<compile_context>
chip_gen: v7x
topology: tpu7x:2x2x1
jax: 0.10.0
libtpu: 0.0.40
codegen_flags: <defaults>
</compile_context>

<pallas_src>
import math

import jax
import jax.numpy as jnp
from jax.experimental import pallas as pl
from jax.experimental.pallas import tpu as pltpu


CFG = dict(enc_in=4, dec_in=4, c_out=4, d_model=32, n_heads=4, d_ff=64,
           e_layers=2, d_layers=1, seq_len=16, label_len=8, pred_len=8,
           n_time_feats=4)   # freq='h' -> 4 time features

LANES = 128


# ---------------------- math used INSIDE the fused kernel --------------------

def _erf(x):
    # f32-accurate erf (Abramowitz & Stegun 7.1.26, |err| ~ 1.5e-7); the
    # rational term uses the EUP reciprocal (approx) per the perf review, so
    # GELU matches torch's exact-erf form to ~1e-6 (eval tolerance).
    a1, a2, a3, a4, a5 = (0.254829592, -0.284496736, 1.421413741,
                          -1.453152027, 1.061405429)
    pp = 0.3275911
    ax = jnp.abs(x)
    t = pl.reciprocal(1.0 + pp * ax, approx=True)
    poly = ((((a5 * t + a4) * t + a3) * t + a2) * t + a1) * t
    y = 1.0 - poly * jnp.exp(-(ax * ax))
    return jnp.where(x >= 0, y, -y)


def _gelu(x):
    return 0.5 * x * (1.0 + _erf(x * (1.0 / math.sqrt(2.0))))


def _layernorm(x, g, b):
    mu = jnp.mean(x, axis=-1, keepdims=True)
    xc = x - mu
    var = jnp.mean(xc * xc, axis=-1, keepdims=True)
    return xc * jax.lax.rsqrt(var + 1e-5) * g + b


def _softmax(s):
    m = jnp.max(s, axis=-1, keepdims=True)
    p = jnp.exp(s - m)
    return p * pl.reciprocal(jnp.sum(p, axis=-1, keepdims=True), approx=True)


def _block_bias(B, Lq, Lk, causal):
    """Additive attention bias (0 inside a batch block, -1e30 outside).

    Lets all batches share one scores matmul per head: cross-batch entries get
    -1e30 and underflow to exactly 0 after the max-subtracted exp, so the
    softmax / P@V results are identical to per-batch attention.  `causal` adds
    the decoder triangular mask inside each block. Built once, reused.
    """
    Rq, Rk = B * Lq, B * Lk
    r = jax.lax.broadcasted_iota(jnp.int32, (Rq, Rk), 0)
    c = jax.lax.broadcasted_iota(jnp.int32, (Rq, Rk), 1)
    ok = None
    for b in range(B):
        blk = ((r >= b * Lq) & (r < (b + 1) * Lq) &
               (c >= b * Lk) & (c < (b + 1) * Lk))
        if causal:
            blk = blk & ((c - b * Lk) <= (r - b * Lq))
        ok = blk if ok is None else (ok | blk)
    return jnp.where(ok, 0.0, -1e30)


def _attn(q, k, v, Wo, bo, H, bias):
    """Multi-head attention + output projection, all batches merged.

    q: (Rq, D), k/v: (Rk, D), bias: (Rq, Rk) additive block/causal mask.
    Per head: one scores dot + one P@V dot; heads are lane-concatenated and
    projected with a single (Rq,D)x(D,D) Wo matmul (2*H + 1 MXU pushes total).
    """
    D = q.shape[-1]
    Dh = D // H
    scale = 1.0 / math.sqrt(Dh)
    ctx = []
    for h in range(H):
        qh = q[:, h * Dh:(h + 1) * Dh]
        kh = k[:, h * Dh:(h + 1) * Dh]
        vh = v[:, h * Dh:(h + 1) * Dh]
        s = jax.lax.dot_general(qh, kh, (((1,), (1,)), ((), ())),
                                preferred_element_type=jnp.float32) * scale
        p = _softmax(s + bias)
        ctx.append(jnp.dot(p, vh, preferred_element_type=jnp.float32))
    o = jnp.concatenate(ctx, axis=-1)                       # (Rq, D) lane concat
    return jnp.dot(o, Wo, preferred_element_type=jnp.float32) + bo


# ------------------------------ fused kernel ---------------------------------

def make_kernel(cfg, layout):
    D = cfg['d_model']
    H = cfg['n_heads']
    L = cfg['seq_len']
    DL = cfg['label_len'] + cfg['pred_len']

    def kernel(emb_enc_ref, pe_enc_ref, emb_dec_ref, pe_dec_ref, slab_ref,
               out_ref):
        def getp(name):
            off, r, c = layout[name]
            return slab_ref[off:off + r, 0:c]

        B = pe_enc_ref.shape[0] // L

        # Additive masks, built once and reused across layers / heads.
        bias_enc = _block_bias(B, L, L, causal=False)     # encoder self-attn
        bias_dec = _block_bias(B, DL, DL, causal=True)    # decoder self-attn
        bias_cross = _block_bias(B, DL, L, causal=False)  # decoder cross-attn

        # Embeddings: one fused matmul per stream ([im2col|marks|1] @ stacked W)
        # + precomputed batched positional encoding.  dropout == identity.
        x_e = jnp.dot(emb_enc_ref[...], getp('enc_emb_W'),
                      preferred_element_type=jnp.float32) + pe_enc_ref[...]
        x_d = jnp.dot(emb_dec_ref[...], getp('dec_emb_W'),
                      preferred_element_type=jnp.float32) + pe_dec_ref[...]

        # -------------------------------- encoder ----------------------------
        for li in range(cfg['e_layers']):
            pre = f'enc{li}.'
            qkv = jnp.dot(x_e, getp(pre + 'Wqkv'),
                          preferred_element_type=jnp.float32) + getp(pre + 'bqkv')
            a = _attn(qkv[:, :D], qkv[:, D:2 * D], qkv[:, 2 * D:3 * D],
                      getp(pre + 'Wo'), getp(pre + 'bo'), H, bias_enc)
            x_e = _layernorm(x_e + a, getp(pre + 'n1_g'), getp(pre + 'n1_b'))
            y = _gelu(jnp.dot(x_e, getp(pre + 'W1'),
                              preferred_element_type=jnp.float32) + getp(pre + 'b1'))
            y = jnp.dot(y, getp(pre + 'W2'),
                        preferred_element_type=jnp.float32) + getp(pre + 'b2')
            x_e = _layernorm(x_e + y, getp(pre + 'n2_g'), getp(pre + 'n2_b'))
        enc_out = _layernorm(x_e, getp('enc_norm_g'), getp('enc_norm_b'))

        # -------------------------------- decoder ----------------------------
        for li in range(cfg['d_layers']):
            pre = f'dec{li}.'
            qkv = jnp.dot(x_d, getp(pre + 'Wqkv'),
                          preferred_element_type=jnp.float32) + getp(pre + 'bqkv')
            a = _attn(qkv[:, :D], qkv[:, D:2 * D], qkv[:, 2 * D:3 * D],
                      getp(pre + 'Wo'), getp(pre + 'bo'), H, bias_dec)
            x_d = _layernorm(x_d + a, getp(pre + 'n1_g'), getp(pre + 'n1_b'))

            q = jnp.dot(x_d, getp(pre + 'Wq'),
                        preferred_element_type=jnp.float32) + getp(pre + 'bq')
            kv = jnp.dot(enc_out, getp(pre + 'Wkv'),
                         preferred_element_type=jnp.float32) + getp(pre + 'bkv')
            a = _attn(q, kv[:, :D], kv[:, D:2 * D],
                      getp(pre + 'cWo'), getp(pre + 'cbo'), H, bias_cross)
            x_d = _layernorm(x_d + a, getp(pre + 'n2_g'), getp(pre + 'n2_b'))

            y = _gelu(jnp.dot(x_d, getp(pre + 'W1'),
                              preferred_element_type=jnp.float32) + getp(pre + 'b1'))
            y = jnp.dot(y, getp(pre + 'W2'),
                        preferred_element_type=jnp.float32) + getp(pre + 'b2')
            x_d = _layernorm(x_d + y, getp(pre + 'n3_g'), getp(pre + 'n3_b'))
        x_d = _layernorm(x_d, getp('dec_norm_g'), getp('dec_norm_b'))

        # Projection into a 128-lane-padded output (lane-dense, unmasked store).
        out = jnp.dot(x_d, getp('proj_W'),
                      preferred_element_type=jnp.float32) + getp('proj_b')
        out_ref[...] = out.astype(out_ref.dtype)

    return kernel


# ------------------------------ cost estimate --------------------------------

def _cost_estimate(cfg, B, slab_rows):
    d, dff = cfg['d_model'], cfg['d_ff']
    L = cfg['seq_len']
    DL = cfg['label_len'] + cfg['pred_len']
    F = cfg['n_time_feats']
    Re, Rd = B * L, B * DL
    we = 3 * cfg['enc_in'] + F + 1
    wd = 3 * cfg['dec_in'] + F + 1
    mm = lambda m, k, n: 2 * m * k * n
    fl = mm(Re, we, d) + mm(Rd, wd, d)
    for _ in range(cfg['e_layers']):
        fl += mm(Re, d, 3 * d) + mm(Re, d, Re) + mm(Re, Re, d) + mm(Re, d, d)
        fl += mm(Re, d, dff) + mm(Re, dff, d)
    for _ in range(cfg['d_layers']):
        fl += mm(Rd, d, 3 * d) + mm(Rd, d, Rd) + mm(Rd, Rd, d) + mm(Rd, d, d)
        fl += (mm(Rd, d, d) + mm(Re, d, 2 * d) + mm(Rd, d, Re)
               + mm(Rd, Re, d) + mm(Rd, d, d))
        fl += mm(Rd, d, dff) + mm(Rd, dff, d)
    fl += mm(Rd, d, LANES)
    tr = (cfg['e_layers'] * (Re * Re + Re * dff)
          + cfg['d_layers'] * (Rd * Rd + Rd * Re + Rd * dff))
    ba = 4 * (slab_rows * LANES + Re * we + Rd * wd + Re * d + Rd * d
              + Rd * LANES)
    return pl.CostEstimate(flops=fl, transcendentals=tr, bytes_accessed=ba)


# -------------------------------- wrapper -------------------------------------

def make_forward(cfg, layout):
    kernel = make_kernel(cfg, layout)
    L = cfg['seq_len']
    DL = cfg['label_len'] + cfg['pred_len']
    pred = cfg['pred_len']
    c_out = cfg['c_out']
    pe_full = sinusoidal_pe(max(L, DL), cfg['d_model'])     # constant, closed over

    def emb_input(x, mark):
        # Conv1d(k=3, circular pad, no bias) as im2col (column order t*C + c,
        # matching conv weight transpose(w,(2,1,0)).reshape(3C,d)), fused with
        # the time-feature input and a ones column for the temporal bias.
        Bx, Lx, Cx = x.shape
        x = x.astype(jnp.float32)
        xp = jnp.concatenate([x[:, -1:, :], x, x[:, :1, :]], axis=1)  # (B,L+2,C)
        cols = jnp.concatenate([xp[:, k:k + Lx, :] for k in range(3)], axis=-1)
        ones_col = jnp.ones((Bx, Lx, 1), jnp.float32)
        cat = jnp.concatenate([cols, mark.astype(jnp.float32), ones_col],
                              axis=-1)
        return cat.reshape(Bx * Lx, cat.shape[-1])          # (B*L, 3C+F+1)

    @jax.jit
    def forward(slab, x_enc, x_mark_enc, x_dec, x_mark_dec):
        B = x_enc.shape[0]
        emb_enc = emb_input(x_enc, x_mark_enc)
        emb_dec = emb_input(x_dec, x_mark_dec)
        # Batched positional encodings built on the XLA side (no in-kernel
        # sublane concats).
        pe_enc = jnp.tile(pe_full[:L, :], (B, 1))
        pe_dec = jnp.tile(pe_full[:DL, :], (B, 1))

        vmem = lambda: pl.BlockSpec(memory_space=pltpu.MemorySpace.VMEM)
        out_pad = pl.pallas_call(
            kernel,
            out_shape=jax.ShapeDtypeStruct((B * DL, LANES), jnp.float32),
            in_specs=[vmem() for _ in range(5)],
            out_specs=vmem(),
            cost_estimate=_cost_estimate(cfg, B, slab.shape[0]),
        )(emb_enc, pe_enc, emb_dec, pe_dec, slab)
        # TODO(synk): on v7x the two batches could be sharded across the 2
        # TensorCores with grid=(B,); skipped here since it only adds pipeline
        # overhead on single-TC v5e/v6e.
        out = out_pad[:, :c_out].reshape(B, DL, c_out)
        return out[:, -pred:, :]

    return forward


# ------------------------------ parameter init -------------------------------

def sinusoidal_pe(max_len, d_model):
    pos = jnp.arange(max_len, dtype=jnp.float32)[:, None]
    div = jnp.exp(jnp.arange(0, d_model, 2, dtype=jnp.float32)
                  * -(math.log(10000.0) / d_model))
    pe = jnp.zeros((max_len, d_model), jnp.float32)
    pe = pe.at[:, 0::2].set(jnp.sin(pos * div))
    pe = pe.at[:, 1::2].set(jnp.cos(pos * div))
    return pe


def init_packed_params(key, cfg):
    """Build every weight in its final fused 2-D f32 layout and pack all of
    them into ONE 128-lane slab (8-row-aligned entries) -> one DMA per call."""
    d, dff = cfg['d_model'], cfg['d_ff']
    F = cfg['n_time_feats']
    ks = iter(jax.random.split(key, 256))

    def W(shape):
        return jax.random.normal(next(ks), shape, jnp.float32) * 0.02

    def zeros(shape):
        return jnp.zeros(shape, jnp.float32)

    def ones(shape):
        return jnp.ones(shape, jnp.float32)

    entries = []

    def add(name, arr):
        entries.append((name, arr))

    def add_embed(prefix, c_in):
        # [conv_W (3C,d) ; temporal_W (F,d) ; temporal_b (1,d)] stacked so the
        # kernel does one matmul against [im2col | marks | 1].
        add(prefix + 'emb_W',
            jnp.concatenate([W((3 * c_in, d)), W((F, d)), zeros((1, d))],
                            axis=0))

    add_embed('enc_', cfg['enc_in'])
    add_embed('dec_', cfg['dec_in'])

    for li in range(cfg['e_layers']):
        pre = f'enc{li}.'
        add(pre + 'Wqkv', W((d, 3 * d))); add(pre + 'bqkv', zeros((1, 3 * d)))
        add(pre + 'Wo', W((d, d)));       add(pre + 'bo', zeros((1, d)))
        add(pre + 'W1', W((d, dff)));     add(pre + 'b1', zeros((1, dff)))
        add(pre + 'W2', W((dff, d)));     add(pre + 'b2', zeros((1, d)))
        add(pre + 'n1_g', ones((1, d)));  add(pre + 'n1_b', zeros((1, d)))
        add(pre + 'n2_g', ones((1, d)));  add(pre + 'n2_b', zeros((1, d)))
    add('enc_norm_g', ones((1, d))); add('enc_norm_b', zeros((1, d)))

    for li in range(cfg['d_layers']):
        pre = f'dec{li}.'
        add(pre + 'Wqkv', W((d, 3 * d))); add(pre + 'bqkv', zeros((1, 3 * d)))
        add(pre + 'Wo', W((d, d)));       add(pre + 'bo', zeros((1, d)))
        add(pre + 'Wq', W((d, d)));       add(pre + 'bq', zeros((1, d)))
        add(pre + 'Wkv', W((d, 2 * d)));  add(pre + 'bkv', zeros((1, 2 * d)))
        add(pre + 'cWo', W((d, d)));      add(pre + 'cbo', zeros((1, d)))
        add(pre + 'W1', W((d, dff)));     add(pre + 'b1', zeros((1, dff)))
        add(pre + 'W2', W((dff, d)));     add(pre + 'b2', zeros((1, d)))
        add(pre + 'n1_g', ones((1, d)));  add(pre + 'n1_b', zeros((1, d)))
        add(pre + 'n2_g', ones((1, d)));  add(pre + 'n2_b', zeros((1, d)))
        add(pre + 'n3_g', ones((1, d)));  add(pre + 'n3_b', zeros((1, d)))
    add('dec_norm_g', ones((1, d))); add('dec_norm_b', zeros((1, d)))

    # Projection zero-padded to 128 lanes -> lane-dense final store.
    proj = jnp.zeros((d, LANES), jnp.float32).at[:, :cfg['c_out']].set(
        W((d, cfg['c_out'])))
    add('proj_W', proj)
    add('proj_b', zeros((1, LANES)))

    # ------- pack into one slab (each entry's row offset aligned to 8) -------
    layout = {}
    off = 0
    for name, arr in entries:
        r, c = arr.shape
        assert c <= LANES
        layout[name] = (off, r, c)
        off += -(-r // 8) * 8
    slab = jnp.zeros((off, LANES), jnp.float32)
    for name, arr in entries:
        o, r, c = layout[name]
        slab = slab.at[o:o + r, :c].set(arr)
    return slab, layout


# ----------------------------------- main ------------------------------------

if __name__ == "__main__":
    cfg = CFG
    key = jax.random.PRNGKey(0)
    kp, k1, k2, k3, k4 = jax.random.split(key, 5)

    slab, layout = init_packed_params(kp, cfg)
    forward = make_forward(cfg, layout)

    B = 2
    dec_len = cfg['label_len'] + cfg['pred_len']
    x_enc = jax.random.normal(k1, (B, cfg['seq_len'], cfg['enc_in']), jnp.float32)
    x_mark_enc = jax.random.normal(k2, (B, cfg['seq_len'], cfg['n_time_feats']),
                                   jnp.float32)
    x_dec = jax.random.normal(k3, (B, dec_len, cfg['dec_in']), jnp.float32)
    x_mark_dec = jax.random.normal(k4, (B, dec_len, cfg['n_time_feats']),
                                   jnp.float32)

    out = forward(slab, x_enc, x_mark_enc, x_dec, x_mark_dec)
    jax.block_until_ready(out)
    assert out.shape == (B, cfg['pred_len'], cfg['c_out']), out.shape
    assert bool(jnp.all(jnp.isfinite(out)))
    print("KERNEL_OK")
</pallas_src>

<mosaic_0001>
module attributes {stable_mosaic.version = 11 : i64} {
  func.func @kernel(%arg0: memref<32x17xf32, #tpu.memory_space<vmem>>, %arg1: memref<32x32xf32, #tpu.memory_space<vmem>>, %arg2: memref<32x17xf32, #tpu.memory_space<vmem>>, %arg3: memref<32x32xf32, #tpu.memory_space<vmem>>, %arg4: memref<928x128xf32, #tpu.memory_space<vmem>>, %arg5: memref<32x128xf32, #tpu.memory_space<vmem>>) attributes {dimension_semantics = [], scalar_prefetch = 0 : i64, scratch_operands = 0 : i64, tpu.core_type = #tpu.core_type<tc>} {
    %0 = tpu.iota {dimensions = array<i32: 0>} : vector<32x32xi32>
    %1 = tpu.iota {dimensions = array<i32: 1>} : vector<32x32xi32>
    %c0_i32 = arith.constant 0 : i32
    %2 = vector.broadcast %c0_i32 : i32 to vector<32x32xi32>
    %3 = arith.cmpi sge, %0, %2 : vector<32x32xi32>
    %c16_i32 = arith.constant 16 : i32
    %4 = vector.broadcast %c16_i32 : i32 to vector<32x32xi32>
    %5 = arith.cmpi slt, %0, %4 : vector<32x32xi32>
    %6 = arith.andi %3, %5 : vector<32x32xi1>
    %c0_i32_0 = arith.constant 0 : i32
    %7 = vector.broadcast %c0_i32_0 : i32 to vector<32x32xi32>
    %8 = arith.cmpi sge, %1, %7 : vector<32x32xi32>
    %9 = arith.andi %6, %8 : vector<32x32xi1>
    %c16_i32_1 = arith.constant 16 : i32
    %10 = vector.broadcast %c16_i32_1 : i32 to vector<32x32xi32>
    %11 = arith.cmpi slt, %1, %10 : vector<32x32xi32>
    %12 = arith.andi %9, %11 : vector<32x32xi1>
    %c16_i32_2 = arith.constant 16 : i32
    %13 = vector.broadcast %c16_i32_2 : i32 to vector<32x32xi32>
    %14 = arith.cmpi sge, %0, %13 : vector<32x32xi32>
    %c32_i32 = arith.constant 32 : i32
    %15 = vector.broadcast %c32_i32 : i32 to vector<32x32xi32>
    %16 = arith.cmpi slt, %0, %15 : vector<32x32xi32>
    %17 = arith.andi %14, %16 : vector<32x32xi1>
    %c16_i32_3 = arith.constant 16 : i32
    %18 = vector.broadcast %c16_i32_3 : i32 to vector<32x32xi32>
    %19 = arith.cmpi sge, %1, %18 : vector<32x32xi32>
    %20 = arith.andi %17, %19 : vector<32x32xi1>
    %c32_i32_4 = arith.constant 32 : i32
    %21 = vector.broadcast %c32_i32_4 : i32 to vector<32x32xi32>
    %22 = arith.cmpi slt, %1, %21 : vector<32x32xi32>
    %23 = arith.andi %20, %22 : vector<32x32xi1>
    %24 = arith.ori %12, %23 : vector<32x32xi1>
    %cst = arith.constant 0.000000e+00 : f32
    %cst_5 = arith.constant -1.000000e+30 : f32
    %25 = vector.broadcast %cst : f32 to vector<32x32xf32>
    %26 = vector.broadcast %cst_5 : f32 to vector<32x32xf32>
    %27 = arith.select %24, %25, %26 : vector<32x32xi1>, vector<32x32xf32>
    %28 = tpu.iota {dimensions = array<i32: 0>} : vector<32x32xi32>
    %29 = tpu.iota {dimensions = array<i32: 1>} : vector<32x32xi32>
    %c0_i32_6 = arith.constant 0 : i32
    %30 = vector.broadcast %c0_i32_6 : i32 to vector<32x32xi32>
    %31 = arith.cmpi sge, %28, %30 : vector<32x32xi32>
    %c16_i32_7 = arith.constant 16 : i32
    %32 = vector.broadcast %c16_i32_7 : i32 to vector<32x32xi32>
    %33 = arith.cmpi slt, %28, %32 : vector<32x32xi32>
    %34 = arith.andi %31, %33 : vector<32x32xi1>
    %c0_i32_8 = arith.constant 0 : i32
    %35 = vector.broadcast %c0_i32_8 : i32 to vector<32x32xi32>
    %36 = arith.cmpi sge, %29, %35 : vector<32x32xi32>
    %37 = arith.andi %34, %36 : vector<32x32xi1>
    %c16_i32_9 = arith.constant 16 : i32
    %38 = vector.broadcast %c16_i32_9 : i32 to vector<32x32xi32>
    %39 = arith.cmpi slt, %29, %38 : vector<32x32xi32>
    %40 = arith.andi %37, %39 : vector<32x32xi1>
    %c0_i32_10 = arith.constant 0 : i32
    %41 = vector.broadcast %c0_i32_10 : i32 to vector<32x32xi32>
    %42 = arith.subi %29, %41 : vector<32x32xi32>
    %c0_i32_11 = arith.constant 0 : i32
    %43 = vector.broadcast %c0_i32_11 : i32 to vector<32x32xi32>
    %44 = arith.subi %28, %43 : vector<32x32xi32>
    %45 = arith.cmpi sle, %42, %44 : vector<32x32xi32>
    %46 = arith.andi %40, %45 : vector<32x32xi1>
    %c16_i32_12 = arith.constant 16 : i32
    %47 = vector.broadcast %c16_i32_12 : i32 to vector<32x32xi32>
    %48 = arith.cmpi sge, %28, %47 : vector<32x32xi32>
    %c32_i32_13 = arith.constant 32 : i32
    %49 = vector.broadcast %c32_i32_13 : i32 to vector<32x32xi32>
    %50 = arith.cmpi slt, %28, %49 : vector<32x32xi32>
    %51 = arith.andi %48, %50 : vector<32x32xi1>
    %c16_i32_14 = arith.constant 16 : i32
    %52 = vector.broadcast %c16_i32_14 : i32 to vector<32x32xi32>
    %53 = arith.cmpi sge, %29, %52 : vector<32x32xi32>
    %54 = arith.andi %51, %53 : vector<32x32xi1>
    %c32_i32_15 = arith.constant 32 : i32
    %55 = vector.broadcast %c32_i32_15 : i32 to vector<32x32xi32>
    %56 = arith.cmpi slt, %29, %55 : vector<32x32xi32>
    %57 = arith.andi %54, %56 : vector<32x32xi1>
    %c16_i32_16 = arith.constant 16 : i32
    %58 = vector.broadcast %c16_i32_16 : i32 to vector<32x32xi32>
    %59 = arith.subi %29, %58 : vector<32x32xi32>
    %c16_i32_17 = arith.constant 16 : i32
    %60 = vector.broadcast %c16_i32_17 : i32 to vector<32x32xi32>
    %61 = arith.subi %28, %60 : vector<32x32xi32>
    %62 = arith.cmpi sle, %59, %61 : vector<32x32xi32>
    %63 = arith.andi %57, %62 : vector<32x32xi1>
    %64 = arith.ori %46, %63 : vector<32x32xi1>
    %cst_18 = arith.constant 0.000000e+00 : f32
    %cst_19 = arith.constant -1.000000e+30 : f32
    %65 = vector.broadcast %cst_18 : f32 to vector<32x32xf32>
    %66 = vector.broadcast %cst_19 : f32 to vector<32x32xf32>
    %67 = arith.select %64, %65, %66 : vector<32x32xi1>, vector<32x32xf32>
    %68 = tpu.iota {dimensions = array<i32: 0>} : vector<32x32xi32>
    %69 = tpu.iota {dimensions = array<i32: 1>} : vector<32x32xi32>
    %c0_i32_20 = arith.constant 0 : i32
    %70 = vector.broadcast %c0_i32_20 : i32 to vector<32x32xi32>
    %71 = arith.cmpi sge, %68, %70 : vector<32x32xi32>
    %c16_i32_21 = arith.constant 16 : i32
    %72 = vector.broadcast %c16_i32_21 : i32 to vector<32x32xi32>
    %73 = arith.cmpi slt, %68, %72 : vector<32x32xi32>
    %74 = arith.andi %71, %73 : vector<32x32xi1>
    %c0_i32_22 = arith.constant 0 : i32
    %75 = vector.broadcast %c0_i32_22 : i32 to vector<32x32xi32>
    %76 = arith.cmpi sge, %69, %75 : vector<32x32xi32>
    %77 = arith.andi %74, %76 : vector<32x32xi1>
    %c16_i32_23 = arith.constant 16 : i32
    %78 = vector.broadcast %c16_i32_23 : i32 to vector<32x32xi32>
    %79 = arith.cmpi slt, %69, %78 : vector<32x32xi32>
    %80 = arith.andi %77, %79 : vector<32x32xi1>
    %c16_i32_24 = arith.constant 16 : i32
    %81 = vector.broadcast %c16_i32_24 : i32 to vector<32x32xi32>
    %82 = arith.cmpi sge, %68, %81 : vector<32x32xi32>
    %c32_i32_25 = arith.constant 32 : i32
    %83 = vector.broadcast %c32_i32_25 : i32 to vector<32x32xi32>
    %84 = arith.cmpi slt, %68, %83 : vector<32x32xi32>
    %85 = arith.andi %82, %84 : vector<32x32xi1>
    %c16_i32_26 = arith.constant 16 : i32
    %86 = vector.broadcast %c16_i32_26 : i32 to vector<32x32xi32>
    %87 = arith.cmpi sge, %69, %86 : vector<32x32xi32>
    %88 = arith.andi %85, %87 : vector<32x32xi1>
    %c32_i32_27 = arith.constant 32 : i32
    %89 = vector.broadcast %c32_i32_27 : i32 to vector<32x32xi32>
    %90 = arith.cmpi slt, %69, %89 : vector<32x32xi32>
    %91 = arith.andi %88, %90 : vector<32x32xi1>
    %92 = arith.ori %80, %91 : vector<32x32xi1>
    %cst_28 = arith.constant 0.000000e+00 : f32
    %cst_29 = arith.constant -1.000000e+30 : f32
    %93 = vector.broadcast %cst_28 : f32 to vector<32x32xf32>
    %94 = vector.broadcast %cst_29 : f32 to vector<32x32xf32>
    %95 = arith.select %92, %93, %94 : vector<32x32xi1>, vector<32x32xf32>
    %c0 = arith.constant 0 : index
    %c0_30 = arith.constant 0 : index
    %96 = vector.load %arg0[%c0, %c0_30] : memref<32x17xf32, #tpu.memory_space<vmem>>, vector<32x17xf32>
    %c0_31 = arith.constant 0 : index
    %c0_32 = arith.constant 0 : index
    %97 = vector.load %arg4[%c0_31, %c0_32] : memref<928x128xf32, #tpu.memory_space<vmem>>, vector<17x32xf32>
    %cst_33 = arith.constant dense<0.000000e+00> : vector<32x32xf32>
    %98 = tpu.matmul %96, %97, %cst_33 {dimension_numbers = #tpu.dot_dimension_numbers<[1], [0], [0], [1], [0, 0, 1, 1], [], []>} : vector<32x17xf32>, vector<17x32xf32>, vector<32x32xf32> -> vector<32x32xf32>
    %c0_34 = arith.constant 0 : index
    %c0_35 = arith.constant 0 : index
    %99 = vector.load %arg1[%c0_34, %c0_35] : memref<32x32xf32, #tpu.memory_space<vmem>>, vector<32x32xf32>
    %100 = arith.addf %98, %99 : vector<32x32xf32>
    %c0_36 = arith.constant 0 : index
    %c0_37 = arith.constant 0 : index
    %101 = vector.load %arg2[%c0_36, %c0_37] : memref<32x17xf32, #tpu.memory_space<vmem>>, vector<32x17xf32>
    %c24 = arith.constant 24 : index
    %c0_38 = arith.constant 0 : index
    %102 = vector.load %arg4[%c24, %c0_38] : memref<928x128xf32, #tpu.memory_space<vmem>>, vector<17x32xf32>
    %cst_39 = arith.constant dense<0.000000e+00> : vector<32x32xf32>
    %103 = tpu.matmul %101, %102, %cst_39 {dimension_numbers = #tpu.dot_dimension_numbers<[1], [0], [0], [1], [0, 0, 1, 1], [], []>} : vector<32x17xf32>, vector<17x32xf32>, vector<32x32xf32> -> vector<32x32xf32>
    %c0_40 = arith.constant 0 : index
    %c0_41 = arith.constant 0 : index
    %104 = vector.load %arg3[%c0_40, %c0_41] : memref<32x32xf32, #tpu.memory_space<vmem>>, vector<32x32xf32>
    %105 = arith.addf %103, %104 : vector<32x32xf32>
    %c48 = arith.constant 48 : index
    %c0_42 = arith.constant 0 : index
    %106 = vector.load %arg4[%c48, %c0_42] : memref<928x128xf32, #tpu.memory_space<vmem>>, vector<32x96xf32>
    %cst_43 = arith.constant dense<0.000000e+00> : vector<32x96xf32>
    %107 = tpu.matmul %100, %106, %cst_43 {dimension_numbers = #tpu.dot_dimension_numbers<[1], [0], [0], [1], [0, 0, 1, 1], [], []>} : vector<32x32xf32>, vector<32x96xf32>, vector<32x96xf32> -> vector<32x96xf32>
    %c80 = arith.constant 80 : index
    %c0_44 = arith.constant 0 : index
    %108 = vector.load %arg4[%c80, %c0_44] : memref<928x128xf32, #tpu.memory_space<vmem>>, vector<1x96xf32>
    %109 = vector.broadcast %108 : vector<1x96xf32> to vector<32x96xf32>
    %110 = arith.addf %107, %109 : vector<32x96xf32>
    %111 = vector.extract_strided_slice %110 {offsets = [0, 0], sizes = [32, 32], strides = [1, 1]} : vector<32x96xf32> to vector<32x32xf32>
    %112 = vector.extract_strided_slice %110 {offsets = [0, 32], sizes = [32, 32], strides = [1, 1]} : vector<32x96xf32> to vector<32x32xf32>
    %113 = vector.extract_strided_slice %110 {offsets = [0, 64], sizes = [32, 32], strides = [1, 1]} : vector<32x96xf32> to vector<32x32xf32>
    %c88 = arith.constant 88 : index
    %c0_45 = arith.constant 0 : index
    %114 = vector.load %arg4[%c88, %c0_45] : memref<928x128xf32, #tpu.memory_space<vmem>>, vector<32x32xf32>
    %c120 = arith.constant 120 : index
    %c0_46 = arith.constant 0 : index
    %115 = vector.load %arg4[%c120, %c0_46] : memref<928x128xf32, #tpu.memory_space<vmem>>, vector<1x32xf32>
    %116 = vector.extract_strided_slice %111 {offsets = [0, 0], sizes = [32, 8], strides = [1, 1]} : vector<32x32xf32> to vector<32x8xf32>
    %117 = vector.extract_strided_slice %112 {offsets = [0, 0], sizes = [32, 8], strides = [1, 1]} : vector<32x32xf32> to vector<32x8xf32>
    %118 = vector.extract_strided_slice %113 {offsets = [0, 0], sizes = [32, 8], strides = [1, 1]} : vector<32x32xf32> to vector<32x8xf32>
    %cst_47 = arith.constant dense<0.000000e+00> : vector<32x32xf32>
    %119 = tpu.matmul %116, %117, %cst_47 {dimension_numbers = #tpu.dot_dimension_numbers<[1], [1], [0], [0], [0, 0, 1, 0], [], []>} : vector<32x8xf32>, vector<32x8xf32>, vector<32x32xf32> -> vector<32x32xf32>
    %cst_48 = arith.constant 0.353553385 : f32
    %120 = vector.broadcast %cst_48 : f32 to vector<32x32xf32>
    %121 = arith.mulf %119, %120 : vector<32x32xf32>
    %122 = arith.addf %121, %27 : vector<32x32xf32>
    %cst_49 = arith.constant dense<0xFF800000> : vector<32xf32>
    %123 = vector.multi_reduction <maximumf>, %122, %cst_49 [1] : vector<32x32xf32> to vector<32xf32>
    %124 = vector.shape_cast %123 : vector<32xf32> to vector<32x1xf32>
    %125 = vector.broadcast %124 : vector<32x1xf32> to vector<32x32xf32>
    %126 = arith.subf %122, %125 : vector<32x32xf32>
    %127 = math.exp %126 : vector<32x32xf32>
    %cst_50 = arith.constant dense<0.000000e+00> : vector<32xf32>
    %128 = vector.multi_reduction <add>, %127, %cst_50 [1] : vector<32x32xf32> to vector<32xf32>
    %129 = vector.shape_cast %128 : vector<32xf32> to vector<32x1xf32>
    %130 = tpu.reciprocal %129 {approx = true} : vector<32x1xf32> -> vector<32x1xf32>
    %131 = vector.broadcast %130 : vector<32x1xf32> to vector<32x32xf32>
    %132 = arith.mulf %127, %131 : vector<32x32xf32>
    %cst_51 = arith.constant dense<0.000000e+00> : vector<32x8xf32>
    %133 = tpu.matmul %132, %118, %cst_51 {dimension_numbers = #tpu.dot_dimension_numbers<[1], [0], [0], [1], [0, 0, 1, 1], [], []>} : vector<32x32xf32>, vector<32x8xf32>, vector<32x8xf32> -> vector<32x8xf32>
    %134 = vector.extract_strided_slice %111 {offsets = [0, 8], sizes = [32, 8], strides = [1, 1]} : vector<32x32xf32> to vector<32x8xf32>
    %135 = vector.extract_strided_slice %112 {offsets = [0, 8], sizes = [32, 8], strides = [1, 1]} : vector<32x32xf32> to vector<32x8xf32>
    %136 = vector.extract_strided_slice %113 {offsets = [0, 8], sizes = [32, 8], strides = [1, 1]} : vector<32x32xf32> to vector<32x8xf32>
    %cst_52 = arith.constant dense<0.000000e+00> : vector<32x32xf32>
    %137 = tpu.matmul %134, %135, %cst_52 {dimension_numbers = #tpu.dot_dimension_numbers<[1], [1], [0], [0], [0, 0, 1, 0], [], []>} : vector<32x8xf32>, vector<32x8xf32>, vector<32x32xf32> -> vector<32x32xf32>
    %cst_53 = arith.constant 0.353553385 : f32
    %138 = vector.broadcast %cst_53 : f32 to vector<32x32xf32>
    %139 = arith.mulf %137, %138 : vector<32x32xf32>
    %140 = arith.addf %139, %27 : vector<32x32xf32>
    %cst_54 = arith.constant dense<0xFF800000> : vector<32xf32>
    %141 = vector.multi_reduction <maximumf>, %140, %cst_54 [1] : vector<32x32xf32> to vector<32xf32>
    %142 = vector.shape_cast %141 : vector<32xf32> to vector<32x1xf32>
    %143 = vector.broadcast %142 : vector<32x1xf32> to vector<32x32xf32>
    %144 = arith.subf %140, %143 : vector<32x32xf32>
    %145 = math.exp %144 : vector<32x32xf32>
    %cst_55 = arith.constant dense<0.000000e+00> : vector<32xf32>
    %146 = vector.multi_reduction <add>, %145, %cst_55 [1] : vector<32x32xf32> to vector<32xf32>
    %147 = vector.shape_cast %146 : vector<32xf32> to vector<32x1xf32>
    %148 = tpu.reciprocal %147 {approx = true} : vector<32x1xf32> -> vector<32x1xf32>
    %149 = vector.broadcast %148 : vector<32x1xf32> to vector<32x32xf32>
    %150 = arith.mulf %145, %149 : vector<32x32xf32>
    %cst_56 = arith.constant dense<0.000000e+00> : vector<32x8xf32>
    %151 = tpu.matmul %150, %136, %cst_56 {dimension_numbers = #tpu.dot_dimension_numbers<[1], [0], [0], [1], [0, 0, 1, 1], [], []>} : vector<32x32xf32>, vector<32x8xf32>, vector<32x8xf32> -> vector<32x8xf32>
    %152 = vector.extract_strided_slice %111 {offsets = [0, 16], sizes = [32, 8], strides = [1, 1]} : vector<32x32xf32> to vector<32x8xf32>
    %153 = vector.extract_strided_slice %112 {offsets = [0, 16], sizes = [32, 8], strides = [1, 1]} : vector<32x32xf32> to vector<32x8xf32>
    %154 = vector.extract_strided_slice %113 {offsets = [0, 16], sizes = [32, 8], strides = [1, 1]} : vector<32x32xf32> to vector<32x8xf32>
    %cst_57 = arith.constant dense<0.000000e+00> : vector<32x32xf32>
    %155 = tpu.matmul %152, %153, %cst_57 {dimension_numbers = #tpu.dot_dimension_numbers<[1], [1], [0], [0], [0, 0, 1, 0], [], []>} : vector<32x8xf32>, vector<32x8xf32>, vector<32x32xf32> -> vector<32x32xf32>
    %cst_58 = arith.constant 0.353553385 : f32
    %156 = vector.broadcast %cst_58 : f32 to vector<32x32xf32>
    %157 = arith.mulf %155, %156 : vector<32x32xf32>
    %158 = arith.addf %157, %27 : vector<32x32xf32>
    %cst_59 = arith.constant dense<0xFF800000> : vector<32xf32>
    %159 = vector.multi_reduction <maximumf>, %158, %cst_59 [1] : vector<32x32xf32> to vector<32xf32>
    %160 = vector.shape_cast %159 : vector<32xf32> to vector<32x1xf32>
    %161 = vector.broadcast %160 : vector<32x1xf32> to vector<32x32xf32>
    %162 = arith.subf %158, %161 : vector<32x32xf32>
    %163 = math.exp %162 : vector<32x32xf32>
    %cst_60 = arith.constant dense<0.000000e+00> : vector<32xf32>
    %164 = vector.multi_reduction <add>, %163, %cst_60 [1] : vector<32x32xf32> to vector<32xf32>
    %165 = vector.shape_cast %164 : vector<32xf32> to vector<32x1xf32>
    %166 = tpu.reciprocal %165 {approx = true} : vector<32x1xf32> -> vector<32x1xf32>
    %167 = vector.broadcast %166 : vector<32x1xf32> to vector<32x32xf32>
    %168 = arith.mulf %163, %167 : vector<32x32xf32>
    %cst_61 = arith.constant dense<0.000000e+00> : vector<32x8xf32>
    %169 = tpu.matmul %168, %154, %cst_61 {dimension_numbers = #tpu.dot_dimension_numbers<[1], [0], [0], [1], [0, 0, 1, 1], [], []>} : vector<32x32xf32>, vector<32x8xf32>, vector<32x8xf32> -> vector<32x8xf32>
    %170 = vector.extract_strided_slice %111 {offsets = [0, 24], sizes = [32, 8], strides = [1, 1]} : vector<32x32xf32> to vector<32x8xf32>
    %171 = vector.extract_strided_slice %112 {offsets = [0, 24], sizes = [32, 8], strides = [1, 1]} : vector<32x32xf32> to vector<32x8xf32>
    %172 = vector.extract_strided_slice %113 {offsets = [0, 24], sizes = [32, 8], strides = [1, 1]} : vector<32x32xf32> to vector<32x8xf32>
    %cst_62 = arith.constant dense<0.000000e+00> : vector<32x32xf32>
    %173 = tpu.matmul %170, %171, %cst_62 {dimension_numbers = #tpu.dot_dimension_numbers<[1], [1], [0], [0], [0, 0, 1, 0], [], []>} : vector<32x8xf32>, vector<32x8xf32>, vector<32x32xf32> -> vector<32x32xf32>
    %cst_63 = arith.constant 0.353553385 : f32
    %174 = vector.broadcast %cst_63 : f32 to vector<32x32xf32>
    %175 = arith.mulf %173, %174 : vector<32x32xf32>
    %176 = arith.addf %175, %27 : vector<32x32xf32>
    %cst_64 = arith.constant dense<0xFF800000> : vector<32xf32>
    %177 = vector.multi_reduction <maximumf>, %176, %cst_64 [1] : vector<32x32xf32> to vector<32xf32>
    %178 = vector.shape_cast %177 : vector<32xf32> to vector<32x1xf32>
    %179 = vector.broadcast %178 : vector<32x1xf32> to vector<32x32xf32>
    %180 = arith.subf %176, %179 : vector<32x32xf32>
    %181 = math.exp %180 : vector<32x32xf32>
    %cst_65 = arith.constant dense<0.000000e+00> : vector<32xf32>
    %182 = vector.multi_reduction <add>, %181, %cst_65 [1] : vector<32x32xf32> to vector<32xf32>
    %183 = vector.shape_cast %182 : vector<32xf32> to vector<32x1xf32>
    %184 = tpu.reciprocal %183 {approx = true} : vector<32x1xf32> -> vector<32x1xf32>
    %185 = vector.broadcast %184 : vector<32x1xf32> to vector<32x32xf32>
    %186 = arith.mulf %181, %185 : vector<32x32xf32>
    %cst_66 = arith.constant dense<0.000000e+00> : vector<32x8xf32>
    %187 = tpu.matmul %186, %172, %cst_66 {dimension_numbers = #tpu.dot_dimension_numbers<[1], [0], [0], [1], [0, 0, 1, 1], [], []>} : vector<32x32xf32>, vector<32x8xf32>, vector<32x8xf32> -> vector<32x8xf32>
    %188 = tpu.concatenate %133, %151, %169, %187 in 1 : vector<32x8xf32>, vector<32x8xf32>, vector<32x8xf32>, vector<32x8xf32> -> vector<32x32xf32>
    %cst_67 = arith.constant dense<0.000000e+00> : vector<32x32xf32>
    %189 = tpu.matmul %188, %114, %cst_67 {dimension_numbers = #tpu.dot_dimension_numbers<[1], [0], [0], [1], [0, 0, 1, 1], [], []>} : vector<32x32xf32>, vector<32x32xf32>, vector<32x32xf32> -> vector<32x32xf32>
    %190 = vector.broadcast %115 : vector<1x32xf32> to vector<32x32xf32>
    %191 = arith.addf %189, %190 : vector<32x32xf32>
    %192 = arith.addf %100, %191 : vector<32x32xf32>
    %c240 = arith.constant 240 : index
    %c0_68 = arith.constant 0 : index
    %193 = vector.load %arg4[%c240, %c0_68] : memref<928x128xf32, #tpu.memory_space<vmem>>, vector<1x32xf32>
    %c248 = arith.constant 248 : index
    %c0_69 = arith.constant 0 : index
    %194 = vector.load %arg4[%c248, %c0_69] : memref<928x128xf32, #tpu.memory_space<vmem>>, vector<1x32xf32>
    %cst_70 = arith.constant dense<0.000000e+00> : vector<32xf32>
    %195 = vector.multi_reduction <add>, %192, %cst_70 [1] : vector<32x32xf32> to vector<32xf32>
    %196 = vector.shape_cast %195 : vector<32xf32> to vector<32x1xf32>
    %cst_71 = arith.constant 3.200000e+01 : f32
    %197 = vector.broadcast %cst_71 : f32 to vector<32x1xf32>
    %198 = arith.divf %196, %197 : vector<32x1xf32>
    %199 = vector.broadcast %198 : vector<32x1xf32> to vector<32x32xf32>
    %200 = arith.subf %192, %199 : vector<32x32xf32>
    %201 = arith.mulf %200, %200 : vector<32x32xf32>
    %cst_72 = arith.constant dense<0.000000e+00> : vector<32xf32>
    %202 = vector.multi_reduction <add>, %201, %cst_72 [1] : vector<32x32xf32> to vector<32xf32>
    %203 = vector.shape_cast %202 : vector<32xf32> to vector<32x1xf32>
    %cst_73 = arith.constant 3.200000e+01 : f32
    %204 = vector.broadcast %cst_73 : f32 to vector<32x1xf32>
    %205 = arith.divf %203, %204 : vector<32x1xf32>
    %cst_74 = arith.constant 9.99999974E-6 : f32
    %206 = vector.broadcast %cst_74 : f32 to vector<32x1xf32>
    %207 = arith.addf %205, %206 : vector<32x1xf32>
    %208 = math.rsqrt %207 : vector<32x1xf32>
    %209 = vector.broadcast %208 : vector<32x1xf32> to vector<32x32xf32>
    %210 = arith.mulf %200, %209 : vector<32x32xf32>
    %211 = vector.broadcast %193 : vector<1x32xf32> to vector<32x32xf32>
    %212 = arith.mulf %210, %211 : vector<32x32xf32>
    %213 = vector.broadcast %194 : vector<1x32xf32> to vector<32x32xf32>
    %214 = arith.addf %212, %213 : vector<32x32xf32>
    %c128 = arith.constant 128 : index
    %c0_75 = arith.constant 0 : index
    %215 = vector.load %arg4[%c128, %c0_75] : memref<928x128xf32, #tpu.memory_space<vmem>>, vector<32x64xf32>
    %cst_76 = arith.constant dense<0.000000e+00> : vector<32x64xf32>
    %216 = tpu.matmul %214, %215, %cst_76 {dimension_numbers = #tpu.dot_dimension_numbers<[1], [0], [0], [1], [0, 0, 1, 1], [], []>} : vector<32x32xf32>, vector<32x64xf32>, vector<32x64xf32> -> vector<32x64xf32>
    %c160 = arith.constant 160 : index
    %c0_77 = arith.constant 0 : index
    %217 = vector.load %arg4[%c160, %c0_77] : memref<928x128xf32, #tpu.memory_space<vmem>>, vector<1x64xf32>
    %218 = vector.broadcast %217 : vector<1x64xf32> to vector<32x64xf32>
    %219 = arith.addf %216, %218 : vector<32x64xf32>
    %cst_78 = arith.constant 5.000000e-01 : f32
    %220 = vector.broadcast %cst_78 : f32 to vector<32x64xf32>
    %221 = arith.mulf %220, %219 : vector<32x64xf32>
    %cst_79 = arith.constant 0.707106769 : f32
    %222 = vector.broadcast %cst_79 : f32 to vector<32x64xf32>
    %223 = arith.mulf %219, %222 : vector<32x64xf32>
    %224 = math.absf %223 : vector<32x64xf32>
    %cst_80 = arith.constant 0.327591091 : f32
    %225 = vector.broadcast %cst_80 : f32 to vector<32x64xf32>
    %226 = arith.mulf %225, %224 : vector<32x64xf32>
    %cst_81 = arith.constant 1.000000e+00 : f32
    %227 = vector.broadcast %cst_81 : f32 to vector<32x64xf32>
    %228 = arith.addf %227, %226 : vector<32x64xf32>
    %229 = tpu.reciprocal %228 {approx = true} : vector<32x64xf32> -> vector<32x64xf32>
    %cst_82 = arith.constant 1.06140542 : f32
    %230 = vector.broadcast %cst_82 : f32 to vector<32x64xf32>
    %231 = arith.mulf %230, %229 : vector<32x64xf32>
    %cst_83 = arith.constant -1.45315206 : f32
    %232 = vector.broadcast %cst_83 : f32 to vector<32x64xf32>
    %233 = arith.addf %231, %232 : vector<32x64xf32>
    %234 = arith.mulf %233, %229 : vector<32x64xf32>
    %cst_84 = arith.constant 1.42141378 : f32
    %235 = vector.broadcast %cst_84 : f32 to vector<32x64xf32>
    %236 = arith.addf %234, %235 : vector<32x64xf32>
    %237 = arith.mulf %236, %229 : vector<32x64xf32>
    %cst_85 = arith.constant -0.284496725 : f32
    %238 = vector.broadcast %cst_85 : f32 to vector<32x64xf32>
    %239 = arith.addf %237, %238 : vector<32x64xf32>
    %240 = arith.mulf %239, %229 : vector<32x64xf32>
    %cst_86 = arith.constant 0.254829586 : f32
    %241 = vector.broadcast %cst_86 : f32 to vector<32x64xf32>
    %242 = arith.addf %240, %241 : vector<32x64xf32>
    %243 = arith.mulf %242, %229 : vector<32x64xf32>
    %244 = arith.mulf %224, %224 : vector<32x64xf32>
    %cst_87 = arith.constant 0.000000e+00 : f32
    %245 = vector.broadcast %cst_87 : f32 to vector<32x64xf32>
    %246 = arith.subf %245, %244 : vector<32x64xf32>
    %247 = math.exp %246 : vector<32x64xf32>
    %248 = arith.mulf %243, %247 : vector<32x64xf32>
    %cst_88 = arith.constant 1.000000e+00 : f32
    %249 = vector.broadcast %cst_88 : f32 to vector<32x64xf32>
    %250 = arith.subf %249, %248 : vector<32x64xf32>
    %cst_89 = arith.constant 0.000000e+00 : f32
    %251 = vector.broadcast %cst_89 : f32 to vector<32x64xf32>
    %252 = arith.cmpf oge, %223, %251 : vector<32x64xf32>
    %cst_90 = arith.constant 0.000000e+00 : f32
    %253 = vector.broadcast %cst_90 : f32 to vector<32x64xf32>
    %254 = arith.subf %253, %250 : vector<32x64xf32>
    %255 = arith.select %252, %250, %254 : vector<32x64xi1>, vector<32x64xf32>
    %cst_91 = arith.constant 1.000000e+00 : f32
    %256 = vector.broadcast %cst_91 : f32 to vector<32x64xf32>
    %257 = arith.addf %256, %255 : vector<32x64xf32>
    %258 = arith.mulf %221, %257 : vector<32x64xf32>
    %c168 = arith.constant 168 : index
    %c0_92 = arith.constant 0 : index
    %259 = vector.load %arg4[%c168, %c0_92] : memref<928x128xf32, #tpu.memory_space<vmem>>, vector<64x32xf32>
    %cst_93 = arith.constant dense<0.000000e+00> : vector<32x32xf32>
    %260 = tpu.matmul %258, %259, %cst_93 {dimension_numbers = #tpu.dot_dimension_numbers<[1], [0], [0], [1], [0, 0, 1, 1], [], []>} : vector<32x64xf32>, vector<64x32xf32>, vector<32x32xf32> -> vector<32x32xf32>
    %c232 = arith.constant 232 : index
    %c0_94 = arith.constant 0 : index
    %261 = vector.load %arg4[%c232, %c0_94] : memref<928x128xf32, #tpu.memory_space<vmem>>, vector<1x32xf32>
    %262 = vector.broadcast %261 : vector<1x32xf32> to vector<32x32xf32>
    %263 = arith.addf %260, %262 : vector<32x32xf32>
    %264 = arith.addf %214, %263 : vector<32x32xf32>
    %c256 = arith.constant 256 : index
    %c0_95 = arith.constant 0 : index
    %265 = vector.load %arg4[%c256, %c0_95] : memref<928x128xf32, #tpu.memory_space<vmem>>, vector<1x32xf32>
    %c264 = arith.constant 264 : index
    %c0_96 = arith.constant 0 : index
    %266 = vector.load %arg4[%c264, %c0_96] : memref<928x128xf32, #tpu.memory_space<vmem>>, vector<1x32xf32>
    %cst_97 = arith.constant dense<0.000000e+00> : vector<32xf32>
    %267 = vector.multi_reduction <add>, %264, %cst_97 [1] : vector<32x32xf32> to vector<32xf32>
    %268 = vector.shape_cast %267 : vector<32xf32> to vector<32x1xf32>
    %cst_98 = arith.constant 3.200000e+01 : f32
    %269 = vector.broadcast %cst_98 : f32 to vector<32x1xf32>
    %270 = arith.divf %268, %269 : vector<32x1xf32>
    %271 = vector.broadcast %270 : vector<32x1xf32> to vector<32x32xf32>
    %272 = arith.subf %264, %271 : vector<32x32xf32>
    %273 = arith.mulf %272, %272 : vector<32x32xf32>
    %cst_99 = arith.constant dense<0.000000e+00> : vector<32xf32>
    %274 = vector.multi_reduction <add>, %273, %cst_99 [1] : vector<32x32xf32> to vector<32xf32>
    %275 = vector.shape_cast %274 : vector<32xf32> to vector<32x1xf32>
    %cst_100 = arith.constant 3.200000e+01 : f32
    %276 = vector.broadcast %cst_100 : f32 to vector<32x1xf32>
    %277 = arith.divf %275, %276 : vector<32x1xf32>
    %cst_101 = arith.constant 9.99999974E-6 : f32
    %278 = vector.broadcast %cst_101 : f32 to vector<32x1xf32>
    %279 = arith.addf %277, %278 : vector<32x1xf32>
    %280 = math.rsqrt %279 : vector<32x1xf32>
    %281 = vector.broadcast %280 : vector<32x1xf32> to vector<32x32xf32>
    %282 = arith.mulf %272, %281 : vector<32x32xf32>
    %283 = vector.broadcast %265 : vector<1x32xf32> to vector<32x32xf32>
    %284 = arith.mulf %282, %283 : vector<32x32xf32>
    %285 = vector.broadcast %266 : vector<1x32xf32> to vector<32x32xf32>
    %286 = arith.addf %284, %285 : vector<32x32xf32>
    %c272 = arith.constant 272 : index
    %c0_102 = arith.constant 0 : index
    %287 = vector.load %arg4[%c272, %c0_102] : memref<928x128xf32, #tpu.memory_space<vmem>>, vector<32x96xf32>
    %cst_103 = arith.constant dense<0.000000e+00> : vector<32x96xf32>
    %288 = tpu.matmul %286, %287, %cst_103 {dimension_numbers = #tpu.dot_dimension_numbers<[1], [0], [0], [1], [0, 0, 1, 1], [], []>} : vector<32x32xf32>, vector<32x96xf32>, vector<32x96xf32> -> vector<32x96xf32>
    %c304 = arith.constant 304 : index
    %c0_104 = arith.constant 0 : index
    %289 = vector.load %arg4[%c304, %c0_104] : memref<928x128xf32, #tpu.memory_space<vmem>>, vector<1x96xf32>
    %290 = vector.broadcast %289 : vector<1x96xf32> to vector<32x96xf32>
    %291 = arith.addf %288, %290 : vector<32x96xf32>
    %292 = vector.extract_strided_slice %291 {offsets = [0, 0], sizes = [32, 32], strides = [1, 1]} : vector<32x96xf32> to vector<32x32xf32>
    %293 = vector.extract_strided_slice %291 {offsets = [0, 32], sizes = [32, 32], strides = [1, 1]} : vector<32x96xf32> to vector<32x32xf32>
    %294 = vector.extract_strided_slice %291 {offsets = [0, 64], sizes = [32, 32], strides = [1, 1]} : vector<32x96xf32> to vector<32x32xf32>
    %c312 = arith.constant 312 : index
    %c0_105 = arith.constant 0 : index
    %295 = vector.load %arg4[%c312, %c0_105] : memref<928x128xf32, #tpu.memory_space<vmem>>, vector<32x32xf32>
    %c344 = arith.constant 344 : index
    %c0_106 = arith.constant 0 : index
    %296 = vector.load %arg4[%c344, %c0_106] : memref<928x128xf32, #tpu.memory_space<vmem>>, vector<1x32xf32>
    %297 = vector.extract_strided_slice %292 {offsets = [0, 0], sizes = [32, 8], strides = [1, 1]} : vector<32x32xf32> to vector<32x8xf32>
    %298 = vector.extract_strided_slice %293 {offsets = [0, 0], sizes = [32, 8], strides = [1, 1]} : vector<32x32xf32> to vector<32x8xf32>
    %299 = vector.extract_strided_slice %294 {offsets = [0, 0], sizes = [32, 8], strides = [1, 1]} : vector<32x32xf32> to vector<32x8xf32>
    %cst_107 = arith.constant dense<0.000000e+00> : vector<32x32xf32>
    %300 = tpu.matmul %297, %298, %cst_107 {dimension_numbers = #tpu.dot_dimension_numbers<[1], [1], [0], [0], [0, 0, 1, 0], [], []>} : vector<32x8xf32>, vector<32x8xf32>, vector<32x32xf32> -> vector<32x32xf32>
    %cst_108 = arith.constant 0.353553385 : f32
    %301 = vector.broadcast %cst_108 : f32 to vector<32x32xf32>
    %302 = arith.mulf %300, %301 : vector<32x32xf32>
    %303 = arith.addf %302, %27 : vector<32x32xf32>
    %cst_109 = arith.constant dense<0xFF800000> : vector<32xf32>
    %304 = vector.multi_reduction <maximumf>, %303, %cst_109 [1] : vector<32x32xf32> to vector<32xf32>
    %305 = vector.shape_cast %304 : vector<32xf32> to vector<32x1xf32>
    %306 = vector.broadcast %305 : vector<32x1xf32> to vector<32x32xf32>
    %307 = arith.subf %303, %306 : vector<32x32xf32>
    %308 = math.exp %307 : vector<32x32xf32>
    %cst_110 = arith.constant dense<0.000000e+00> : vector<32xf32>
    %309 = vector.multi_reduction <add>, %308, %cst_110 [1] : vector<32x32xf32> to vector<32xf32>
    %310 = vector.shape_cast %309 : vector<32xf32> to vector<32x1xf32>
    %311 = tpu.reciprocal %310 {approx = true} : vector<32x1xf32> -> vector<32x1xf32>
    %312 = vector.broadcast %311 : vector<32x1xf32> to vector<32x32xf32>
    %313 = arith.mulf %308, %312 : vector<32x32xf32>
    %cst_111 = arith.constant dense<0.000000e+00> : vector<32x8xf32>
    %314 = tpu.matmul %313, %299, %cst_111 {dimension_numbers = #tpu.dot_dimension_numbers<[1], [0], [0], [1], [0, 0, 1, 1], [], []>} : vector<32x32xf32>, vector<32x8xf32>, vector<32x8xf32> -> vector<32x8xf32>
    %315 = vector.extract_strided_slice %292 {offsets = [0, 8], sizes = [32, 8], strides = [1, 1]} : vector<32x32xf32> to vector<32x8xf32>
    %316 = vector.extract_strided_slice %293 {offsets = [0, 8], sizes = [32, 8], strides = [1, 1]} : vector<32x32xf32> to vector<32x8xf32>
    %317 = vector.extract_strided_slice %294 {offsets = [0, 8], sizes = [32, 8], strides = [1, 1]} : vector<32x32xf32> to vector<32x8xf32>
    %cst_112 = arith.constant dense<0.000000e+00> : vector<32x32xf32>
    %318 = tpu.matmul %315, %316, %cst_112 {dimension_numbers = #tpu.dot_dimension_numbers<[1], [1], [0], [0], [0, 0, 1, 0], [], []>} : vector<32x8xf32>, vector<32x8xf32>, vector<32x32xf32> -> vector<32x32xf32>
    %cst_113 = arith.constant 0.353553385 : f32
    %319 = vector.broadcast %cst_113 : f32 to vector<32x32xf32>
    %320 = arith.mulf %318, %319 : vector<32x32xf32>
    %321 = arith.addf %320, %27 : vector<32x32xf32>
    %cst_114 = arith.constant dense<0xFF800000> : vector<32xf32>
    %322 = vector.multi_reduction <maximumf>, %321, %cst_114 [1] : vector<32x32xf32> to vector<32xf32>
    %323 = vector.shape_cast %322 : vector<32xf32> to vector<32x1xf32>
    %324 = vector.broadcast %323 : vector<32x1xf32> to vector<32x32xf32>
    %325 = arith.subf %321, %324 : vector<32x32xf32>
    %326 = math.exp %325 : vector<32x32xf32>
    %cst_115 = arith.constant dense<0.000000e+00> : vector<32xf32>
    %327 = vector.multi_reduction <add>, %326, %cst_115 [1] : vector<32x32xf32> to vector<32xf32>
    %328 = vector.shape_cast %327 : vector<32xf32> to vector<32x1xf32>
    %329 = tpu.reciprocal %328 {approx = true} : vector<32x1xf32> -> vector<32x1xf32>
    %330 = vector.broadcast %329 : vector<32x1xf32> to vector<32x32xf32>
    %331 = arith.mulf %326, %330 : vector<32x32xf32>
    %cst_116 = arith.constant dense<0.000000e+00> : vector<32x8xf32>
    %332 = tpu.matmul %331, %317, %cst_116 {dimension_numbers = #tpu.dot_dimension_numbers<[1], [0], [0], [1], [0, 0, 1, 1], [], []>} : vector<32x32xf32>, vector<32x8xf32>, vector<32x8xf32> -> vector<32x8xf32>
    %333 = vector.extract_strided_slice %292 {offsets = [0, 16], sizes = [32, 8], strides = [1, 1]} : vector<32x32xf32> to vector<32x8xf32>
    %334 = vector.extract_strided_slice %293 {offsets = [0, 16], sizes = [32, 8], strides = [1, 1]} : vector<32x32xf32> to vector<32x8xf32>
    %335 = vector.extract_strided_slice %294 {offsets = [0, 16], sizes = [32, 8], strides = [1, 1]} : vector<32x32xf32> to vector<32x8xf32>
    %cst_117 = arith.constant dense<0.000000e+00> : vector<32x32xf32>
    %336 = tpu.matmul %333, %334, %cst_117 {dimension_numbers = #tpu.dot_dimension_numbers<[1], [1], [0], [0], [0, 0, 1, 0], [], []>} : vector<32x8xf32>, vector<32x8xf32>, vector<32x32xf32> -> vector<32x32xf32>
    %cst_118 = arith.constant 0.353553385 : f32
    %337 = vector.broadcast %cst_118 : f32 to vector<32x32xf32>
    %338 = arith.mulf %336, %337 : vector<32x32xf32>
    %339 = arith.addf %338, %27 : vector<32x32xf32>
    %cst_119 = arith.constant dense<0xFF800000> : vector<32xf32>
    %340 = vector.multi_reduction <maximumf>, %339, %cst_119 [1] : vector<32x32xf32> to vector<32xf32>
    %341 = vector.shape_cast %340 : vector<32xf32> to vector<32x1xf32>
    %342 = vector.broadcast %341 : vector<32x1xf32> to vector<32x32xf32>
    %343 = arith.subf %339, %342 : vector<32x32xf32>
    %344 = math.exp %343 : vector<32x32xf32>
    %cst_120 = arith.constant dense<0.000000e+00> : vector<32xf32>
    %345 = vector.multi_reduction <add>, %344, %cst_120 [1] : vector<32x32xf32> to vector<32xf32>
    %346 = vector.shape_cast %345 : vector<32xf32> to vector<32x1xf32>
    %347 = tpu.reciprocal %346 {approx = true} : vector<32x1xf32> -> vector<32x1xf32>
    %348 = vector.broadcast %347 : vector<32x1xf32> to vector<32x32xf32>
    %349 = arith.mulf %344, %348 : vector<32x32xf32>
    %cst_121 = arith.constant dense<0.000000e+00> : vector<32x8xf32>
    %350 = tpu.matmul %349, %335, %cst_121 {dimension_numbers = #tpu.dot_dimension_numbers<[1], [0], [0], [1], [0, 0, 1, 1], [], []>} : vector<32x32xf32>, vector<32x8xf32>, vector<32x8xf32> -> vector<32x8xf32>
    %351 = vector.extract_strided_slice %292 {offsets = [0, 24], sizes = [32, 8], strides = [1, 1]} : vector<32x32xf32> to vector<32x8xf32>
    %352 = vector.extract_strided_slice %293 {offsets = [0, 24], sizes = [32, 8], strides = [1, 1]} : vector<32x32xf32> to vector<32x8xf32>
    %353 = vector.extract_strided_slice %294 {offsets = [0, 24], sizes = [32, 8], strides = [1, 1]} : vector<32x32xf32> to vector<32x8xf32>
    %cst_122 = arith.constant dense<0.000000e+00> : vector<32x32xf32>
    %354 = tpu.matmul %351, %352, %cst_122 {dimension_numbers = #tpu.dot_dimension_numbers<[1], [1], [0], [0], [0, 0, 1, 0], [], []>} : vector<32x8xf32>, vector<32x8xf32>, vector<32x32xf32> -> vector<32x32xf32>
    %cst_123 = arith.constant 0.353553385 : f32
    %355 = vector.broadcast %cst_123 : f32 to vector<32x32xf32>
    %356 = arith.mulf %354, %355 : vector<32x32xf32>
    %357 = arith.addf %356, %27 : vector<32x32xf32>
    %cst_124 = arith.constant dense<0xFF800000> : vector<32xf32>
    %358 = vector.multi_reduction <maximumf>, %357, %cst_124 [1] : vector<32x32xf32> to vector<32xf32>
    %359 = vector.shape_cast %358 : vector<32xf32> to vector<32x1xf32>
    %360 = vector.broadcast %359 : vector<32x1xf32> to vector<32x32xf32>
    %361 = arith.subf %357, %360 : vector<32x32xf32>
    %362 = math.exp %361 : vector<32x32xf32>
    %cst_125 = arith.constant dense<0.000000e+00> : vector<32xf32>
    %363 = vector.multi_reduction <add>, %362, %cst_125 [1] : vector<32x32xf32> to vector<32xf32>
    %364 = vector.shape_cast %363 : vector<32xf32> to vector<32x1xf32>
    %365 = tpu.reciprocal %364 {approx = true} : vector<32x1xf32> -> vector<32x1xf32>
    %366 = vector.broadcast %365 : vector<32x1xf32> to vector<32x32xf32>
    %367 = arith.mulf %362, %366 : vector<32x32xf32>
    %cst_126 = arith.constant dense<0.000000e+00> : vector<32x8xf32>
    %368 = tpu.matmul %367, %353, %cst_126 {dimension_numbers = #tpu.dot_dimension_numbers<[1], [0], [0], [1], [0, 0, 1, 1], [], []>} : vector<32x32xf32>, vector<32x8xf32>, vector<32x8xf32> -> vector<32x8xf32>
    %369 = tpu.concatenate %314, %332, %350, %368 in 1 : vector<32x8xf32>, vector<32x8xf32>, vector<32x8xf32>, vector<32x8xf32> -> vector<32x32xf32>
    %cst_127 = arith.constant dense<0.000000e+00> : vector<32x32xf32>
    %370 = tpu.matmul %369, %295, %cst_127 {dimension_numbers = #tpu.dot_dimension_numbers<[1], [0], [0], [1], [0, 0, 1, 1], [], []>} : vector<32x32xf32>, vector<32x32xf32>, vector<32x32xf32> -> vector<32x32xf32>
    %371 = vector.broadcast %296 : vector<1x32xf32> to vector<32x32xf32>
    %372 = arith.addf %370, %371 : vector<32x32xf32>
    %373 = arith.addf %286, %372 : vector<32x32xf32>
    %c464 = arith.constant 464 : index
    %c0_128 = arith.constant 0 : index
    %374 = vector.load %arg4[%c464, %c0_128] : memref<928x128xf32, #tpu.memory_space<vmem>>, vector<1x32xf32>
    %c472 = arith.constant 472 : index
    %c0_129 = arith.constant 0 : index
    %375 = vector.load %arg4[%c472, %c0_129] : memref<928x128xf32, #tpu.memory_space<vmem>>, vector<1x32xf32>
    %cst_130 = arith.constant dense<0.000000e+00> : vector<32xf32>
    %376 = vector.multi_reduction <add>, %373, %cst_130 [1] : vector<32x32xf32> to vector<32xf32>
    %377 = vector.shape_cast %376 : vector<32xf32> to vector<32x1xf32>
    %cst_131 = arith.constant 3.200000e+01 : f32
    %378 = vector.broadcast %cst_131 : f32 to vector<32x1xf32>
    %379 = arith.divf %377, %378 : vector<32x1xf32>
    %380 = vector.broadcast %379 : vector<32x1xf32> to vector<32x32xf32>
    %381 = arith.subf %373, %380 : vector<32x32xf32>
    %382 = arith.mulf %381, %381 : vector<32x32xf32>
    %cst_132 = arith.constant dense<0.000000e+00> : vector<32xf32>
    %383 = vector.multi_reduction <add>, %382, %cst_132 [1] : vector<32x32xf32> to vector<32xf32>
    %384 = vector.shape_cast %383 : vector<32xf32> to vector<32x1xf32>
    %cst_133 = arith.constant 3.200000e+01 : f32
    %385 = vector.broadcast %cst_133 : f32 to vector<32x1xf32>
    %386 = arith.divf %384, %385 : vector<32x1xf32>
    %cst_134 = arith.constant 9.99999974E-6 : f32
    %387 = vector.broadcast %cst_134 : f32 to vector<32x1xf32>
    %388 = arith.addf %386, %387 : vector<32x1xf32>
    %389 = math.rsqrt %388 : vector<32x1xf32>
    %390 = vector.broadcast %389 : vector<32x1xf32> to vector<32x32xf32>
    %391 = arith.mulf %381, %390 : vector<32x32xf32>
    %392 = vector.broadcast %374 : vector<1x32xf32> to vector<32x32xf32>
    %393 = arith.mulf %391, %392 : vector<32x32xf32>
    %394 = vector.broadcast %375 : vector<1x32xf32> to vector<32x32xf32>
    %395 = arith.addf %393, %394 : vector<32x32xf32>
    %c352 = arith.constant 352 : index
    %c0_135 = arith.constant 0 : index
    %396 = vector.load %arg4[%c352, %c0_135] : memref<928x128xf32, #tpu.memory_space<vmem>>, vector<32x64xf32>
    %cst_136 = arith.constant dense<0.000000e+00> : vector<32x64xf32>
    %397 = tpu.matmul %395, %396, %cst_136 {dimension_numbers = #tpu.dot_dimension_numbers<[1], [0], [0], [1], [0, 0, 1, 1], [], []>} : vector<32x32xf32>, vector<32x64xf32>, vector<32x64xf32> -> vector<32x64xf32>
    %c384 = arith.constant 384 : index
    %c0_137 = arith.constant 0 : index
    %398 = vector.load %arg4[%c384, %c0_137] : memref<928x128xf32, #tpu.memory_space<vmem>>, vector<1x64xf32>
    %399 = vector.broadcast %398 : vector<1x64xf32> to vector<32x64xf32>
    %400 = arith.addf %397, %399 : vector<32x64xf32>
    %cst_138 = arith.constant 5.000000e-01 : f32
    %401 = vector.broadcast %cst_138 : f32 to vector<32x64xf32>
    %402 = arith.mulf %401, %400 : vector<32x64xf32>
    %cst_139 = arith.constant 0.707106769 : f32
    %403 = vector.broadcast %cst_139 : f32 to vector<32x64xf32>
    %404 = arith.mulf %400, %403 : vector<32x64xf32>
    %405 = math.absf %404 : vector<32x64xf32>
    %cst_140 = arith.constant 0.327591091 : f32
    %406 = vector.broadcast %cst_140 : f32 to vector<32x64xf32>
    %407 = arith.mulf %406, %405 : vector<32x64xf32>
    %cst_141 = arith.constant 1.000000e+00 : f32
    %408 = vector.broadcast %cst_141 : f32 to vector<32x64xf32>
    %409 = arith.addf %408, %407 : vector<32x64xf32>
    %410 = tpu.reciprocal %409 {approx = true} : vector<32x64xf32> -> vector<32x64xf32>
    %cst_142 = arith.constant 1.06140542 : f32
    %411 = vector.broadcast %cst_142 : f32 to vector<32x64xf32>
    %412 = arith.mulf %411, %410 : vector<32x64xf32>
    %cst_143 = arith.constant -1.45315206 : f32
    %413 = vector.broadcast %cst_143 : f32 to vector<32x64xf32>
    %414 = arith.addf %412, %413 : vector<32x64xf32>
    %415 = arith.mulf %414, %410 : vector<32x64xf32>
    %cst_144 = arith.constant 1.42141378 : f32
    %416 = vector.broadcast %cst_144 : f32 to vector<32x64xf32>
    %417 = arith.addf %415, %416 : vector<32x64xf32>
    %418 = arith.mulf %417, %410 : vector<32x64xf32>
    %cst_145 = arith.constant -0.284496725 : f32
    %419 = vector.broadcast %cst_145 : f32 to vector<32x64xf32>
    %420 = arith.addf %418, %419 : vector<32x64xf32>
    %421 = arith.mulf %420, %410 : vector<32x64xf32>
    %cst_146 = arith.constant 0.254829586 : f32
    %422 = vector.broadcast %cst_146 : f32 to vector<32x64xf32>
    %423 = arith.addf %421, %422 : vector<32x64xf32>
    %424 = arith.mulf %423, %410 : vector<32x64xf32>
    %425 = arith.mulf %405, %405 : vector<32x64xf32>
    %cst_147 = arith.constant 0.000000e+00 : f32
    %426 = vector.broadcast %cst_147 : f32 to vector<32x64xf32>
    %427 = arith.subf %426, %425 : vector<32x64xf32>
    %428 = math.exp %427 : vector<32x64xf32>
    %429 = arith.mulf %424, %428 : vector<32x64xf32>
    %cst_148 = arith.constant 1.000000e+00 : f32
    %430 = vector.broadcast %cst_148 : f32 to vector<32x64xf32>
    %431 = arith.subf %430, %429 : vector<32x64xf32>
    %cst_149 = arith.constant 0.000000e+00 : f32
    %432 = vector.broadcast %cst_149 : f32 to vector<32x64xf32>
    %433 = arith.cmpf oge, %404, %432 : vector<32x64xf32>
    %cst_150 = arith.constant 0.000000e+00 : f32
    %434 = vector.broadcast %cst_150 : f32 to vector<32x64xf32>
    %435 = arith.subf %434, %431 : vector<32x64xf32>
    %436 = arith.select %433, %431, %435 : vector<32x64xi1>, vector<32x64xf32>
    %cst_151 = arith.constant 1.000000e+00 : f32
    %437 = vector.broadcast %cst_151 : f32 to vector<32x64xf32>
    %438 = arith.addf %437, %436 : vector<32x64xf32>
    %439 = arith.mulf %402, %438 : vector<32x64xf32>
    %c392 = arith.constant 392 : index
    %c0_152 = arith.constant 0 : index
    %440 = vector.load %arg4[%c392, %c0_152] : memref<928x128xf32, #tpu.memory_space<vmem>>, vector<64x32xf32>
    %cst_153 = arith.constant dense<0.000000e+00> : vector<32x32xf32>
    %441 = tpu.matmul %439, %440, %cst_153 {dimension_numbers = #tpu.dot_dimension_numbers<[1], [0], [0], [1], [0, 0, 1, 1], [], []>} : vector<32x64xf32>, vector<64x32xf32>, vector<32x32xf32> -> vector<32x32xf32>
    %c456 = arith.constant 456 : index
    %c0_154 = arith.constant 0 : index
    %442 = vector.load %arg4[%c456, %c0_154] : memref<928x128xf32, #tpu.memory_space<vmem>>, vector<1x32xf32>
    %443 = vector.broadcast %442 : vector<1x32xf32> to vector<32x32xf32>
    %444 = arith.addf %441, %443 : vector<32x32xf32>
    %445 = arith.addf %395, %444 : vector<32x32xf32>
    %c480 = arith.constant 480 : index
    %c0_155 = arith.constant 0 : index
    %446 = vector.load %arg4[%c480, %c0_155] : memref<928x128xf32, #tpu.memory_space<vmem>>, vector<1x32xf32>
    %c488 = arith.constant 488 : index
    %c0_156 = arith.constant 0 : index
    %447 = vector.load %arg4[%c488, %c0_156] : memref<928x128xf32, #tpu.memory_space<vmem>>, vector<1x32xf32>
    %cst_157 = arith.constant dense<0.000000e+00> : vector<32xf32>
    %448 = vector.multi_reduction <add>, %445, %cst_157 [1] : vector<32x32xf32> to vector<32xf32>
    %449 = vector.shape_cast %448 : vector<32xf32> to vector<32x1xf32>
    %cst_158 = arith.constant 3.200000e+01 : f32
    %450 = vector.broadcast %cst_158 : f32 to vector<32x1xf32>
    %451 = arith.divf %449, %450 : vector<32x1xf32>
    %452 = vector.broadcast %451 : vector<32x1xf32> to vector<32x32xf32>
    %453 = arith.subf %445, %452 : vector<32x32xf32>
    %454 = arith.mulf %453, %453 : vector<32x32xf32>
    %cst_159 = arith.constant dense<0.000000e+00> : vector<32xf32>
    %455 = vector.multi_reduction <add>, %454, %cst_159 [1] : vector<32x32xf32> to vector<32xf32>
    %456 = vector.shape_cast %455 : vector<32xf32> to vector<32x1xf32>
    %cst_160 = arith.constant 3.200000e+01 : f32
    %457 = vector.broadcast %cst_160 : f32 to vector<32x1xf32>
    %458 = arith.divf %456, %457 : vector<32x1xf32>
    %cst_161 = arith.constant 9.99999974E-6 : f32
    %459 = vector.broadcast %cst_161 : f32 to vector<32x1xf32>
    %460 = arith.addf %458, %459 : vector<32x1xf32>
    %461 = math.rsqrt %460 : vector<32x1xf32>
    %462 = vector.broadcast %461 : vector<32x1xf32> to vector<32x32xf32>
    %463 = arith.mulf %453, %462 : vector<32x32xf32>
    %464 = vector.broadcast %446 : vector<1x32xf32> to vector<32x32xf32>
    %465 = arith.mulf %463, %464 : vector<32x32xf32>
    %466 = vector.broadcast %447 : vector<1x32xf32> to vector<32x32xf32>
    %467 = arith.addf %465, %466 : vector<32x32xf32>
    %c496 = arith.constant 496 : index
    %c0_162 = arith.constant 0 : index
    %468 = vector.load %arg4[%c496, %c0_162] : memref<928x128xf32, #tpu.memory_space<vmem>>, vector<1x32xf32>
    %c504 = arith.constant 504 : index
    %c0_163 = arith.constant 0 : index
    %469 = vector.load %arg4[%c504, %c0_163] : memref<928x128xf32, #tpu.memory_space<vmem>>, vector<1x32xf32>
    %cst_164 = arith.constant dense<0.000000e+00> : vector<32xf32>
    %470 = vector.multi_reduction <add>, %467, %cst_164 [1] : vector<32x32xf32> to vector<32xf32>
    %471 = vector.shape_cast %470 : vector<32xf32> to vector<32x1xf32>
    %cst_165 = arith.constant 3.200000e+01 : f32
    %472 = vector.broadcast %cst_165 : f32 to vector<32x1xf32>
    %473 = arith.divf %471, %472 : vector<32x1xf32>
    %474 = vector.broadcast %473 : vector<32x1xf32> to vector<32x32xf32>
    %475 = arith.subf %467, %474 : vector<32x32xf32>
    %476 = arith.mulf %475, %475 : vector<32x32xf32>
    %cst_166 = arith.constant dense<0.000000e+00> : vector<32xf32>
    %477 = vector.multi_reduction <add>, %476, %cst_166 [1] : vector<32x32xf32> to vector<32xf32>
    %478 = vector.shape_cast %477 : vector<32xf32> to vector<32x1xf32>
    %cst_167 = arith.constant 3.200000e+01 : f32
    %479 = vector.broadcast %cst_167 : f32 to vector<32x1xf32>
    %480 = arith.divf %478, %479 : vector<32x1xf32>
    %cst_168 = arith.constant 9.99999974E-6 : f32
    %481 = vector.broadcast %cst_168 : f32 to vector<32x1xf32>
    %482 = arith.addf %480, %481 : vector<32x1xf32>
    %483 = math.rsqrt %482 : vector<32x1xf32>
    %484 = vector.broadcast %483 : vector<32x1xf32> to vector<32x32xf32>
    %485 = arith.mulf %475, %484 : vector<32x32xf32>
    %486 = vector.broadcast %468 : vector<1x32xf32> to vector<32x32xf32>
    %487 = arith.mulf %485, %486 : vector<32x32xf32>
    %488 = vector.broadcast %469 : vector<1x32xf32> to vector<32x32xf32>
    %489 = arith.addf %487, %488 : vector<32x32xf32>
    %c512 = arith.constant 512 : index
    %c0_169 = arith.constant 0 : index
    %490 = vector.load %arg4[%c512, %c0_169] : memref<928x128xf32, #tpu.memory_space<vmem>>, vector<32x96xf32>
    %cst_170 = arith.constant dense<0.000000e+00> : vector<32x96xf32>
    %491 = tpu.matmul %105, %490, %cst_170 {dimension_numbers = #tpu.dot_dimension_numbers<[1], [0], [0], [1], [0, 0, 1, 1], [], []>} : vector<32x32xf32>, vector<32x96xf32>, vector<32x96xf32> -> vector<32x96xf32>
    %c544 = arith.constant 544 : index
    %c0_171 = arith.constant 0 : index
    %492 = vector.load %arg4[%c544, %c0_171] : memref<928x128xf32, #tpu.memory_space<vmem>>, vector<1x96xf32>
    %493 = vector.broadcast %492 : vector<1x96xf32> to vector<32x96xf32>
    %494 = arith.addf %491, %493 : vector<32x96xf32>
    %495 = vector.extract_strided_slice %494 {offsets = [0, 0], sizes = [32, 32], strides = [1, 1]} : vector<32x96xf32> to vector<32x32xf32>
    %496 = vector.extract_strided_slice %494 {offsets = [0, 32], sizes = [32, 32], strides = [1, 1]} : vector<32x96xf32> to vector<32x32xf32>
    %497 = vector.extract_strided_slice %494 {offsets = [0, 64], sizes = [32, 32], strides = [1, 1]} : vector<32x96xf32> to vector<32x32xf32>
    %c552 = arith.constant 552 : index
    %c0_172 = arith.constant 0 : index
    %498 = vector.load %arg4[%c552, %c0_172] : memref<928x128xf32, #tpu.memory_space<vmem>>, vector<32x32xf32>
    %c584 = arith.constant 584 : index
    %c0_173 = arith.constant 0 : index
    %499 = vector.load %arg4[%c584, %c0_173] : memref<928x128xf32, #tpu.memory_space<vmem>>, vector<1x32xf32>
    %500 = vector.extract_strided_slice %495 {offsets = [0, 0], sizes = [32, 8], strides = [1, 1]} : vector<32x32xf32> to vector<32x8xf32>
    %501 = vector.extract_strided_slice %496 {offsets = [0, 0], sizes = [32, 8], strides = [1, 1]} : vector<32x32xf32> to vector<32x8xf32>
    %502 = vector.extract_strided_slice %497 {offsets = [0, 0], sizes = [32, 8], strides = [1, 1]} : vector<32x32xf32> to vector<32x8xf32>
    %cst_174 = arith.constant dense<0.000000e+00> : vector<32x32xf32>
    %503 = tpu.matmul %500, %501, %cst_174 {dimension_numbers = #tpu.dot_dimension_numbers<[1], [1], [0], [0], [0, 0, 1, 0], [], []>} : vector<32x8xf32>, vector<32x8xf32>, vector<32x32xf32> -> vector<32x32xf32>
    %cst_175 = arith.constant 0.353553385 : f32
    %504 = vector.broadcast %cst_175 : f32 to vector<32x32xf32>
    %505 = arith.mulf %503, %504 : vector<32x32xf32>
    %506 = arith.addf %505, %67 : vector<32x32xf32>
    %cst_176 = arith.constant dense<0xFF800000> : vector<32xf32>
    %507 = vector.multi_reduction <maximumf>, %506, %cst_176 [1] : vector<32x32xf32> to vector<32xf32>
    %508 = vector.shape_cast %507 : vector<32xf32> to vector<32x1xf32>
    %509 = vector.broadcast %508 : vector<32x1xf32> to vector<32x32xf32>
    %510 = arith.subf %506, %509 : vector<32x32xf32>
    %511 = math.exp %510 : vector<32x32xf32>
    %cst_177 = arith.constant dense<0.000000e+00> : vector<32xf32>
    %512 = vector.multi_reduction <add>, %511, %cst_177 [1] : vector<32x32xf32> to vector<32xf32>
    %513 = vector.shape_cast %512 : vector<32xf32> to vector<32x1xf32>
    %514 = tpu.reciprocal %513 {approx = true} : vector<32x1xf32> -> vector<32x1xf32>
    %515 = vector.broadcast %514 : vector<32x1xf32> to vector<32x32xf32>
    %516 = arith.mulf %511, %515 : vector<32x32xf32>
    %cst_178 = arith.constant dense<0.000000e+00> : vector<32x8xf32>
    %517 = tpu.matmul %516, %502, %cst_178 {dimension_numbers = #tpu.dot_dimension_numbers<[1], [0], [0], [1], [0, 0, 1, 1], [], []>} : vector<32x32xf32>, vector<32x8xf32>, vector<32x8xf32> -> vector<32x8xf32>
    %518 = vector.extract_strided_slice %495 {offsets = [0, 8], sizes = [32, 8], strides = [1, 1]} : vector<32x32xf32> to vector<32x8xf32>
    %519 = vector.extract_strided_slice %496 {offsets = [0, 8], sizes = [32, 8], strides = [1, 1]} : vector<32x32xf32> to vector<32x8xf32>
    %520 = vector.extract_strided_slice %497 {offsets = [0, 8], sizes = [32, 8], strides = [1, 1]} : vector<32x32xf32> to vector<32x8xf32>
    %cst_179 = arith.constant dense<0.000000e+00> : vector<32x32xf32>
    %521 = tpu.matmul %518, %519, %cst_179 {dimension_numbers = #tpu.dot_dimension_numbers<[1], [1], [0], [0], [0, 0, 1, 0], [], []>} : vector<32x8xf32>, vector<32x8xf32>, vector<32x32xf32> -> vector<32x32xf32>
    %cst_180 = arith.constant 0.353553385 : f32
    %522 = vector.broadcast %cst_180 : f32 to vector<32x32xf32>
    %523 = arith.mulf %521, %522 : vector<32x32xf32>
    %524 = arith.addf %523, %67 : vector<32x32xf32>
    %cst_181 = arith.constant dense<0xFF800000> : vector<32xf32>
    %525 = vector.multi_reduction <maximumf>, %524, %cst_181 [1] : vector<32x32xf32> to vector<32xf32>
    %526 = vector.shape_cast %525 : vector<32xf32> to vector<32x1xf32>
    %527 = vector.broadcast %526 : vector<32x1xf32> to vector<32x32xf32>
    %528 = arith.subf %524, %527 : vector<32x32xf32>
    %529 = math.exp %528 : vector<32x32xf32>
    %cst_182 = arith.constant dense<0.000000e+00> : vector<32xf32>
    %530 = vector.multi_reduction <add>, %529, %cst_182 [1] : vector<32x32xf32> to vector<32xf32>
    %531 = vector.shape_cast %530 : vector<32xf32> to vector<32x1xf32>
    %532 = tpu.reciprocal %531 {approx = true} : vector<32x1xf32> -> vector<32x1xf32>
    %533 = vector.broadcast %532 : vector<32x1xf32> to vector<32x32xf32>
    %534 = arith.mulf %529, %533 : vector<32x32xf32>
    %cst_183 = arith.constant dense<0.000000e+00> : vector<32x8xf32>
    %535 = tpu.matmul %534, %520, %cst_183 {dimension_numbers = #tpu.dot_dimension_numbers<[1], [0], [0], [1], [0, 0, 1, 1], [], []>} : vector<32x32xf32>, vector<32x8xf32>, vector<32x8xf32> -> vector<32x8xf32>
    %536 = vector.extract_strided_slice %495 {offsets = [0, 16], sizes = [32, 8], strides = [1, 1]} : vector<32x32xf32> to vector<32x8xf32>
    %537 = vector.extract_strided_slice %496 {offsets = [0, 16], sizes = [32, 8], strides = [1, 1]} : vector<32x32xf32> to vector<32x8xf32>
    %538 = vector.extract_strided_slice %497 {offsets = [0, 16], sizes = [32, 8], strides = [1, 1]} : vector<32x32xf32> to vector<32x8xf32>
    %cst_184 = arith.constant dense<0.000000e+00> : vector<32x32xf32>
    %539 = tpu.matmul %536, %537, %cst_184 {dimension_numbers = #tpu.dot_dimension_numbers<[1], [1], [0], [0], [0, 0, 1, 0], [], []>} : vector<32x8xf32>, vector<32x8xf32>, vector<32x32xf32> -> vector<32x32xf32>
    %cst_185 = arith.constant 0.353553385 : f32
    %540 = vector.broadcast %cst_185 : f32 to vector<32x32xf32>
    %541 = arith.mulf %539, %540 : vector<32x32xf32>
    %542 = arith.addf %541, %67 : vector<32x32xf32>
    %cst_186 = arith.constant dense<0xFF800000> : vector<32xf32>
    %543 = vector.multi_reduction <maximumf>, %542, %cst_186 [1] : vector<32x32xf32> to vector<32xf32>
    %544 = vector.shape_cast %543 : vector<32xf32> to vector<32x1xf32>
    %545 = vector.broadcast %544 : vector<32x1xf32> to vector<32x32xf32>
    %546 = arith.subf %542, %545 : vector<32x32xf32>
    %547 = math.exp %546 : vector<32x32xf32>
    %cst_187 = arith.constant dense<0.000000e+00> : vector<32xf32>
    %548 = vector.multi_reduction <add>, %547, %cst_187 [1] : vector<32x32xf32> to vector<32xf32>
    %549 = vector.shape_cast %548 : vector<32xf32> to vector<32x1xf32>
    %550 = tpu.reciprocal %549 {approx = true} : vector<32x1xf32> -> vector<32x1xf32>
    %551 = vector.broadcast %550 : vector<32x1xf32> to vector<32x32xf32>
    %552 = arith.mulf %547, %551 : vector<32x32xf32>
    %cst_188 = arith.constant dense<0.000000e+00> : vector<32x8xf32>
    %553 = tpu.matmul %552, %538, %cst_188 {dimension_numbers = #tpu.dot_dimension_numbers<[1], [0], [0], [1], [0, 0, 1, 1], [], []>} : vector<32x32xf32>, vector<32x8xf32>, vector<32x8xf32> -> vector<32x8xf32>
    %554 = vector.extract_strided_slice %495 {offsets = [0, 24], sizes = [32, 8], strides = [1, 1]} : vector<32x32xf32> to vector<32x8xf32>
    %555 = vector.extract_strided_slice %496 {offsets = [0, 24], sizes = [32, 8], strides = [1, 1]} : vector<32x32xf32> to vector<32x8xf32>
    %556 = vector.extract_strided_slice %497 {offsets = [0, 24], sizes = [32, 8], strides = [1, 1]} : vector<32x32xf32> to vector<32x8xf32>
    %cst_189 = arith.constant dense<0.000000e+00> : vector<32x32xf32>
    %557 = tpu.matmul %554, %555, %cst_189 {dimension_numbers = #tpu.dot_dimension_numbers<[1], [1], [0], [0], [0, 0, 1, 0], [], []>} : vector<32x8xf32>, vector<32x8xf32>, vector<32x32xf32> -> vector<32x32xf32>
    %cst_190 = arith.constant 0.353553385 : f32
    %558 = vector.broadcast %cst_190 : f32 to vector<32x32xf32>
    %559 = arith.mulf %557, %558 : vector<32x32xf32>
    %560 = arith.addf %559, %67 : vector<32x32xf32>
    %cst_191 = arith.constant dense<0xFF800000> : vector<32xf32>
    %561 = vector.multi_reduction <maximumf>, %560, %cst_191 [1] : vector<32x32xf32> to vector<32xf32>
    %562 = vector.shape_cast %561 : vector<32xf32> to vector<32x1xf32>
    %563 = vector.broadcast %562 : vector<32x1xf32> to vector<32x32xf32>
    %564 = arith.subf %560, %563 : vector<32x32xf32>
    %565 = math.exp %564 : vector<32x32xf32>
    %cst_192 = arith.constant dense<0.000000e+00> : vector<32xf32>
    %566 = vector.multi_reduction <add>, %565, %cst_192 [1] : vector<32x32xf32> to vector<32xf32>
    %567 = vector.shape_cast %566 : vector<32xf32> to vector<32x1xf32>
    %568 = tpu.reciprocal %567 {approx = true} : vector<32x1xf32> -> vector<32x1xf32>
    %569 = vector.broadcast %568 : vector<32x1xf32> to vector<32x32xf32>
    %570 = arith.mulf %565, %569 : vector<32x32xf32>
    %cst_193 = arith.constant dense<0.000000e+00> : vector<32x8xf32>
    %571 = tpu.matmul %570, %556, %cst_193 {dimension_numbers = #tpu.dot_dimension_numbers<[1], [0], [0], [1], [0, 0, 1, 1], [], []>} : vector<32x32xf32>, vector<32x8xf32>, vector<32x8xf32> -> vector<32x8xf32>
    %572 = tpu.concatenate %517, %535, %553, %571 in 1 : vector<32x8xf32>, vector<32x8xf32>, vector<32x8xf32>, vector<32x8xf32> -> vector<32x32xf32>
    %cst_194 = arith.constant dense<0.000000e+00> : vector<32x32xf32>
    %573 = tpu.matmul %572, %498, %cst_194 {dimension_numbers = #tpu.dot_dimension_numbers<[1], [0], [0], [1], [0, 0, 1, 1], [], []>} : vector<32x32xf32>, vector<32x32xf32>, vector<32x32xf32> -> vector<32x32xf32>
    %574 = vector.broadcast %499 : vector<1x32xf32> to vector<32x32xf32>
    %575 = arith.addf %573, %574 : vector<32x32xf32>
    %576 = arith.addf %105, %575 : vector<32x32xf32>
    %c824 = arith.constant 824 : index
    %c0_195 = arith.constant 0 : index
    %577 = vector.load %arg4[%c824, %c0_195] : memref<928x128xf32, #tpu.memory_space<vmem>>, vector<1x32xf32>
    %c832 = arith.constant 832 : index
    %c0_196 = arith.constant 0 : index
    %578 = vector.load %arg4[%c832, %c0_196] : memref<928x128xf32, #tpu.memory_space<vmem>>, vector<1x32xf32>
    %cst_197 = arith.constant dense<0.000000e+00> : vector<32xf32>
    %579 = vector.multi_reduction <add>, %576, %cst_197 [1] : vector<32x32xf32> to vector<32xf32>
    %580 = vector.shape_cast %579 : vector<32xf32> to vector<32x1xf32>
    %cst_198 = arith.constant 3.200000e+01 : f32
    %581 = vector.broadcast %cst_198 : f32 to vector<32x1xf32>
    %582 = arith.divf %580, %581 : vector<32x1xf32>
    %583 = vector.broadcast %582 : vector<32x1xf32> to vector<32x32xf32>
    %584 = arith.subf %576, %583 : vector<32x32xf32>
    %585 = arith.mulf %584, %584 : vector<32x32xf32>
    %cst_199 = arith.constant dense<0.000000e+00> : vector<32xf32>
    %586 = vector.multi_reduction <add>, %585, %cst_199 [1] : vector<32x32xf32> to vector<32xf32>
    %587 = vector.shape_cast %586 : vector<32xf32> to vector<32x1xf32>
    %cst_200 = arith.constant 3.200000e+01 : f32
    %588 = vector.broadcast %cst_200 : f32 to vector<32x1xf32>
    %589 = arith.divf %587, %588 : vector<32x1xf32>
    %cst_201 = arith.constant 9.99999974E-6 : f32
    %590 = vector.broadcast %cst_201 : f32 to vector<32x1xf32>
    %591 = arith.addf %589, %590 : vector<32x1xf32>
    %592 = math.rsqrt %591 : vector<32x1xf32>
    %593 = vector.broadcast %592 : vector<32x1xf32> to vector<32x32xf32>
    %594 = arith.mulf %584, %593 : vector<32x32xf32>
    %595 = vector.broadcast %577 : vector<1x32xf32> to vector<32x32xf32>
    %596 = arith.mulf %594, %595 : vector<32x32xf32>
    %597 = vector.broadcast %578 : vector<1x32xf32> to vector<32x32xf32>
    %598 = arith.addf %596, %597 : vector<32x32xf32>
    %c592 = arith.constant 592 : index
    %c0_202 = arith.constant 0 : index
    %599 = vector.load %arg4[%c592, %c0_202] : memref<928x128xf32, #tpu.memory_space<vmem>>, vector<32x32xf32>
    %cst_203 = arith.constant dense<0.000000e+00> : vector<32x32xf32>
    %600 = tpu.matmul %598, %599, %cst_203 {dimension_numbers = #tpu.dot_dimension_numbers<[1], [0], [0], [1], [0, 0, 1, 1], [], []>} : vector<32x32xf32>, vector<32x32xf32>, vector<32x32xf32> -> vector<32x32xf32>
    %c624 = arith.constant 624 : index
    %c0_204 = arith.constant 0 : index
    %601 = vector.load %arg4[%c624, %c0_204] : memref<928x128xf32, #tpu.memory_space<vmem>>, vector<1x32xf32>
    %602 = vector.broadcast %601 : vector<1x32xf32> to vector<32x32xf32>
    %603 = arith.addf %600, %602 : vector<32x32xf32>
    %c632 = arith.constant 632 : index
    %c0_205 = arith.constant 0 : index
    %604 = vector.load %arg4[%c632, %c0_205] : memref<928x128xf32, #tpu.memory_space<vmem>>, vector<32x64xf32>
    %cst_206 = arith.constant dense<0.000000e+00> : vector<32x64xf32>
    %605 = tpu.matmul %489, %604, %cst_206 {dimension_numbers = #tpu.dot_dimension_numbers<[1], [0], [0], [1], [0, 0, 1, 1], [], []>} : vector<32x32xf32>, vector<32x64xf32>, vector<32x64xf32> -> vector<32x64xf32>
    %c664 = arith.constant 664 : index
    %c0_207 = arith.constant 0 : index
    %606 = vector.load %arg4[%c664, %c0_207] : memref<928x128xf32, #tpu.memory_space<vmem>>, vector<1x64xf32>
    %607 = vector.broadcast %606 : vector<1x64xf32> to vector<32x64xf32>
    %608 = arith.addf %605, %607 : vector<32x64xf32>
    %609 = vector.extract_strided_slice %608 {offsets = [0, 0], sizes = [32, 32], strides = [1, 1]} : vector<32x64xf32> to vector<32x32xf32>
    %610 = vector.extract_strided_slice %608 {offsets = [0, 32], sizes = [32, 32], strides = [1, 1]} : vector<32x64xf32> to vector<32x32xf32>
    %c672 = arith.constant 672 : index
    %c0_208 = arith.constant 0 : index
    %611 = vector.load %arg4[%c672, %c0_208] : memref<928x128xf32, #tpu.memory_space<vmem>>, vector<32x32xf32>
    %c704 = arith.constant 704 : index
    %c0_209 = arith.constant 0 : index
    %612 = vector.load %arg4[%c704, %c0_209] : memref<928x128xf32, #tpu.memory_space<vmem>>, vector<1x32xf32>
    %613 = vector.extract_strided_slice %603 {offsets = [0, 0], sizes = [32, 8], strides = [1, 1]} : vector<32x32xf32> to vector<32x8xf32>
    %614 = vector.extract_strided_slice %609 {offsets = [0, 0], sizes = [32, 8], strides = [1, 1]} : vector<32x32xf32> to vector<32x8xf32>
    %615 = vector.extract_strided_slice %610 {offsets = [0, 0], sizes = [32, 8], strides = [1, 1]} : vector<32x32xf32> to vector<32x8xf32>
    %cst_210 = arith.constant dense<0.000000e+00> : vector<32x32xf32>
    %616 = tpu.matmul %613, %614, %cst_210 {dimension_numbers = #tpu.dot_dimension_numbers<[1], [1], [0], [0], [0, 0, 1, 0], [], []>} : vector<32x8xf32>, vector<32x8xf32>, vector<32x32xf32> -> vector<32x32xf32>
    %cst_211 = arith.constant 0.353553385 : f32
    %617 = vector.broadcast %cst_211 : f32 to vector<32x32xf32>
    %618 = arith.mulf %616, %617 : vector<32x32xf32>
    %619 = arith.addf %618, %95 : vector<32x32xf32>
    %cst_212 = arith.constant dense<0xFF800000> : vector<32xf32>
    %620 = vector.multi_reduction <maximumf>, %619, %cst_212 [1] : vector<32x32xf32> to vector<32xf32>
    %621 = vector.shape_cast %620 : vector<32xf32> to vector<32x1xf32>
    %622 = vector.broadcast %621 : vector<32x1xf32> to vector<32x32xf32>
    %623 = arith.subf %619, %622 : vector<32x32xf32>
    %624 = math.exp %623 : vector<32x32xf32>
    %cst_213 = arith.constant dense<0.000000e+00> : vector<32xf32>
    %625 = vector.multi_reduction <add>, %624, %cst_213 [1] : vector<32x32xf32> to vector<32xf32>
    %626 = vector.shape_cast %625 : vector<32xf32> to vector<32x1xf32>
    %627 = tpu.reciprocal %626 {approx = true} : vector<32x1xf32> -> vector<32x1xf32>
    %628 = vector.broadcast %627 : vector<32x1xf32> to vector<32x32xf32>
    %629 = arith.mulf %624, %628 : vector<32x32xf32>
    %cst_214 = arith.constant dense<0.000000e+00> : vector<32x8xf32>
    %630 = tpu.matmul %629, %615, %cst_214 {dimension_numbers = #tpu.dot_dimension_numbers<[1], [0], [0], [1], [0, 0, 1, 1], [], []>} : vector<32x32xf32>, vector<32x8xf32>, vector<32x8xf32> -> vector<32x8xf32>
    %631 = vector.extract_strided_slice %603 {offsets = [0, 8], sizes = [32, 8], strides = [1, 1]} : vector<32x32xf32> to vector<32x8xf32>
    %632 = vector.extract_strided_slice %609 {offsets = [0, 8], sizes = [32, 8], strides = [1, 1]} : vector<32x32xf32> to vector<32x8xf32>
    %633 = vector.extract_strided_slice %610 {offsets = [0, 8], sizes = [32, 8], strides = [1, 1]} : vector<32x32xf32> to vector<32x8xf32>
    %cst_215 = arith.constant dense<0.000000e+00> : vector<32x32xf32>
    %634 = tpu.matmul %631, %632, %cst_215 {dimension_numbers = #tpu.dot_dimension_numbers<[1], [1], [0], [0], [0, 0, 1, 0], [], []>} : vector<32x8xf32>, vector<32x8xf32>, vector<32x32xf32> -> vector<32x32xf32>
    %cst_216 = arith.constant 0.353553385 : f32
    %635 = vector.broadcast %cst_216 : f32 to vector<32x32xf32>
    %636 = arith.mulf %634, %635 : vector<32x32xf32>
    %637 = arith.addf %636, %95 : vector<32x32xf32>
    %cst_217 = arith.constant dense<0xFF800000> : vector<32xf32>
    %638 = vector.multi_reduction <maximumf>, %637, %cst_217 [1] : vector<32x32xf32> to vector<32xf32>
    %639 = vector.shape_cast %638 : vector<32xf32> to vector<32x1xf32>
    %640 = vector.broadcast %639 : vector<32x1xf32> to vector<32x32xf32>
    %641 = arith.subf %637, %640 : vector<32x32xf32>
    %642 = math.exp %641 : vector<32x32xf32>
    %cst_218 = arith.constant dense<0.000000e+00> : vector<32xf32>
    %643 = vector.multi_reduction <add>, %642, %cst_218 [1] : vector<32x32xf32> to vector<32xf32>
    %644 = vector.shape_cast %643 : vector<32xf32> to vector<32x1xf32>
    %645 = tpu.reciprocal %644 {approx = true} : vector<32x1xf32> -> vector<32x1xf32>
    %646 = vector.broadcast %645 : vector<32x1xf32> to vector<32x32xf32>
    %647 = arith.mulf %642, %646 : vector<32x32xf32>
    %cst_219 = arith.constant dense<0.000000e+00> : vector<32x8xf32>
    %648 = tpu.matmul %647, %633, %cst_219 {dimension_numbers = #tpu.dot_dimension_numbers<[1], [0], [0], [1], [0, 0, 1, 1], [], []>} : vector<32x32xf32>, vector<32x8xf32>, vector<32x8xf32> -> vector<32x8xf32>
    %649 = vector.extract_strided_slice %603 {offsets = [0, 16], sizes = [32, 8], strides = [1, 1]} : vector<32x32xf32> to vector<32x8xf32>
    %650 = vector.extract_strided_slice %609 {offsets = [0, 16], sizes = [32, 8], strides = [1, 1]} : vector<32x32xf32> to vector<32x8xf32>
    %651 = vector.extract_strided_slice %610 {offsets = [0, 16], sizes = [32, 8], strides = [1, 1]} : vector<32x32xf32> to vector<32x8xf32>
    %cst_220 = arith.constant dense<0.000000e+00> : vector<32x32xf32>
    %652 = tpu.matmul %649, %650, %cst_220 {dimension_numbers = #tpu.dot_dimension_numbers<[1], [1], [0], [0], [0, 0, 1, 0], [], []>} : vector<32x8xf32>, vector<32x8xf32>, vector<32x32xf32> -> vector<32x32xf32>
    %cst_221 = arith.constant 0.353553385 : f32
    %653 = vector.broadcast %cst_221 : f32 to vector<32x32xf32>
    %654 = arith.mulf %652, %653 : vector<32x32xf32>
    %655 = arith.addf %654, %95 : vector<32x32xf32>
    %cst_222 = arith.constant dense<0xFF800000> : vector<32xf32>
    %656 = vector.multi_reduction <maximumf>, %655, %cst_222 [1] : vector<32x32xf32> to vector<32xf32>
    %657 = vector.shape_cast %656 : vector<32xf32> to vector<32x1xf32>
    %658 = vector.broadcast %657 : vector<32x1xf32> to vector<32x32xf32>
    %659 = arith.subf %655, %658 : vector<32x32xf32>
    %660 = math.exp %659 : vector<32x32xf32>
    %cst_223 = arith.constant dense<0.000000e+00> : vector<32xf32>
    %661 = vector.multi_reduction <add>, %660, %cst_223 [1] : vector<32x32xf32> to vector<32xf32>
    %662 = vector.shape_cast %661 : vector<32xf32> to vector<32x1xf32>
    %663 = tpu.reciprocal %662 {approx = true} : vector<32x1xf32> -> vector<32x1xf32>
    %664 = vector.broadcast %663 : vector<32x1xf32> to vector<32x32xf32>
    %665 = arith.mulf %660, %664 : vector<32x32xf32>
    %cst_224 = arith.constant dense<0.000000e+00> : vector<32x8xf32>
    %666 = tpu.matmul %665, %651, %cst_224 {dimension_numbers = #tpu.dot_dimension_numbers<[1], [0], [0], [1], [0, 0, 1, 1], [], []>} : vector<32x32xf32>, vector<32x8xf32>, vector<32x8xf32> -> vector<32x8xf32>
    %667 = vector.extract_strided_slice %603 {offsets = [0, 24], sizes = [32, 8], strides = [1, 1]} : vector<32x32xf32> to vector<32x8xf32>
    %668 = vector.extract_strided_slice %609 {offsets = [0, 24], sizes = [32, 8], strides = [1, 1]} : vector<32x32xf32> to vector<32x8xf32>
    %669 = vector.extract_strided_slice %610 {offsets = [0, 24], sizes = [32, 8], strides = [1, 1]} : vector<32x32xf32> to vector<32x8xf32>
    %cst_225 = arith.constant dense<0.000000e+00> : vector<32x32xf32>
    %670 = tpu.matmul %667, %668, %cst_225 {dimension_numbers = #tpu.dot_dimension_numbers<[1], [1], [0], [0], [0, 0, 1, 0], [], []>} : vector<32x8xf32>, vector<32x8xf32>, vector<32x32xf32> -> vector<32x32xf32>
    %cst_226 = arith.constant 0.353553385 : f32
    %671 = vector.broadcast %cst_226 : f32 to vector<32x32xf32>
    %672 = arith.mulf %670, %671 : vector<32x32xf32>
    %673 = arith.addf %672, %95 : vector<32x32xf32>
    %cst_227 = arith.constant dense<0xFF800000> : vector<32xf32>
    %674 = vector.multi_reduction <maximumf>, %673, %cst_227 [1] : vector<32x32xf32> to vector<32xf32>
    %675 = vector.shape_cast %674 : vector<32xf32> to vector<32x1xf32>
    %676 = vector.broadcast %675 : vector<32x1xf32> to vector<32x32xf32>
    %677 = arith.subf %673, %676 : vector<32x32xf32>
    %678 = math.exp %677 : vector<32x32xf32>
    %cst_228 = arith.constant dense<0.000000e+00> : vector<32xf32>
    %679 = vector.multi_reduction <add>, %678, %cst_228 [1] : vector<32x32xf32> to vector<32xf32>
    %680 = vector.shape_cast %679 : vector<32xf32> to vector<32x1xf32>
    %681 = tpu.reciprocal %680 {approx = true} : vector<32x1xf32> -> vector<32x1xf32>
    %682 = vector.broadcast %681 : vector<32x1xf32> to vector<32x32xf32>
    %683 = arith.mulf %678, %682 : vector<32x32xf32>
    %cst_229 = arith.constant dense<0.000000e+00> : vector<32x8xf32>
    %684 = tpu.matmul %683, %669, %cst_229 {dimension_numbers = #tpu.dot_dimension_numbers<[1], [0], [0], [1], [0, 0, 1, 1], [], []>} : vector<32x32xf32>, vector<32x8xf32>, vector<32x8xf32> -> vector<32x8xf32>
    %685 = tpu.concatenate %630, %648, %666, %684 in 1 : vector<32x8xf32>, vector<32x8xf32>, vector<32x8xf32>, vector<32x8xf32> -> vector<32x32xf32>
    %cst_230 = arith.constant dense<0.000000e+00> : vector<32x32xf32>
    %686 = tpu.matmul %685, %611, %cst_230 {dimension_numbers = #tpu.dot_dimension_numbers<[1], [0], [0], [1], [0, 0, 1, 1], [], []>} : vector<32x32xf32>, vector<32x32xf32>, vector<32x32xf32> -> vector<32x32xf32>
    %687 = vector.broadcast %612 : vector<1x32xf32> to vector<32x32xf32>
    %688 = arith.addf %686, %687 : vector<32x32xf32>
    %689 = arith.addf %598, %688 : vector<32x32xf32>
    %c840 = arith.constant 840 : index
    %c0_231 = arith.constant 0 : index
    %690 = vector.load %arg4[%c840, %c0_231] : memref<928x128xf32, #tpu.memory_space<vmem>>, vector<1x32xf32>
    %c848 = arith.constant 848 : index
    %c0_232 = arith.constant 0 : index
    %691 = vector.load %arg4[%c848, %c0_232] : memref<928x128xf32, #tpu.memory_space<vmem>>, vector<1x32xf32>
    %cst_233 = arith.constant dense<0.000000e+00> : vector<32xf32>
    %692 = vector.multi_reduction <add>, %689, %cst_233 [1] : vector<32x32xf32> to vector<32xf32>
    %693 = vector.shape_cast %692 : vector<32xf32> to vector<32x1xf32>
    %cst_234 = arith.constant 3.200000e+01 : f32
    %694 = vector.broadcast %cst_234 : f32 to vector<32x1xf32>
    %695 = arith.divf %693, %694 : vector<32x1xf32>
    %696 = vector.broadcast %695 : vector<32x1xf32> to vector<32x32xf32>
    %697 = arith.subf %689, %696 : vector<32x32xf32>
    %698 = arith.mulf %697, %697 : vector<32x32xf32>
    %cst_235 = arith.constant dense<0.000000e+00> : vector<32xf32>
    %699 = vector.multi_reduction <add>, %698, %cst_235 [1] : vector<32x32xf32> to vector<32xf32>
    %700 = vector.shape_cast %699 : vector<32xf32> to vector<32x1xf32>
    %cst_236 = arith.constant 3.200000e+01 : f32
    %701 = vector.broadcast %cst_236 : f32 to vector<32x1xf32>
    %702 = arith.divf %700, %701 : vector<32x1xf32>
    %cst_237 = arith.constant 9.99999974E-6 : f32
    %703 = vector.broadcast %cst_237 : f32 to vector<32x1xf32>
    %704 = arith.addf %702, %703 : vector<32x1xf32>
    %705 = math.rsqrt %704 : vector<32x1xf32>
    %706 = vector.broadcast %705 : vector<32x1xf32> to vector<32x32xf32>
    %707 = arith.mulf %697, %706 : vector<32x32xf32>
    %708 = vector.broadcast %690 : vector<1x32xf32> to vector<32x32xf32>
    %709 = arith.mulf %707, %708 : vector<32x32xf32>
    %710 = vector.broadcast %691 : vector<1x32xf32> to vector<32x32xf32>
    %711 = arith.addf %709, %710 : vector<32x32xf32>
    %c712 = arith.constant 712 : index
    %c0_238 = arith.constant 0 : index
    %712 = vector.load %arg4[%c712, %c0_238] : memref<928x128xf32, #tpu.memory_space<vmem>>, vector<32x64xf32>
    %cst_239 = arith.constant dense<0.000000e+00> : vector<32x64xf32>
    %713 = tpu.matmul %711, %712, %cst_239 {dimension_numbers = #tpu.dot_dimension_numbers<[1], [0], [0], [1], [0, 0, 1, 1], [], []>} : vector<32x32xf32>, vector<32x64xf32>, vector<32x64xf32> -> vector<32x64xf32>
    %c744 = arith.constant 744 : index
    %c0_240 = arith.constant 0 : index
    %714 = vector.load %arg4[%c744, %c0_240] : memref<928x128xf32, #tpu.memory_space<vmem>>, vector<1x64xf32>
    %715 = vector.broadcast %714 : vector<1x64xf32> to vector<32x64xf32>
    %716 = arith.addf %713, %715 : vector<32x64xf32>
    %cst_241 = arith.constant 5.000000e-01 : f32
    %717 = vector.broadcast %cst_241 : f32 to vector<32x64xf32>
    %718 = arith.mulf %717, %716 : vector<32x64xf32>
    %cst_242 = arith.constant 0.707106769 : f32
    %719 = vector.broadcast %cst_242 : f32 to vector<32x64xf32>
    %720 = arith.mulf %716, %719 : vector<32x64xf32>
    %721 = math.absf %720 : vector<32x64xf32>
    %cst_243 = arith.constant 0.327591091 : f32
    %722 = vector.broadcast %cst_243 : f32 to vector<32x64xf32>
    %723 = arith.mulf %722, %721 : vector<32x64xf32>
    %cst_244 = arith.constant 1.000000e+00 : f32
    %724 = vector.broadcast %cst_244 : f32 to vector<32x64xf32>
    %725 = arith.addf %724, %723 : vector<32x64xf32>
    %726 = tpu.reciprocal %725 {approx = true} : vector<32x64xf32> -> vector<32x64xf32>
    %cst_245 = arith.constant 1.06140542 : f32
    %727 = vector.broadcast %cst_245 : f32 to vector<32x64xf32>
    %728 = arith.mulf %727, %726 : vector<32x64xf32>
    %cst_246 = arith.constant -1.45315206 : f32
    %729 = vector.broadcast %cst_246 : f32 to vector<32x64xf32>
    %730 = arith.addf %728, %729 : vector<32x64xf32>
    %731 = arith.mulf %730, %726 : vector<32x64xf32>
    %cst_247 = arith.constant 1.42141378 : f32
    %732 = vector.broadcast %cst_247 : f32 to vector<32x64xf32>
    %733 = arith.addf %731, %732 : vector<32x64xf32>
    %734 = arith.mulf %733, %726 : vector<32x64xf32>
    %cst_248 = arith.constant -0.284496725 : f32
    %735 = vector.broadcast %cst_248 : f32 to vector<32x64xf32>
    %736 = arith.addf %734, %735 : vector<32x64xf32>
    %737 = arith.mulf %736, %726 : vector<32x64xf32>
    %cst_249 = arith.constant 0.254829586 : f32
    %738 = vector.broadcast %cst_249 : f32 to vector<32x64xf32>
    %739 = arith.addf %737, %738 : vector<32x64xf32>
    %740 = arith.mulf %739, %726 : vector<32x64xf32>
    %741 = arith.mulf %721, %721 : vector<32x64xf32>
    %cst_250 = arith.constant 0.000000e+00 : f32
    %742 = vector.broadcast %cst_250 : f32 to vector<32x64xf32>
    %743 = arith.subf %742, %741 : vector<32x64xf32>
    %744 = math.exp %743 : vector<32x64xf32>
    %745 = arith.mulf %740, %744 : vector<32x64xf32>
    %cst_251 = arith.constant 1.000000e+00 : f32
    %746 = vector.broadcast %cst_251 : f32 to vector<32x64xf32>
    %747 = arith.subf %746, %745 : vector<32x64xf32>
    %cst_252 = arith.constant 0.000000e+00 : f32
    %748 = vector.broadcast %cst_252 : f32 to vector<32x64xf32>
    %749 = arith.cmpf oge, %720, %748 : vector<32x64xf32>
    %cst_253 = arith.constant 0.000000e+00 : f32
    %750 = vector.broadcast %cst_253 : f32 to vector<32x64xf32>
    %751 = arith.subf %750, %747 : vector<32x64xf32>
    %752 = arith.select %749, %747, %751 : vector<32x64xi1>, vector<32x64xf32>
    %cst_254 = arith.constant 1.000000e+00 : f32
    %753 = vector.broadcast %cst_254 : f32 to vector<32x64xf32>
    %754 = arith.addf %753, %752 : vector<32x64xf32>
    %755 = arith.mulf %718, %754 : vector<32x64xf32>
    %c752 = arith.constant 752 : index
    %c0_255 = arith.constant 0 : index
    %756 = vector.load %arg4[%c752, %c0_255] : memref<928x128xf32, #tpu.memory_space<vmem>>, vector<64x32xf32>
    %cst_256 = arith.constant dense<0.000000e+00> : vector<32x32xf32>
    %757 = tpu.matmul %755, %756, %cst_256 {dimension_numbers = #tpu.dot_dimension_numbers<[1], [0], [0], [1], [0, 0, 1, 1], [], []>} : vector<32x64xf32>, vector<64x32xf32>, vector<32x32xf32> -> vector<32x32xf32>
    %c816 = arith.constant 816 : index
    %c0_257 = arith.constant 0 : index
    %758 = vector.load %arg4[%c816, %c0_257] : memref<928x128xf32, #tpu.memory_space<vmem>>, vector<1x32xf32>
    %759 = vector.broadcast %758 : vector<1x32xf32> to vector<32x32xf32>
    %760 = arith.addf %757, %759 : vector<32x32xf32>
    %761 = arith.addf %711, %760 : vector<32x32xf32>
    %c856 = arith.constant 856 : index
    %c0_258 = arith.constant 0 : index
    %762 = vector.load %arg4[%c856, %c0_258] : memref<928x128xf32, #tpu.memory_space<vmem>>, vector<1x32xf32>
    %c864 = arith.constant 864 : index
    %c0_259 = arith.constant 0 : index
    %763 = vector.load %arg4[%c864, %c0_259] : memref<928x128xf32, #tpu.memory_space<vmem>>, vector<1x32xf32>
    %cst_260 = arith.constant dense<0.000000e+00> : vector<32xf32>
    %764 = vector.multi_reduction <add>, %761, %cst_260 [1] : vector<32x32xf32> to vector<32xf32>
    %765 = vector.shape_cast %764 : vector<32xf32> to vector<32x1xf32>
    %cst_261 = arith.constant 3.200000e+01 : f32
    %766 = vector.broadcast %cst_261 : f32 to vector<32x1xf32>
    %767 = arith.divf %765, %766 : vector<32x1xf32>
    %768 = vector.broadcast %767 : vector<32x1xf32> to vector<32x32xf32>
    %769 = arith.subf %761, %768 : vector<32x32xf32>
    %770 = arith.mulf %769, %769 : vector<32x32xf32>
    %cst_262 = arith.constant dense<0.000000e+00> : vector<32xf32>
    %771 = vector.multi_reduction <add>, %770, %cst_262 [1] : vector<32x32xf32> to vector<32xf32>
    %772 = vector.shape_cast %771 : vector<32xf32> to vector<32x1xf32>
    %cst_263 = arith.constant 3.200000e+01 : f32
    %773 = vector.broadcast %cst_263 : f32 to vector<32x1xf32>
    %774 = arith.divf %772, %773 : vector<32x1xf32>
    %cst_264 = arith.constant 9.99999974E-6 : f32
    %775 = vector.broadcast %cst_264 : f32 to vector<32x1xf32>
    %776 = arith.addf %774, %775 : vector<32x1xf32>
    %777 = math.rsqrt %776 : vector<32x1xf32>
    %778 = vector.broadcast %777 : vector<32x1xf32> to vector<32x32xf32>
    %779 = arith.mulf %769, %778 : vector<32x32xf32>
    %780 = vector.broadcast %762 : vector<1x32xf32> to vector<32x32xf32>
    %781 = arith.mulf %779, %780 : vector<32x32xf32>
    %782 = vector.broadcast %763 : vector<1x32xf32> to vector<32x32xf32>
    %783 = arith.addf %781, %782 : vector<32x32xf32>
    %c872 = arith.constant 872 : index
    %c0_265 = arith.constant 0 : index
    %784 = vector.load %arg4[%c872, %c0_265] : memref<928x128xf32, #tpu.memory_space<vmem>>, vector<1x32xf32>
    %c880 = arith.constant 880 : index
    %c0_266 = arith.constant 0 : index
    %785 = vector.load %arg4[%c880, %c0_266] : memref<928x128xf32, #tpu.memory_space<vmem>>, vector<1x32xf32>
    %cst_267 = arith.constant dense<0.000000e+00> : vector<32xf32>
    %786 = vector.multi_reduction <add>, %783, %cst_267 [1] : vector<32x32xf32> to vector<32xf32>
    %787 = vector.shape_cast %786 : vector<32xf32> to vector<32x1xf32>
    %cst_268 = arith.constant 3.200000e+01 : f32
    %788 = vector.broadcast %cst_268 : f32 to vector<32x1xf32>
    %789 = arith.divf %787, %788 : vector<32x1xf32>
    %790 = vector.broadcast %789 : vector<32x1xf32> to vector<32x32xf32>
    %791 = arith.subf %783, %790 : vector<32x32xf32>
    %792 = arith.mulf %791, %791 : vector<32x32xf32>
    %cst_269 = arith.constant dense<0.000000e+00> : vector<32xf32>
    %793 = vector.multi_reduction <add>, %792, %cst_269 [1] : vector<32x32xf32> to vector<32xf32>
    %794 = vector.shape_cast %793 : vector<32xf32> to vector<32x1xf32>
    %cst_270 = arith.constant 3.200000e+01 : f32
    %795 = vector.broadcast %cst_270 : f32 to vector<32x1xf32>
    %796 = arith.divf %794, %795 : vector<32x1xf32>
    %cst_271 = arith.constant 9.99999974E-6 : f32
    %797 = vector.broadcast %cst_271 : f32 to vector<32x1xf32>
    %798 = arith.addf %796, %797 : vector<32x1xf32>
    %799 = math.rsqrt %798 : vector<32x1xf32>
    %800 = vector.broadcast %799 : vector<32x1xf32> to vector<32x32xf32>
    %801 = arith.mulf %791, %800 : vector<32x32xf32>
    %802 = vector.broadcast %784 : vector<1x32xf32> to vector<32x32xf32>
    %803 = arith.mulf %801, %802 : vector<32x32xf32>
    %804 = vector.broadcast %785 : vector<1x32xf32> to vector<32x32xf32>
    %805 = arith.addf %803, %804 : vector<32x32xf32>
    %c888 = arith.constant 888 : index
    %c0_272 = arith.constant 0 : index
    %806 = vector.load %arg4[%c888, %c0_272] : memref<928x128xf32, #tpu.memory_space<vmem>>, vector<32x128xf32>
    %cst_273 = arith.constant dense<0.000000e+00> : vector<32x128xf32>
    %807 = tpu.matmul %805, %806, %cst_273 {dimension_numbers = #tpu.dot_dimension_numbers<[1], [0], [0], [1], [0, 0, 1, 1], [], []>} : vector<32x32xf32>, vector<32x128xf32>, vector<32x128xf32> -> vector<32x128xf32>
    %c920 = arith.constant 920 : index
    %c0_274 = arith.constant 0 : index
    %808 = vector.load %arg4[%c920, %c0_274] : memref<928x128xf32, #tpu.memory_space<vmem>>, vector<1x128xf32>
    %809 = vector.broadcast %808 : vector<1x128xf32> to vector<32x128xf32>
    %810 = arith.addf %807, %809 : vector<32x128xf32>
    %c0_275 = arith.constant 0 : index
    %c0_276 = arith.constant 0 : index
    %811 = vector.load %arg5[%c0_275, %c0_276] : memref<32x128xf32, #tpu.memory_space<vmem>>, vector<32x128xf32>
    tpu.vector_store %arg5[%c0_275, %c0_276], %810 {strides = array<i32>} : memref<32x128xf32, #tpu.memory_space<vmem>>, vector<32x128xf32>,
    return
  }
}

</mosaic_0001>

<llo_original>
// kernel: forward.1
$region0: #{forward.1}
  #allocation0 [shape = 'u32[]', space=smem, size = 0x4, offset = 0x4, fixed_abs, tag = 'smem constant byte address 0x4 - core index']
  #allocation1 [shape = 'u32[144,128]{1,0:T(1,128)}', space=vmem, size = 0x12000, scoped, tag = 'internal scratch']
  %s0 = inlined_call_operand.vmem [shape: f32[32,17], index: 0, kind: input, shape index: {}]
  %s1 = inlined_call_operand.vmem [shape: f32[32,32], index: 1, kind: input, shape index: {}, may-alias: {1,3}]
  %s2 = inlined_call_operand.vmem [shape: f32[32,17], index: 2, kind: input, shape index: {}]
  %s3 = inlined_call_operand.vmem [shape: f32[32,32], index: 3, kind: input, shape index: {}, may-alias: {1,3}]
  %s4 = inlined_call_operand.hbm [shape: f32[928,128], index: 4, kind: input, shape index: {}]
  %s5 = inlined_call_operand.vmem [shape: f32[32,128], index: 5, kind: output, shape index: {}]
  %s6 = sld [smem:[#allocation0]]
  $region34: #{forward.1} parent=0
    _
  %s8 = ssub.s32 1, %s6
  %s9 = scalar_select 0, %s8, %s6
  $region1: #{forward.1} parent=0
    #allocation2 [shape = 'u8[475136]{0}', space=vmem, size = 0x74000, scoped, tag = 'input window, operand 4, single buffered']
    #allocation3 [shape = 's32[1]{0}', space=sflag, size = 0x4, scoped, tag = 'scoped memory for forward.1']
    %10 = vsyncpa [#allocation3], 0
    // Predicated region
    $region2: #{forward.1} parent=1 // pred_check
      _
    $region3: #{forward.1} parent=1 // pred_check_branch
      %12 = sbr.rel (0) target = $region5
    $region4: #{forward.1} parent=1 // pred_region
      _
    $region5: #{forward.1} parent=1 // pred_fallthru
      _
    // Predicated region
    $region6: #{forward.1} parent=1 // pred_check
      _
    $region7: #{forward.1} parent=1 // pred_check_branch
      %14 = sbr.rel (0) target = $region9
    $region8: #{forward.1} parent=1 // pred_region
      _
    $region9: #{forward.1} parent=1 // pred_fallthru
      _
    // Predicated region
    $region10: #{forward.1} parent=1 // pred_check
      _
    $region11: #{forward.1} parent=1 // pred_check_branch
      %16 = sbr.rel (0) target = $region13
    $region12: #{forward.1} parent=1 // pred_region
      _
    $region13: #{forward.1} parent=1 // pred_fallthru
      _
    // Predicated region
    $region14: #{forward.1} parent=1 // pred_check
      _
    $region15: #{forward.1} parent=1 // pred_check_branch
      %18 = sbr.rel (0) target = $region17
    $region16: #{forward.1} parent=1 // pred_region
      _
    $region17: #{forward.1} parent=1 // pred_fallthru
      _
    // Predicated region
    $region18: #{forward.1} parent=1 // pred_check
      _
    $region19: #{forward.1} parent=1 // pred_check_branch
      %20 = sbr.rel (0) target = $region21
    $region20: #{forward.1} parent=1 // pred_region
      %s22 = ssub.s32 14848, 14848
      %23 = vsyncadd [#allocation3], %s22
      %s24 = sshll.u32 [#allocation2], 4
      %s25 = int_to_ptr.vmem [resolvable:$true] %s24
      %30 = dma.hbm_to_vmem [thread:$0]  %s4, 14848, %s25, [#allocation3], 128, 128, 8
    $region21: #{forward.1} parent=1 // pred_fallthru
      _
    // Predicated region
    $region22: #{forward.1} parent=1 // pred_check
      _
    $region23: #{forward.1} parent=1 // pred_check_branch
      %32 = sbr.rel (0) target = $region25
    $region24: #{forward.1} parent=1 // pred_region
      %33 = dma.done [#allocation3], 14848
    $region25: #{forward.1} parent=1 // pred_fallthru
      _
    %v34 = vlaneseq
    %v35 = vshrl.u32 %v34, 7
    %v36 = vadd.s32 %v35, 8
    %v37 = vadd.s32 %v35, 16
    %v38 = vadd.s32 %v35, 24
    %v39 = vlaneseq
    %v40 = vand.u32 %v39, 127
    %vm41 = vcmp.ge.s32.totalorder %v35, 0
    %vm42 = vcmp.ge.s32.totalorder %v36, 0
    %vm43 = vcmp.ge.s32.totalorder %v37, 0
    %vm44 = vcmp.ge.s32.totalorder %v38, 0
    %vm45 = vcmp.lt.s32.totalorder %v35, 16
    %vm46 = vcmp.lt.s32.totalorder %v36, 16
    %vm47 = vcmp.lt.s32.totalorder %v37, 16
    %vm48 = vcmp.lt.s32.totalorder %v38, 16
    %vm49 = vmand %vm41, %vm45
    %vm50 = vmand %vm42, %vm46
    %vm51 = vmand %vm43, %vm47
    %vm52 = vmand %vm44, %vm48
    %vm53 = vcmp.ge.s32.totalorder %v40, 0
    %vm54 = vmand %vm49, %vm53
    %vm55 = vmand %vm50, %vm53
    %vm56 = vmand %vm51, %vm53
    %vm57 = vmand %vm52, %vm53
    %vm58 = vcmp.lt.s32.totalorder %v40, 16
    %vm59 = vmand %vm54, %vm58
    %vm60 = vmand %vm55, %vm58
    %vm61 = vmand %vm56, %vm58
    %vm62 = vmand %vm57, %vm58
    %vm63 = vcmp.ge.s32.totalorder %v35, 16
    %vm64 = vcmp.ge.s32.totalorder %v36, 16
    %vm65 = vcmp.ge.s32.totalorder %v37, 16
    %vm66 = vcmp.ge.s32.totalorder %v38, 16
    %vm67 = vcmp.lt.s32.totalorder %v35, 32
    %vm68 = vcmp.lt.s32.totalorder %v36, 32
    %vm69 = vcmp.lt.s32.totalorder %v37, 32
    %vm70 = vcmp.lt.s32.totalorder %v38, 32
    %vm71 = vmand %vm63, %vm67
    %vm72 = vmand %vm64, %vm68
    %vm73 = vmand %vm65, %vm69
    %vm74 = vmand %vm66, %vm70
    %vm75 = vcmp.ge.s32.totalorder %v40, 16
    %vm76 = vmand %vm71, %vm75
    %vm77 = vmand %vm72, %vm75
    %vm78 = vmand %vm73, %vm75
    %vm79 = vmand %vm74, %vm75
    %vm80 = vcmp.lt.s32.totalorder %v40, 32
    %vm81 = vmand %vm76, %vm80
    %vm82 = vmand %vm77, %vm80
    %vm83 = vmand %vm78, %vm80
    %vm84 = vmand %vm79, %vm80
    %vm85 = vmor %vm59, %vm81
    %vm86 = vmor %vm60, %vm82
    %vm87 = vmor %vm61, %vm83
    %vm88 = vmor %vm62, %vm84
    %v89 = vsel %vm85, 0.0, -1e+30
    %v90 = vsel %vm86, 0.0, -1e+30
    %v91 = vsel %vm87, 0.0, -1e+30
    %v92 = vsel %vm88, 0.0, -1e+30
    %vm93 = vcmp.le.s32.totalorder %v40, %v35
    %vm94 = vcmp.le.s32.totalorder %v40, %v36
    %vm95 = vcmp.le.s32.totalorder %v40, %v37
    %vm96 = vcmp.le.s32.totalorder %v40, %v38
    %vm97 = vmand %vm59, %vm93
    %vm98 = vmand %vm60, %vm94
    %vm99 = vmand %vm61, %vm95
    %vm100 = vmand %vm62, %vm96
    %v101 = vsub.s32 %v40, 16
    %v102 = vsub.s32 %v35, 16
    %v103 = vsub.s32 %v36, 16
    %v104 = vsub.s32 %v38, 16
    %vm105 = vcmp.le.s32.totalorder %v101, %v102
    %vm106 = vcmp.le.s32.totalorder %v101, %v103
    %vm107 = vcmp.le.s32.totalorder %v101, %v35
    %vm108 = vcmp.le.s32.totalorder %v101, %v104
    %vm109 = vmand %vm81, %vm105
    %vm110 = vmand %vm82, %vm106
    %vm111 = vmand %vm83, %vm107
    %vm112 = vmand %vm84, %vm108
    %vm113 = vmor %vm97, %vm109
    %vm114 = vmor %vm98, %vm110
    %vm115 = vmor %vm99, %vm111
    %vm116 = vmor %vm100, %vm112
    %v117 = vsel %vm113, 0.0, -1e+30
    %v118 = vsel %vm114, 0.0, -1e+30
    %v119 = vsel %vm115, 0.0, -1e+30
    %v120 = vsel %vm116, 0.0, -1e+30
    %v121 = vld [vmem:[%s0] sm:$0xff]
    %v122 = vld [vmem:[%s0 + $0x8] sm:$0xff]
    %v123 = vld [vmem:[%s0 + $0x10] sm:$0xff]
    %v124 = vld [vmem:[%s0 + $0x18] sm:$0xff]
    %v125 = vld [vmem:[#allocation2] sm:$0xff]
    %v126 = vld [vmem:[#allocation2 + $0x8] sm:$0xff]
    %v127 = vld [vmem:[#allocation2 + $0x10] sm:$0x1]
    %v128 = vld [vmem:[%s1] sm:$0xff]
    %v129 = vld [vmem:[%s1 + $0x8] sm:$0xff]
    %v130 = vld [vmem:[%s1 + $0x10] sm:$0xff]
    %v131 = vld [vmem:[%s1 + $0x18] sm:$0xff]
    %vm132 = vcmask 138240
    %v134 = vsel %vm132, %v121, 0
    %v137 = vsel %vm132, %v122, 0
    %v140 = vsel %vm132, %v123, 0
    %v143 = vsel %vm132, %v124, 0
    %vm145 = vcmask 1040384
    %v147 = vsel %vm145, %v127, 0
    %149 = vmatprep.subr.mxu0 0.0
    %150 = vmatpush1.msra.mxu0 %v125
    %151 = vmatprep.subr.mxu0 0.0
    %152 = vmatpush1.msra.mxu0 %v126
    %153 = vmatprep.subr.mxu0 0.0
    %154 = vmatpush1.msra.mxu0 %v147
    %155 = vmatprep.subr.mxu0 0.0
    %156 = vmatpush1.msra.mxu0 0.0
    %157 = vmatprep.subr.mxu0 0.0
    %158 = vmatpush1.msra.mxu0 0.0
    %159 = vmatprep.subr.mxu0 0.0
    %160 = vmatpush1.msra.mxu0 0.0
    %161 = vmatprep.subr.mxu0 0.0
    %162 = vmatpush1.msra.mxu0 0.0
    %163 = vmatprep.subr.mxu0 0.0
    %164 = vmatpush1.msra.mxu0 0.0
    %165 = vmatprep.subr.mxu0 0.0
    %166 = vmatpush1.msra.mxu0 0.0
    %167 = vmatprep.subr.mxu0 0.0
    %168 = vmatpush1.msra.mxu0 0.0
    %169 = vmatprep.subr.mxu0 0.0
    %170 = vmatpush1.msra.mxu0 0.0
    %171 = vmatprep.subr.mxu0 0.0
    %172 = vmatpush1.msra.mxu0 0.0
    %173 = vmatprep.subr.mxu0 0.0
    %174 = vmatpush1.msra.mxu0 0.0
    %175 = vmatprep.subr.mxu0 0.0
    %176 = vmatpush1.msra.mxu0 0.0
    %177 = vmatprep.subr.mxu0 0.0
    %178 = vmatpush1.msra.mxu0 0.0
    %179 = vmatprep.subr.mxu0 0.0
    %180 = vmatpush1.msra.mxu0 0.0
    %181 = vmatprep.subr.mxu0 0.0
    %182 = vmatpush1.msra.mxu0 0.0
    %183 = vmatprep.subr.mxu0 0.0
    %184 = vmatpush1.msra.mxu0 0.0
    %185 = vmatprep.subr.mxu0 0.0
    %186 = vmatpush1.msra.mxu0 0.0
    %187 = vmatprep.subr.mxu0 0.0
    %188 = vmatpush1.msra.mxu0 0.0
    %189 = vmatprep.subr.mxu0 0.0
    %190 = vmatpush1.msra.mxu0 0.0
    %191 = vmatprep.subr.mxu0 0.0
    %192 = vmatpush1.msra.mxu0 0.0
    %193 = vmatprep.subr.mxu0 0.0
    %194 = vmatpush1.msra.mxu0 0.0
    %195 = vmatprep.subr.mxu0 0.0
    %196 = vmatpush1.msra.mxu0 0.0
    %197 = vmatprep.subr.mxu0 0.0
    %198 = vmatpush1.msra.mxu0 0.0
    %199 = vmatprep.subr.mxu0 0.0
    %200 = vmatpush1.msra.mxu0 0.0
    %201 = vmatprep.subr.mxu0 0.0
    %202 = vmatpush1.msra.mxu0 0.0
    %203 = vmatprep.subr.mxu0 0.0
    %204 = vmatpush1.msra.mxu0 0.0
    %205 = vmatprep.subr.mxu0 0.0
    %206 = vmatpush1.msra.mxu0 0.0
    %207 = vmatprep.subr.mxu0 0.0
    %208 = vmatpush1.msra.mxu0 0.0
    %209 = vmatprep.subr.mxu0 0.0
    %210 = vmatpush1.msra.mxu0 0.0
    %211 = vmatprep.subr.mxu0 0.0
    %212 = vmatpush1.msra.mxu0 0.0
    %213 = vmatprep.mubr.f32.mxu0 0.0
    %214 = vmatmul.mubr.f32.gmra.mrb[0].mxu0 %v134
    %v215 = vpop.f32.mrb[0].mxu0
    %v216 = vadd.f32 %v128, %v215
    %v217 = vpop.f32.mrb[0].mxu0
    %218 = vmatprep.mubr.f32.mxu0 0.0
    %219 = vmatmul.mubr.f32.gmra.mrb[0].mxu0 %v137
    %v220 = vpop.f32.mrb[0].mxu0
    %v221 = vadd.f32 %v129, %v220
    %v222 = vpop.f32.mrb[0].mxu0
    %223 = vmatprep.mubr.f32.mxu0 0.0
    %224 = vmatmul.mubr.f32.gmra.mrb[0].mxu0 %v140
    %v225 = vpop.f32.mrb[0].mxu0
    %v226 = vadd.f32 %v130, %v225
    %v227 = vpop.f32.mrb[0].mxu0
    %228 = vmatprep.mubr.f32.mxu0 0.0
    %229 = vmatmul.mubr.f32.gmra.mrb[0].mxu0 %v143
    %v230 = vpop.f32.mrb[0].mxu0
    %v231 = vadd.f32 %v131, %v230
    %v232 = vpop.f32.mrb[0].mxu0
    %233 = vdwg.mxu0
    %v234 = vld [vmem:[%s2] sm:$0xff]
    %v235 = vld [vmem:[%s2 + $0x8] sm:$0xff]
    %v236 = vld [vmem:[%s2 + $0x10] sm:$0xff]
    %v237 = vld [vmem:[%s2 + $0x18] sm:$0xff]
    %v238 = vld [vmem:[#allocation2 + $0x18] sm:$0xff]
    %v239 = vld [vmem:[#allocation2 + $0x20] sm:$0xff]
    %v240 = vld [vmem:[#allocation2 + $0x28] sm:$0x1]
    %v241 = vld [vmem:[%s3] sm:$0xff]
    %v242 = vld [vmem:[%s3 + $0x8] sm:$0xff]
    %v243 = vld [vmem:[%s3 + $0x10] sm:$0xff]
    %v244 = vld [vmem:[%s3 + $0x18] sm:$0xff]
    %v246 = vsel %vm132, %v234, 0
    %v249 = vsel %vm132, %v235, 0
    %v252 = vsel %vm132, %v236, 0
    %v255 = vsel %vm132, %v237, 0
    %v258 = vsel %vm145, %v240, 0
    %260 = vmatprep.subr.mxu0 0.0
    %261 = vmatpush1.msra.mxu0 %v238
    %262 = vmatprep.subr.mxu0 0.0
    %263 = vmatpush1.msra.mxu0 %v239
    %264 = vmatprep.subr.mxu0 0.0
    %265 = vmatpush1.msra.mxu0 %v258
    %266 = vmatprep.subr.mxu0 0.0
    %267 = vmatpush1.msra.mxu0 0.0
    %268 = vmatprep.subr.mxu0 0.0
    %269 = vmatpush1.msra.mxu0 0.0
    %270 = vmatprep.subr.mxu0 0.0
    %271 = vmatpush1.msra.mxu0 0.0
    %272 = vmatprep.subr.mxu0 0.0
    %273 = vmatpush1.msra.mxu0 0.0
    %274 = vmatprep.subr.mxu0 0.0
    %275 = vmatpush1.msra.mxu0 0.0
    %276 = vmatprep.subr.mxu0 0.0
    %277 = vmatpush1.msra.mxu0 0.0
    %278 = vmatprep.subr.mxu0 0.0
    %279 = vmatpush1.msra.mxu0 0.0
    %280 = vmatprep.subr.mxu0 0.0
    %281 = vmatpush1.msra.mxu0 0.0
    %282 = vmatprep.subr.mxu0 0.0
    %283 = vmatpush1.msra.mxu0 0.0
    %284 = vmatprep.subr.mxu0 0.0
    %285 = vmatpush1.msra.mxu0 0.0
    %286 = vmatprep.subr.mxu0 0.0
    %287 = vmatpush1.msra.mxu0 0.0
    %288 = vmatprep.subr.mxu0 0.0
    %289 = vmatpush1.msra.mxu0 0.0
    %290 = vmatprep.subr.mxu0 0.0
    %291 = vmatpush1.msra.mxu0 0.0
    %292 = vmatprep.subr.mxu0 0.0
    %293 = vmatpush1.msra.mxu0 0.0
    %294 = vmatprep.subr.mxu0 0.0
    %295 = vmatpush1.msra.mxu0 0.0
    %296 = vmatprep.subr.mxu0 0.0
    %297 = vmatpush1.msra.mxu0 0.0
    %298 = vmatprep.subr.mxu0 0.0
    %299 = vmatpush1.msra.mxu0 0.0
    %300 = vmatprep.subr.mxu0 0.0
    %301 = vmatpush1.msra.mxu0 0.0
    %302 = vmatprep.subr.mxu0 0.0
    %303 = vmatpush1.msra.mxu0 0.0
    %304 = vmatprep.subr.mxu0 0.0
    %305 = vmatpush1.msra.mxu0 0.0
    %306 = vmatprep.subr.mxu0 0.0
    %307 = vmatpush1.msra.mxu0 0.0
    %308 = vmatprep.subr.mxu0 0.0
    %309 = vmatpush1.msra.mxu0 0.0
    %310 = vmatprep.subr.mxu0 0.0
    %311 = vmatpush1.msra.mxu0 0.0
    %312 = vmatprep.subr.mxu0 0.0
    %313 = vmatpush1.msra.mxu0 0.0
    %314 = vmatprep.subr.mxu0 0.0
    %315 = vmatpush1.msra.mxu0 0.0
    %316 = vmatprep.subr.mxu0 0.0
    %317 = vmatpush1.msra.mxu0 0.0
    %318 = vmatprep.subr.mxu0 0.0
    %319 = vmatpush1.msra.mxu0 0.0
    %320 = vmatprep.subr.mxu0 0.0
    %321 = vmatpush1.msra.mxu0 0.0
    %322 = vmatprep.subr.mxu0 0.0
    %323 = vmatpush1.msra.mxu0 0.0
    %324 = vmatprep.mubr.f32.mxu0 0.0
    %325 = vmatmul.mubr.f32.gmra.mrb[0].mxu0 %v246
    %v326 = vpop.f32.mrb[0].mxu0
    %v327 = vadd.f32 %v241, %v326
    %v328 = vpop.f32.mrb[0].mxu0
    %329 = vmatprep.mubr.f32.mxu0 0.0
    %330 = vmatmul.mubr.f32.gmra.mrb[0].mxu0 %v249
    %v331 = vpop.f32.mrb[0].mxu0
    %v332 = vadd.f32 %v242, %v331
    %v333 = vpop.f32.mrb[0].mxu0
    %334 = vmatprep.mubr.f32.mxu0 0.0
    %335 = vmatmul.mubr.f32.gmra.mrb[0].mxu0 %v252
    %v336 = vpop.f32.mrb[0].mxu0
    %v337 = vadd.f32 %v243, %v336
    %v338 = vpop.f32.mrb[0].mxu0
    %339 = vmatprep.mubr.f32.mxu0 0.0
    %340 = vmatmul.mubr.f32.gmra.mrb[0].mxu0 %v255
    %v341 = vpop.f32.mrb[0].mxu0
    %v342 = vadd.f32 %v244, %v341
    %v343 = vpop.f32.mrb[0].mxu0
    %344 = vdwg.mxu0
    %v345 = vld [vmem:[#allocation2 + $0x30] sm:$0xff]
    %v346 = vld [vmem:[#allocation2 + $0x38] sm:$0xff]
    %v347 = vld [vmem:[#allocation2 + $0x40] sm:$0xff]
    %v348 = vld [vmem:[#allocation2 + $0x48] sm:$0xff]
    %v349 = vld [vmem:[#allocation2 + $0x50] sm:$0x1]
    %v350 = vlaneseq
    %v351 = vshrl.u32 %v350, 7
    %v352 = vsub.s32 0, %v351
    %v353 = vrot.slane %v349, %v352
    %vm354 = vcmask 261120
    %v356 = vsel %vm354, %v216, 0
    %v359 = vsel %vm354, %v221, 0
    %v362 = vsel %vm354, %v226, 0
    %v365 = vsel %vm354, %v231, 0
    %367 = vmatprep.subr.mxu0 0.0
    %368 = vmatpush1.msra.mxu0 %v345
    %369 = vmatprep.subr.mxu0 0.0
    %370 = vmatpush1.msra.mxu0 %v346
    %371 = vmatprep.subr.mxu0 0.0
    %372 = vmatpush1.msra.mxu0 %v347
    %373 = vmatprep.subr.mxu0 0.0
    %374 = vmatpush1.msra.mxu0 %v348
    %375 = vmatprep.subr.mxu0 0.0
    %376 = vmatpush1.msra.mxu0 0.0
    %377 = vmatprep.subr.mxu0 0.0
    %378 = vmatpush1.msra.mxu0 0.0
    %379 = vmatprep.subr.mxu0 0.0
    %380 = vmatpush1.msra.mxu0 0.0
    %381 = vmatprep.subr.mxu0 0.0
    %382 = vmatpush1.msra.mxu0 0.0
    %383 = vmatprep.subr.mxu0 0.0
    %384 = vmatpush1.msra.mxu0 0.0
    %385 = vmatprep.subr.mxu0 0.0
    %386 = vmatpush1.msra.mxu0 0.0
    %387 = vmatprep.subr.mxu0 0.0
    %388 = vmatpush1.msra.mxu0 0.0
    %389 = vmatprep.subr.mxu0 0.0
    %390 = vmatpush1.msra.mxu0 0.0
    %391 = vmatprep.subr.mxu0 0.0
    %392 = vmatpush1.msra.mxu0 0.0
    %393 = vmatprep.subr.mxu0 0.0
    %394 = vmatpush1.msra.mxu0 0.0
    %395 = vmatprep.subr.mxu0 0.0
    %396 = vmatpush1.msra.mxu0 0.0
    %397 = vmatprep.subr.mxu0 0.0
    %398 = vmatpush1.msra.mxu0 0.0
    %399 = vmatprep.subr.mxu0 0.0
    %400 = vmatpush1.msra.mxu0 0.0
    %401 = vmatprep.subr.mxu0 0.0
    %402 = vmatpush1.msra.mxu0 0.0
    %403 = vmatprep.subr.mxu0 0.0
    %404 = vmatpush1.msra.mxu0 0.0
    %405 = vmatprep.subr.mxu0 0.0
    %406 = vmatpush1.msra.mxu0 0.0
    %407 = vmatprep.subr.mxu0 0.0
    %408 = vmatpush1.msra.mxu0 0.0
    %409 = vmatprep.subr.mxu0 0.0
    %410 = vmatpush1.msra.mxu0 0.0
    %411 = vmatprep.subr.mxu0 0.0
    %412 = vmatpush1.msra.mxu0 0.0
    %413 = vmatprep.subr.mxu0 0.0
    %414 = vmatpush1.msra.mxu0 0.0
    %415 = vmatprep.subr.mxu0 0.0
    %416 = vmatpush1.msra.mxu0 0.0
    %417 = vmatprep.subr.mxu0 0.0
    %418 = vmatpush1.msra.mxu0 0.0
    %419 = vmatprep.subr.mxu0 0.0
    %420 = vmatpush1.msra.mxu0 0.0
    %421 = vmatprep.subr.mxu0 0.0
    %422 = vmatpush1.msra.mxu0 0.0
    %423 = vmatprep.subr.mxu0 0.0
    %424 = vmatpush1.msra.mxu0 0.0
    %425 = vmatprep.subr.mxu0 0.0
    %426 = vmatpush1.msra.mxu0 0.0
    %427 = vmatprep.subr.mxu0 0.0
    %428 = vmatpush1.msra.mxu0 0.0
    %429 = vmatprep.subr.mxu0 0.0
    %430 = vmatpush1.msra.mxu0 0.0
    %431 = vmatprep.mubr.f32.mxu0 0.0
    %432 = vmatmul.mubr.f32.gmra.mrb[0].mxu0 %v356
    %v433 = vpop.f32.mrb[0].mxu0
    %v434 = vadd.f32 %v353, %v433
    %v435 = vpop.f32.mrb[0].mxu0
    %436 = vmatprep.mubr.f32.mxu0 0.0
    %437 = vmatmul.mubr.f32.gmra.mrb[0].mxu0 %v359
    %v438 = vpop.f32.mrb[0].mxu0
    %v439 = vadd.f32 %v353, %v438
    %v440 = vpop.f32.mrb[0].mxu0
    %441 = vmatprep.mubr.f32.mxu0 0.0
    %442 = vmatmul.mubr.f32.gmra.mrb[0].mxu0 %v362
    %v443 = vpop.f32.mrb[0].mxu0
    %v444 = vadd.f32 %v353, %v443
    %v445 = vpop.f32.mrb[0].mxu0
    %446 = vmatprep.mubr.f32.mxu0 0.0
    %447 = vmatmul.mubr.f32.gmra.mrb[0].mxu0 %v365
    %v448 = vpop.f32.mrb[0].mxu0
    %v449 = vadd.f32 %v353, %v448
    %v450 = vpop.f32.mrb[0].mxu0
    %451 = vdwg.mxu0
    %v452 = vld [vmem:[#allocation2 + $0x58] sm:$0xff]
    %v453 = vld [vmem:[#allocation2 + $0x60] sm:$0xff]
    %v454 = vld [vmem:[#allocation2 + $0x68] sm:$0xff]
    %v455 = vld [vmem:[#allocation2 + $0x70] sm:$0xff]
    %v456 = vld [vmem:[#allocation2 + $0x78] sm:$0x1]
    %461 = vrot.lane.b32.xlu0 %v434, 96
    %v462 = vpop.permute.xlu0 %461
    %463 = vrot.lane.b32.xlu0 %v439, 96
    %v464 = vpop.permute.xlu0 %463
    %465 = vrot.lane.b32.xlu0 %v444, 96
    %v466 = vpop.permute.xlu0 %465
    %467 = vrot.lane.b32.xlu0 %v449, 96
    %v468 = vpop.permute.xlu0 %467
    %vm469 = vcmask 64512
    %v470 = vsel %vm469, %v434, 0
    %v472 = vsel %vm469, %v439, 0
    %v474 = vsel %vm469, %v444, 0
    %v476 = vsel %vm469, %v449, 0
    %v478 = vsel %vm469, %v462, 0
    %v480 = vsel %vm469, %v464, 0
    %v482 = vsel %vm469, %v466, 0
    %v484 = vsel %vm469, %v468, 0
    %486 = vmatprep.subr.mxu0 0.0
    %487 = vmatpush1.xpose.msra.mxu0 %v478
    %488 = vmatprep.subr.mxu0 0.0
    %489 = vmatpush1.xpose.msra.mxu0 %v480
    %490 = vmatprep.subr.mxu0 0.0
    %491 = vmatpush1.xpose.msra.mxu0 %v482
    %492 = vmatprep.subr.mxu0 0.0
    %493 = vmatpush1.xpose.msra.mxu0 %v484
    %494 = vmatprep.subr.mxu0 0.0
    %495 = vmatpush1.xpose.msra.mxu0 0.0
    %496 = vmatprep.subr.mxu0 0.0
    %497 = vmatpush1.xpose.msra.mxu0 0.0
    %498 = vmatprep.subr.mxu0 0.0
    %499 = vmatpush1.xpose.msra.mxu0 0.0
    %500 = vmatprep.subr.mxu0 0.0
    %501 = vmatpush1.xpose.msra.mxu0 0.0
    %502 = vmatprep.subr.mxu0 0.0
    %503 = vmatpush1.xpose.msra.mxu0 0.0
    %504 = vmatprep.subr.mxu0 0.0
    %505 = vmatpush1.xpose.msra.mxu0 0.0
    %506 = vmatprep.subr.mxu0 0.0
    %507 = vmatpush1.xpose.msra.mxu0 0.0
    %508 = vmatprep.subr.mxu0 0.0
    %509 = vmatpush1.xpose.msra.mxu0 0.0
    %510 = vmatprep.subr.mxu0 0.0
    %511 = vmatpush1.xpose.msra.mxu0 0.0
    %512 = vmatprep.subr.mxu0 0.0
    %513 = vmatpush1.xpose.msra.mxu0 0.0
    %514 = vmatprep.subr.mxu0 0.0
    %515 = vmatpush1.xpose.msra.mxu0 0.0
    %516 = vmatprep.subr.mxu0 0.0
    %517 = vmatpush1.xpose.msra.mxu0 0.0
    %518 = vmatprep.subr.mxu0 0.0
    %519 = vmatpush1.xpose.msra.mxu0 0.0
    %520 = vmatprep.subr.mxu0 0.0
    %521 = vmatpush1.xpose.msra.mxu0 0.0
    %522 = vmatprep.subr.mxu0 0.0
    %523 = vmatpush1.xpose.msra.mxu0 0.0
    %524 = vmatprep.subr.mxu0 0.0
    %525 = vmatpush1.xpose.msra.mxu0 0.0
    %526 = vmatprep.subr.mxu0 0.0
    %527 = vmatpush1.xpose.msra.mxu0 0.0
    %528 = vmatprep.subr.mxu0 0.0
    %529 = vmatpush1.xpose.msra.mxu0 0.0
    %530 = vmatprep.subr.mxu0 0.0
    %531 = vmatpush1.xpose.msra.mxu0 0.0
    %532 = vmatprep.subr.mxu0 0.0
    %533 = vmatpush1.xpose.msra.mxu0 0.0
    %534 = vmatprep.subr.mxu0 0.0
    %535 = vmatpush1.xpose.msra.mxu0 0.0
    %536 = vmatprep.subr.mxu0 0.0
    %537 = vmatpush1.xpose.msra.mxu0 0.0
    %538 = vmatprep.subr.mxu0 0.0
    %539 = vmatpush1.xpose.msra.mxu0 0.0
    %540 = vmatprep.subr.mxu0 0.0
    %541 = vmatpush1.xpose.msra.mxu0 0.0
    %542 = vmatprep.subr.mxu0 0.0
    %543 = vmatpush1.xpose.msra.mxu0 0.0
    %544 = vmatprep.subr.mxu0 0.0
    %545 = vmatpush1.xpose.msra.mxu0 0.0
    %546 = vmatprep.subr.mxu0 0.0
    %547 = vmatpush1.xpose.msra.mxu0 0.0
    %548 = vmatprep.subr.mxu0 0.0
    %549 = vmatpush1.xpose.msra.mxu0 0.0
    %550 = vmatprep.mubr.f32.mxu0 0.0
    %551 = vmatmul.mubr.f32.gmra.mrb[0].mxu0 %v470
    %v552 = vpop.f32.mrb[0].mxu0
    %v553 = vadd.f32 0.0, %v552
    %v554 = vpop.f32.mrb[0].mxu0
    %555 = vmatprep.mubr.f32.mxu0 0.0
    %556 = vmatmul.mubr.f32.gmra.mrb[0].mxu0 %v472
    %v557 = vpop.f32.mrb[0].mxu0
    %v558 = vadd.f32 0.0, %v557
    %v559 = vpop.f32.mrb[0].mxu0
    %560 = vmatprep.mubr.f32.mxu0 0.0
    %561 = vmatmul.mubr.f32.gmra.mrb[0].mxu0 %v474
    %v562 = vpop.f32.mrb[0].mxu0
    %v563 = vadd.f32 0.0, %v562
    %v564 = vpop.f32.mrb[0].mxu0
    %565 = vmatprep.mubr.f32.mxu0 0.0
    %566 = vmatmul.mubr.f32.gmra.mrb[0].mxu0 %v476
    %v567 = vpop.f32.mrb[0].mxu0
    %v568 = vadd.f32 0.0, %v567
    %v569 = vpop.f32.mrb[0].mxu0
    %570 = vdwg.mxu0
    %v571 = vmul.f32 %v553, 0.35355338
    %v572 = vmul.f32 %v558, 0.35355338
    %v573 = vmul.f32 %v563, 0.35355338
    %v574 = vmul.f32 %v568, 0.35355338
    %v575 = vadd.f32 %v571, %v89
    %v576 = vadd.f32 %v572, %v90
    %v577 = vadd.f32 %v573, %v91
    %v578 = vadd.f32 %v574, %v92
    %v579 = vsel %vm354, %v575, -inf
    %580 = vmax.xlane.f32.xlu0 %v579
    %v581 = vpop.xlane.xlu0 %580
    %v582 = vsel %vm354, %v576, -inf
    %583 = vmax.xlane.f32.xlu0 %v582
    %v584 = vpop.xlane.xlu0 %583
    %v585 = vsel %vm354, %v577, -inf
    %586 = vmax.xlane.f32.xlu0 %v585
    %v587 = vpop.xlane.xlu0 %586
    %v588 = vsel %vm354, %v578, -inf
    %589 = vmax.xlane.f32.xlu0 %v588
    %v590 = vpop.xlane.xlu0 %589
    %v591 = vsub.f32 %v575, %v581
    %v592 = vsub.f32 %v576, %v584
    %v593 = vsub.f32 %v577, %v587
    %v594 = vsub.f32 %v578, %v590
    %v595 = vmul.f32 %v591, 1.442695
    %v596 = vpow.pop %v595
    %v597 = vmul.f32 %v592, 1.442695
    %v598 = vpow.pop %v597
    %v599 = vmul.f32 %v593, 1.442695
    %v600 = vpow.pop %v599
    %v601 = vmul.f32 %v594, 1.442695
    %v602 = vpow.pop %v601
    %v603 = vsel %vm354, %v596, 0.0
    %604 = vadd.xlane.f32.xlu0 %v603
    %v605 = vpop.xlane.xlu0 %604
    %v606 = vsel %vm354, %v598, 0.0
    %607 = vadd.xlane.f32.xlu0 %v606
    %v608 = vpop.xlane.xlu0 %607
    %v609 = vsel %vm354, %v600, 0.0
    %610 = vadd.xlane.f32.xlu0 %v609
    %v611 = vpop.xlane.xlu0 %610
    %v612 = vsel %vm354, %v602, 0.0
    %613 = vadd.xlane.f32.xlu0 %v612
    %v614 = vpop.xlane.xlu0 %613
    %v615 = vrcp.pop %v605
    %v616 = vrcp.pop %v608
    %v617 = vrcp.pop %v611
    %v618 = vrcp.pop %v614
    %v619 = vmul.f32 %v596, %v615
    %v620 = vmul.f32 %v598, %v616
    %v621 = vmul.f32 %v600, %v617
    %v622 = vmul.f32 %v602, %v618
    %623 = vrot.lane.b32.xlu0 %v434, 64
    %v624 = vpop.permute.xlu0 %623
    %625 = vrot.lane.b32.xlu0 %v439, 64
    %v626 = vpop.permute.xlu0 %625
    %627 = vrot.lane.b32.xlu0 %v444, 64
    %v628 = vpop.permute.xlu0 %627
    %629 = vrot.lane.b32.xlu0 %v449, 64
    %v630 = vpop.permute.xlu0 %629
    %v636 = vsel %vm354, %v619, 0
    %v639 = vsel %vm354, %v620, 0
    %v642 = vsel %vm354, %v621, 0
    %v645 = vsel %vm354, %v622, 0
    %647 = vmatprep.subr.mxu0 0.0
    %648 = vmatpush1.msra.mxu0 %v624
    %649 = vmatprep.subr.mxu0 0.0
    %650 = vmatpush1.msra.mxu0 %v626
    %651 = vmatprep.subr.mxu0 0.0
    %652 = vmatpush1.msra.mxu0 %v628
    %653 = vmatprep.subr.mxu0 0.0
    %654 = vmatpush1.msra.mxu0 %v630
    %655 = vmatprep.subr.mxu0 0.0
    %656 = vmatpush1.msra.mxu0 0.0
    %657 = vmatprep.subr.mxu0 0.0
    %658 = vmatpush1.msra.mxu0 0.0
    %659 = vmatprep.subr.mxu0 0.0
    %660 = vmatpush1.msra.mxu0 0.0
    %661 = vmatprep.subr.mxu0 0.0
    %662 = vmatpush1.msra.mxu0 0.0
    %663 = vmatprep.subr.mxu0 0.0
    %664 = vmatpush1.msra.mxu0 0.0
    %665 = vmatprep.subr.mxu0 0.0
    %666 = vmatpush1.msra.mxu0 0.0
    %667 = vmatprep.subr.mxu0 0.0
    %668 = vmatpush1.msra.mxu0 0.0
    %669 = vmatprep.subr.mxu0 0.0
    %670 = vmatpush1.msra.mxu0 0.0
    %671 = vmatprep.subr.mxu0 0.0
    %672 = vmatpush1.msra.mxu0 0.0
    %673 = vmatprep.subr.mxu0 0.0
    %674 = vmatpush1.msra.mxu0 0.0
    %675 = vmatprep.subr.mxu0 0.0
    %676 = vmatpush1.msra.mxu0 0.0
    %677 = vmatprep.subr.mxu0 0.0
    %678 = vmatpush1.msra.mxu0 0.0
    %679 = vmatprep.subr.mxu0 0.0
    %680 = vmatpush1.msra.mxu0 0.0
    %681 = vmatprep.subr.mxu0 0.0
    %682 = vmatpush1.msra.mxu0 0.0
    %683 = vmatprep.subr.mxu0 0.0
    %684 = vmatpush1.msra.mxu0 0.0
    %685 = vmatprep.subr.mxu0 0.0
    %686 = vmatpush1.msra.mxu0 0.0
    %687 = vmatprep.subr.mxu0 0.0
    %688 = vmatpush1.msra.mxu0 0.0
    %689 = vmatprep.subr.mxu0 0.0
    %690 = vmatpush1.msra.mxu0 0.0
    %691 = vmatprep.subr.mxu0 0.0
    %692 = vmatpush1.msra.mxu0 0.0
    %693 = vmatprep.subr.mxu0 0.0
    %694 = vmatpush1.msra.mxu0 0.0
    %695 = vmatprep.subr.mxu0 0.0
    %696 = vmatpush1.msra.mxu0 0.0
    %697 = vmatprep.subr.mxu0 0.0
    %698 = vmatpush1.msra.mxu0 0.0
    %699 = vmatprep.subr.mxu0 0.0
    %700 = vmatpush1.msra.mxu0 0.0
    %701 = vmatprep.subr.mxu0 0.0
    %702 = vmatpush1.msra.mxu0 0.0
    %703 = vmatprep.subr.mxu0 0.0
    %704 = vmatpush1.msra.mxu0 0.0
    %705 = vmatprep.subr.mxu0 0.0
    %706 = vmatpush1.msra.mxu0 0.0
    %707 = vmatprep.subr.mxu0 0.0
    %708 = vmatpush1.msra.mxu0 0.0
    %709 = vmatprep.subr.mxu0 0.0
    %710 = vmatpush1.msra.mxu0 0.0
    %711 = vmatprep.mubr.f32.mxu0 0.0
    %712 = vmatmul.mubr.f32.gmra.mrb[0].mxu0 %v636
    %v713 = vpop.f32.mrb[0].mxu0
    %v714 = vadd.f32 0.0, %v713
    %v715 = vpop.f32.mrb[0].mxu0
    %716 = vmatprep.mubr.f32.mxu0 0.0
    %717 = vmatmul.mubr.f32.gmra.mrb[0].mxu0 %v639
    %v718 = vpop.f32.mrb[0].mxu0
    %v719 = vadd.f32 0.0, %v718
    %v720 = vpop.f32.mrb[0].mxu0
    %721 = vmatprep.mubr.f32.mxu0 0.0
    %722 = vmatmul.mubr.f32.gmra.mrb[0].mxu0 %v642
    %v723 = vpop.f32.mrb[0].mxu0
    %v724 = vadd.f32 0.0, %v723
    %v725 = vpop.f32.mrb[0].mxu0
    %726 = vmatprep.mubr.f32.mxu0 0.0
    %727 = vmatmul.mubr.f32.gmra.mrb[0].mxu0 %v645
    %v728 = vpop.f32.mrb[0].mxu0
    %v729 = vadd.f32 0.0, %v728
    %v730 = vpop.f32.mrb[0].mxu0
    %731 = vdwg.mxu0
    %732 = vrot.lane.b32.xlu0 %v434, 120
    %v733 = vpop.permute.xlu0 %732
    %734 = vrot.lane.b32.xlu0 %v439, 120
    %v735 = vpop.permute.xlu0 %734
    %736 = vrot.lane.b32.xlu0 %v444, 120
    %v737 = vpop.permute.xlu0 %736
    %738 = vrot.lane.b32.xlu0 %v449, 120
    %v739 = vpop.permute.xlu0 %738
    %740 = vrot.lane.b32.xlu0 %v434, 88
    %v741 = vpop.permute.xlu0 %740
    %742 = vrot.lane.b32.xlu0 %v439, 88
    %v743 = vpop.permute.xlu0 %742
    %744 = vrot.lane.b32.xlu0 %v444, 88
    %v745 = vpop.permute.xlu0 %744
    %746 = vrot.lane.b32.xlu0 %v449, 88
    %v747 = vpop.permute.xlu0 %746
    %v748 = vsel %vm469, %v733, 0
    %v750 = vsel %vm469, %v735, 0
    %v752 = vsel %vm469, %v737, 0
    %v754 = vsel %vm469, %v739, 0
    %v756 = vsel %vm469, %v741, 0
    %v758 = vsel %vm469, %v743, 0
    %v760 = vsel %vm469, %v745, 0
    %v762 = vsel %vm469, %v747, 0
    %764 = vmatprep.subr.mxu0 0.0
    %765 = vmatpush1.xpose.msra.mxu0 %v756
    %766 = vmatprep.subr.mxu0 0.0
    %767 = vmatpush1.xpose.msra.mxu0 %v758
    %768 = vmatprep.subr.mxu0 0.0
    %769 = vmatpush1.xpose.msra.mxu0 %v760
    %770 = vmatprep.subr.mxu0 0.0
    %771 = vmatpush1.xpose.msra.mxu0 %v762
    %772 = vmatprep.subr.mxu0 0.0
    %773 = vmatpush1.xpose.msra.mxu0 0.0
    %774 = vmatprep.subr.mxu0 0.0
    %775 = vmatpush1.xpose.msra.mxu0 0.0
    %776 = vmatprep.subr.mxu0 0.0
    %777 = vmatpush1.xpose.msra.mxu0 0.0
    %778 = vmatprep.subr.mxu0 0.0
    %779 = vmatpush1.xpose.msra.mxu0 0.0
    %780 = vmatprep.subr.mxu0 0.0
    %781 = vmatpush1.xpose.msra.mxu0 0.0
    %782 = vmatprep.subr.mxu0 0.0
    %783 = vmatpush1.xpose.msra.mxu0 0.0
    %784 = vmatprep.subr.mxu0 0.0
    %785 = vmatpush1.xpose.msra.mxu0 0.0
    %786 = vmatprep.subr.mxu0 0.0
    %787 = vmatpush1.xpose.msra.mxu0 0.0
    %788 = vmatprep.subr.mxu0 0.0
    %789 = vmatpush1.xpose.msra.mxu0 0.0
    %790 = vmatprep.subr.mxu0 0.0
    %791 = vmatpush1.xpose.msra.mxu0 0.0
    %792 = vmatprep.subr.mxu0 0.0
    %793 = vmatpush1.xpose.msra.mxu0 0.0
    %794 = vmatprep.subr.mxu0 0.0
    %795 = vmatpush1.xpose.msra.mxu0 0.0
    %796 = vmatprep.subr.mxu0 0.0
    %797 = vmatpush1.xpose.msra.mxu0 0.0
    %798 = vmatprep.subr.mxu0 0.0
    %799 = vmatpush1.xpose.msra.mxu0 0.0
    %800 = vmatprep.subr.mxu0 0.0
    %801 = vmatpush1.xpose.msra.mxu0 0.0
    %802 = vmatprep.subr.mxu0 0.0
    %803 = vmatpush1.xpose.msra.mxu0 0.0
    %804 = vmatprep.subr.mxu0 0.0
    %805 = vmatpush1.xpose.msra.mxu0 0.0
    %806 = vmatprep.subr.mxu0 0.0
    %807 = vmatpush1.xpose.msra.mxu0 0.0
    %808 = vmatprep.subr.mxu0 0.0
    %809 = vmatpush1.xpose.msra.mxu0 0.0
    %810 = vmatprep.subr.mxu0 0.0
    %811 = vmatpush1.xpose.msra.mxu0 0.0
    %812 = vmatprep.subr.mxu0 0.0
    %813 = vmatpush1.xpose.msra.mxu0 0.0
    %814 = vmatprep.subr.mxu0 0.0
    %815 = vmatpush1.xpose.msra.mxu0 0.0
    %816 = vmatprep.subr.mxu0 0.0
    %817 = vmatpush1.xpose.msra.mxu0 0.0
    %818 = vmatprep.subr.mxu0 0.0
    %819 = vmatpush1.xpose.msra.mxu0 0.0
    %820 = vmatprep.subr.mxu0 0.0
    %821 = vmatpush1.xpose.msra.mxu0 0.0
    %822 = vmatprep.subr.mxu0 0.0
    %823 = vmatpush1.xpose.msra.mxu0 0.0
    %824 = vmatprep.subr.mxu0 0.0
    %825 = vmatpush1.xpose.msra.mxu0 0.0
    %826 = vmatprep.subr.mxu0 0.0
    %827 = vmatpush1.xpose.msra.mxu0 0.0
    %828 = vmatprep.mubr.f32.mxu0 0.0
    %829 = vmatmul.mubr.f32.gmra.mrb[0].mxu0 %v748
    %v830 = vpop.f32.mrb[0].mxu0
    %v831 = vadd.f32 0.0, %v830
    %v832 = vpop.f32.mrb[0].mxu0
    %833 = vmatprep.mubr.f32.mxu0 0.0
    %834 = vmatmul.mubr.f32.gmra.mrb[0].mxu0 %v750
    %v835 = vpop.f32.mrb[0].mxu0
    %v836 = vadd.f32 0.0, %v835
    %v837 = vpop.f32.mrb[0].mxu0
    %838 = vmatprep.mubr.f32.mxu0 0.0
    %839 = vmatmul.mubr.f32.gmra.mrb[0].mxu0 %v752
    %v840 = vpop.f32.mrb[0].mxu0
    %v841 = vadd.f32 0.0, %v840
    %v842 = vpop.f32.mrb[0].mxu0
    %843 = vmatprep.mubr.f32.mxu0 0.0
    %844 = vmatmul.mubr.f32.gmra.mrb[0].mxu0 %v754
    %v845 = vpop.f32.mrb[0].mxu0
    %v846 = vadd.f32 0.0, %v845
    %v847 = vpop.f32.mrb[0].mxu0
    %848 = vdwg.mxu0
    %v849 = vmul.f32 %v831, 0.35355338
    %v850 = vmul.f32 %v836, 0.35355338
    %v851 = vmul.f32 %v841, 0.35355338
    %v852 = vmul.f32 %v846, 0.35355338
    %v853 = vadd.f32 %v849, %v89
    %v854 = vadd.f32 %v850, %v90
    %v855 = vadd.f32 %v851, %v91
    %v856 = vadd.f32 %v852, %v92
    %v857 = vsel %vm354, %v853, -inf
    %858 = vmax.xlane.f32.xlu0 %v857
    %v859 = vpop.xlane.xlu0 %858
    %v860 = vsel %vm354, %v854, -inf
    %861 = vmax.xlane.f32.xlu0 %v860
    %v862 = vpop.xlane.xlu0 %861
    %v863 = vsel %vm354, %v855, -inf
    %864 = vmax.xlane.f32.xlu0 %v863
    %v865 = vpop.xlane.xlu0 %864
    %v866 = vsel %vm354, %v856, -inf
    %867 = vmax.xlane.f32.xlu0 %v866
    %v868 = vpop.xlane.xlu0 %867
    %v869 = vsub.f32 %v853, %v859
    %v870 = vsub.f32 %v854, %v862
    %v871 = vsub.f32 %v855, %v865
    %v872 = vsub.f32 %v856, %v868
    %v873 = vmul.f32 %v869, 1.442695
    %v874 = vpow.pop %v873
    %v875 = vmul.f32 %v870, 1.442695
    %v876 = vpow.pop %v875
    %v877 = vmul.f32 %v871, 1.442695
    %v878 = vpow.pop %v877
    %v879 = vmul.f32 %v872, 1.442695
    %v880 = vpow.pop %v879
    %v881 = vsel %vm354, %v874, 0.0
    %882 = vadd.xlane.f32.xlu0 %v881
    %v883 = vpop.xlane.xlu0 %882
    %v884 = vsel %vm354, %v876, 0.0
    %885 = vadd.xlane.f32.xlu0 %v884
    %v886 = vpop.xlane.xlu0 %885
    %v887 = vsel %vm354, %v878, 0.0
    %888 = vadd.xlane.f32.xlu0 %v887
    %v889 = vpop.xlane.xlu0 %888
    %v890 = vsel %vm354, %v880, 0.0
    %891 = vadd.xlane.f32.xlu0 %v890
    %v892 = vpop.xlane.xlu0 %891
    %v893 = vrcp.pop %v883
    %v894 = vrcp.pop %v886
    %v895 = vrcp.pop %v889
    %v896 = vrcp.pop %v892
    %v897 = vmul.f32 %v874, %v893
    %v898 = vmul.f32 %v876, %v894
    %v899 = vmul.f32 %v878, %v895
    %v900 = vmul.f32 %v880, %v896
    %901 = vrot.lane.b32.xlu0 %v434, 56
    %v902 = vpop.permute.xlu0 %901
    %903 = vrot.lane.b32.xlu0 %v439, 56
    %v904 = vpop.permute.xlu0 %903
    %905 = vrot.lane.b32.xlu0 %v444, 56
    %v906 = vpop.permute.xlu0 %905
    %907 = vrot.lane.b32.xlu0 %v449, 56
    %v908 = vpop.permute.xlu0 %907
    %v914 = vsel %vm354, %v897, 0
    %v917 = vsel %vm354, %v898, 0
    %v920 = vsel %vm354, %v899, 0
    %v923 = vsel %vm354, %v900, 0
    %925 = vmatprep.subr.mxu0 0.0
    %926 = vmatpush1.msra.mxu0 %v902
    %927 = vmatprep.subr.mxu0 0.0
    %928 = vmatpush1.msra.mxu0 %v904
    %929 = vmatprep.subr.mxu0 0.0
    %930 = vmatpush1.msra.mxu0 %v906
    %931 = vmatprep.subr.mxu0 0.0
    %932 = vmatpush1.msra.mxu0 %v908
    %933 = vmatprep.subr.mxu0 0.0
    %934 = vmatpush1.msra.mxu0 0.0
    %935 = vmatprep.subr.mxu0 0.0
    %936 = vmatpush1.msra.mxu0 0.0
    %937 = vmatprep.subr.mxu0 0.0
    %938 = vmatpush1.msra.mxu0 0.0
    %939 = vmatprep.subr.mxu0 0.0
    %940 = vmatpush1.msra.mxu0 0.0
    %941 = vmatprep.subr.mxu0 0.0
    %942 = vmatpush1.msra.mxu0 0.0
    %943 = vmatprep.subr.mxu0 0.0
    %944 = vmatpush1.msra.mxu0 0.0
    %945 = vmatprep.subr.mxu0 0.0
    %946 = vmatpush1.msra.mxu0 0.0
    %947 = vmatprep.subr.mxu0 0.0
    %948 = vmatpush1.msra.mxu0 0.0
    %949 = vmatprep.subr.mxu0 0.0
    %950 = vmatpush1.msra.mxu0 0.0
    %951 = vmatprep.subr.mxu0 0.0
    %952 = vmatpush1.msra.mxu0 0.0
    %953 = vmatprep.subr.mxu0 0.0
    %954 = vmatpush1.msra.mxu0 0.0
    %955 = vmatprep.subr.mxu0 0.0
    %956 = vmatpush1.msra.mxu0 0.0
    %957 = vmatprep.subr.mxu0 0.0
    %958 = vmatpush1.msra.mxu0 0.0
    %959 = vmatprep.subr.mxu0 0.0
    %960 = vmatpush1.msra.mxu0 0.0
    %961 = vmatprep.subr.mxu0 0.0
    %962 = vmatpush1.msra.mxu0 0.0
    %963 = vmatprep.subr.mxu0 0.0
    %964 = vmatpush1.msra.mxu0 0.0
    %965 = vmatprep.subr.mxu0 0.0
    %966 = vmatpush1.msra.mxu0 0.0
    %967 = vmatprep.subr.mxu0 0.0
    %968 = vmatpush1.msra.mxu0 0.0
    %969 = vmatprep.subr.mxu0 0.0
    %970 = vmatpush1.msra.mxu0 0.0
    %971 = vmatprep.subr.mxu0 0.0
    %972 = vmatpush1.msra.mxu0 0.0
    %973 = vmatprep.subr.mxu0 0.0
    %974 = vmatpush1.msra.mxu0 0.0
    %975 = vmatprep.subr.mxu0 0.0
    %976 = vmatpush1.msra.mxu0 0.0
    %977 = vmatprep.subr.mxu0 0.0
    %978 = vmatpush1.msra.mxu0 0.0
    %979 = vmatprep.subr.mxu0 0.0
    %980 = vmatpush1.msra.mxu0 0.0
    %981 = vmatprep.subr.mxu0 0.0
    %982 = vmatpush1.msra.mxu0 0.0
    %983 = vmatprep.subr.mxu0 0.0
    %984 = vmatpush1.msra.mxu0 0.0
    %985 = vmatprep.subr.mxu0 0.0
    %986 = vmatpush1.msra.mxu0 0.0
    %987 = vmatprep.subr.mxu0 0.0
    %988 = vmatpush1.msra.mxu0 0.0
    %989 = vmatprep.mubr.f32.mxu0 0.0
    %990 = vmatmul.mubr.f32.gmra.mrb[0].mxu0 %v914
    %v991 = vpop.f32.mrb[0].mxu0
    %v992 = vadd.f32 0.0, %v991
    %v993 = vpop.f32.mrb[0].mxu0
    %994 = vmatprep.mubr.f32.mxu0 0.0
    %995 = vmatmul.mubr.f32.gmra.mrb[0].mxu0 %v917
    %v996 = vpop.f32.mrb[0].mxu0
    %v997 = vadd.f32 0.0, %v996
    %v998 = vpop.f32.mrb[0].mxu0
    %999 = vmatprep.mubr.f32.mxu0 0.0
    %1000 = vmatmul.mubr.f32.gmra.mrb[0].mxu0 %v920
    %v1001 = vpop.f32.mrb[0].mxu0
    %v1002 = vadd.f32 0.0, %v1001
    %v1003 = vpop.f32.mrb[0].mxu0
    %1004 = vmatprep.mubr.f32.mxu0 0.0
    %1005 = vmatmul.mubr.f32.gmra.mrb[0].mxu0 %v923
    %v1006 = vpop.f32.mrb[0].mxu0
    %v1007 = vadd.f32 0.0, %v1006
    %v1008 = vpop.f32.mrb[0].mxu0
    %1009 = vdwg.mxu0
    %1010 = vrot.lane.b32.xlu0 %v434, 112
    %v1011 = vpop.permute.xlu0 %1010
    %1012 = vrot.lane.b32.xlu0 %v439, 112
    %v1013 = vpop.permute.xlu0 %1012
    %1014 = vrot.lane.b32.xlu0 %v444, 112
    %v1015 = vpop.permute.xlu0 %1014
    %1016 = vrot.lane.b32.xlu0 %v449, 112
    %v1017 = vpop.permute.xlu0 %1016
    %1018 = vrot.lane.b32.xlu0 %v434, 80
    %v1019 = vpop.permute.xlu0 %1018
    %1020 = vrot.lane.b32.xlu0 %v439, 80
    %v1021 = vpop.permute.xlu0 %1020
    %1022 = vrot.lane.b32.xlu0 %v444, 80
    %v1023 = vpop.permute.xlu0 %1022
    %1024 = vrot.lane.b32.xlu0 %v449, 80
    %v1025 = vpop.permute.xlu0 %1024
    %v1026 = vsel %vm469, %v1011, 0
    %v1028 = vsel %vm469, %v1013, 0
    %v1030 = vsel %vm469, %v1015, 0
    %v1032 = vsel %vm469, %v1017, 0
    %v1034 = vsel %vm469, %v1019, 0
    %v1036 = vsel %vm469, %v1021, 0
    %v1038 = vsel %vm469, %v1023, 0
    %v1040 = vsel %vm469, %v1025, 0
    %1042 = vmatprep.subr.mxu0 0.0
    %1043 = vmatpush1.xpose.msra.mxu0 %v1034
    %1044 = vmatprep.subr.mxu0 0.0
    %1045 = vmatpush1.xpose.msra.mxu0 %v1036
    %1046 = vmatprep.subr.mxu0 0.0
    %1047 = vmatpush1.xpose.msra.mxu0 %v1038
    %1048 = vmatprep.subr.mxu0 0.0
    %1049 = vmatpush1.xpose.msra.mxu0 %v1040
    %1050 = vmatprep.subr.mxu0 0.0
    %1051 = vmatpush1.xpose.msra.mxu0 0.0
    %1052 = vmatprep.subr.mxu0 0.0
    %1053 = vmatpush1.xpose.msra.mxu0 0.0
    %1054 = vmatprep.subr.mxu0 0.0
    %1055 = vmatpush1.xpose.msra.mxu0 0.0
    %1056 = vmatprep.subr.mxu0 0.0
    %1057 = vmatpush1.xpose.msra.mxu0 0.0
    %1058 = vmatprep.subr.mxu0 0.0
    %1059 = vmatpush1.xpose.msra.mxu0 0.0
    %1060 = vmatprep.subr.mxu0 0.0
    %1061 = vmatpush1.xpose.msra.mxu0 0.0
    %1062 = vmatprep.subr.mxu0 0.0
    %1063 = vmatpush1.xpose.msra.mxu0 0.0
    %1064 = vmatprep.subr.mxu0 0.0
    %1065 = vmatpush1.xpose.msra.mxu0 0.0
    %1066 = vmatprep.subr.mxu0 0.0
    %1067 = vmatpush1.xpose.msra.mxu0 0.0
    %1068 = vmatprep.subr.mxu0 0.0
    %1069 = vmatpush1.xpose.msra.mxu0 0.0
    %1070 = vmatprep.subr.mxu0 0.0
    %1071 = vmatpush1.xpose.msra.mxu0 0.0
    %1072 = vmatprep.subr.mxu0 0.0
    %1073 = vmatpush1.xpose.msra.mxu0 0.0
    %1074 = vmatprep.subr.mxu0 0.0
    %1075 = vmatpush1.xpose.msra.mxu0 0.0
    %1076 = vmatprep.subr.mxu0 0.0
    %1077 = vmatpush1.xpose.msra.mxu0 0.0
    %1078 = vmatprep.subr.mxu0 0.0
    %1079 = vmatpush1.xpose.msra.mxu0 0.0
    %1080 = vmatprep.subr.mxu0 0.0
    %1081 = vmatpush1.xpose.msra.mxu0 0.0
    %1082 = vmatprep.subr.mxu0 0.0
    %1083 = vmatpush1.xpose.msra.mxu0 0.0
    %1084 = vmatprep.subr.mxu0 0.0
    %1085 = vmatpush1.xpose.msra.mxu0 0.0
    %1086 = vmatprep.subr.mxu0 0.0
    %1087 = vmatpush1.xpose.msra.mxu0 0.0
    %1088 = vmatprep.subr.mxu0 0.0
    %1089 = vmatpush1.xpose.msra.mxu0 0.0
    %1090 = vmatprep.subr.mxu0 0.0
    %1091 = vmatpush1.xpose.msra.mxu0 0.0
    %1092 = vmatprep.subr.mxu0 0.0
    %1093 = vmatpush1.xpose.msra.mxu0 0.0
    %1094 = vmatprep.subr.mxu0 0.0
    %1095 = vmatpush1.xpose.msra.mxu0 0.0
    %1096 = vmatprep.subr.mxu0 0.0
    %1097 = vmatpush1.xpose.msra.mxu0 0.0
    %1098 = vmatprep.subr.mxu0 0.0
    %1099 = vmatpush1.xpose.msra.mxu0 0.0
    %1100 = vmatprep.subr.mxu0 0.0
    %1101 = vmatpush1.xpose.msra.mxu0 0.0
    %1102 = vmatprep.subr.mxu0 0.0
    %1103 = vmatpush1.xpose.msra.mxu0 0.0
    %1104 = vmatprep.subr.mxu0 0.0
    %1105 = vmatpush1.xpose.msra.mxu0 0.0
    %1106 = vmatprep.mubr.f32.mxu0 0.0
    %1107 = vmatmul.mubr.f32.gmra.mrb[0].mxu0 %v1026
    %v1108 = vpop.f32.mrb[0].mxu0
    %v1109 = vadd.f32 0.0, %v1108
    %v1110 = vpop.f32.mrb[0].mxu0
    %1111 = vmatprep.mubr.f32.mxu0 0.0
    %1112 = vmatmul.mubr.f32.gmra.mrb[0].mxu0 %v1028
    %v1113 = vpop.f32.mrb[0].mxu0
    %v1114 = vadd.f32 0.0, %v1113
    %v1115 = vpop.f32.mrb[0].mxu0
    %1116 = vmatprep.mubr.f32.mxu0 0.0
    %1117 = vmatmul.mubr.f32.gmra.mrb[0].mxu0 %v1030
    %v1118 = vpop.f32.mrb[0].mxu0
    %v1119 = vadd.f32 0.0, %v1118
    %v1120 = vpop.f32.mrb[0].mxu0
    %1121 = vmatprep.mubr.f32.mxu0 0.0
    %1122 = vmatmul.mubr.f32.gmra.mrb[0].mxu0 %v1032
    %v1123 = vpop.f32.mrb[0].mxu0
    %v1124 = vadd.f32 0.0, %v1123
    %v1125 = vpop.f32.mrb[0].mxu0
    %1126 = vdwg.mxu0
    %v1127 = vmul.f32 %v1109, 0.35355338
    %v1128 = vmul.f32 %v1114, 0.35355338
    %v1129 = vmul.f32 %v1119, 0.35355338
    %v1130 = vmul.f32 %v1124, 0.35355338
    %v1131 = vadd.f32 %v1127, %v89
    %v1132 = vadd.f32 %v1128, %v90
    %v1133 = vadd.f32 %v1129, %v91
    %v1134 = vadd.f32 %v1130, %v92
    %v1135 = vsel %vm354, %v1131, -inf
    %1136 = vmax.xlane.f32.xlu0 %v1135
    %v1137 = vpop.xlane.xlu0 %1136
    %v1138 = vsel %vm354, %v1132, -inf
    %1139 = vmax.xlane.f32.xlu0 %v1138
    %v1140 = vpop.xlane.xlu0 %1139
    %v1141 = vsel %vm354, %v1133, -inf
    %1142 = vmax.xlane.f32.xlu0 %v1141
    %v1143 = vpop.xlane.xlu0 %1142
    %v1144 = vsel %vm354, %v1134, -inf
    %1145 = vmax.xlane.f32.xlu0 %v1144
    %v1146 = vpop.xlane.xlu0 %1145
    %v1147 = vsub.f32 %v1131, %v1137
    %v1148 = vsub.f32 %v1132, %v1140
    %v1149 = vsub.f32 %v1133, %v1143
    %v1150 = vsub.f32 %v1134, %v1146
    %v1151 = vmul.f32 %v1147, 1.442695
    %v1152 = vpow.pop %v1151
    %v1153 = vmul.f32 %v1148, 1.442695
    %v1154 = vpow.pop %v1153
    %v1155 = vmul.f32 %v1149, 1.442695
    %v1156 = vpow.pop %v1155
    %v1157 = vmul.f32 %v1150, 1.442695
    %v1158 = vpow.pop %v1157
    %v1159 = vsel %vm354, %v1152, 0.0
    %1160 = vadd.xlane.f32.xlu0 %v1159
    %v1161 = vpop.xlane.xlu0 %1160
    %v1162 = vsel %vm354, %v1154, 0.0
    %1163 = vadd.xlane.f32.xlu0 %v1162
    %v1164 = vpop.xlane.xlu0 %1163
    %v1165 = vsel %vm354, %v1156, 0.0
    %1166 = vadd.xlane.f32.xlu0 %v1165
    %v1167 = vpop.xlane.xlu0 %1166
    %v1168 = vsel %vm354, %v1158, 0.0
    %1169 = vadd.xlane.f32.xlu0 %v1168
    %v1170 = vpop.xlane.xlu0 %1169
    %v1171 = vrcp.pop %v1161
    %v1172 = vrcp.pop %v1164
    %v1173 = vrcp.pop %v1167
    %v1174 = vrcp.pop %v1170
    %v1175 = vmul.f32 %v1152, %v1171
    %v1176 = vmul.f32 %v1154, %v1172
    %v1177 = vmul.f32 %v1156, %v1173
    %v1178 = vmul.f32 %v1158, %v1174
    %1179 = vrot.lane.b32.xlu0 %v434, 48
    %v1180 = vpop.permute.xlu0 %1179
    %1181 = vrot.lane.b32.xlu0 %v439, 48
    %v1182 = vpop.permute.xlu0 %1181
    %1183 = vrot.lane.b32.xlu0 %v444, 48
    %v1184 = vpop.permute.xlu0 %1183
    %1185 = vrot.lane.b32.xlu0 %v449, 48
    %v1186 = vpop.permute.xlu0 %1185
    %v1192 = vsel %vm354, %v1175, 0
    %v1195 = vsel %vm354, %v1176, 0
    %v1198 = vsel %vm354, %v1177, 0
    %v1201 = vsel %vm354, %v1178, 0
    %1203 = vmatprep.subr.mxu0 0.0
    %1204 = vmatpush1.msra.mxu0 %v1180
    %1205 = vmatprep.subr.mxu0 0.0
    %1206 = vmatpush1.msra.mxu0 %v1182
    %1207 = vmatprep.subr.mxu0 0.0
    %1208 = vmatpush1.msra.mxu0 %v1184
    %1209 = vmatprep.subr.mxu0 0.0
    %1210 = vmatpush1.msra.mxu0 %v1186
    %1211 = vmatprep.subr.mxu0 0.0
    %1212 = vmatpush1.msra.mxu0 0.0
    %1213 = vmatprep.subr.mxu0 0.0
    %1214 = vmatpush1.msra.mxu0 0.0
    %1215 = vmatprep.subr.mxu0 0.0
    %1216 = vmatpush1.msra.mxu0 0.0
    %1217 = vmatprep.subr.mxu0 0.0
    %1218 = vmatpush1.msra.mxu0 0.0
    %1219 = vmatprep.subr.mxu0 0.0
    %1220 = vmatpush1.msra.mxu0 0.0
    %1221 = vmatprep.subr.mxu0 0.0
    %1222 = vmatpush1.msra.mxu0 0.0
    %1223 = vmatprep.subr.mxu0 0.0
    %1224 = vmatpush1.msra.mxu0 0.0
    %1225 = vmatprep.subr.mxu0 0.0
    %1226 = vmatpush1.msra.mxu0 0.0
    %1227 = vmatprep.subr.mxu0 0.0
    %1228 = vmatpush1.msra.mxu0 0.0
    %1229 = vmatprep.subr.mxu0 0.0
    %1230 = vmatpush1.msra.mxu0 0.0
    %1231 = vmatprep.subr.mxu0 0.0
    %1232 = vmatpush1.msra.mxu0 0.0
    %1233 = vmatprep.subr.mxu0 0.0
    %1234 = vmatpush1.msra.mxu0 0.0
    %1235 = vmatprep.subr.mxu0 0.0
    %1236 = vmatpush1.msra.mxu0 0.0
    %1237 = vmatprep.subr.mxu0 0.0
    %1238 = vmatpush1.msra.mxu0 0.0
    %1239 = vmatprep.subr.mxu0 0.0
    %1240 = vmatpush1.msra.mxu0 0.0
    %1241 = vmatprep.subr.mxu0 0.0
    %1242 = vmatpush1.msra.mxu0 0.0
    %1243 = vmatprep.subr.mxu0 0.0
    %1244 = vmatpush1.msra.mxu0 0.0
    %1245 = vmatprep.subr.mxu0 0.0
    %1246 = vmatpush1.msra.mxu0 0.0
    %1247 = vmatprep.subr.mxu0 0.0
    %1248 = vmatpush1.msra.mxu0 0.0
    %1249 = vmatprep.subr.mxu0 0.0
    %1250 = vmatpush1.msra.mxu0 0.0
    %1251 = vmatprep.subr.mxu0 0.0
    %1252 = vmatpush1.msra.mxu0 0.0
    %1253 = vmatprep.subr.mxu0 0.0
    %1254 = vmatpush1.msra.mxu0 0.0
    %1255 = vmatprep.subr.mxu0 0.0
    %1256 = vmatpush1.msra.mxu0 0.0
    %1257 = vmatprep.subr.mxu0 0.0
    %1258 = vmatpush1.msra.mxu0 0.0
    %1259 = vmatprep.subr.mxu0 0.0
    %1260 = vmatpush1.msra.mxu0 0.0
    %1261 = vmatprep.subr.mxu0 0.0
    %1262 = vmatpush1.msra.mxu0 0.0
    %1263 = vmatprep.subr.mxu0 0.0
    %1264 = vmatpush1.msra.mxu0 0.0
    %1265 = vmatprep.subr.mxu0 0.0
    %1266 = vmatpush1.msra.mxu0 0.0
    %1267 = vmatprep.mubr.f32.mxu0 0.0
    %1268 = vmatmul.mubr.f32.gmra.mrb[0].mxu0 %v1192
    %v1269 = vpop.f32.mrb[0].mxu0
    %v1270 = vadd.f32 0.0, %v1269
    %v1271 = vpop.f32.mrb[0].mxu0
    %1272 = vmatprep.mubr.f32.mxu0 0.0
    %1273 = vmatmul.mubr.f32.gmra.mrb[0].mxu0 %v1195
    %v1274 = vpop.f32.mrb[0].mxu0
    %v1275 = vadd.f32 0.0, %v1274
    %v1276 = vpop.f32.mrb[0].mxu0
    %1277 = vmatprep.mubr.f32.mxu0 0.0
    %1278 = vmatmul.mubr.f32.gmra.mrb[0].mxu0 %v1198
    %v1279 = vpop.f32.mrb[0].mxu0
    %v1280 = vadd.f32 0.0, %v1279
    %v1281 = vpop.f32.mrb[0].mxu0
    %1282 = vmatprep.mubr.f32.mxu0 0.0
    %1283 = vmatmul.mubr.f32.gmra.mrb[0].mxu0 %v1201
    %v1284 = vpop.f32.mrb[0].mxu0
    %v1285 = vadd.f32 0.0, %v1284
    %v1286 = vpop.f32.mrb[0].mxu0
    %1287 = vdwg.mxu0
    %1288 = vrot.lane.b32.xlu0 %v434, 104
    %v1289 = vpop.permute.xlu0 %1288
    %1290 = vrot.lane.b32.xlu0 %v439, 104
    %v1291 = vpop.permute.xlu0 %1290
    %1292 = vrot.lane.b32.xlu0 %v444, 104
    %v1293 = vpop.permute.xlu0 %1292
    %1294 = vrot.lane.b32.xlu0 %v449, 104
    %v1295 = vpop.permute.xlu0 %1294
    %1296 = vrot.lane.b32.xlu0 %v434, 72
    %v1297 = vpop.permute.xlu0 %1296
    %1298 = vrot.lane.b32.xlu0 %v439, 72
    %v1299 = vpop.permute.xlu0 %1298
    %1300 = vrot.lane.b32.xlu0 %v444, 72
    %v1301 = vpop.permute.xlu0 %1300
    %1302 = vrot.lane.b32.xlu0 %v449, 72
    %v1303 = vpop.permute.xlu0 %1302
    %v1304 = vsel %vm469, %v1289, 0
    %v1306 = vsel %vm469, %v1291, 0
    %v1308 = vsel %vm469, %v1293, 0
    %v1310 = vsel %vm469, %v1295, 0
    %v1312 = vsel %vm469, %v1297, 0
    %v1314 = vsel %vm469, %v1299, 0
    %v1316 = vsel %vm469, %v1301, 0
    %v1318 = vsel %vm469, %v1303, 0
    %1320 = vmatprep.subr.mxu0 0.0
    %1321 = vmatpush1.xpose.msra.mxu0 %v1312
    %1322 = vmatprep.subr.mxu0 0.0
    %1323 = vmatpush1.xpose.msra.mxu0 %v1314
    %1324 = vmatprep.subr.mxu0 0.0
    %1325 = vmatpush1.xpose.msra.mxu0 %v1316
    %1326 = vmatprep.subr.mxu0 0.0
    %1327 = vmatpush1.xpose.msra.mxu0 %v1318
    %1328 = vmatprep.subr.mxu0 0.0
    %1329 = vmatpush1.xpose.msra.mxu0 0.0
    %1330 = vmatprep.subr.mxu0 0.0
    %1331 = vmatpush1.xpose.msra.mxu0 0.0
    %1332 = vmatprep.subr.mxu0 0.0
    %1333 = vmatpush1.xpose.msra.mxu0 0.0
    %1334 = vmatprep.subr.mxu0 0.0
    %1335 = vmatpush1.xpose.msra.mxu0 0.0
    %1336 = vmatprep.subr.mxu0 0.0
    %1337 = vmatpush1.xpose.msra.mxu0 0.0
    %1338 = vmatprep.subr.mxu0 0.0
    %1339 = vmatpush1.xpose.msra.mxu0 0.0
    %1340 = vmatprep.subr.mxu0 0.0
    %1341 = vmatpush1.xpose.msra.mxu0 0.0
    %1342 = vmatprep.subr.mxu0 0.0
    %1343 = vmatpush1.xpose.msra.mxu0 0.0
    %1344 = vmatprep.subr.mxu0 0.0
    %1345 = vmatpush1.xpose.msra.mxu0 0.0
    %1346 = vmatprep.subr.mxu0 0.0
    %1347 = vmatpush1.xpose.msra.mxu0 0.0
    %1348 = vmatprep.subr.mxu0 0.0
    %1349 = vmatpush1.xpose.msra.mxu0 0.0
    %1350 = vmatprep.subr.mxu0 0.0
    %1351 = vmatpush1.xpose.msra.mxu0 0.0
    %1352 = vmatprep.subr.mxu0 0.0
    %1353 = vmatpush1.xpose.msra.mxu0 0.0
    %1354 = vmatprep.subr.mxu0 0.0
    %1355 = vmatpush1.xpose.msra.mxu0 0.0
    %1356 = vmatprep.subr.mxu0 0.0
    %1357 = vmatpush1.xpose.msra.mxu0 0.0
    %1358 = vmatprep.subr.mxu0 0.0
    %1359 = vmatpush1.xpose.msra.mxu0 0.0
    %1360 = vmatprep.subr.mxu0 0.0
    %1361 = vmatpush1.xpose.msra.mxu0 0.0
    %1362 = vmatprep.subr.mxu0 0.0
    %1363 = vmatpush1.xpose.msra.mxu0 0.0
    %1364 = vmatprep.subr.mxu0 0.0
    %1365 = vmatpush1.xpose.msra.mxu0 0.0
    %1366 = vmatprep.subr.mxu0 0.0
    %1367 = vmatpush1.xpose.msra.mxu0 0.0
    %1368 = vmatprep.subr.mxu0 0.0
    %1369 = vmatpush1.xpose.msra.mxu0 0.0
    %1370 = vmatprep.subr.mxu0 0.0
    %1371 = vmatpush1.xpose.msra.mxu0 0.0
    %1372 = vmatprep.subr.mxu0 0.0
    %1373 = vmatpush1.xpose.msra.mxu0 0.0
    %1374 = vmatprep.subr.mxu0 0.0
    %1375 = vmatpush1.xpose.msra.mxu0 0.0
    %1376 = vmatprep.subr.mxu0 0.0
    %1377 = vmatpush1.xpose.msra.mxu0 0.0
    %1378 = vmatprep.subr.mxu0 0.0
    %1379 = vmatpush1.xpose.msra.mxu0 0.0
    %1380 = vmatprep.subr.mxu0 0.0
    %1381 = vmatpush1.xpose.msra.mxu0 0.0
    %1382 = vmatprep.subr.mxu0 0.0
    %1383 = vmatpush1.xpose.msra.mxu0 0.0
    %1384 = vmatprep.mubr.f32.mxu0 0.0
    %1385 = vmatmul.mubr.f32.gmra.mrb[0].mxu0 %v1304
    %v1386 = vpop.f32.mrb[0].mxu0
    %v1387 = vadd.f32 0.0, %v1386
    %v1388 = vpop.f32.mrb[0].mxu0
    %1389 = vmatprep.mubr.f32.mxu0 0.0
    %1390 = vmatmul.mubr.f32.gmra.mrb[0].mxu0 %v1306
    %v1391 = vpop.f32.mrb[0].mxu0
    %v1392 = vadd.f32 0.0, %v1391
    %v1393 = vpop.f32.mrb[0].mxu0
    %1394 = vmatprep.mubr.f32.mxu0 0.0
    %1395 = vmatmul.mubr.f32.gmra.mrb[0].mxu0 %v1308
    %v1396 = vpop.f32.mrb[0].mxu0
    %v1397 = vadd.f32 0.0, %v1396
    %v1398 = vpop.f32.mrb[0].mxu0
    %1399 = vmatprep.mubr.f32.mxu0 0.0
    %1400 = vmatmul.mubr.f32.gmra.mrb[0].mxu0 %v1310
    %v1401 = vpop.f32.mrb[0].mxu0
    %v1402 = vadd.f32 0.0, %v1401
    %v1403 = vpop.f32.mrb[0].mxu0
    %1404 = vdwg.mxu0
    %v1405 = vmul.f32 %v1387, 0.35355338
    %v1406 = vmul.f32 %v1392, 0.35355338
    %v1407 = vmul.f32 %v1397, 0.35355338
    %v1408 = vmul.f32 %v1402, 0.35355338
    %v1409 = vadd.f32 %v1405, %v89
    %v1410 = vadd.f32 %v1406, %v90
    %v1411 = vadd.f32 %v1407, %v91
    %v1412 = vadd.f32 %v1408, %v92
    %v1413 = vsel %vm354, %v1409, -inf
    %1414 = vmax.xlane.f32.xlu0 %v1413
    %v1415 = vpop.xlane.xlu0 %1414
    %v1416 = vsel %vm354, %v1410, -inf
    %1417 = vmax.xlane.f32.xlu0 %v1416
    %v1418 = vpop.xlane.xlu0 %1417
    %v1419 = vsel %vm354, %v1411, -inf
    %1420 = vmax.xlane.f32.xlu0 %v1419
    %v1421 = vpop.xlane.xlu0 %1420
    %v1422 = vsel %vm354, %v1412, -inf
    %1423 = vmax.xlane.f32.xlu0 %v1422
    %v1424 = vpop.xlane.xlu0 %1423
    %v1425 = vsub.f32 %v1409, %v1415
    %v1426 = vsub.f32 %v1410, %v1418
    %v1427 = vsub.f32 %v1411, %v1421
    %v1428 = vsub.f32 %v1412, %v1424
    %v1429 = vmul.f32 %v1425, 1.442695
    %v1430 = vpow.pop %v1429
    %v1431 = vmul.f32 %v1426, 1.442695
    %v1432 = vpow.pop %v1431
    %v1433 = vmul.f32 %v1427, 1.442695
    %v1434 = vpow.pop %v1433
    %v1435 = vmul.f32 %v1428, 1.442695
    %v1436 = vpow.pop %v1435
    %v1437 = vsel %vm354, %v1430, 0.0
    %1438 = vadd.xlane.f32.xlu0 %v1437
    %v1439 = vpop.xlane.xlu0 %1438
    %v1440 = vsel %vm354, %v1432, 0.0
    %1441 = vadd.xlane.f32.xlu0 %v1440
    %v1442 = vpop.xlane.xlu0 %1441
    %v1443 = vsel %vm354, %v1434, 0.0
    %1444 = vadd.xlane.f32.xlu0 %v1443
    %v1445 = vpop.xlane.xlu0 %1444
    %v1446 = vsel %vm354, %v1436, 0.0
    %1447 = vadd.xlane.f32.xlu0 %v1446
    %v1448 = vpop.xlane.xlu0 %1447
    %v1449 = vrcp.pop %v1439
    %v1450 = vrcp.pop %v1442
    %v1451 = vrcp.pop %v1445
    %v1452 = vrcp.pop %v1448
    %v1453 = vmul.f32 %v1430, %v1449
    %v1454 = vmul.f32 %v1432, %v1450
    %v1455 = vmul.f32 %v1434, %v1451
    %v1456 = vmul.f32 %v1436, %v1452
    %1457 = vrot.lane.b32.xlu0 %v434, 40
    %v1458 = vpop.permute.xlu0 %1457
    %1459 = vrot.lane.b32.xlu0 %v439, 40
    %v1460 = vpop.permute.xlu0 %1459
    %1461 = vrot.lane.b32.xlu0 %v444, 40
    %v1462 = vpop.permute.xlu0 %1461
    %1463 = vrot.lane.b32.xlu0 %v449, 40
    %v1464 = vpop.permute.xlu0 %1463
    %v1470 = vsel %vm354, %v1453, 0
    %v1473 = vsel %vm354, %v1454, 0
    %v1476 = vsel %vm354, %v1455, 0
    %v1479 = vsel %vm354, %v1456, 0
    %1481 = vmatprep.subr.mxu0 0.0
    %1482 = vmatpush1.msra.mxu0 %v1458
    %1483 = vmatprep.subr.mxu0 0.0
    %1484 = vmatpush1.msra.mxu0 %v1460
    %1485 = vmatprep.subr.mxu0 0.0
    %1486 = vmatpush1.msra.mxu0 %v1462
    %1487 = vmatprep.subr.mxu0 0.0
    %1488 = vmatpush1.msra.mxu0 %v1464
    %1489 = vmatprep.subr.mxu0 0.0
    %1490 = vmatpush1.msra.mxu0 0.0
    %1491 = vmatprep.subr.mxu0 0.0
    %1492 = vmatpush1.msra.mxu0 0.0
    %1493 = vmatprep.subr.mxu0 0.0
    %1494 = vmatpush1.msra.mxu0 0.0
    %1495 = vmatprep.subr.mxu0 0.0
    %1496 = vmatpush1.msra.mxu0 0.0
    %1497 = vmatprep.subr.mxu0 0.0
    %1498 = vmatpush1.msra.mxu0 0.0
    %1499 = vmatprep.subr.mxu0 0.0
    %1500 = vmatpush1.msra.mxu0 0.0
    %1501 = vmatprep.subr.mxu0 0.0
    %1502 = vmatpush1.msra.mxu0 0.0
    %1503 = vmatprep.subr.mxu0 0.0
    %1504 = vmatpush1.msra.mxu0 0.0
    %1505 = vmatprep.subr.mxu0 0.0
    %1506 = vmatpush1.msra.mxu0 0.0
    %1507 = vmatprep.subr.mxu0 0.0
    %1508 = vmatpush1.msra.mxu0 0.0
    %1509 = vmatprep.subr.mxu0 0.0
    %1510 = vmatpush1.msra.mxu0 0.0
    %1511 = vmatprep.subr.mxu0 0.0
    %1512 = vmatpush1.msra.mxu0 0.0
    %1513 = vmatprep.subr.mxu0 0.0
    %1514 = vmatpush1.msra.mxu0 0.0
    %1515 = vmatprep.subr.mxu0 0.0
    %1516 = vmatpush1.msra.mxu0 0.0
    %1517 = vmatprep.subr.mxu0 0.0
    %1518 = vmatpush1.msra.mxu0 0.0
    %1519 = vmatprep.subr.mxu0 0.0
    %1520 = vmatpush1.msra.mxu0 0.0
    %1521 = vmatprep.subr.mxu0 0.0
    %1522 = vmatpush1.msra.mxu0 0.0
    %1523 = vmatprep.subr.mxu0 0.0
    %1524 = vmatpush1.msra.mxu0 0.0
    %1525 = vmatprep.subr.mxu0 0.0
    %1526 = vmatpush1.msra.mxu0 0.0
    %1527 = vmatprep.subr.mxu0 0.0
    %1528 = vmatpush1.msra.mxu0 0.0
    %1529 = vmatprep.subr.mxu0 0.0
    %1530 = vmatpush1.msra.mxu0 0.0
    %1531 = vmatprep.subr.mxu0 0.0
    %1532 = vmatpush1.msra.mxu0 0.0
    %1533 = vmatprep.subr.mxu0 0.0
    %1534 = vmatpush1.msra.mxu0 0.0
    %1535 = vmatprep.subr.mxu0 0.0
    %1536 = vmatpush1.msra.mxu0 0.0
    %1537 = vmatprep.subr.mxu0 0.0
    %1538 = vmatpush1.msra.mxu0 0.0
    %1539 = vmatprep.subr.mxu0 0.0
    %1540 = vmatpush1.msra.mxu0 0.0
    %1541 = vmatprep.subr.mxu0 0.0
    %1542 = vmatpush1.msra.mxu0 0.0
    %1543 = vmatprep.subr.mxu0 0.0
    %1544 = vmatpush1.msra.mxu0 0.0
    %1545 = vmatprep.mubr.f32.mxu0 0.0
    %1546 = vmatmul.mubr.f32.gmra.mrb[0].mxu0 %v1470
    %v1547 = vpop.f32.mrb[0].mxu0
    %v1548 = vadd.f32 0.0, %v1547
    %v1549 = vpop.f32.mrb[0].mxu0
    %1550 = vmatprep.mubr.f32.mxu0 0.0
    %1551 = vmatmul.mubr.f32.gmra.mrb[0].mxu0 %v1473
    %v1552 = vpop.f32.mrb[0].mxu0
    %v1553 = vadd.f32 0.0, %v1552
    %v1554 = vpop.f32.mrb[0].mxu0
    %1555 = vmatprep.mubr.f32.mxu0 0.0
    %1556 = vmatmul.mubr.f32.gmra.mrb[0].mxu0 %v1476
    %v1557 = vpop.f32.mrb[0].mxu0
    %v1558 = vadd.f32 0.0, %v1557
    %v1559 = vpop.f32.mrb[0].mxu0
    %1560 = vmatprep.mubr.f32.mxu0 0.0
    %1561 = vmatmul.mubr.f32.gmra.mrb[0].mxu0 %v1479
    %v1562 = vpop.f32.mrb[0].mxu0
    %v1563 = vadd.f32 0.0, %v1562
    %v1564 = vpop.f32.mrb[0].mxu0
    %1565 = vdwg.mxu0
    %1570 = vrot.lane.b32.xlu0 %v992, 8
    %v1571 = vpop.permute.xlu0 %1570
    %1572 = vrot.lane.b32.xlu0 %v997, 8
    %v1573 = vpop.permute.xlu0 %1572
    %1574 = vrot.lane.b32.xlu0 %v1002, 8
    %v1575 = vpop.permute.xlu0 %1574
    %1576 = vrot.lane.b32.xlu0 %v1007, 8
    %v1577 = vpop.permute.xlu0 %1576
    %1586 = vrot.lane.b32.xlu0 %v1270, 16
    %v1587 = vpop.permute.xlu0 %1586
    %1588 = vrot.lane.b32.xlu0 %v1275, 16
    %v1589 = vpop.permute.xlu0 %1588
    %1590 = vrot.lane.b32.xlu0 %v1280, 16
    %v1591 = vpop.permute.xlu0 %1590
    %1592 = vrot.lane.b32.xlu0 %v1285, 16
    %v1593 = vpop.permute.xlu0 %1592
    %1602 = vrot.lane.b32.xlu0 %v1548, 24
    %v1603 = vpop.permute.xlu0 %1602
    %1604 = vrot.lane.b32.xlu0 %v1553, 24
    %v1605 = vpop.permute.xlu0 %1604
    %1606 = vrot.lane.b32.xlu0 %v1558, 24
    %v1607 = vpop.permute.xlu0 %1606
    %1608 = vrot.lane.b32.xlu0 %v1563, 24
    %v1609 = vpop.permute.xlu0 %1608
    %v1614 = vsel %vm469, %v714, %v1571
    %v1615 = vsel %vm469, %v719, %v1573
    %v1616 = vsel %vm469, %v724, %v1575
    %v1617 = vsel %vm469, %v729, %v1577
    %vm1618 = vcmask 130048
    %v1619 = vsel %vm1618, %v1614, %v1587
    %v1620 = vsel %vm1618, %v1615, %v1589
    %v1621 = vsel %vm1618, %v1616, %v1591
    %v1622 = vsel %vm1618, %v1617, %v1593
    %vm1623 = vcmask 195584
    %v1624 = vsel %vm1623, %v1619, %v1603
    %v1625 = vsel %vm1623, %v1620, %v1605
    %v1626 = vsel %vm1623, %v1621, %v1607
    %v1627 = vsel %vm1623, %v1622, %v1609
    %v1628 = vlaneseq
    %v1629 = vshrl.u32 %v1628, 7
    %v1630 = vsub.s32 0, %v1629
    %v1631 = vrot.slane %v456, %v1630
    %v1633 = vsel %vm354, %v1624, 0
    %v1636 = vsel %vm354, %v1625, 0
    %v1639 = vsel %vm354, %v1626, 0
    %v1642 = vsel %vm354, %v1627, 0
    %1644 = vmatprep.subr.mxu0 0.0
    %1645 = vmatpush1.msra.mxu0 %v452
    %1646 = vmatprep.subr.mxu0 0.0
    %1647 = vmatpush1.msra.mxu0 %v453
    %1648 = vmatprep.subr.mxu0 0.0
    %1649 = vmatpush1.msra.mxu0 %v454
    %1650 = vmatprep.subr.mxu0 0.0
    %1651 = vmatpush1.msra.mxu0 %v455
    %1652 = vmatprep.subr.mxu0 0.0
    %1653 = vmatpush1.msra.mxu0 0.0
    %1654 = vmatprep.subr.mxu0 0.0
    %1655 = vmatpush1.msra.mxu0 0.0
    %1656 = vmatprep.subr.mxu0 0.0
    %1657 = vmatpush1.msra.mxu0 0.0
    %1658 = vmatprep.subr.mxu0 0.0
    %1659 = vmatpush1.msra.mxu0 0.0
    %1660 = vmatprep.subr.mxu0 0.0
    %1661 = vmatpush1.msra.mxu0 0.0
    %1662 = vmatprep.subr.mxu0 0.0
    %1663 = vmatpush1.msra.mxu0 0.0
    %1664 = vmatprep.subr.mxu0 0.0
    %1665 = vmatpush1.msra.mxu0 0.0
    %1666 = vmatprep.subr.mxu0 0.0
    %1667 = vmatpush1.msra.mxu0 0.0
    %1668 = vmatprep.subr.mxu0 0.0
    %1669 = vmatpush1.msra.mxu0 0.0
    %1670 = vmatprep.subr.mxu0 0.0
    %1671 = vmatpush1.msra.mxu0 0.0
    %1672 = vmatprep.subr.mxu0 0.0
    %1673 = vmatpush1.msra.mxu0 0.0
    %1674 = vmatprep.subr.mxu0 0.0
    %1675 = vmatpush1.msra.mxu0 0.0
    %1676 = vmatprep.subr.mxu0 0.0
    %1677 = vmatpush1.msra.mxu0 0.0
    %1678 = vmatprep.subr.mxu0 0.0
    %1679 = vmatpush1.msra.mxu0 0.0
    %1680 = vmatprep.subr.mxu0 0.0
    %1681 = vmatpush1.msra.mxu0 0.0
    %1682 = vmatprep.subr.mxu0 0.0
    %1683 = vmatpush1.msra.mxu0 0.0
    %1684 = vmatprep.subr.mxu0 0.0
    %1685 = vmatpush1.msra.mxu0 0.0
    %1686 = vmatprep.subr.mxu0 0.0
    %1687 = vmatpush1.msra.mxu0 0.0
    %1688 = vmatprep.subr.mxu0 0.0
    %1689 = vmatpush1.msra.mxu0 0.0
    %1690 = vmatprep.subr.mxu0 0.0
    %1691 = vmatpush1.msra.mxu0 0.0
    %1692 = vmatprep.subr.mxu0 0.0
    %1693 = vmatpush1.msra.mxu0 0.0
    %1694 = vmatprep.subr.mxu0 0.0
    %1695 = vmatpush1.msra.mxu0 0.0
    %1696 = vmatprep.subr.mxu0 0.0
    %1697 = vmatpush1.msra.mxu0 0.0
    %1698 = vmatprep.subr.mxu0 0.0
    %1699 = vmatpush1.msra.mxu0 0.0
    %1700 = vmatprep.subr.mxu0 0.0
    %1701 = vmatpush1.msra.mxu0 0.0
    %1702 = vmatprep.subr.mxu0 0.0
    %1703 = vmatpush1.msra.mxu0 0.0
    %1704 = vmatprep.subr.mxu0 0.0
    %1705 = vmatpush1.msra.mxu0 0.0
    %1706 = vmatprep.subr.mxu0 0.0
    %1707 = vmatpush1.msra.mxu0 0.0
    %1708 = vmatprep.mubr.f32.mxu0 0.0
    %1709 = vmatmul.mubr.f32.gmra.mrb[0].mxu0 %v1633
    %v1710 = vpop.f32.mrb[0].mxu0
    %v1711 = vadd.f32 %v1631, %v1710
    %v1712 = vpop.f32.mrb[0].mxu0
    %1713 = vmatprep.mubr.f32.mxu0 0.0
    %1714 = vmatmul.mubr.f32.gmra.mrb[0].mxu0 %v1636
    %v1715 = vpop.f32.mrb[0].mxu0
    %v1716 = vadd.f32 %v1631, %v1715
    %v1717 = vpop.f32.mrb[0].mxu0
    %1718 = vmatprep.mubr.f32.mxu0 0.0
    %1719 = vmatmul.mubr.f32.gmra.mrb[0].mxu0 %v1639
    %v1720 = vpop.f32.mrb[0].mxu0
    %v1721 = vadd.f32 %v1631, %v1720
    %v1722 = vpop.f32.mrb[0].mxu0
    %1723 = vmatprep.mubr.f32.mxu0 0.0
    %1724 = vmatmul.mubr.f32.gmra.mrb[0].mxu0 %v1642
    %v1725 = vpop.f32.mrb[0].mxu0
    %v1726 = vadd.f32 %v1631, %v1725
    %v1727 = vpop.f32.mrb[0].mxu0
    %1728 = vdwg.mxu0
    %v1729 = vadd.f32 %v216, %v1711
    %v1730 = vadd.f32 %v221, %v1716
    %v1731 = vadd.f32 %v226, %v1721
    %v1732 = vadd.f32 %v231, %v1726
    %v1733 = vld [vmem:[#allocation2 + $0xf0] sm:$0x1]
    %v1734 = vld [vmem:[#allocation2 + $0xf8] sm:$0x1]
    %v1735 = vsel %vm354, %v1729, 0.0
    %1736 = vadd.xlane.f32.xlu0 %v1735
    %v1737 = vpop.xlane.xlu0 %1736
    %v1738 = vsel %vm354, %v1730, 0.0
    %1739 = vadd.xlane.f32.xlu0 %v1738
    %v1740 = vpop.xlane.xlu0 %1739
    %v1741 = vsel %vm354, %v1731, 0.0
    %1742 = vadd.xlane.f32.xlu0 %v1741
    %v1743 = vpop.xlane.xlu0 %1742
    %v1744 = vsel %vm354, %v1732, 0.0
    %1745 = vadd.xlane.f32.xlu0 %v1744
    %v1746 = vpop.xlane.xlu0 %1745
    %v1747 = vrcp.pop 32.0
    %v1748 = vmul.f32 %v1737, %v1747
    %v1749 = vmul.f32 %v1740, %v1747
    %v1750 = vmul.f32 %v1743, %v1747
    %v1751 = vmul.f32 %v1746, %v1747
    %v1752 = vsub.f32 %v1729, %v1748
    %v1753 = vsub.f32 %v1730, %v1749
    %v1754 = vsub.f32 %v1731, %v1750
    %v1755 = vsub.f32 %v1732, %v1751
    %v1756 = vmul.f32 %v1752, %v1752
    %v1757 = vmul.f32 %v1753, %v1753
    %v1758 = vmul.f32 %v1754, %v1754
    %v1759 = vmul.f32 %v1755, %v1755
    %v1760 = vsel %vm354, %v1756, 0.0
    %1761 = vadd.xlane.f32.xlu0 %v1760
    %v1762 = vpop.xlane.xlu0 %1761
    %v1763 = vsel %vm354, %v1757, 0.0
    %1764 = vadd.xlane.f32.xlu0 %v1763
    %v1765 = vpop.xlane.xlu0 %1764
    %v1766 = vsel %vm354, %v1758, 0.0
    %1767 = vadd.xlane.f32.xlu0 %v1766
    %v1768 = vpop.xlane.xlu0 %1767
    %v1769 = vsel %vm354, %v1759, 0.0
    %1770 = vadd.xlane.f32.xlu0 %v1769
    %v1771 = vpop.xlane.xlu0 %1770
    %v1772 = vmul.f32 %v1762, %v1747
    %v1773 = vmul.f32 %v1765, %v1747
    %v1774 = vmul.f32 %v1768, %v1747
    %v1775 = vmul.f32 %v1771, %v1747
    %v1776 = vadd.f32 %v1772, 1e-05
    %v1777 = vadd.f32 %v1773, 1e-05
    %v1778 = vadd.f32 %v1774, 1e-05
    %v1779 = vadd.f32 %v1775, 1e-05
    %v1780 = vrsqrt.pop %v1776
    %v1781 = vrsqrt.pop %v1777
    %v1782 = vrsqrt.pop %v1778
    %v1783 = vrsqrt.pop %v1779
    %v1784 = vmul.f32 %v1752, %v1780
    %v1785 = vmul.f32 %v1753, %v1781
    %v1786 = vmul.f32 %v1754, %v1782
    %v1787 = vmul.f32 %v1755, %v1783
    %v1788 = vlaneseq
    %v1789 = vshrl.u32 %v1788, 7
    %v1790 = vsub.s32 0, %v1789
    %v1791 = vrot.slane %v1733, %v1790
    %v1792 = vmul.f32 %v1784, %v1791
    %v1793 = vmul.f32 %v1785, %v1791
    %v1794 = vmul.f32 %v1786, %v1791
    %v1795 = vmul.f32 %v1787, %v1791
    %v1796 = vlaneseq
    %v1797 = vshrl.u32 %v1796, 7
    %v1798 = vsub.s32 0, %v1797
    %v1799 = vrot.slane %v1734, %v1798
    %v1800 = vadd.f32 %v1792, %v1799
    %v1801 = vadd.f32 %v1793, %v1799
    %v1802 = vadd.f32 %v1794, %v1799
    %v1803 = vadd.f32 %v1795, %v1799
    %v1804 = vld [vmem:[#allocation2 + $0x80] sm:$0xff]
    %v1805 = vld [vmem:[#allocation2 + $0x88] sm:$0xff]
    %v1806 = vld [vmem:[#allocation2 + $0x90] sm:$0xff]
    %v1807 = vld [vmem:[#allocation2 + $0x98] sm:$0xff]
    %v1808 = vld [vmem:[#allocation2 + $0xa0] sm:$0x1]
    %v1809 = vlaneseq
    %v1810 = vshrl.u32 %v1809, 7
    %v1811 = vsub.s32 0, %v1810
    %v1812 = vrot.slane %v1808, %v1811
    %v1814 = vsel %vm354, %v1800, 0
    %v1817 = vsel %vm354, %v1801, 0
    %v1820 = vsel %vm354, %v1802, 0
    %v1823 = vsel %vm354, %v1803, 0
    %1825 = vmatprep.subr.mxu0 0.0
    %1826 = vmatpush1.msra.mxu0 %v1804
    %1827 = vmatprep.subr.mxu0 0.0
    %1828 = vmatpush1.msra.mxu0 %v1805
    %1829 = vmatprep.subr.mxu0 0.0
    %1830 = vmatpush1.msra.mxu0 %v1806
    %1831 = vmatprep.subr.mxu0 0.0
    %1832 = vmatpush1.msra.mxu0 %v1807
    %1833 = vmatprep.subr.mxu0 0.0
    %1834 = vmatpush1.msra.mxu0 0.0
    %1835 = vmatprep.subr.mxu0 0.0
    %1836 = vmatpush1.msra.mxu0 0.0
    %1837 = vmatprep.subr.mxu0 0.0
    %1838 = vmatpush1.msra.mxu0 0.0
    %1839 = vmatprep.subr.mxu0 0.0
    %1840 = vmatpush1.msra.mxu0 0.0
    %1841 = vmatprep.subr.mxu0 0.0
    %1842 = vmatpush1.msra.mxu0 0.0
    %1843 = vmatprep.subr.mxu0 0.0
    %1844 = vmatpush1.msra.mxu0 0.0
    %1845 = vmatprep.subr.mxu0 0.0
    %1846 = vmatpush1.msra.mxu0 0.0
    %1847 = vmatprep.subr.mxu0 0.0
    %1848 = vmatpush1.msra.mxu0 0.0
    %1849 = vmatprep.subr.mxu0 0.0
    %1850 = vmatpush1.msra.mxu0 0.0
    %1851 = vmatprep.subr.mxu0 0.0
    %1852 = vmatpush1.msra.mxu0 0.0
    %1853 = vmatprep.subr.mxu0 0.0
    %1854 = vmatpush1.msra.mxu0 0.0
    %1855 = vmatprep.subr.mxu0 0.0
    %1856 = vmatpush1.msra.mxu0 0.0
    %1857 = vmatprep.subr.mxu0 0.0
    %1858 = vmatpush1.msra.mxu0 0.0
    %1859 = vmatprep.subr.mxu0 0.0
    %1860 = vmatpush1.msra.mxu0 0.0
    %1861 = vmatprep.subr.mxu0 0.0
    %1862 = vmatpush1.msra.mxu0 0.0
    %1863 = vmatprep.subr.mxu0 0.0
    %1864 = vmatpush1.msra.mxu0 0.0
    %1865 = vmatprep.subr.mxu0 0.0
    %1866 = vmatpush1.msra.mxu0 0.0
    %1867 = vmatprep.subr.mxu0 0.0
    %1868 = vmatpush1.msra.mxu0 0.0
    %1869 = vmatprep.subr.mxu0 0.0
    %1870 = vmatpush1.msra.mxu0 0.0
    %1871 = vmatprep.subr.mxu0 0.0
    %1872 = vmatpush1.msra.mxu0 0.0
    %1873 = vmatprep.subr.mxu0 0.0
    %1874 = vmatpush1.msra.mxu0 0.0
    %1875 = vmatprep.subr.mxu0 0.0
    %1876 = vmatpush1.msra.mxu0 0.0
    %1877 = vmatprep.subr.mxu0 0.0
    %1878 = vmatpush1.msra.mxu0 0.0
    %1879 = vmatprep.subr.mxu0 0.0
    %1880 = vmatpush1.msra.mxu0 0.0
    %1881 = vmatprep.subr.mxu0 0.0
    %1882 = vmatpush1.msra.mxu0 0.0
    %1883 = vmatprep.subr.mxu0 0.0
    %1884 = vmatpush1.msra.mxu0 0.0
    %1885 = vmatprep.subr.mxu0 0.0
    %1886 = vmatpush1.msra.mxu0 0.0
    %1887 = vmatprep.subr.mxu0 0.0
    %1888 = vmatpush1.msra.mxu0 0.0
    %1889 = vmatprep.mubr.f32.mxu0 0.0
    %1890 = vmatmul.mubr.f32.gmra.mrb[0].mxu0 %v1814
    %v1891 = vpop.f32.mrb[0].mxu0
    %v1892 = vadd.f32 %v1812, %v1891
    %v1893 = vpop.f32.mrb[0].mxu0
    %1894 = vmatprep.mubr.f32.mxu0 0.0
    %1895 = vmatmul.mubr.f32.gmra.mrb[0].mxu0 %v1817
    %v1896 = vpop.f32.mrb[0].mxu0
    %v1897 = vadd.f32 %v1812, %v1896
    %v1898 = vpop.f32.mrb[0].mxu0
    %1899 = vmatprep.mubr.f32.mxu0 0.0
    %1900 = vmatmul.mubr.f32.gmra.mrb[0].mxu0 %v1820
    %v1901 = vpop.f32.mrb[0].mxu0
    %v1902 = vadd.f32 %v1812, %v1901
    %v1903 = vpop.f32.mrb[0].mxu0
    %1904 = vmatprep.mubr.f32.mxu0 0.0
    %1905 = vmatmul.mubr.f32.gmra.mrb[0].mxu0 %v1823
    %v1906 = vpop.f32.mrb[0].mxu0
    %v1907 = vadd.f32 %v1812, %v1906
    %v1908 = vpop.f32.mrb[0].mxu0
    %1909 = vdwg.mxu0
    %v1910 = vmul.f32 %v1892, 0.5
    %v1911 = vmul.f32 %v1897, 0.5
    %v1912 = vmul.f32 %v1902, 0.5
    %v1913 = vmul.f32 %v1907, 0.5
    %v1914 = vmul.f32 %v1892, 0.70710677
    %v1915 = vmul.f32 %v1897, 0.70710677
    %v1916 = vmul.f32 %v1902, 0.70710677
    %v1917 = vmul.f32 %v1907, 0.70710677
    %v1918 = vand.u32 2147483647, %v1914
    %v1919 = vand.u32 2147483647, %v1915
    %v1920 = vand.u32 2147483647, %v1916
    %v1921 = vand.u32 2147483647, %v1917
    %v1922 = vmul.f32 %v1918, 0.3275911
    %v1923 = vmul.f32 %v1919, 0.3275911
    %v1924 = vmul.f32 %v1920, 0.3275911
    %v1925 = vmul.f32 %v1921, 0.3275911
    %v1926 = vadd.f32 %v1922, 1.0
    %v1927 = vadd.f32 %v1923, 1.0
    %v1928 = vadd.f32 %v1924, 1.0
    %v1929 = vadd.f32 %v1925, 1.0
    %v1930 = vrcp.pop %v1926
    %v1931 = vrcp.pop %v1927
    %v1932 = vrcp.pop %v1928
    %v1933 = vrcp.pop %v1929
    %v1934 = vmul.f32 %v1930, 1.0614054
    %v1935 = vmul.f32 %v1931, 1.0614054
    %v1936 = vmul.f32 %v1932, 1.0614054
    %v1937 = vmul.f32 %v1933, 1.0614054
    %v1938 = vadd.f32 %v1934, -1.4531521
    %v1939 = vadd.f32 %v1935, -1.4531521
    %v1940 = vadd.f32 %v1936, -1.4531521
    %v1941 = vadd.f32 %v1937, -1.4531521
    %v1942 = vmul.f32 %v1938, %v1930
    %v1943 = vmul.f32 %v1939, %v1931
    %v1944 = vmul.f32 %v1940, %v1932
    %v1945 = vmul.f32 %v1941, %v1933
    %v1946 = vadd.f32 %v1942, 1.4214138
    %v1947 = vadd.f32 %v1943, 1.4214138
    %v1948 = vadd.f32 %v1944, 1.4214138
    %v1949 = vadd.f32 %v1945, 1.4214138
    %v1950 = vmul.f32 %v1946, %v1930
    %v1951 = vmul.f32 %v1947, %v1931
    %v1952 = vmul.f32 %v1948, %v1932
    %v1953 = vmul.f32 %v1949, %v1933
    %v1954 = vadd.f32 %v1950, -0.28449672
    %v1955 = vadd.f32 %v1951, -0.28449672
    %v1956 = vadd.f32 %v1952, -0.28449672
    %v1957 = vadd.f32 %v1953, -0.28449672
    %v1958 = vmul.f32 %v1954, %v1930
    %v1959 = vmul.f32 %v1955, %v1931
    %v1960 = vmul.f32 %v1956, %v1932
    %v1961 = vmul.f32 %v1957, %v1933
    %v1962 = vadd.f32 %v1958, 0.2548296
    %v1963 = vadd.f32 %v1959, 0.2548296
    %v1964 = vadd.f32 %v1960, 0.2548296
    %v1965 = vadd.f32 %v1961, 0.2548296
    %v1966 = vmul.f32 %v1962, %v1930
    %v1967 = vmul.f32 %v1963, %v1931
    %v1968 = vmul.f32 %v1964, %v1932
    %v1969 = vmul.f32 %v1965, %v1933
    %v1970 = vmul.f32 %v1918, %v1918
    %v1971 = vmul.f32 %v1919, %v1919
    %v1972 = vmul.f32 %v1920, %v1920
    %v1973 = vmul.f32 %v1921, %v1921
    %v1974 = vsub.f32 0.0, %v1970
    %v1975 = vsub.f32 0.0, %v1971
    %v1976 = vsub.f32 0.0, %v1972
    %v1977 = vsub.f32 0.0, %v1973
    %v1978 = vmul.f32 %v1974, 1.442695
    %v1979 = vpow.pop %v1978
    %v1980 = vmul.f32 %v1975, 1.442695
    %v1981 = vpow.pop %v1980
    %v1982 = vmul.f32 %v1976, 1.442695
    %v1983 = vpow.pop %v1982
    %v1984 = vmul.f32 %v1977, 1.442695
    %v1985 = vpow.pop %v1984
    %v1986 = vmul.f32 %v1966, %v1979
    %v1987 = vmul.f32 %v1967, %v1981
    %v1988 = vmul.f32 %v1968, %v1983
    %v1989 = vmul.f32 %v1969, %v1985
    %v1990 = vsub.f32 1.0, %v1986
    %v1991 = vsub.f32 1.0, %v1987
    %v1992 = vsub.f32 1.0, %v1988
    %v1993 = vsub.f32 1.0, %v1989
    %vm1994 = vcmp.ge.f32.partialorder %v1914, 0.0
    %vm1995 = vcmp.ge.f32.partialorder %v1915, 0.0
    %vm1996 = vcmp.ge.f32.partialorder %v1916, 0.0
    %vm1997 = vcmp.ge.f32.partialorder %v1917, 0.0
    %v1998 = vsub.f32 0.0, %v1990
    %v1999 = vsub.f32 0.0, %v1991
    %v2000 = vsub.f32 0.0, %v1992
    %v2001 = vsub.f32 0.0, %v1993
    %v2002 = vsel %vm1994, %v1990, %v1998
    %v2003 = vsel %vm1995, %v1991, %v1999
    %v2004 = vsel %vm1996, %v1992, %v2000
    %v2005 = vsel %vm1997, %v1993, %v2001
    %v2006 = vadd.f32 %v2002, 1.0
    %v2007 = vadd.f32 %v2003, 1.0
    %v2008 = vadd.f32 %v2004, 1.0
    %v2009 = vadd.f32 %v2005, 1.0
    %v2010 = vmul.f32 %v1910, %v2006
    %v2011 = vmul.f32 %v1911, %v2007
    %v2012 = vmul.f32 %v1912, %v2008
    %v2013 = vmul.f32 %v1913, %v2009
    %v2014 = vld [vmem:[#allocation2 + $0xa8] sm:$0xff]
    %v2015 = vld [vmem:[#allocation2 + $0xb0] sm:$0xff]
    %v2016 = vld [vmem:[#allocation2 + $0xb8] sm:$0xff]
    %v2017 = vld [vmem:[#allocation2 + $0xc0] sm:$0xff]
    %v2018 = vld [vmem:[#allocation2 + $0xc8] sm:$0xff]
    %v2019 = vld [vmem:[#allocation2 + $0xd0] sm:$0xff]
    %v2020 = vld [vmem:[#allocation2 + $0xd8] sm:$0xff]
    %v2021 = vld [vmem:[#allocation2 + $0xe0] sm:$0xff]
    %v2022 = vld [vmem:[#allocation2 + $0xe8] sm:$0x1]
    %v2023 = vlaneseq
    %v2024 = vshrl.u32 %v2023, 7
    %v2025 = vsub.s32 0, %v2024
    %v2026 = vrot.slane %v2022, %v2025
    %vm2027 = vcmask 523264
    %v2029 = vsel %vm2027, %v2010, 0
    %v2032 = vsel %vm2027, %v2011, 0
    %v2035 = vsel %vm2027, %v2012, 0
    %v2038 = vsel %vm2027, %v2013, 0
    %2040 = vmatprep.subr.mxu0 0.0
    %2041 = vmatpush1.msra.mxu0 %v2014
    %2042 = vmatprep.subr.mxu0 0.0
    %2043 = vmatpush1.msra.mxu0 %v2015
    %2044 = vmatprep.subr.mxu0 0.0
    %2045 = vmatpush1.msra.mxu0 %v2016
    %2046 = vmatprep.subr.mxu0 0.0
    %2047 = vmatpush1.msra.mxu0 %v2017
    %2048 = vmatprep.subr.mxu0 0.0
    %2049 = vmatpush1.msra.mxu0 %v2018
    %2050 = vmatprep.subr.mxu0 0.0
    %2051 = vmatpush1.msra.mxu0 %v2019
    %2052 = vmatprep.subr.mxu0 0.0
    %2053 = vmatpush1.msra.mxu0 %v2020
    %2054 = vmatprep.subr.mxu0 0.0
    %2055 = vmatpush1.msra.mxu0 %v2021
    %2056 = vmatprep.subr.mxu0 0.0
    %2057 = vmatpush1.msra.mxu0 0.0
    %2058 = vmatprep.subr.mxu0 0.0
    %2059 = vmatpush1.msra.mxu0 0.0
    %2060 = vmatprep.subr.mxu0 0.0
    %2061 = vmatpush1.msra.mxu0 0.0
    %2062 = vmatprep.subr.mxu0 0.0
    %2063 = vmatpush1.msra.mxu0 0.0
    %2064 = vmatprep.subr.mxu0 0.0
    %2065 = vmatpush1.msra.mxu0 0.0
    %2066 = vmatprep.subr.mxu0 0.0
    %2067 = vmatpush1.msra.mxu0 0.0
    %2068 = vmatprep.subr.mxu0 0.0
    %2069 = vmatpush1.msra.mxu0 0.0
    %2070 = vmatprep.subr.mxu0 0.0
    %2071 = vmatpush1.msra.mxu0 0.0
    %2072 = vmatprep.subr.mxu0 0.0
    %2073 = vmatpush1.msra.mxu0 0.0
    %2074 = vmatprep.subr.mxu0 0.0
    %2075 = vmatpush1.msra.mxu0 0.0
    %2076 = vmatprep.subr.mxu0 0.0
    %2077 = vmatpush1.msra.mxu0 0.0
    %2078 = vmatprep.subr.mxu0 0.0
    %2079 = vmatpush1.msra.mxu0 0.0
    %2080 = vmatprep.subr.mxu0 0.0
    %2081 = vmatpush1.msra.mxu0 0.0
    %2082 = vmatprep.subr.mxu0 0.0
    %2083 = vmatpush1.msra.mxu0 0.0
    %2084 = vmatprep.subr.mxu0 0.0
    %2085 = vmatpush1.msra.mxu0 0.0
    %2086 = vmatprep.subr.mxu0 0.0
    %2087 = vmatpush1.msra.mxu0 0.0
    %2088 = vmatprep.subr.mxu0 0.0
    %2089 = vmatpush1.msra.mxu0 0.0
    %2090 = vmatprep.subr.mxu0 0.0
    %2091 = vmatpush1.msra.mxu0 0.0
    %2092 = vmatprep.subr.mxu0 0.0
    %2093 = vmatpush1.msra.mxu0 0.0
    %2094 = vmatprep.subr.mxu0 0.0
    %2095 = vmatpush1.msra.mxu0 0.0
    %2096 = vmatprep.subr.mxu0 0.0
    %2097 = vmatpush1.msra.mxu0 0.0
    %2098 = vmatprep.subr.mxu0 0.0
    %2099 = vmatpush1.msra.mxu0 0.0
    %2100 = vmatprep.subr.mxu0 0.0
    %2101 = vmatpush1.msra.mxu0 0.0
    %2102 = vmatprep.subr.mxu0 0.0
    %2103 = vmatpush1.msra.mxu0 0.0
    %2104 = vmatprep.mubr.f32.mxu0 0.0
    %2105 = vmatmul.mubr.f32.gmra.mrb[0].mxu0 %v2029
    %v2106 = vpop.f32.mrb[0].mxu0
    %v2107 = vadd.f32 %v2026, %v2106
    %v2108 = vpop.f32.mrb[0].mxu0
    %2109 = vmatprep.mubr.f32.mxu0 0.0
    %2110 = vmatmul.mubr.f32.gmra.mrb[0].mxu0 %v2032
    %v2111 = vpop.f32.mrb[0].mxu0
    %v2112 = vadd.f32 %v2026, %v2111
    %v2113 = vpop.f32.mrb[0].mxu0
    %2114 = vmatprep.mubr.f32.mxu0 0.0
    %2115 = vmatmul.mubr.f32.gmra.mrb[0].mxu0 %v2035
    %v2116 = vpop.f32.mrb[0].mxu0
    %v2117 = vadd.f32 %v2026, %v2116
    %v2118 = vpop.f32.mrb[0].mxu0
    %2119 = vmatprep.mubr.f32.mxu0 0.0
    %2120 = vmatmul.mubr.f32.gmra.mrb[0].mxu0 %v2038
    %v2121 = vpop.f32.mrb[0].mxu0
    %v2122 = vadd.f32 %v2026, %v2121
    %v2123 = vpop.f32.mrb[0].mxu0
    %2124 = vdwg.mxu0
    %v2125 = vadd.f32 %v1800, %v2107
    %v2126 = vadd.f32 %v1801, %v2112
    %v2127 = vadd.f32 %v1802, %v2117
    %v2128 = vadd.f32 %v1803, %v2122
    %v2129 = vld [vmem:[#allocation2 + $0x100] sm:$0x1]
    %v2130 = vld [vmem:[#allocation2 + $0x108] sm:$0x1]
    %v2131 = vsel %vm354, %v2125, 0.0
    %2132 = vadd.xlane.f32.xlu0 %v2131
    %v2133 = vpop.xlane.xlu0 %2132
    %v2134 = vsel %vm354, %v2126, 0.0
    %2135 = vadd.xlane.f32.xlu0 %v2134
    %v2136 = vpop.xlane.xlu0 %2135
    %v2137 = vsel %vm354, %v2127, 0.0
    %2138 = vadd.xlane.f32.xlu0 %v2137
    %v2139 = vpop.xlane.xlu0 %2138
    %v2140 = vsel %vm354, %v2128, 0.0
    %2141 = vadd.xlane.f32.xlu0 %v2140
    %v2142 = vpop.xlane.xlu0 %2141
    %v2143 = vmul.f32 %v2133, %v1747
    %v2144 = vmul.f32 %v2136, %v1747
    %v2145 = vmul.f32 %v2139, %v1747
    %v2146 = vmul.f32 %v2142, %v1747
    %v2147 = vsub.f32 %v2125, %v2143
    %v2148 = vsub.f32 %v2126, %v2144
    %v2149 = vsub.f32 %v2127, %v2145
    %v2150 = vsub.f32 %v2128, %v2146
    %v2151 = vmul.f32 %v2147, %v2147
    %v2152 = vmul.f32 %v2148, %v2148
    %v2153 = vmul.f32 %v2149, %v2149
    %v2154 = vmul.f32 %v2150, %v2150
    %v2155 = vsel %vm354, %v2151, 0.0
    %2156 = vadd.xlane.f32.xlu0 %v2155
    %v2157 = vpop.xlane.xlu0 %2156
    %v2158 = vsel %vm354, %v2152, 0.0
    %2159 = vadd.xlane.f32.xlu0 %v2158
    %v2160 = vpop.xlane.xlu0 %2159
    %v2161 = vsel %vm354, %v2153, 0.0
    %2162 = vadd.xlane.f32.xlu0 %v2161
    %v2163 = vpop.xlane.xlu0 %2162
    %v2164 = vsel %vm354, %v2154, 0.0
    %2165 = vadd.xlane.f32.xlu0 %v2164
    %v2166 = vpop.xlane.xlu0 %2165
    %v2167 = vmul.f32 %v2157, %v1747
    %v2168 = vmul.f32 %v2160, %v1747
    %v2169 = vmul.f32 %v2163, %v1747
    %v2170 = vmul.f32 %v2166, %v1747
    %v2171 = vadd.f32 %v2167, 1e-05
    %v2172 = vadd.f32 %v2168, 1e-05
    %v2173 = vadd.f32 %v2169, 1e-05
    %v2174 = vadd.f32 %v2170, 1e-05
    %v2175 = vrsqrt.pop %v2171
    %v2176 = vrsqrt.pop %v2172
    %v2177 = vrsqrt.pop %v2173
    %v2178 = vrsqrt.pop %v2174
    %v2179 = vmul.f32 %v2147, %v2175
    %v2180 = vmul.f32 %v2148, %v2176
    %v2181 = vmul.f32 %v2149, %v2177
    %v2182 = vmul.f32 %v2150, %v2178
    %v2183 = vlaneseq
    %v2184 = vshrl.u32 %v2183, 7
    %v2185 = vsub.s32 0, %v2184
    %v2186 = vrot.slane %v2129, %v2185
    %v2187 = vmul.f32 %v2179, %v2186
    %v2188 = vmul.f32 %v2180, %v2186
    %v2189 = vmul.f32 %v2181, %v2186
    %v2190 = vmul.f32 %v2182, %v2186
    %v2191 = vlaneseq
    %v2192 = vshrl.u32 %v2191, 7
    %v2193 = vsub.s32 0, %v2192
    %v2194 = vrot.slane %v2130, %v2193
    %v2195 = vadd.f32 %v2187, %v2194
    %v2196 = vadd.f32 %v2188, %v2194
    %v2197 = vadd.f32 %v2189, %v2194
    %v2198 = vadd.f32 %v2190, %v2194
    %v2199 = vld [vmem:[#allocation2 + $0x110] sm:$0xff]
    %v2200 = vld [vmem:[#allocation2 + $0x118] sm:$0xff]
    %v2201 = vld [vmem:[#allocation2 + $0x120] sm:$0xff]
    %v2202 = vld [vmem:[#allocation2 + $0x128] sm:$0xff]
    %v2203 = vld [vmem:[#allocation2 + $0x130] sm:$0x1]
    %v2204 = vlaneseq
    %v2205 = vshrl.u32 %v2204, 7
    %v2206 = vsub.s32 0, %v2205
    %v2207 = vrot.slane %v2203, %v2206
    %v2209 = vsel %vm354, %v2195, 0
    %v2212 = vsel %vm354, %v2196, 0
    %v2215 = vsel %vm354, %v2197, 0
    %v2218 = vsel %vm354, %v2198, 0
    %2220 = vmatprep.subr.mxu0 0.0
    %2221 = vmatpush1.msra.mxu0 %v2199
    %2222 = vmatprep.subr.mxu0 0.0
    %2223 = vmatpush1.msra.mxu0 %v2200
    %2224 = vmatprep.subr.mxu0 0.0
    %2225 = vmatpush1.msra.mxu0 %v2201
    %2226 = vmatprep.subr.mxu0 0.0
    %2227 = vmatpush1.msra.mxu0 %v2202
    %2228 = vmatprep.subr.mxu0 0.0
    %2229 = vmatpush1.msra.mxu0 0.0
    %2230 = vmatprep.subr.mxu0 0.0
    %2231 = vmatpush1.msra.mxu0 0.0
    %2232 = vmatprep.subr.mxu0 0.0
    %2233 = vmatpush1.msra.mxu0 0.0
    %2234 = vmatprep.subr.mxu0 0.0
    %2235 = vmatpush1.msra.mxu0 0.0
    %2236 = vmatprep.subr.mxu0 0.0
    %2237 = vmatpush1.msra.mxu0 0.0
    %2238 = vmatprep.subr.mxu0 0.0
    %2239 = vmatpush1.msra.mxu0 0.0
    %2240 = vmatprep.subr.mxu0 0.0
    %2241 = vmatpush1.msra.mxu0 0.0
    %2242 = vmatprep.subr.mxu0 0.0
    %2243 = vmatpush1.msra.mxu0 0.0
    %2244 = vmatprep.subr.mxu0 0.0
    %2245 = vmatpush1.msra.mxu0 0.0
    %2246 = vmatprep.subr.mxu0 0.0
    %2247 = vmatpush1.msra.mxu0 0.0
    %2248 = vmatprep.subr.mxu0 0.0
    %2249 = vmatpush1.msra.mxu0 0.0
    %2250 = vmatprep.subr.mxu0 0.0
    %2251 = vmatpush1.msra.mxu0 0.0
    %2252 = vmatprep.subr.mxu0 0.0
    %2253 = vmatpush1.msra.mxu0 0.0
    %2254 = vmatprep.subr.mxu0 0.0
    %2255 = vmatpush1.msra.mxu0 0.0
    %2256 = vmatprep.subr.mxu0 0.0
    %2257 = vmatpush1.msra.mxu0 0.0
    %2258 = vmatprep.subr.mxu0 0.0
    %2259 = vmatpush1.msra.mxu0 0.0
    %2260 = vmatprep.subr.mxu0 0.0
    %2261 = vmatpush1.msra.mxu0 0.0
    %2262 = vmatprep.subr.mxu0 0.0
    %2263 = vmatpush1.msra.mxu0 0.0
    %2264 = vmatprep.subr.mxu0 0.0
    %2265 = vmatpush1.msra.mxu0 0.0
    %2266 = vmatprep.subr.mxu0 0.0
    %2267 = vmatpush1.msra.mxu0 0.0
    %2268 = vmatprep.subr.mxu0 0.0
    %2269 = vmatpush1.msra.mxu0 0.0
    %2270 = vmatprep.subr.mxu0 0.0
    %2271 = vmatpush1.msra.mxu0 0.0
    %2272 = vmatprep.subr.mxu0 0.0
    %2273 = vmatpush1.msra.mxu0 0.0
    %2274 = vmatprep.subr.mxu0 0.0
    %2275 = vmatpush1.msra.mxu0 0.0
    %2276 = vmatprep.subr.mxu0 0.0
    %2277 = vmatpush1.msra.mxu0 0.0
    %2278 = vmatprep.subr.mxu0 0.0
    %2279 = vmatpush1.msra.mxu0 0.0
    %2280 = vmatprep.subr.mxu0 0.0
    %2281 = vmatpush1.msra.mxu0 0.0
    %2282 = vmatprep.subr.mxu0 0.0
    %2283 = vmatpush1.msra.mxu0 0.0
    %2284 = vmatprep.mubr.f32.mxu0 0.0
    %2285 = vmatmul.mubr.f32.gmra.mrb[0].mxu0 %v2209
    %v2286 = vpop.f32.mrb[0].mxu0
    %v2287 = vadd.f32 %v2207, %v2286
    %v2288 = vpop.f32.mrb[0].mxu0
    %2289 = vmatprep.mubr.f32.mxu0 0.0
    %2290 = vmatmul.mubr.f32.gmra.mrb[0].mxu0 %v2212
    %v2291 = vpop.f32.mrb[0].mxu0
    %v2292 = vadd.f32 %v2207, %v2291
    %v2293 = vpop.f32.mrb[0].mxu0
    %2294 = vmatprep.mubr.f32.mxu0 0.0
    %2295 = vmatmul.mubr.f32.gmra.mrb[0].mxu0 %v2215
    %v2296 = vpop.f32.mrb[0].mxu0
    %v2297 = vadd.f32 %v2207, %v2296
    %v2298 = vpop.f32.mrb[0].mxu0
    %2299 = vmatprep.mubr.f32.mxu0 0.0
    %2300 = vmatmul.mubr.f32.gmra.mrb[0].mxu0 %v2218
    %v2301 = vpop.f32.mrb[0].mxu0
    %v2302 = vadd.f32 %v2207, %v2301
    %v2303 = vpop.f32.mrb[0].mxu0
    %2304 = vdwg.mxu0
    %v2305 = vld [vmem:[#allocation2 + $0x138] sm:$0xff]
    %v2306 = vld [vmem:[#allocation2 + $0x140] sm:$0xff]
    %v2307 = vld [vmem:[#allocation2 + $0x148] sm:$0xff]
    %v2308 = vld [vmem:[#allocation2 + $0x150] sm:$0xff]
    %v2309 = vld [vmem:[#allocation2 + $0x158] sm:$0x1]
    %2314 = vrot.lane.b32.xlu0 %v2287, 96
    %v2315 = vpop.permute.xlu0 %2314
    %2316 = vrot.lane.b32.xlu0 %v2292, 96
    %v2317 = vpop.permute.xlu0 %2316
    %2318 = vrot.lane.b32.xlu0 %v2297, 96
    %v2319 = vpop.permute.xlu0 %2318
    %2320 = vrot.lane.b32.xlu0 %v2302, 96
    %v2321 = vpop.permute.xlu0 %2320
    %v2322 = vsel %vm469, %v2287, 0
    %v2324 = vsel %vm469, %v2292, 0
    %v2326 = vsel %vm469, %v2297, 0
    %v2328 = vsel %vm469, %v2302, 0
    %v2330 = vsel %vm469, %v2315, 0
    %v2332 = vsel %vm469, %v2317, 0
    %v2334 = vsel %vm469, %v2319, 0
    %v2336 = vsel %vm469, %v2321, 0
    %2338 = vmatprep.subr.mxu0 0.0
    %2339 = vmatpush1.xpose.msra.mxu0 %v2330
    %2340 = vmatprep.subr.mxu0 0.0
    %2341 = vmatpush1.xpose.msra.mxu0 %v2332
    %2342 = vmatprep.subr.mxu0 0.0
    %2343 = vmatpush1.xpose.msra.mxu0 %v2334
    %2344 = vmatprep.subr.mxu0 0.0
    %2345 = vmatpush1.xpose.msra.mxu0 %v2336
    %2346 = vmatprep.subr.mxu0 0.0
    %2347 = vmatpush1.xpose.msra.mxu0 0.0
    %2348 = vmatprep.subr.mxu0 0.0
    %2349 = vmatpush1.xpose.msra.mxu0 0.0
    %2350 = vmatprep.subr.mxu0 0.0
    %2351 = vmatpush1.xpose.msra.mxu0 0.0
    %2352 = vmatprep.subr.mxu0 0.0
    %2353 = vmatpush1.xpose.msra.mxu0 0.0
    %2354 = vmatprep.subr.mxu0 0.0
    %2355 = vmatpush1.xpose.msra.mxu0 0.0
    %2356 = vmatprep.subr.mxu0 0.0
    %2357 = vmatpush1.xpose.msra.mxu0 0.0
    %2358 = vmatprep.subr.mxu0 0.0
    %2359 = vmatpush1.xpose.msra.mxu0 0.0
    %2360 = vmatprep.subr.mxu0 0.0
    %2361 = vmatpush1.xpose.msra.mxu0 0.0
    %2362 = vmatprep.subr.mxu0 0.0
    %2363 = vmatpush1.xpose.msra.mxu0 0.0
    %2364 = vmatprep.subr.mxu0 0.0
    %2365 = vmatpush1.xpose.msra.mxu0 0.0
    %2366 = vmatprep.subr.mxu0 0.0
    %2367 = vmatpush1.xpose.msra.mxu0 0.0
    %2368 = vmatprep.subr.mxu0 0.0
    %2369 = vmatpush1.xpose.msra.mxu0 0.0
    %2370 = vmatprep.subr.mxu0 0.0
    %2371 = vmatpush1.xpose.msra.mxu0 0.0
    %2372 = vmatprep.subr.mxu0 0.0
    %2373 = vmatpush1.xpose.msra.mxu0 0.0
    %2374 = vmatprep.subr.mxu0 0.0
    %2375 = vmatpush1.xpose.msra.mxu0 0.0
    %2376 = vmatprep.subr.mxu0 0.0
    %2377 = vmatpush1.xpose.msra.mxu0 0.0
    %2378 = vmatprep.subr.mxu0 0.0
    %2379 = vmatpush1.xpose.msra.mxu0 0.0
    %2380 = vmatprep.subr.mxu0 0.0
    %2381 = vmatpush1.xpose.msra.mxu0 0.0
    %2382 = vmatprep.subr.mxu0 0.0
    %2383 = vmatpush1.xpose.msra.mxu0 0.0
    %2384 = vmatprep.subr.mxu0 0.0
    %2385 = vmatpush1.xpose.msra.mxu0 0.0
    %2386 = vmatprep.subr.mxu0 0.0
    %2387 = vmatpush1.xpose.msra.mxu0 0.0
    %2388 = vmatprep.subr.mxu0 0.0
    %2389 = vmatpush1.xpose.msra.mxu0 0.0
    %2390 = vmatprep.subr.mxu0 0.0
    %2391 = vmatpush1.xpose.msra.mxu0 0.0
    %2392 = vmatprep.subr.mxu0 0.0
    %2393 = vmatpush1.xpose.msra.mxu0 0.0
    %2394 = vmatprep.subr.mxu0 0.0
    %2395 = vmatpush1.xpose.msra.mxu0 0.0
    %2396 = vmatprep.subr.mxu0 0.0
    %2397 = vmatpush1.xpose.msra.mxu0 0.0
    %2398 = vmatprep.subr.mxu0 0.0
    %2399 = vmatpush1.xpose.msra.mxu0 0.0
    %2400 = vmatprep.subr.mxu0 0.0
    %2401 = vmatpush1.xpose.msra.mxu0 0.0
    %2402 = vmatprep.mubr.f32.mxu0 0.0
    %2403 = vmatmul.mubr.f32.gmra.mrb[0].mxu0 %v2322
    %v2404 = vpop.f32.mrb[0].mxu0
    %v2405 = vadd.f32 0.0, %v2404
    %v2406 = vpop.f32.mrb[0].mxu0
    %2407 = vmatprep.mubr.f32.mxu0 0.0
    %2408 = vmatmul.mubr.f32.gmra.mrb[0].mxu0 %v2324
    %v2409 = vpop.f32.mrb[0].mxu0
    %v2410 = vadd.f32 0.0, %v2409
    %v2411 = vpop.f32.mrb[0].mxu0
    %2412 = vmatprep.mubr.f32.mxu0 0.0
    %2413 = vmatmul.mubr.f32.gmra.mrb[0].mxu0 %v2326
    %v2414 = vpop.f32.mrb[0].mxu0
    %v2415 = vadd.f32 0.0, %v2414
    %v2416 = vpop.f32.mrb[0].mxu0
    %2417 = vmatprep.mubr.f32.mxu0 0.0
    %2418 = vmatmul.mubr.f32.gmra.mrb[0].mxu0 %v2328
    %v2419 = vpop.f32.mrb[0].mxu0
    %v2420 = vadd.f32 0.0, %v2419
    %v2421 = vpop.f32.mrb[0].mxu0
    %2422 = vdwg.mxu0
    %v2423 = vmul.f32 %v2405, 0.35355338
    %v2424 = vmul.f32 %v2410, 0.35355338
    %v2425 = vmul.f32 %v2415, 0.35355338
    %v2426 = vmul.f32 %v2420, 0.35355338
    %v2427 = vadd.f32 %v2423, %v89
    %v2428 = vadd.f32 %v2424, %v90
    %v2429 = vadd.f32 %v2425, %v91
    %v2430 = vadd.f32 %v2426, %v92
    %v2431 = vsel %vm354, %v2427, -inf
    %2432 = vmax.xlane.f32.xlu0 %v2431
    %v2433 = vpop.xlane.xlu0 %2432
    %v2434 = vsel %vm354, %v2428, -inf
    %2435 = vmax.xlane.f32.xlu0 %v2434
    %v2436 = vpop.xlane.xlu0 %2435
    %v2437 = vsel %vm354, %v2429, -inf
    %2438 = vmax.xlane.f32.xlu0 %v2437
    %v2439 = vpop.xlane.xlu0 %2438
    %v2440 = vsel %vm354, %v2430, -inf
    %2441 = vmax.xlane.f32.xlu0 %v2440
    %v2442 = vpop.xlane.xlu0 %2441
    %v2443 = vsub.f32 %v2427, %v2433
    %v2444 = vsub.f32 %v2428, %v2436
    %v2445 = vsub.f32 %v2429, %v2439
    %v2446 = vsub.f32 %v2430, %v2442
    %v2447 = vmul.f32 %v2443, 1.442695
    %v2448 = vpow.pop %v2447
    %v2449 = vmul.f32 %v2444, 1.442695
    %v2450 = vpow.pop %v2449
    %v2451 = vmul.f32 %v2445, 1.442695
    %v2452 = vpow.pop %v2451
    %v2453 = vmul.f32 %v2446, 1.442695
    %v2454 = vpow.pop %v2453
    %v2455 = vsel %vm354, %v2448, 0.0
    %2456 = vadd.xlane.f32.xlu0 %v2455
    %v2457 = vpop.xlane.xlu0 %2456
    %v2458 = vsel %vm354, %v2450, 0.0
    %2459 = vadd.xlane.f32.xlu0 %v2458
    %v2460 = vpop.xlane.xlu0 %2459
    %v2461 = vsel %vm354, %v2452, 0.0
    %2462 = vadd.xlane.f32.xlu0 %v2461
    %v2463 = vpop.xlane.xlu0 %2462
    %v2464 = vsel %vm354, %v2454, 0.0
    %2465 = vadd.xlane.f32.xlu0 %v2464
    %v2466 = vpop.xlane.xlu0 %2465
    %v2467 = vrcp.pop %v2457
    %v2468 = vrcp.pop %v2460
    %v2469 = vrcp.pop %v2463
    %v2470 = vrcp.pop %v2466
    %v2471 = vmul.f32 %v2448, %v2467
    %v2472 = vmul.f32 %v2450, %v2468
    %v2473 = vmul.f32 %v2452, %v2469
    %v2474 = vmul.f32 %v2454, %v2470
    %2475 = vrot.lane.b32.xlu0 %v2287, 64
    %v2476 = vpop.permute.xlu0 %2475
    %2477 = vrot.lane.b32.xlu0 %v2292, 64
    %v2478 = vpop.permute.xlu0 %2477
    %2479 = vrot.lane.b32.xlu0 %v2297, 64
    %v2480 = vpop.permute.xlu0 %2479
    %2481 = vrot.lane.b32.xlu0 %v2302, 64
    %v2482 = vpop.permute.xlu0 %2481
    %v2488 = vsel %vm354, %v2471, 0
    %v2491 = vsel %vm354, %v2472, 0
    %v2494 = vsel %vm354, %v2473, 0
    %v2497 = vsel %vm354, %v2474, 0
    %2499 = vmatprep.subr.mxu0 0.0
    %2500 = vmatpush1.msra.mxu0 %v2476
    %2501 = vmatprep.subr.mxu0 0.0
    %2502 = vmatpush1.msra.mxu0 %v2478
    %2503 = vmatprep.subr.mxu0 0.0
    %2504 = vmatpush1.msra.mxu0 %v2480
    %2505 = vmatprep.subr.mxu0 0.0
    %2506 = vmatpush1.msra.mxu0 %v2482
    %2507 = vmatprep.subr.mxu0 0.0
    %2508 = vmatpush1.msra.mxu0 0.0
    %2509 = vmatprep.subr.mxu0 0.0
    %2510 = vmatpush1.msra.mxu0 0.0
    %2511 = vmatprep.subr.mxu0 0.0
    %2512 = vmatpush1.msra.mxu0 0.0
    %2513 = vmatprep.subr.mxu0 0.0
    %2514 = vmatpush1.msra.mxu0 0.0
    %2515 = vmatprep.subr.mxu0 0.0
    %2516 = vmatpush1.msra.mxu0 0.0
    %2517 = vmatprep.subr.mxu0 0.0
    %2518 = vmatpush1.msra.mxu0 0.0
    %2519 = vmatprep.subr.mxu0 0.0
    %2520 = vmatpush1.msra.mxu0 0.0
    %2521 = vmatprep.subr.mxu0 0.0
    %2522 = vmatpush1.msra.mxu0 0.0
    %2523 = vmatprep.subr.mxu0 0.0
    %2524 = vmatpush1.msra.mxu0 0.0
    %2525 = vmatprep.subr.mxu0 0.0
    %2526 = vmatpush1.msra.mxu0 0.0
    %2527 = vmatprep.subr.mxu0 0.0
    %2528 = vmatpush1.msra.mxu0 0.0
    %2529 = vmatprep.subr.mxu0 0.0
    %2530 = vmatpush1.msra.mxu0 0.0
    %2531 = vmatprep.subr.mxu0 0.0
    %2532 = vmatpush1.msra.mxu0 0.0
    %2533 = vmatprep.subr.mxu0 0.0
    %2534 = vmatpush1.msra.mxu0 0.0
    %2535 = vmatprep.subr.mxu0 0.0
    %2536 = vmatpush1.msra.mxu0 0.0
    %2537 = vmatprep.subr.mxu0 0.0
    %2538 = vmatpush1.msra.mxu0 0.0
    %2539 = vmatprep.subr.mxu0 0.0
    %2540 = vmatpush1.msra.mxu0 0.0
    %2541 = vmatprep.subr.mxu0 0.0
    %2542 = vmatpush1.msra.mxu0 0.0
    %2543 = vmatprep.subr.mxu0 0.0
    %2544 = vmatpush1.msra.mxu0 0.0
    %2545 = vmatprep.subr.mxu0 0.0
    %2546 = vmatpush1.msra.mxu0 0.0
    %2547 = vmatprep.subr.mxu0 0.0
    %2548 = vmatpush1.msra.mxu0 0.0
    %2549 = vmatprep.subr.mxu0 0.0
    %2550 = vmatpush1.msra.mxu0 0.0
    %2551 = vmatprep.subr.mxu0 0.0
    %2552 = vmatpush1.msra.mxu0 0.0
    %2553 = vmatprep.subr.mxu0 0.0
    %2554 = vmatpush1.msra.mxu0 0.0
    %2555 = vmatprep.subr.mxu0 0.0
    %2556 = vmatpush1.msra.mxu0 0.0
    %2557 = vmatprep.subr.mxu0 0.0
    %2558 = vmatpush1.msra.mxu0 0.0
    %2559 = vmatprep.subr.mxu0 0.0
    %2560 = vmatpush1.msra.mxu0 0.0
    %2561 = vmatprep.subr.mxu0 0.0
    %2562 = vmatpush1.msra.mxu0 0.0
    %2563 = vmatprep.mubr.f32.mxu0 0.0
    %2564 = vmatmul.mubr.f32.gmra.mrb[0].mxu0 %v2488
    %v2565 = vpop.f32.mrb[0].mxu0
    %v2566 = vadd.f32 0.0, %v2565
    %v2567 = vpop.f32.mrb[0].mxu0
    %2568 = vmatprep.mubr.f32.mxu0 0.0
    %2569 = vmatmul.mubr.f32.gmra.mrb[0].mxu0 %v2491
    %v2570 = vpop.f32.mrb[0].mxu0
    %v2571 = vadd.f32 0.0, %v2570
    %v2572 = vpop.f32.mrb[0].mxu0
    %2573 = vmatprep.mubr.f32.mxu0 0.0
    %2574 = vmatmul.mubr.f32.gmra.mrb[0].mxu0 %v2494
    %v2575 = vpop.f32.mrb[0].mxu0
    %v2576 = vadd.f32 0.0, %v2575
    %v2577 = vpop.f32.mrb[0].mxu0
    %2578 = vmatprep.mubr.f32.mxu0 0.0
    %2579 = vmatmul.mubr.f32.gmra.mrb[0].mxu0 %v2497
    %v2580 = vpop.f32.mrb[0].mxu0
    %v2581 = vadd.f32 0.0, %v2580
    %v2582 = vpop.f32.mrb[0].mxu0
    %2583 = vdwg.mxu0
    %2584 = vrot.lane.b32.xlu0 %v2287, 120
    %v2585 = vpop.permute.xlu0 %2584
    %2586 = vrot.lane.b32.xlu0 %v2292, 120
    %v2587 = vpop.permute.xlu0 %2586
    %2588 = vrot.lane.b32.xlu0 %v2297, 120
    %v2589 = vpop.permute.xlu0 %2588
    %2590 = vrot.lane.b32.xlu0 %v2302, 120
    %v2591 = vpop.permute.xlu0 %2590
    %2592 = vrot.lane.b32.xlu0 %v2287, 88
    %v2593 = vpop.permute.xlu0 %2592
    %2594 = vrot.lane.b32.xlu0 %v2292, 88
    %v2595 = vpop.permute.xlu0 %2594
    %2596 = vrot.lane.b32.xlu0 %v2297, 88
    %v2597 = vpop.permute.xlu0 %2596
    %2598 = vrot.lane.b32.xlu0 %v2302, 88
    %v2599 = vpop.permute.xlu0 %2598
    %v2600 = vsel %vm469, %v2585, 0
    %v2602 = vsel %vm469, %v2587, 0
    %v2604 = vsel %vm469, %v2589, 0
    %v2606 = vsel %vm469, %v2591, 0
    %v2608 = vsel %vm469, %v2593, 0
    %v2610 = vsel %vm469, %v2595, 0
    %v2612 = vsel %vm469, %v2597, 0
    %v2614 = vsel %vm469, %v2599, 0
    %2616 = vmatprep.subr.mxu0 0.0
    %2617 = vmatpush1.xpose.msra.mxu0 %v2608
    %2618 = vmatprep.subr.mxu0 0.0
    %2619 = vmatpush1.xpose.msra.mxu0 %v2610
    %2620 = vmatprep.subr.mxu0 0.0
    %2621 = vmatpush1.xpose.msra.mxu0 %v2612
    %2622 = vmatprep.subr.mxu0 0.0
    %2623 = vmatpush1.xpose.msra.mxu0 %v2614
    %2624 = vmatprep.subr.mxu0 0.0
    %2625 = vmatpush1.xpose.msra.mxu0 0.0
    %2626 = vmatprep.subr.mxu0 0.0
    %2627 = vmatpush1.xpose.msra.mxu0 0.0
    %2628 = vmatprep.subr.mxu0 0.0
    %2629 = vmatpush1.xpose.msra.mxu0 0.0
    %2630 = vmatprep.subr.mxu0 0.0
    %2631 = vmatpush1.xpose.msra.mxu0 0.0
    %2632 = vmatprep.subr.mxu0 0.0
    %2633 = vmatpush1.xpose.msra.mxu0 0.0
    %2634 = vmatprep.subr.mxu0 0.0
    %2635 = vmatpush1.xpose.msra.mxu0 0.0
    %2636 = vmatprep.subr.mxu0 0.0
    %2637 = vmatpush1.xpose.msra.mxu0 0.0
    %2638 = vmatprep.subr.mxu0 0.0
    %2639 = vmatpush1.xpose.msra.mxu0 0.0
    %2640 = vmatprep.subr.mxu0 0.0
    %2641 = vmatpush1.xpose.msra.mxu0 0.0
    %2642 = vmatprep.subr.mxu0 0.0
    %2643 = vmatpush1.xpose.msra.mxu0 0.0
    %2644 = vmatprep.subr.mxu0 0.0
    %2645 = vmatpush1.xpose.msra.mxu0 0.0
    %2646 = vmatprep.subr.mxu0 0.0
    %2647 = vmatpush1.xpose.msra.mxu0 0.0
    %2648 = vmatprep.subr.mxu0 0.0
    %2649 = vmatpush1.xpose.msra.mxu0 0.0
    %2650 = vmatprep.subr.mxu0 0.0
    %2651 = vmatpush1.xpose.msra.mxu0 0.0
    %2652 = vmatprep.subr.mxu0 0.0
    %2653 = vmatpush1.xpose.msra.mxu0 0.0
    %2654 = vmatprep.subr.mxu0 0.0
    %2655 = vmatpush1.xpose.msra.mxu0 0.0
    %2656 = vmatprep.subr.mxu0 0.0
    %2657 = vmatpush1.xpose.msra.mxu0 0.0
    %2658 = vmatprep.subr.mxu0 0.0
    %2659 = vmatpush1.xpose.msra.mxu0 0.0
    %2660 = vmatprep.subr.mxu0 0.0
    %2661 = vmatpush1.xpose.msra.mxu0 0.0
    %2662 = vmatprep.subr.mxu0 0.0
    %2663 = vmatpush1.xpose.msra.mxu0 0.0
    %2664 = vmatprep.subr.mxu0 0.0
    %2665 = vmatpush1.xpose.msra.mxu0 0.0
    %2666 = vmatprep.subr.mxu0 0.0
    %2667 = vmatpush1.xpose.msra.mxu0 0.0
    %2668 = vmatprep.subr.mxu0 0.0
    %2669 = vmatpush1.xpose.msra.mxu0 0.0
    %2670 = vmatprep.subr.mxu0 0.0
    %2671 = vmatpush1.xpose.msra.mxu0 0.0
    %2672 = vmatprep.subr.mxu0 0.0
    %2673 = vmatpush1.xpose.msra.mxu0 0.0
    %2674 = vmatprep.subr.mxu0 0.0
    %2675 = vmatpush1.xpose.msra.mxu0 0.0
    %2676 = vmatprep.subr.mxu0 0.0
    %2677 = vmatpush1.xpose.msra.mxu0 0.0
    %2678 = vmatprep.subr.mxu0 0.0
    %2679 = vmatpush1.xpose.msra.mxu0 0.0
    %2680 = vmatprep.mubr.f32.mxu0 0.0
    %2681 = vmatmul.mubr.f32.gmra.mrb[0].mxu0 %v2600
    %v2682 = vpop.f32.mrb[0].mxu0
    %v2683 = vadd.f32 0.0, %v2682
    %v2684 = vpop.f32.mrb[0].mxu0
    %2685 = vmatprep.mubr.f32.mxu0 0.0
    %2686 = vmatmul.mubr.f32.gmra.mrb[0].mxu0 %v2602
    %v2687 = vpop.f32.mrb[0].mxu0
    %v2688 = vadd.f32 0.0, %v2687
    %v2689 = vpop.f32.mrb[0].mxu0
    %2690 = vmatprep.mubr.f32.mxu0 0.0
    %2691 = vmatmul.mubr.f32.gmra.mrb[0].mxu0 %v2604
    %v2692 = vpop.f32.mrb[0].mxu0
    %v2693 = vadd.f32 0.0, %v2692
    %v2694 = vpop.f32.mrb[0].mxu0
    %2695 = vmatprep.mubr.f32.mxu0 0.0
    %2696 = vmatmul.mubr.f32.gmra.mrb[0].mxu0 %v2606
    %v2697 = vpop.f32.mrb[0].mxu0
    %v2698 = vadd.f32 0.0, %v2697
    %v2699 = vpop.f32.mrb[0].mxu0
    %2700 = vdwg.mxu0
    %v2701 = vmul.f32 %v2683, 0.35355338
    %v2702 = vmul.f32 %v2688, 0.35355338
    %v2703 = vmul.f32 %v2693, 0.35355338
    %v2704 = vmul.f32 %v2698, 0.35355338
    %v2705 = vadd.f32 %v2701, %v89
    %v2706 = vadd.f32 %v2702, %v90
    %v2707 = vadd.f32 %v2703, %v91
    %v2708 = vadd.f32 %v2704, %v92
    %v2709 = vsel %vm354, %v2705, -inf
    %2710 = vmax.xlane.f32.xlu0 %v2709
    %v2711 = vpop.xlane.xlu0 %2710
    %v2712 = vsel %vm354, %v2706, -inf
    %2713 = vmax.xlane.f32.xlu0 %v2712
    %v2714 = vpop.xlane.xlu0 %2713
    %v2715 = vsel %vm354, %v2707, -inf
    %2716 = vmax.xlane.f32.xlu0 %v2715
    %v2717 = vpop.xlane.xlu0 %2716
    %v2718 = vsel %vm354, %v2708, -inf
    %2719 = vmax.xlane.f32.xlu0 %v2718
    %v2720 = vpop.xlane.xlu0 %2719
    %v2721 = vsub.f32 %v2705, %v2711
    %v2722 = vsub.f32 %v2706, %v2714
    %v2723 = vsub.f32 %v2707, %v2717
    %v2724 = vsub.f32 %v2708, %v2720
    %v2725 = vmul.f32 %v2721, 1.442695
    %v2726 = vpow.pop %v2725
    %v2727 = vmul.f32 %v2722, 1.442695
    %v2728 = vpow.pop %v2727
    %v2729 = vmul.f32 %v2723, 1.442695
    %v2730 = vpow.pop %v2729
    %v2731 = vmul.f32 %v2724, 1.442695
    %v2732 = vpow.pop %v2731
    %v2733 = vsel %vm354, %v2726, 0.0
    %2734 = vadd.xlane.f32.xlu0 %v2733
    %v2735 = vpop.xlane.xlu0 %2734
    %v2736 = vsel %vm354, %v2728, 0.0
    %2737 = vadd.xlane.f32.xlu0 %v2736
    %v2738 = vpop.xlane.xlu0 %2737
    %v2739 = vsel %vm354, %v2730, 0.0
    %2740 = vadd.xlane.f32.xlu0 %v2739
    %v2741 = vpop.xlane.xlu0 %2740
    %v2742 = vsel %vm354, %v2732, 0.0
    %2743 = vadd.xlane.f32.xlu0 %v2742
    %v2744 = vpop.xlane.xlu0 %2743
    %v2745 = vrcp.pop %v2735
    %v2746 = vrcp.pop %v2738
    %v2747 = vrcp.pop %v2741
    %v2748 = vrcp.pop %v2744
    %v2749 = vmul.f32 %v2726, %v2745
    %v2750 = vmul.f32 %v2728, %v2746
    %v2751 = vmul.f32 %v2730, %v2747
    %v2752 = vmul.f32 %v2732, %v2748
    %2753 = vrot.lane.b32.xlu0 %v2287, 56
    %v2754 = vpop.permute.xlu0 %2753
    %2755 = vrot.lane.b32.xlu0 %v2292, 56
    %v2756 = vpop.permute.xlu0 %2755
    %2757 = vrot.lane.b32.xlu0 %v2297, 56
    %v2758 = vpop.permute.xlu0 %2757
    %2759 = vrot.lane.b32.xlu0 %v2302, 56
    %v2760 = vpop.permute.xlu0 %2759
    %v2766 = vsel %vm354, %v2749, 0
    %v2769 = vsel %vm354, %v2750, 0
    %v2772 = vsel %vm354, %v2751, 0
    %v2775 = vsel %vm354, %v2752, 0
    %2777 = vmatprep.subr.mxu0 0.0
    %2778 = vmatpush1.msra.mxu0 %v2754
    %2779 = vmatprep.subr.mxu0 0.0
    %2780 = vmatpush1.msra.mxu0 %v2756
    %2781 = vmatprep.subr.mxu0 0.0
    %2782 = vmatpush1.msra.mxu0 %v2758
    %2783 = vmatprep.subr.mxu0 0.0
    %2784 = vmatpush1.msra.mxu0 %v2760
    %2785 = vmatprep.subr.mxu0 0.0
    %2786 = vmatpush1.msra.mxu0 0.0
    %2787 = vmatprep.subr.mxu0 0.0
    %2788 = vmatpush1.msra.mxu0 0.0
    %2789 = vmatprep.subr.mxu0 0.0
    %2790 = vmatpush1.msra.mxu0 0.0
    %2791 = vmatprep.subr.mxu0 0.0
    %2792 = vmatpush1.msra.mxu0 0.0
    %2793 = vmatprep.subr.mxu0 0.0
    %2794 = vmatpush1.msra.mxu0 0.0
    %2795 = vmatprep.subr.mxu0 0.0
    %2796 = vmatpush1.msra.mxu0 0.0
    %2797 = vmatprep.subr.mxu0 0.0
    %2798 = vmatpush1.msra.mxu0 0.0
    %2799 = vmatprep.subr.mxu0 0.0
    %2800 = vmatpush1.msra.mxu0 0.0
    %2801 = vmatprep.subr.mxu0 0.0
    %2802 = vmatpush1.msra.mxu0 0.0
    %2803 = vmatprep.subr.mxu0 0.0
    %2804 = vmatpush1.msra.mxu0 0.0
    %2805 = vmatprep.subr.mxu0 0.0
    %2806 = vmatpush1.msra.mxu0 0.0
    %2807 = vmatprep.subr.mxu0 0.0
    %2808 = vmatpush1.msra.mxu0 0.0
    %2809 = vmatprep.subr.mxu0 0.0
    %2810 = vmatpush1.msra.mxu0 0.0
    %2811 = vmatprep.subr.mxu0 0.0
    %2812 = vmatpush1.msra.mxu0 0.0
    %2813 = vmatprep.subr.mxu0 0.0
    %2814 = vmatpush1.msra.mxu0 0.0
    %2815 = vmatprep.subr.mxu0 0.0
    %2816 = vmatpush1.msra.mxu0 0.0
    %2817 = vmatprep.subr.mxu0 0.0
    %2818 = vmatpush1.msra.mxu0 0.0
    %2819 = vmatprep.subr.mxu0 0.0
    %2820 = vmatpush1.msra.mxu0 0.0
    %2821 = vmatprep.subr.mxu0 0.0
    %2822 = vmatpush1.msra.mxu0 0.0
    %2823 = vmatprep.subr.mxu0 0.0
    %2824 = vmatpush1.msra.mxu0 0.0
    %2825 = vmatprep.subr.mxu0 0.0
    %2826 = vmatpush1.msra.mxu0 0.0
    %2827 = vmatprep.subr.mxu0 0.0
    %2828 = vmatpush1.msra.mxu0 0.0
    %2829 = vmatprep.subr.mxu0 0.0
    %2830 = vmatpush1.msra.mxu0 0.0
    %2831 = vmatprep.subr.mxu0 0.0
    %2832 = vmatpush1.msra.mxu0 0.0
    %2833 = vmatprep.subr.mxu0 0.0
    %2834 = vmatpush1.msra.mxu0 0.0
    %2835 = vmatprep.subr.mxu0 0.0
    %2836 = vmatpush1.msra.mxu0 0.0
    %2837 = vmatprep.subr.mxu0 0.0
    %2838 = vmatpush1.msra.mxu0 0.0
    %2839 = vmatprep.subr.mxu0 0.0
    %2840 = vmatpush1.msra.mxu0 0.0
    %2841 = vmatprep.mubr.f32.mxu0 0.0
    %2842 = vmatmul.mubr.f32.gmra.mrb[0].mxu0 %v2766
    %v2843 = vpop.f32.mrb[0].mxu0
    %v2844 = vadd.f32 0.0, %v2843
    %v2845 = vpop.f32.mrb[0].mxu0
    %2846 = vmatprep.mubr.f32.mxu0 0.0
    %2847 = vmatmul.mubr.f32.gmra.mrb[0].mxu0 %v2769
    %v2848 = vpop.f32.mrb[0].mxu0
    %v2849 = vadd.f32 0.0, %v2848
    %v2850 = vpop.f32.mrb[0].mxu0
    %2851 = vmatprep.mubr.f32.mxu0 0.0
    %2852 = vmatmul.mubr.f32.gmra.mrb[0].mxu0 %v2772
    %v2853 = vpop.f32.mrb[0].mxu0
    %v2854 = vadd.f32 0.0, %v2853
    %v2855 = vpop.f32.mrb[0].mxu0
    %2856 = vmatprep.mubr.f32.mxu0 0.0
    %2857 = vmatmul.mubr.f32.gmra.mrb[0].mxu0 %v2775
    %v2858 = vpop.f32.mrb[0].mxu0
    %v2859 = vadd.f32 0.0, %v2858
    %v2860 = vpop.f32.mrb[0].mxu0
    %2861 = vdwg.mxu0
    %2862 = vrot.lane.b32.xlu0 %v2287, 112
    %v2863 = vpop.permute.xlu0 %2862
    %2864 = vrot.lane.b32.xlu0 %v2292, 112
    %v2865 = vpop.permute.xlu0 %2864
    %2866 = vrot.lane.b32.xlu0 %v2297, 112
    %v2867 = vpop.permute.xlu0 %2866
    %2868 = vrot.lane.b32.xlu0 %v2302, 112
    %v2869 = vpop.permute.xlu0 %2868
    %2870 = vrot.lane.b32.xlu0 %v2287, 80
    %v2871 = vpop.permute.xlu0 %2870
    %2872 = vrot.lane.b32.xlu0 %v2292, 80
    %v2873 = vpop.permute.xlu0 %2872
    %2874 = vrot.lane.b32.xlu0 %v2297, 80
    %v2875 = vpop.permute.xlu0 %2874
    %2876 = vrot.lane.b32.xlu0 %v2302, 80
    %v2877 = vpop.permute.xlu0 %2876
    %v2878 = vsel %vm469, %v2863, 0
    %v2880 = vsel %vm469, %v2865, 0
    %v2882 = vsel %vm469, %v2867, 0
    %v2884 = vsel %vm469, %v2869, 0
    %v2886 = vsel %vm469, %v2871, 0
    %v2888 = vsel %vm469, %v2873, 0
    %v2890 = vsel %vm469, %v2875, 0
    %v2892 = vsel %vm469, %v2877, 0
    %2894 = vmatprep.subr.mxu0 0.0
    %2895 = vmatpush1.xpose.msra.mxu0 %v2886
    %2896 = vmatprep.subr.mxu0 0.0
    %2897 = vmatpush1.xpose.msra.mxu0 %v2888
    %2898 = vmatprep.subr.mxu0 0.0
    %2899 = vmatpush1.xpose.msra.mxu0 %v2890
    %2900 = vmatprep.subr.mxu0 0.0
    %2901 = vmatpush1.xpose.msra.mxu0 %v2892
    %2902 = vmatprep.subr.mxu0 0.0
    %2903 = vmatpush1.xpose.msra.mxu0 0.0
    %2904 = vmatprep.subr.mxu0 0.0
    %2905 = vmatpush1.xpose.msra.mxu0 0.0
    %2906 = vmatprep.subr.mxu0 0.0
    %2907 = vmatpush1.xpose.msra.mxu0 0.0
    %2908 = vmatprep.subr.mxu0 0.0
    %2909 = vmatpush1.xpose.msra.mxu0 0.0
    %2910 = vmatprep.subr.mxu0 0.0
    %2911 = vmatpush1.xpose.msra.mxu0 0.0
    %2912 = vmatprep.subr.mxu0 0.0
    %2913 = vmatpush1.xpose.msra.mxu0 0.0
    %2914 = vmatprep.subr.mxu0 0.0
    %2915 = vmatpush1.xpose.msra.mxu0 0.0
    %2916 = vmatprep.subr.mxu0 0.0
    %2917 = vmatpush1.xpose.msra.mxu0 0.0
    %2918 = vmatprep.subr.mxu0 0.0
    %2919 = vmatpush1.xpose.msra.mxu0 0.0
    %2920 = vmatprep.subr.mxu0 0.0
    %2921 = vmatpush1.xpose.msra.mxu0 0.0
    %2922 = vmatprep.subr.mxu0 0.0
    %2923 = vmatpush1.xpose.msra.mxu0 0.0
    %2924 = vmatprep.subr.mxu0 0.0
    %2925 = vmatpush1.xpose.msra.mxu0 0.0
    %2926 = vmatprep.subr.mxu0 0.0
    %2927 = vmatpush1.xpose.msra.mxu0 0.0
    %2928 = vmatprep.subr.mxu0 0.0
    %2929 = vmatpush1.xpose.msra.mxu0 0.0
    %2930 = vmatprep.subr.mxu0 0.0
    %2931 = vmatpush1.xpose.msra.mxu0 0.0
    %2932 = vmatprep.subr.mxu0 0.0
    %2933 = vmatpush1.xpose.msra.mxu0 0.0
    %2934 = vmatprep.subr.mxu0 0.0
    %2935 = vmatpush1.xpose.msra.mxu0 0.0
    %2936 = vmatprep.subr.mxu0 0.0
    %2937 = vmatpush1.xpose.msra.mxu0 0.0
    %2938 = vmatprep.subr.mxu0 0.0
    %2939 = vmatpush1.xpose.msra.mxu0 0.0
    %2940 = vmatprep.subr.mxu0 0.0
    %2941 = vmatpush1.xpose.msra.mxu0 0.0
    %2942 = vmatprep.subr.mxu0 0.0
    %2943 = vmatpush1.xpose.msra.mxu0 0.0
    %2944 = vmatprep.subr.mxu0 0.0
    %2945 = vmatpush1.xpose.msra.mxu0 0.0
    %2946 = vmatprep.subr.mxu0 0.0
    %2947 = vmatpush1.xpose.msra.mxu0 0.0
    %2948 = vmatprep.subr.mxu0 0.0
    %2949 = vmatpush1.xpose.msra.mxu0 0.0
    %2950 = vmatprep.subr.mxu0 0.0
    %2951 = vmatpush1.xpose.msra.mxu0 0.0
    %2952 = vmatprep.subr.mxu0 0.0
    %2953 = vmatpush1.xpose.msra.mxu0 0.0
    %2954 = vmatprep.subr.mxu0 0.0
    %2955 = vmatpush1.xpose.msra.mxu0 0.0
    %2956 = vmatprep.subr.mxu0 0.0
    %2957 = vmatpush1.xpose.msra.mxu0 0.0
    %2958 = vmatprep.mubr.f32.mxu0 0.0
    %2959 = vmatmul.mubr.f32.gmra.mrb[0].mxu0 %v2878
    %v2960 = vpop.f32.mrb[0].mxu0
    %v2961 = vadd.f32 0.0, %v2960
    %v2962 = vpop.f32.mrb[0].mxu0
    %2963 = vmatprep.mubr.f32.mxu0 0.0
    %2964 = vmatmul.mubr.f32.gmra.mrb[0].mxu0 %v2880
    %v2965 = vpop.f32.mrb[0].mxu0
    %v2966 = vadd.f32 0.0, %v2965
    %v2967 = vpop.f32.mrb[0].mxu0
    %2968 = vmatprep.mubr.f32.mxu0 0.0
    %2969 = vmatmul.mubr.f32.gmra.mrb[0].mxu0 %v2882
    %v2970 = vpop.f32.mrb[0].mxu0
    %v2971 = vadd.f32 0.0, %v2970
    %v2972 = vpop.f32.mrb[0].mxu0
    %2973 = vmatprep.mubr.f32.mxu0 0.0
    %2974 = vmatmul.mubr.f32.gmra.mrb[0].mxu0 %v2884
    %v2975 = vpop.f32.mrb[0].mxu0
    %v2976 = vadd.f32 0.0, %v2975
    %v2977 = vpop.f32.mrb[0].mxu0
    %2978 = vdwg.mxu0
    %v2979 = vmul.f32 %v2961, 0.35355338
    %v2980 = vmul.f32 %v2966, 0.35355338
    %v2981 = vmul.f32 %v2971, 0.35355338
    %v2982 = vmul.f32 %v2976, 0.35355338
    %v2983 = vadd.f32 %v2979, %v89
    %v2984 = vadd.f32 %v2980, %v90
    %v2985 = vadd.f32 %v2981, %v91
    %v2986 = vadd.f32 %v2982, %v92
    %v2987 = vsel %vm354, %v2983, -inf
    %2988 = vmax.xlane.f32.xlu0 %v2987
    %v2989 = vpop.xlane.xlu0 %2988
    %v2990 = vsel %vm354, %v2984, -inf
    %2991 = vmax.xlane.f32.xlu0 %v2990
    %v2992 = vpop.xlane.xlu0 %2991
    %v2993 = vsel %vm354, %v2985, -inf
    %2994 = vmax.xlane.f32.xlu0 %v2993
    %v2995 = vpop.xlane.xlu0 %2994
    %v2996 = vsel %vm354, %v2986, -inf
    %2997 = vmax.xlane.f32.xlu0 %v2996
    %v2998 = vpop.xlane.xlu0 %2997
    %v2999 = vsub.f32 %v2983, %v2989
    %v3000 = vsub.f32 %v2984, %v2992
    %v3001 = vsub.f32 %v2985, %v2995
    %v3002 = vsub.f32 %v2986, %v2998
    %v3003 = vmul.f32 %v2999, 1.442695
    %v3004 = vpow.pop %v3003
    %v3005 = vmul.f32 %v3000, 1.442695
    %v3006 = vpow.pop %v3005
    %v3007 = vmul.f32 %v3001, 1.442695
    %v3008 = vpow.pop %v3007
    %v3009 = vmul.f32 %v3002, 1.442695
    %v3010 = vpow.pop %v3009
    %v3011 = vsel %vm354, %v3004, 0.0
    %3012 = vadd.xlane.f32.xlu0 %v3011
    %v3013 = vpop.xlane.xlu0 %3012
    %v3014 = vsel %vm354, %v3006, 0.0
    %3015 = vadd.xlane.f32.xlu0 %v3014
    %v3016 = vpop.xlane.xlu0 %3015
    %v3017 = vsel %vm354, %v3008, 0.0
    %3018 = vadd.xlane.f32.xlu0 %v3017
    %v3019 = vpop.xlane.xlu0 %3018
    %v3020 = vsel %vm354, %v3010, 0.0
    %3021 = vadd.xlane.f32.xlu0 %v3020
    %v3022 = vpop.xlane.xlu0 %3021
    %v3023 = vrcp.pop %v3013
    %v3024 = vrcp.pop %v3016
    %v3025 = vrcp.pop %v3019
    %v3026 = vrcp.pop %v3022
    %v3027 = vmul.f32 %v3004, %v3023
    %v3028 = vmul.f32 %v3006, %v3024
    %v3029 = vmul.f32 %v3008, %v3025
    %v3030 = vmul.f32 %v3010, %v3026
    %3031 = vrot.lane.b32.xlu0 %v2287, 48
    %v3032 = vpop.permute.xlu0 %3031
    %3033 = vrot.lane.b32.xlu0 %v2292, 48
    %v3034 = vpop.permute.xlu0 %3033
    %3035 = vrot.lane.b32.xlu0 %v2297, 48
    %v3036 = vpop.permute.xlu0 %3035
    %3037 = vrot.lane.b32.xlu0 %v2302, 48
    %v3038 = vpop.permute.xlu0 %3037
    %v3044 = vsel %vm354, %v3027, 0
    %v3047 = vsel %vm354, %v3028, 0
    %v3050 = vsel %vm354, %v3029, 0
    %v3053 = vsel %vm354, %v3030, 0
    %3055 = vmatprep.subr.mxu0 0.0
    %3056 = vmatpush1.msra.mxu0 %v3032
    %3057 = vmatprep.subr.mxu0 0.0
    %3058 = vmatpush1.msra.mxu0 %v3034
    %3059 = vmatprep.subr.mxu0 0.0
    %3060 = vmatpush1.msra.mxu0 %v3036
    %3061 = vmatprep.subr.mxu0 0.0
    %3062 = vmatpush1.msra.mxu0 %v3038
    %3063 = vmatprep.subr.mxu0 0.0
    %3064 = vmatpush1.msra.mxu0 0.0
    %3065 = vmatprep.subr.mxu0 0.0
    %3066 = vmatpush1.msra.mxu0 0.0
    %3067 = vmatprep.subr.mxu0 0.0
    %3068 = vmatpush1.msra.mxu0 0.0
    %3069 = vmatprep.subr.mxu0 0.0
    %3070 = vmatpush1.msra.mxu0 0.0
    %3071 = vmatprep.subr.mxu0 0.0
    %3072 = vmatpush1.msra.mxu0 0.0
    %3073 = vmatprep.subr.mxu0 0.0
    %3074 = vmatpush1.msra.mxu0 0.0
    %3075 = vmatprep.subr.mxu0 0.0
    %3076 = vmatpush1.msra.mxu0 0.0
    %3077 = vmatprep.subr.mxu0 0.0
    %3078 = vmatpush1.msra.mxu0 0.0
    %3079 = vmatprep.subr.mxu0 0.0
    %3080 = vmatpush1.msra.mxu0 0.0
    %3081 = vmatprep.subr.mxu0 0.0
    %3082 = vmatpush1.msra.mxu0 0.0
    %3083 = vmatprep.subr.mxu0 0.0
    %3084 = vmatpush1.msra.mxu0 0.0
    %3085 = vmatprep.subr.mxu0 0.0
    %3086 = vmatpush1.msra.mxu0 0.0
    %3087 = vmatprep.subr.mxu0 0.0
    %3088 = vmatpush1.msra.mxu0 0.0
    %3089 = vmatprep.subr.mxu0 0.0
    %3090 = vmatpush1.msra.mxu0 0.0
    %3091 = vmatprep.subr.mxu0 0.0
    %3092 = vmatpush1.msra.mxu0 0.0
    %3093 = vmatprep.subr.mxu0 0.0
    %3094 = vmatpush1.msra.mxu0 0.0
    %3095 = vmatprep.subr.mxu0 0.0
    %3096 = vmatpush1.msra.mxu0 0.0
    %3097 = vmatprep.subr.mxu0 0.0
    %3098 = vmatpush1.msra.mxu0 0.0
    %3099 = vmatprep.subr.mxu0 0.0
    %3100 = vmatpush1.msra.mxu0 0.0
    %3101 = vmatprep.subr.mxu0 0.0
    %3102 = vmatpush1.msra.mxu0 0.0
    %3103 = vmatprep.subr.mxu0 0.0
    %3104 = vmatpush1.msra.mxu0 0.0
    %3105 = vmatprep.subr.mxu0 0.0
    %3106 = vmatpush1.msra.mxu0 0.0
    %3107 = vmatprep.subr.mxu0 0.0
    %3108 = vmatpush1.msra.mxu0 0.0
    %3109 = vmatprep.subr.mxu0 0.0
    %3110 = vmatpush1.msra.mxu0 0.0
    %3111 = vmatprep.subr.mxu0 0.0
    %3112 = vmatpush1.msra.mxu0 0.0
    %3113 = vmatprep.subr.mxu0 0.0
    %3114 = vmatpush1.msra.mxu0 0.0
    %3115 = vmatprep.subr.mxu0 0.0
    %3116 = vmatpush1.msra.mxu0 0.0
    %3117 = vmatprep.subr.mxu0 0.0
    %3118 = vmatpush1.msra.mxu0 0.0
    %3119 = vmatprep.mubr.f32.mxu0 0.0
    %3120 = vmatmul.mubr.f32.gmra.mrb[0].mxu0 %v3044
    %v3121 = vpop.f32.mrb[0].mxu0
    %v3122 = vadd.f32 0.0, %v3121
    %v3123 = vpop.f32.mrb[0].mxu0
    %3124 = vmatprep.mubr.f32.mxu0 0.0
    %3125 = vmatmul.mubr.f32.gmra.mrb[0].mxu0 %v3047
    %v3126 = vpop.f32.mrb[0].mxu0
    %v3127 = vadd.f32 0.0, %v3126
    %v3128 = vpop.f32.mrb[0].mxu0
    %3129 = vmatprep.mubr.f32.mxu0 0.0
    %3130 = vmatmul.mubr.f32.gmra.mrb[0].mxu0 %v3050
    %v3131 = vpop.f32.mrb[0].mxu0
    %v3132 = vadd.f32 0.0, %v3131
    %v3133 = vpop.f32.mrb[0].mxu0
    %3134 = vmatprep.mubr.f32.mxu0 0.0
    %3135 = vmatmul.mubr.f32.gmra.mrb[0].mxu0 %v3053
    %v3136 = vpop.f32.mrb[0].mxu0
    %v3137 = vadd.f32 0.0, %v3136
    %v3138 = vpop.f32.mrb[0].mxu0
    %3139 = vdwg.mxu0
    %3140 = vrot.lane.b32.xlu0 %v2287, 104
    %v3141 = vpop.permute.xlu0 %3140
    %3142 = vrot.lane.b32.xlu0 %v2292, 104
    %v3143 = vpop.permute.xlu0 %3142
    %3144 = vrot.lane.b32.xlu0 %v2297, 104
    %v3145 = vpop.permute.xlu0 %3144
    %3146 = vrot.lane.b32.xlu0 %v2302, 104
    %v3147 = vpop.permute.xlu0 %3146
    %3148 = vrot.lane.b32.xlu0 %v2287, 72
    %v3149 = vpop.permute.xlu0 %3148
    %3150 = vrot.lane.b32.xlu0 %v2292, 72
    %v3151 = vpop.permute.xlu0 %3150
    %3152 = vrot.lane.b32.xlu0 %v2297, 72
    %v3153 = vpop.permute.xlu0 %3152
    %3154 = vrot.lane.b32.xlu0 %v2302, 72
    %v3155 = vpop.permute.xlu0 %3154
    %v3156 = vsel %vm469, %v3141, 0
    %v3158 = vsel %vm469, %v3143, 0
    %v3160 = vsel %vm469, %v3145, 0
    %v3162 = vsel %vm469, %v3147, 0
    %v3164 = vsel %vm469, %v3149, 0
    %v3166 = vsel %vm469, %v3151, 0
    %v3168 = vsel %vm469, %v3153, 0
    %v3170 = vsel %vm469, %v3155, 0
    %3172 = vmatprep.subr.mxu0 0.0
    %3173 = vmatpush1.xpose.msra.mxu0 %v3164
    %3174 = vmatprep.subr.mxu0 0.0
    %3175 = vmatpush1.xpose.msra.mxu0 %v3166
    %3176 = vmatprep.subr.mxu0 0.0
    %3177 = vmatpush1.xpose.msra.mxu0 %v3168
    %3178 = vmatprep.subr.mxu0 0.0
    %3179 = vmatpush1.xpose.msra.mxu0 %v3170
    %3180 = vmatprep.subr.mxu0 0.0
    %3181 = vmatpush1.xpose.msra.mxu0 0.0
    %3182 = vmatprep.subr.mxu0 0.0
    %3183 = vmatpush1.xpose.msra.mxu0 0.0
    %3184 = vmatprep.subr.mxu0 0.0
    %3185 = vmatpush1.xpose.msra.mxu0 0.0
    %3186 = vmatprep.subr.mxu0 0.0
    %3187 = vmatpush1.xpose.msra.mxu0 0.0
    %3188 = vmatprep.subr.mxu0 0.0
    %3189 = vmatpush1.xpose.msra.mxu0 0.0
    %3190 = vmatprep.subr.mxu0 0.0
    %3191 = vmatpush1.xpose.msra.mxu0 0.0
    %3192 = vmatprep.subr.mxu0 0.0
    %3193 = vmatpush1.xpose.msra.mxu0 0.0
    %3194 = vmatprep.subr.mxu0 0.0
    %3195 = vmatpush1.xpose.msra.mxu0 0.0
    %3196 = vmatprep.subr.mxu0 0.0
    %3197 = vmatpush1.xpose.msra.mxu0 0.0
    %3198 = vmatprep.subr.mxu0 0.0
    %3199 = vmatpush1.xpose.msra.mxu0 0.0
    %3200 = vmatprep.subr.mxu0 0.0
    %3201 = vmatpush1.xpose.msra.mxu0 0.0
    %3202 = vmatprep.subr.mxu0 0.0
    %3203 = vmatpush1.xpose.msra.mxu0 0.0
    %3204 = vmatprep.subr.mxu0 0.0
    %3205 = vmatpush1.xpose.msra.mxu0 0.0
    %3206 = vmatprep.subr.mxu0 0.0
    %3207 = vmatpush1.xpose.msra.mxu0 0.0
    %3208 = vmatprep.subr.mxu0 0.0
    %3209 = vmatpush1.xpose.msra.mxu0 0.0
    %3210 = vmatprep.subr.mxu0 0.0
    %3211 = vmatpush1.xpose.msra.mxu0 0.0
    %3212 = vmatprep.subr.mxu0 0.0
    %3213 = vmatpush1.xpose.msra.mxu0 0.0
    %3214 = vmatprep.subr.mxu0 0.0
    %3215 = vmatpush1.xpose.msra.mxu0 0.0
    %3216 = vmatprep.subr.mxu0 0.0
    %3217 = vmatpush1.xpose.msra.mxu0 0.0
    %3218 = vmatprep.subr.mxu0 0.0
    %3219 = vmatpush1.xpose.msra.mxu0 0.0
    %3220 = vmatprep.subr.mxu0 0.0
    %3221 = vmatpush1.xpose.msra.mxu0 0.0
    %3222 = vmatprep.subr.mxu0 0.0
    %3223 = vmatpush1.xpose.msra.mxu0 0.0
    %3224 = vmatprep.subr.mxu0 0.0
    %3225 = vmatpush1.xpose.msra.mxu0 0.0
    %3226 = vmatprep.subr.mxu0 0.0
    %3227 = vmatpush1.xpose.msra.mxu0 0.0
    %3228 = vmatprep.subr.mxu0 0.0
    %3229 = vmatpush1.xpose.msra.mxu0 0.0
    %3230 = vmatprep.subr.mxu0 0.0
    %3231 = vmatpush1.xpose.msra.mxu0 0.0
    %3232 = vmatprep.subr.mxu0 0.0
    %3233 = vmatpush1.xpose.msra.mxu0 0.0
    %3234 = vmatprep.subr.mxu0 0.0
    %3235 = vmatpush1.xpose.msra.mxu0 0.0
    %3236 = vmatprep.mubr.f32.mxu0 0.0
    %3237 = vmatmul.mubr.f32.gmra.mrb[0].mxu0 %v3156
    %v3238 = vpop.f32.mrb[0].mxu0
    %v3239 = vadd.f32 0.0, %v3238
    %v3240 = vpop.f32.mrb[0].mxu0
    %3241 = vmatprep.mubr.f32.mxu0 0.0
    %3242 = vmatmul.mubr.f32.gmra.mrb[0].mxu0 %v3158
    %v3243 = vpop.f32.mrb[0].mxu0
    %v3244 = vadd.f32 0.0, %v3243
    %v3245 = vpop.f32.mrb[0].mxu0
    %3246 = vmatprep.mubr.f32.mxu0 0.0
    %3247 = vmatmul.mubr.f32.gmra.mrb[0].mxu0 %v3160
    %v3248 = vpop.f32.mrb[0].mxu0
    %v3249 = vadd.f32 0.0, %v3248
    %v3250 = vpop.f32.mrb[0].mxu0
    %3251 = vmatprep.mubr.f32.mxu0 0.0
    %3252 = vmatmul.mubr.f32.gmra.mrb[0].mxu0 %v3162
    %v3253 = vpop.f32.mrb[0].mxu0
    %v3254 = vadd.f32 0.0, %v3253
    %v3255 = vpop.f32.mrb[0].mxu0
    %3256 = vdwg.mxu0
    %v3257 = vmul.f32 %v3239, 0.35355338
    %v3258 = vmul.f32 %v3244, 0.35355338
    %v3259 = vmul.f32 %v3249, 0.35355338
    %v3260 = vmul.f32 %v3254, 0.35355338
    %v3261 = vadd.f32 %v3257, %v89
    %v3262 = vadd.f32 %v3258, %v90
    %v3263 = vadd.f32 %v3259, %v91
    %v3264 = vadd.f32 %v3260, %v92
    %v3265 = vsel %vm354, %v3261, -inf
    %3266 = vmax.xlane.f32.xlu0 %v3265
    %v3267 = vpop.xlane.xlu0 %3266
    %v3268 = vsel %vm354, %v3262, -inf
    %3269 = vmax.xlane.f32.xlu0 %v3268
    %v3270 = vpop.xlane.xlu0 %3269
    %v3271 = vsel %vm354, %v3263, -inf
    %3272 = vmax.xlane.f32.xlu0 %v3271
    %v3273 = vpop.xlane.xlu0 %3272
    %v3274 = vsel %vm354, %v3264, -inf
    %3275 = vmax.xlane.f32.xlu0 %v3274
    %v3276 = vpop.xlane.xlu0 %3275
    %v3277 = vsub.f32 %v3261, %v3267
    %v3278 = vsub.f32 %v3262, %v3270
    %v3279 = vsub.f32 %v3263, %v3273
    %v3280 = vsub.f32 %v3264, %v3276
    %v3281 = vmul.f32 %v3277, 1.442695
    %v3282 = vpow.pop %v3281
    %v3283 = vmul.f32 %v3278, 1.442695
    %v3284 = vpow.pop %v3283
    %v3285 = vmul.f32 %v3279, 1.442695
    %v3286 = vpow.pop %v3285
    %v3287 = vmul.f32 %v3280, 1.442695
    %v3288 = vpow.pop %v3287
    %v3289 = vsel %vm354, %v3282, 0.0
    %3290 = vadd.xlane.f32.xlu0 %v3289
    %v3291 = vpop.xlane.xlu0 %3290
    %v3292 = vsel %vm354, %v3284, 0.0
    %3293 = vadd.xlane.f32.xlu0 %v3292
    %v3294 = vpop.xlane.xlu0 %3293
    %v3295 = vsel %vm354, %v3286, 0.0
    %3296 = vadd.xlane.f32.xlu0 %v3295
    %v3297 = vpop.xlane.xlu0 %3296
    %v3298 = vsel %vm354, %v3288, 0.0
    %3299 = vadd.xlane.f32.xlu0 %v3298
    %v3300 = vpop.xlane.xlu0 %3299
    %v3301 = vrcp.pop %v3291
    %v3302 = vrcp.pop %v3294
    %v3303 = vrcp.pop %v3297
    %v3304 = vrcp.pop %v3300
    %v3305 = vmul.f32 %v3282, %v3301
    %v3306 = vmul.f32 %v3284, %v3302
    %v3307 = vmul.f32 %v3286, %v3303
    %v3308 = vmul.f32 %v3288, %v3304
    %3309 = vrot.lane.b32.xlu0 %v2287, 40
    %v3310 = vpop.permute.xlu0 %3309
    %3311 = vrot.lane.b32.xlu0 %v2292, 40
    %v3312 = vpop.permute.xlu0 %3311
    %3313 = vrot.lane.b32.xlu0 %v2297, 40
    %v3314 = vpop.permute.xlu0 %3313
    %3315 = vrot.lane.b32.xlu0 %v2302, 40
    %v3316 = vpop.permute.xlu0 %3315
    %v3322 = vsel %vm354, %v3305, 0
    %v3325 = vsel %vm354, %v3306, 0
    %v3328 = vsel %vm354, %v3307, 0
    %v3331 = vsel %vm354, %v3308, 0
    %3333 = vmatprep.subr.mxu0 0.0
    %3334 = vmatpush1.msra.mxu0 %v3310
    %3335 = vmatprep.subr.mxu0 0.0
    %3336 = vmatpush1.msra.mxu0 %v3312
    %3337 = vmatprep.subr.mxu0 0.0
    %3338 = vmatpush1.msra.mxu0 %v3314
    %3339 = vmatprep.subr.mxu0 0.0
    %3340 = vmatpush1.msra.mxu0 %v3316
    %3341 = vmatprep.subr.mxu0 0.0
    %3342 = vmatpush1.msra.mxu0 0.0
    %3343 = vmatprep.subr.mxu0 0.0
    %3344 = vmatpush1.msra.mxu0 0.0
    %3345 = vmatprep.subr.mxu0 0.0
    %3346 = vmatpush1.msra.mxu0 0.0
    %3347 = vmatprep.subr.mxu0 0.0
    %3348 = vmatpush1.msra.mxu0 0.0
    %3349 = vmatprep.subr.mxu0 0.0
    %3350 = vmatpush1.msra.mxu0 0.0
    %3351 = vmatprep.subr.mxu0 0.0
    %3352 = vmatpush1.msra.mxu0 0.0
    %3353 = vmatprep.subr.mxu0 0.0
    %3354 = vmatpush1.msra.mxu0 0.0
    %3355 = vmatprep.subr.mxu0 0.0
    %3356 = vmatpush1.msra.mxu0 0.0
    %3357 = vmatprep.subr.mxu0 0.0
    %3358 = vmatpush1.msra.mxu0 0.0
    %3359 = vmatprep.subr.mxu0 0.0
    %3360 = vmatpush1.msra.mxu0 0.0
    %3361 = vmatprep.subr.mxu0 0.0
    %3362 = vmatpush1.msra.mxu0 0.0
    %3363 = vmatprep.subr.mxu0 0.0
    %3364 = vmatpush1.msra.mxu0 0.0
    %3365 = vmatprep.subr.mxu0 0.0
    %3366 = vmatpush1.msra.mxu0 0.0
    %3367 = vmatprep.subr.mxu0 0.0
    %3368 = vmatpush1.msra.mxu0 0.0
    %3369 = vmatprep.subr.mxu0 0.0
    %3370 = vmatpush1.msra.mxu0 0.0
    %3371 = vmatprep.subr.mxu0 0.0
    %3372 = vmatpush1.msra.mxu0 0.0
    %3373 = vmatprep.subr.mxu0 0.0
    %3374 = vmatpush1.msra.mxu0 0.0
    %3375 = vmatprep.subr.mxu0 0.0
    %3376 = vmatpush1.msra.mxu0 0.0
    %3377 = vmatprep.subr.mxu0 0.0
    %3378 = vmatpush1.msra.mxu0 0.0
    %3379 = vmatprep.subr.mxu0 0.0
    %3380 = vmatpush1.msra.mxu0 0.0
    %3381 = vmatprep.subr.mxu0 0.0
    %3382 = vmatpush1.msra.mxu0 0.0
    %3383 = vmatprep.subr.mxu0 0.0
    %3384 = vmatpush1.msra.mxu0 0.0
    %3385 = vmatprep.subr.mxu0 0.0
    %3386 = vmatpush1.msra.mxu0 0.0
    %3387 = vmatprep.subr.mxu0 0.0
    %3388 = vmatpush1.msra.mxu0 0.0
    %3389 = vmatprep.subr.mxu0 0.0
    %3390 = vmatpush1.msra.mxu0 0.0
    %3391 = vmatprep.subr.mxu0 0.0
    %3392 = vmatpush1.msra.mxu0 0.0
    %3393 = vmatprep.subr.mxu0 0.0
    %3394 = vmatpush1.msra.mxu0 0.0
    %3395 = vmatprep.subr.mxu0 0.0
    %3396 = vmatpush1.msra.mxu0 0.0
    %3397 = vmatprep.mubr.f32.mxu0 0.0
    %3398 = vmatmul.mubr.f32.gmra.mrb[0].mxu0 %v3322
    %v3399 = vpop.f32.mrb[0].mxu0
    %v3400 = vadd.f32 0.0, %v3399
    %v3401 = vpop.f32.mrb[0].mxu0
    %3402 = vmatprep.mubr.f32.mxu0 0.0
    %3403 = vmatmul.mubr.f32.gmra.mrb[0].mxu0 %v3325
    %v3404 = vpop.f32.mrb[0].mxu0
    %v3405 = vadd.f32 0.0, %v3404
    %v3406 = vpop.f32.mrb[0].mxu0
    %3407 = vmatprep.mubr.f32.mxu0 0.0
    %3408 = vmatmul.mubr.f32.gmra.mrb[0].mxu0 %v3328
    %v3409 = vpop.f32.mrb[0].mxu0
    %v3410 = vadd.f32 0.0, %v3409
    %v3411 = vpop.f32.mrb[0].mxu0
    %3412 = vmatprep.mubr.f32.mxu0 0.0
    %3413 = vmatmul.mubr.f32.gmra.mrb[0].mxu0 %v3331
    %v3414 = vpop.f32.mrb[0].mxu0
    %v3415 = vadd.f32 0.0, %v3414
    %v3416 = vpop.f32.mrb[0].mxu0
    %3417 = vdwg.mxu0
    %3422 = vrot.lane.b32.xlu0 %v2844, 8
    %v3423 = vpop.permute.xlu0 %3422
    %3424 = vrot.lane.b32.xlu0 %v2849, 8
    %v3425 = vpop.permute.xlu0 %3424
    %3426 = vrot.lane.b32.xlu0 %v2854, 8
    %v3427 = vpop.permute.xlu0 %3426
    %3428 = vrot.lane.b32.xlu0 %v2859, 8
    %v3429 = vpop.permute.xlu0 %3428
    %3438 = vrot.lane.b32.xlu0 %v3122, 16
    %v3439 = vpop.permute.xlu0 %3438
    %3440 = vrot.lane.b32.xlu0 %v3127, 16
    %v3441 = vpop.permute.xlu0 %3440
    %3442 = vrot.lane.b32.xlu0 %v3132, 16
    %v3443 = vpop.permute.xlu0 %3442
    %3444 = vrot.lane.b32.xlu0 %v3137, 16
    %v3445 = vpop.permute.xlu0 %3444
    %3454 = vrot.lane.b32.xlu0 %v3400, 24
    %v3455 = vpop.permute.xlu0 %3454
    %3456 = vrot.lane.b32.xlu0 %v3405, 24
    %v3457 = vpop.permute.xlu0 %3456
    %3458 = vrot.lane.b32.xlu0 %v3410, 24
    %v3459 = vpop.permute.xlu0 %3458
    %3460 = vrot.lane.b32.xlu0 %v3415, 24
    %v3461 = vpop.permute.xlu0 %3460
    %v3466 = vsel %vm469, %v2566, %v3423
    %v3467 = vsel %vm469, %v2571, %v3425
    %v3468 = vsel %vm469, %v2576, %v3427
    %v3469 = vsel %vm469, %v2581, %v3429
    %v3470 = vsel %vm1618, %v3466, %v3439
    %v3471 = vsel %vm1618, %v3467, %v3441
    %v3472 = vsel %vm1618, %v3468, %v3443
    %v3473 = vsel %vm1618, %v3469, %v3445
    %v3474 = vsel %vm1623, %v3470, %v3455
    %v3475 = vsel %vm1623, %v3471, %v3457
    %v3476 = vsel %vm1623, %v3472, %v3459
    %v3477 = vsel %vm1623, %v3473, %v3461
    %v3478 = vlaneseq
    %v3479 = vshrl.u32 %v3478, 7
    %v3480 = vsub.s32 0, %v3479
    %v3481 = vrot.slane %v2309, %v3480
    %v3483 = vsel %vm354, %v3474, 0
    %v3486 = vsel %vm354, %v3475, 0
    %v3489 = vsel %vm354, %v3476, 0
    %v3492 = vsel %vm354, %v3477, 0
    %3494 = vmatprep.subr.mxu0 0.0
    %3495 = vmatpush1.msra.mxu0 %v2305
    %3496 = vmatprep.subr.mxu0 0.0
    %3497 = vmatpush1.msra.mxu0 %v2306
    %3498 = vmatprep.subr.mxu0 0.0
    %3499 = vmatpush1.msra.mxu0 %v2307
    %3500 = vmatprep.subr.mxu0 0.0
    %3501 = vmatpush1.msra.mxu0 %v2308
    %3502 = vmatprep.subr.mxu0 0.0
    %3503 = vmatpush1.msra.mxu0 0.0
    %3504 = vmatprep.subr.mxu0 0.0
    %3505 = vmatpush1.msra.mxu0 0.0
    %3506 = vmatprep.subr.mxu0 0.0
    %3507 = vmatpush1.msra.mxu0 0.0
    %3508 = vmatprep.subr.mxu0 0.0
    %3509 = vmatpush1.msra.mxu0 0.0
    %3510 = vmatprep.subr.mxu0 0.0
    %3511 = vmatpush1.msra.mxu0 0.0
    %3512 = vmatprep.subr.mxu0 0.0
    %3513 = vmatpush1.msra.mxu0 0.0
    %3514 = vmatprep.subr.mxu0 0.0
    %3515 = vmatpush1.msra.mxu0 0.0
    %3516 = vmatprep.subr.mxu0 0.0
    %3517 = vmatpush1.msra.mxu0 0.0
    %3518 = vmatprep.subr.mxu0 0.0
    %3519 = vmatpush1.msra.mxu0 0.0
    %3520 = vmatprep.subr.mxu0 0.0
    %3521 = vmatpush1.msra.mxu0 0.0
    %3522 = vmatprep.subr.mxu0 0.0
    %3523 = vmatpush1.msra.mxu0 0.0
    %3524 = vmatprep.subr.mxu0 0.0
    %3525 = vmatpush1.msra.mxu0 0.0
    %3526 = vmatprep.subr.mxu0 0.0
    %3527 = vmatpush1.msra.mxu0 0.0
    %3528 = vmatprep.subr.mxu0 0.0
    %3529 = vmatpush1.msra.mxu0 0.0
    %3530 = vmatprep.subr.mxu0 0.0
    %3531 = vmatpush1.msra.mxu0 0.0
    %3532 = vmatprep.subr.mxu0 0.0
    %3533 = vmatpush1.msra.mxu0 0.0
    %3534 = vmatprep.subr.mxu0 0.0
    %3535 = vmatpush1.msra.mxu0 0.0
    %3536 = vmatprep.subr.mxu0 0.0
    %3537 = vmatpush1.msra.mxu0 0.0
    %3538 = vmatprep.subr.mxu0 0.0
    %3539 = vmatpush1.msra.mxu0 0.0
    %3540 = vmatprep.subr.mxu0 0.0
    %3541 = vmatpush1.msra.mxu0 0.0
    %3542 = vmatprep.subr.mxu0 0.0
    %3543 = vmatpush1.msra.mxu0 0.0
    %3544 = vmatprep.subr.mxu0 0.0
    %3545 = vmatpush1.msra.mxu0 0.0
    %3546 = vmatprep.subr.mxu0 0.0
    %3547 = vmatpush1.msra.mxu0 0.0
    %3548 = vmatprep.subr.mxu0 0.0
    %3549 = vmatpush1.msra.mxu0 0.0
    %3550 = vmatprep.subr.mxu0 0.0
    %3551 = vmatpush1.msra.mxu0 0.0
    %3552 = vmatprep.subr.mxu0 0.0
    %3553 = vmatpush1.msra.mxu0 0.0
    %3554 = vmatprep.subr.mxu0 0.0
    %3555 = vmatpush1.msra.mxu0 0.0
    %3556 = vmatprep.subr.mxu0 0.0
    %3557 = vmatpush1.msra.mxu0 0.0
    %3558 = vmatprep.mubr.f32.mxu0 0.0
    %3559 = vmatmul.mubr.f32.gmra.mrb[0].mxu0 %v3483
    %v3560 = vpop.f32.mrb[0].mxu0
    %v3561 = vadd.f32 %v3481, %v3560
    %v3562 = vpop.f32.mrb[0].mxu0
    %3563 = vmatprep.mubr.f32.mxu0 0.0
    %3564 = vmatmul.mubr.f32.gmra.mrb[0].mxu0 %v3486
    %v3565 = vpop.f32.mrb[0].mxu0
    %v3566 = vadd.f32 %v3481, %v3565
    %v3567 = vpop.f32.mrb[0].mxu0
    %3568 = vmatprep.mubr.f32.mxu0 0.0
    %3569 = vmatmul.mubr.f32.gmra.mrb[0].mxu0 %v3489
    %v3570 = vpop.f32.mrb[0].mxu0
    %v3571 = vadd.f32 %v3481, %v3570
    %v3572 = vpop.f32.mrb[0].mxu0
    %3573 = vmatprep.mubr.f32.mxu0 0.0
    %3574 = vmatmul.mubr.f32.gmra.mrb[0].mxu0 %v3492
    %v3575 = vpop.f32.mrb[0].mxu0
    %v3576 = vadd.f32 %v3481, %v3575
    %v3577 = vpop.f32.mrb[0].mxu0
    %3578 = vdwg.mxu0
    %v3579 = vadd.f32 %v2195, %v3561
    %v3580 = vadd.f32 %v2196, %v3566
    %v3581 = vadd.f32 %v2197, %v3571
    %v3582 = vadd.f32 %v2198, %v3576
    %v3583 = vld [vmem:[#allocation2 + $0x1d0] sm:$0x1]
    %v3584 = vld [vmem:[#allocation2 + $0x1d8] sm:$0x1]
    %v3585 = vsel %vm354, %v3579, 0.0
    %3586 = vadd.xlane.f32.xlu0 %v3585
    %v3587 = vpop.xlane.xlu0 %3586
    %v3588 = vsel %vm354, %v3580, 0.0
    %3589 = vadd.xlane.f32.xlu0 %v3588
    %v3590 = vpop.xlane.xlu0 %3589
    %v3591 = vsel %vm354, %v3581, 0.0
    %3592 = vadd.xlane.f32.xlu0 %v3591
    %v3593 = vpop.xlane.xlu0 %3592
    %v3594 = vsel %vm354, %v3582, 0.0
    %3595 = vadd.xlane.f32.xlu0 %v3594
    %v3596 = vpop.xlane.xlu0 %3595
    %v3597 = vmul.f32 %v3587, %v1747
    %v3598 = vmul.f32 %v3590, %v1747
    %v3599 = vmul.f32 %v3593, %v1747
    %v3600 = vmul.f32 %v3596, %v1747
    %v3601 = vsub.f32 %v3579, %v3597
    %v3602 = vsub.f32 %v3580, %v3598
    %v3603 = vsub.f32 %v3581, %v3599
    %v3604 = vsub.f32 %v3582, %v3600
    %v3605 = vmul.f32 %v3601, %v3601
    %v3606 = vmul.f32 %v3602, %v3602
    %v3607 = vmul.f32 %v3603, %v3603
    %v3608 = vmul.f32 %v3604, %v3604
    %v3609 = vsel %vm354, %v3605, 0.0
    %3610 = vadd.xlane.f32.xlu0 %v3609
    %v3611 = vpop.xlane.xlu0 %3610
    %v3612 = vsel %vm354, %v3606, 0.0
    %3613 = vadd.xlane.f32.xlu0 %v3612
    %v3614 = vpop.xlane.xlu0 %3613
    %v3615 = vsel %vm354, %v3607, 0.0
    %3616 = vadd.xlane.f32.xlu0 %v3615
    %v3617 = vpop.xlane.xlu0 %3616
    %v3618 = vsel %vm354, %v3608, 0.0
    %3619 = vadd.xlane.f32.xlu0 %v3618
    %v3620 = vpop.xlane.xlu0 %3619
    %v3621 = vmul.f32 %v3611, %v1747
    %v3622 = vmul.f32 %v3614, %v1747
    %v3623 = vmul.f32 %v3617, %v1747
    %v3624 = vmul.f32 %v3620, %v1747
    %v3625 = vadd.f32 %v3621, 1e-05
    %v3626 = vadd.f32 %v3622, 1e-05
    %v3627 = vadd.f32 %v3623, 1e-05
    %v3628 = vadd.f32 %v3624, 1e-05
    %v3629 = vrsqrt.pop %v3625
    %v3630 = vrsqrt.pop %v3626
    %v3631 = vrsqrt.pop %v3627
    %v3632 = vrsqrt.pop %v3628
    %v3633 = vmul.f32 %v3601, %v3629
    %v3634 = vmul.f32 %v3602, %v3630
    %v3635 = vmul.f32 %v3603, %v3631
    %v3636 = vmul.f32 %v3604, %v3632
    %v3637 = vlaneseq
    %v3638 = vshrl.u32 %v3637, 7
    %v3639 = vsub.s32 0, %v3638
    %v3640 = vrot.slane %v3583, %v3639
    %v3641 = vmul.f32 %v3633, %v3640
    %v3642 = vmul.f32 %v3634, %v3640
    %v3643 = vmul.f32 %v3635, %v3640
    %v3644 = vmul.f32 %v3636, %v3640
    %v3645 = vlaneseq
    %v3646 = vshrl.u32 %v3645, 7
    %v3647 = vsub.s32 0, %v3646
    %v3648 = vrot.slane %v3584, %v3647
    %v3649 = vadd.f32 %v3641, %v3648
    %v3650 = vadd.f32 %v3642, %v3648
    %v3651 = vadd.f32 %v3643, %v3648
    %v3652 = vadd.f32 %v3644, %v3648
    %v3653 = vld [vmem:[#allocation2 + $0x160] sm:$0xff]
    %v3654 = vld [vmem:[#allocation2 + $0x168] sm:$0xff]
    %v3655 = vld [vmem:[#allocation2 + $0x170] sm:$0xff]
    %v3656 = vld [vmem:[#allocation2 + $0x178] sm:$0xff]
    %v3657 = vld [vmem:[#allocation2 + $0x180] sm:$0x1]
    %v3658 = vlaneseq
    %v3659 = vshrl.u32 %v3658, 7
    %v3660 = vsub.s32 0, %v3659
    %v3661 = vrot.slane %v3657, %v3660
    %v3663 = vsel %vm354, %v3649, 0
    %v3666 = vsel %vm354, %v3650, 0
    %v3669 = vsel %vm354, %v3651, 0
    %v3672 = vsel %vm354, %v3652, 0
    %3674 = vmatprep.subr.mxu0 0.0
    %3675 = vmatpush1.msra.mxu0 %v3653
    %3676 = vmatprep.subr.mxu0 0.0
    %3677 = vmatpush1.msra.mxu0 %v3654
    %3678 = vmatprep.subr.mxu0 0.0
    %3679 = vmatpush1.msra.mxu0 %v3655
    %3680 = vmatprep.subr.mxu0 0.0
    %3681 = vmatpush1.msra.mxu0 %v3656
    %3682 = vmatprep.subr.mxu0 0.0
    %3683 = vmatpush1.msra.mxu0 0.0
    %3684 = vmatprep.subr.mxu0 0.0
    %3685 = vmatpush1.msra.mxu0 0.0
    %3686 = vmatprep.subr.mxu0 0.0
    %3687 = vmatpush1.msra.mxu0 0.0
    %3688 = vmatprep.subr.mxu0 0.0
    %3689 = vmatpush1.msra.mxu0 0.0
    %3690 = vmatprep.subr.mxu0 0.0
    %3691 = vmatpush1.msra.mxu0 0.0
    %3692 = vmatprep.subr.mxu0 0.0
    %3693 = vmatpush1.msra.mxu0 0.0
    %3694 = vmatprep.subr.mxu0 0.0
    %3695 = vmatpush1.msra.mxu0 0.0
    %3696 = vmatprep.subr.mxu0 0.0
    %3697 = vmatpush1.msra.mxu0 0.0
    %3698 = vmatprep.subr.mxu0 0.0
    %3699 = vmatpush1.msra.mxu0 0.0
    %3700 = vmatprep.subr.mxu0 0.0
    %3701 = vmatpush1.msra.mxu0 0.0
    %3702 = vmatprep.subr.mxu0 0.0
    %3703 = vmatpush1.msra.mxu0 0.0
    %3704 = vmatprep.subr.mxu0 0.0
    %3705 = vmatpush1.msra.mxu0 0.0
    %3706 = vmatprep.subr.mxu0 0.0
    %3707 = vmatpush1.msra.mxu0 0.0
    %3708 = vmatprep.subr.mxu0 0.0
    %3709 = vmatpush1.msra.mxu0 0.0
    %3710 = vmatprep.subr.mxu0 0.0
    %3711 = vmatpush1.msra.mxu0 0.0
    %3712 = vmatprep.subr.mxu0 0.0
    %3713 = vmatpush1.msra.mxu0 0.0
    %3714 = vmatprep.subr.mxu0 0.0
    %3715 = vmatpush1.msra.mxu0 0.0
    %3716 = vmatprep.subr.mxu0 0.0
    %3717 = vmatpush1.msra.mxu0 0.0
    %3718 = vmatprep.subr.mxu0 0.0
    %3719 = vmatpush1.msra.mxu0 0.0
    %3720 = vmatprep.subr.mxu0 0.0
    %3721 = vmatpush1.msra.mxu0 0.0
    %3722 = vmatprep.subr.mxu0 0.0
    %3723 = vmatpush1.msra.mxu0 0.0
    %3724 = vmatprep.subr.mxu0 0.0
    %3725 = vmatpush1.msra.mxu0 0.0
    %3726 = vmatprep.subr.mxu0 0.0
    %3727 = vmatpush1.msra.mxu0 0.0
    %3728 = vmatprep.subr.mxu0 0.0
    %3729 = vmatpush1.msra.mxu0 0.0
    %3730 = vmatprep.subr.mxu0 0.0
    %3731 = vmatpush1.msra.mxu0 0.0
    %3732 = vmatprep.subr.mxu0 0.0
    %3733 = vmatpush1.msra.mxu0 0.0
    %3734 = vmatprep.subr.mxu0 0.0
    %3735 = vmatpush1.msra.mxu0 0.0
    %3736 = vmatprep.subr.mxu0 0.0
    %3737 = vmatpush1.msra.mxu0 0.0
    %3738 = vmatprep.mubr.f32.mxu0 0.0
    %3739 = vmatmul.mubr.f32.gmra.mrb[0].mxu0 %v3663
    %v3740 = vpop.f32.mrb[0].mxu0
    %v3741 = vadd.f32 %v3661, %v3740
    %v3742 = vpop.f32.mrb[0].mxu0
    %3743 = vmatprep.mubr.f32.mxu0 0.0
    %3744 = vmatmul.mubr.f32.gmra.mrb[0].mxu0 %v3666
    %v3745 = vpop.f32.mrb[0].mxu0
    %v3746 = vadd.f32 %v3661, %v3745
    %v3747 = vpop.f32.mrb[0].mxu0
    %3748 = vmatprep.mubr.f32.mxu0 0.0
    %3749 = vmatmul.mubr.f32.gmra.mrb[0].mxu0 %v3669
    %v3750 = vpop.f32.mrb[0].mxu0
    %v3751 = vadd.f32 %v3661, %v3750
    %v3752 = vpop.f32.mrb[0].mxu0
    %3753 = vmatprep.mubr.f32.mxu0 0.0
    %3754 = vmatmul.mubr.f32.gmra.mrb[0].mxu0 %v3672
    %v3755 = vpop.f32.mrb[0].mxu0
    %v3756 = vadd.f32 %v3661, %v3755
    %v3757 = vpop.f32.mrb[0].mxu0
    %3758 = vdwg.mxu0
    %v3759 = vmul.f32 %v3741, 0.5
    %v3760 = vmul.f32 %v3746, 0.5
    %v3761 = vmul.f32 %v3751, 0.5
    %v3762 = vmul.f32 %v3756, 0.5
    %v3763 = vmul.f32 %v3741, 0.70710677
    %v3764 = vmul.f32 %v3746, 0.70710677
    %v3765 = vmul.f32 %v3751, 0.70710677
    %v3766 = vmul.f32 %v3756, 0.70710677
    %v3767 = vand.u32 2147483647, %v3763
    %v3768 = vand.u32 2147483647, %v3764
    %v3769 = vand.u32 2147483647, %v3765
    %v3770 = vand.u32 2147483647, %v3766
    %v3771 = vmul.f32 %v3767, 0.3275911
    %v3772 = vmul.f32 %v3768, 0.3275911
    %v3773 = vmul.f32 %v3769, 0.3275911
    %v3774 = vmul.f32 %v3770, 0.3275911
    %v3775 = vadd.f32 %v3771, 1.0
    %v3776 = vadd.f32 %v3772, 1.0
    %v3777 = vadd.f32 %v3773, 1.0
    %v3778 = vadd.f32 %v3774, 1.0
    %v3779 = vrcp.pop %v3775
    %v3780 = vrcp.pop %v3776
    %v3781 = vrcp.pop %v3777
    %v3782 = vrcp.pop %v3778
    %v3783 = vmul.f32 %v3779, 1.0614054
    %v3784 = vmul.f32 %v3780, 1.0614054
    %v3785 = vmul.f32 %v3781, 1.0614054
    %v3786 = vmul.f32 %v3782, 1.0614054
    %v3787 = vadd.f32 %v3783, -1.4531521
    %v3788 = vadd.f32 %v3784, -1.4531521
    %v3789 = vadd.f32 %v3785, -1.4531521
    %v3790 = vadd.f32 %v3786, -1.4531521
    %v3791 = vmul.f32 %v3787, %v3779
    %v3792 = vmul.f32 %v3788, %v3780
    %v3793 = vmul.f32 %v3789, %v3781
    %v3794 = vmul.f32 %v3790, %v3782
    %v3795 = vadd.f32 %v3791, 1.4214138
    %v3796 = vadd.f32 %v3792, 1.4214138
    %v3797 = vadd.f32 %v3793, 1.4214138
    %v3798 = vadd.f32 %v3794, 1.4214138
    %v3799 = vmul.f32 %v3795, %v3779
    %v3800 = vmul.f32 %v3796, %v3780
    %v3801 = vmul.f32 %v3797, %v3781
    %v3802 = vmul.f32 %v3798, %v3782
    %v3803 = vadd.f32 %v3799, -0.28449672
    %v3804 = vadd.f32 %v3800, -0.28449672
    %v3805 = vadd.f32 %v3801, -0.28449672
    %v3806 = vadd.f32 %v3802, -0.28449672
    %v3807 = vmul.f32 %v3803, %v3779
    %v3808 = vmul.f32 %v3804, %v3780
    %v3809 = vmul.f32 %v3805, %v3781
    %v3810 = vmul.f32 %v3806, %v3782
    %v3811 = vadd.f32 %v3807, 0.2548296
    %v3812 = vadd.f32 %v3808, 0.2548296
    %v3813 = vadd.f32 %v3809, 0.2548296
    %v3814 = vadd.f32 %v3810, 0.2548296
    %v3815 = vmul.f32 %v3811, %v3779
    %v3816 = vmul.f32 %v3812, %v3780
    %v3817 = vmul.f32 %v3813, %v3781
    %v3818 = vmul.f32 %v3814, %v3782
    %v3819 = vmul.f32 %v3767, %v3767
    %v3820 = vmul.f32 %v3768, %v3768
    %v3821 = vmul.f32 %v3769, %v3769
    %v3822 = vmul.f32 %v3770, %v3770
    %v3823 = vsub.f32 0.0, %v3819
    %v3824 = vsub.f32 0.0, %v3820
    %v3825 = vsub.f32 0.0, %v3821
    %v3826 = vsub.f32 0.0, %v3822
    %v3827 = vmul.f32 %v3823, 1.442695
    %v3828 = vpow.pop %v3827
    %v3829 = vmul.f32 %v3824, 1.442695
    %v3830 = vpow.pop %v3829
    %v3831 = vmul.f32 %v3825, 1.442695
    %v3832 = vpow.pop %v3831
    %v3833 = vmul.f32 %v3826, 1.442695
    %v3834 = vpow.pop %v3833
    %v3835 = vmul.f32 %v3815, %v3828
    %v3836 = vmul.f32 %v3816, %v3830
    %v3837 = vmul.f32 %v3817, %v3832
    %v3838 = vmul.f32 %v3818, %v3834
    %v3839 = vsub.f32 1.0, %v3835
    %v3840 = vsub.f32 1.0, %v3836
    %v3841 = vsub.f32 1.0, %v3837
    %v3842 = vsub.f32 1.0, %v3838
    %vm3843 = vcmp.ge.f32.partialorder %v3763, 0.0
    %vm3844 = vcmp.ge.f32.partialorder %v3764, 0.0
    %vm3845 = vcmp.ge.f32.partialorder %v3765, 0.0
    %vm3846 = vcmp.ge.f32.partialorder %v3766, 0.0
    %v3847 = vsub.f32 0.0, %v3839
    %v3848 = vsub.f32 0.0, %v3840
    %v3849 = vsub.f32 0.0, %v3841
    %v3850 = vsub.f32 0.0, %v3842
    %v3851 = vsel %vm3843, %v3839, %v3847
    %v3852 = vsel %vm3844, %v3840, %v3848
    %v3853 = vsel %vm3845, %v3841, %v3849
    %v3854 = vsel %vm3846, %v3842, %v3850
    %v3855 = vadd.f32 %v3851, 1.0
    %v3856 = vadd.f32 %v3852, 1.0
    %v3857 = vadd.f32 %v3853, 1.0
    %v3858 = vadd.f32 %v3854, 1.0
    %v3859 = vmul.f32 %v3759, %v3855
    %v3860 = vmul.f32 %v3760, %v3856
    %v3861 = vmul.f32 %v3761, %v3857
    %v3862 = vmul.f32 %v3762, %v3858
    %v3863 = vld [vmem:[#allocation2 + $0x188] sm:$0xff]
    %v3864 = vld [vmem:[#allocation2 + $0x190] sm:$0xff]
    %v3865 = vld [vmem:[#allocation2 + $0x198] sm:$0xff]
    %v3866 = vld [vmem:[#allocation2 + $0x1a0] sm:$0xff]
    %v3867 = vld [vmem:[#allocation2 + $0x1a8] sm:$0xff]
    %v3868 = vld [vmem:[#allocation2 + $0x1b0] sm:$0xff]
    %v3869 = vld [vmem:[#allocation2 + $0x1b8] sm:$0xff]
    %v3870 = vld [vmem:[#allocation2 + $0x1c0] sm:$0xff]
    %v3871 = vld [vmem:[#allocation2 + $0x1c8] sm:$0x1]
    %v3872 = vlaneseq
    %v3873 = vshrl.u32 %v3872, 7
    %v3874 = vsub.s32 0, %v3873
    %v3875 = vrot.slane %v3871, %v3874
    %v3877 = vsel %vm2027, %v3859, 0
    %v3880 = vsel %vm2027, %v3860, 0
    %v3883 = vsel %vm2027, %v3861, 0
    %v3886 = vsel %vm2027, %v3862, 0
    %3888 = vmatprep.subr.mxu0 0.0
    %3889 = vmatpush1.msra.mxu0 %v3863
    %3890 = vmatprep.subr.mxu0 0.0
    %3891 = vmatpush1.msra.mxu0 %v3864
    %3892 = vmatprep.subr.mxu0 0.0
    %3893 = vmatpush1.msra.mxu0 %v3865
    %3894 = vmatprep.subr.mxu0 0.0
    %3895 = vmatpush1.msra.mxu0 %v3866
    %3896 = vmatprep.subr.mxu0 0.0
    %3897 = vmatpush1.msra.mxu0 %v3867
    %3898 = vmatprep.subr.mxu0 0.0
    %3899 = vmatpush1.msra.mxu0 %v3868
    %3900 = vmatprep.subr.mxu0 0.0
    %3901 = vmatpush1.msra.mxu0 %v3869
    %3902 = vmatprep.subr.mxu0 0.0
    %3903 = vmatpush1.msra.mxu0 %v3870
    %3904 = vmatprep.subr.mxu0 0.0
    %3905 = vmatpush1.msra.mxu0 0.0
    %3906 = vmatprep.subr.mxu0 0.0
    %3907 = vmatpush1.msra.mxu0 0.0
    %3908 = vmatprep.subr.mxu0 0.0
    %3909 = vmatpush1.msra.mxu0 0.0
    %3910 = vmatprep.subr.mxu0 0.0
    %3911 = vmatpush1.msra.mxu0 0.0
    %3912 = vmatprep.subr.mxu0 0.0
    %3913 = vmatpush1.msra.mxu0 0.0
    %3914 = vmatprep.subr.mxu0 0.0
    %3915 = vmatpush1.msra.mxu0 0.0
    %3916 = vmatprep.subr.mxu0 0.0
    %3917 = vmatpush1.msra.mxu0 0.0
    %3918 = vmatprep.subr.mxu0 0.0
    %3919 = vmatpush1.msra.mxu0 0.0
    %3920 = vmatprep.subr.mxu0 0.0
    %3921 = vmatpush1.msra.mxu0 0.0
    %3922 = vmatprep.subr.mxu0 0.0
    %3923 = vmatpush1.msra.mxu0 0.0
    %3924 = vmatprep.subr.mxu0 0.0
    %3925 = vmatpush1.msra.mxu0 0.0
    %3926 = vmatprep.subr.mxu0 0.0
    %3927 = vmatpush1.msra.mxu0 0.0
    %3928 = vmatprep.subr.mxu0 0.0
    %3929 = vmatpush1.msra.mxu0 0.0
    %3930 = vmatprep.subr.mxu0 0.0
    %3931 = vmatpush1.msra.mxu0 0.0
    %3932 = vmatprep.subr.mxu0 0.0
    %3933 = vmatpush1.msra.mxu0 0.0
    %3934 = vmatprep.subr.mxu0 0.0
    %3935 = vmatpush1.msra.mxu0 0.0
    %3936 = vmatprep.subr.mxu0 0.0
    %3937 = vmatpush1.msra.mxu0 0.0
    %3938 = vmatprep.subr.mxu0 0.0
    %3939 = vmatpush1.msra.mxu0 0.0
    %3940 = vmatprep.subr.mxu0 0.0
    %3941 = vmatpush1.msra.mxu0 0.0
    %3942 = vmatprep.subr.mxu0 0.0
    %3943 = vmatpush1.msra.mxu0 0.0
    %3944 = vmatprep.subr.mxu0 0.0
    %3945 = vmatpush1.msra.mxu0 0.0
    %3946 = vmatprep.subr.mxu0 0.0
    %3947 = vmatpush1.msra.mxu0 0.0
    %3948 = vmatprep.subr.mxu0 0.0
    %3949 = vmatpush1.msra.mxu0 0.0
    %3950 = vmatprep.subr.mxu0 0.0
    %3951 = vmatpush1.msra.mxu0 0.0
    %3952 = vmatprep.mubr.f32.mxu0 0.0
    %3953 = vmatmul.mubr.f32.gmra.mrb[0].mxu0 %v3877
    %v3954 = vpop.f32.mrb[0].mxu0
    %v3955 = vadd.f32 %v3875, %v3954
    %v3956 = vpop.f32.mrb[0].mxu0
    %3957 = vmatprep.mubr.f32.mxu0 0.0
    %3958 = vmatmul.mubr.f32.gmra.mrb[0].mxu0 %v3880
    %v3959 = vpop.f32.mrb[0].mxu0
    %v3960 = vadd.f32 %v3875, %v3959
    %v3961 = vpop.f32.mrb[0].mxu0
    %3962 = vmatprep.mubr.f32.mxu0 0.0
    %3963 = vmatmul.mubr.f32.gmra.mrb[0].mxu0 %v3883
    %v3964 = vpop.f32.mrb[0].mxu0
    %v3965 = vadd.f32 %v3875, %v3964
    %v3966 = vpop.f32.mrb[0].mxu0
    %3967 = vmatprep.mubr.f32.mxu0 0.0
    %3968 = vmatmul.mubr.f32.gmra.mrb[0].mxu0 %v3886
    %v3969 = vpop.f32.mrb[0].mxu0
    %v3970 = vadd.f32 %v3875, %v3969
    %v3971 = vpop.f32.mrb[0].mxu0
    %3972 = vdwg.mxu0
    %v3973 = vadd.f32 %v3649, %v3955
    %v3974 = vadd.f32 %v3650, %v3960
    %v3975 = vadd.f32 %v3651, %v3965
    %v3976 = vadd.f32 %v3652, %v3970
    %v3977 = vld [vmem:[#allocation2 + $0x1e0] sm:$0x1]
    %v3978 = vld [vmem:[#allocation2 + $0x1e8] sm:$0x1]
    %v3979 = vsel %vm354, %v3973, 0.0
    %3980 = vadd.xlane.f32.xlu0 %v3979
    %v3981 = vpop.xlane.xlu0 %3980
    %v3982 = vsel %vm354, %v3974, 0.0
    %3983 = vadd.xlane.f32.xlu0 %v3982
    %v3984 = vpop.xlane.xlu0 %3983
    %v3985 = vsel %vm354, %v3975, 0.0
    %3986 = vadd.xlane.f32.xlu0 %v3985
    %v3987 = vpop.xlane.xlu0 %3986
    %v3988 = vsel %vm354, %v3976, 0.0
    %3989 = vadd.xlane.f32.xlu0 %v3988
    %v3990 = vpop.xlane.xlu0 %3989
    %v3991 = vmul.f32 %v3981, %v1747
    %v3992 = vmul.f32 %v3984, %v1747
    %v3993 = vmul.f32 %v3987, %v1747
    %v3994 = vmul.f32 %v3990, %v1747
    %v3995 = vsub.f32 %v3973, %v3991
    %v3996 = vsub.f32 %v3974, %v3992
    %v3997 = vsub.f32 %v3975, %v3993
    %v3998 = vsub.f32 %v3976, %v3994
    %v3999 = vmul.f32 %v3995, %v3995
    %v4000 = vmul.f32 %v3996, %v3996
    %v4001 = vmul.f32 %v3997, %v3997
    %v4002 = vmul.f32 %v3998, %v3998
    %v4003 = vsel %vm354, %v3999, 0.0
    %4004 = vadd.xlane.f32.xlu0 %v4003
    %v4005 = vpop.xlane.xlu0 %4004
    %v4006 = vsel %vm354, %v4000, 0.0
    %4007 = vadd.xlane.f32.xlu0 %v4006
    %v4008 = vpop.xlane.xlu0 %4007
    %v4009 = vsel %vm354, %v4001, 0.0
    %4010 = vadd.xlane.f32.xlu0 %v4009
    %v4011 = vpop.xlane.xlu0 %4010
    %v4012 = vsel %vm354, %v4002, 0.0
    %4013 = vadd.xlane.f32.xlu0 %v4012
    %v4014 = vpop.xlane.xlu0 %4013
    %v4015 = vmul.f32 %v4005, %v1747
    %v4016 = vmul.f32 %v4008, %v1747
    %v4017 = vmul.f32 %v4011, %v1747
    %v4018 = vmul.f32 %v4014, %v1747
    %v4019 = vadd.f32 %v4015, 1e-05
    %v4020 = vadd.f32 %v4016, 1e-05
    %v4021 = vadd.f32 %v4017, 1e-05
    %v4022 = vadd.f32 %v4018, 1e-05
    %v4023 = vrsqrt.pop %v4019
    %v4024 = vrsqrt.pop %v4020
    %v4025 = vrsqrt.pop %v4021
    %v4026 = vrsqrt.pop %v4022
    %v4027 = vmul.f32 %v3995, %v4023
    %v4028 = vmul.f32 %v3996, %v4024
    %v4029 = vmul.f32 %v3997, %v4025
    %v4030 = vmul.f32 %v3998, %v4026
    %v4031 = vlaneseq
    %v4032 = vshrl.u32 %v4031, 7
    %v4033 = vsub.s32 0, %v4032
    %v4034 = vrot.slane %v3977, %v4033
    %v4035 = vmul.f32 %v4027, %v4034
    %v4036 = vmul.f32 %v4028, %v4034
    %v4037 = vmul.f32 %v4029, %v4034
    %v4038 = vmul.f32 %v4030, %v4034
    %v4039 = vlaneseq
    %v4040 = vshrl.u32 %v4039, 7
    %v4041 = vsub.s32 0, %v4040
    %v4042 = vrot.slane %v3978, %v4041
    %v4043 = vadd.f32 %v4035, %v4042
    %v4044 = vadd.f32 %v4036, %v4042
    %v4045 = vadd.f32 %v4037, %v4042
    %v4046 = vadd.f32 %v4038, %v4042
    %v4047 = vld [vmem:[#allocation2 + $0x1f0] sm:$0x1]
    %v4048 = vld [vmem:[#allocation2 + $0x1f8] sm:$0x1]
    %v4049 = vsel %vm354, %v4043, 0.0
    %4050 = vadd.xlane.f32.xlu0 %v4049
    %v4051 = vpop.xlane.xlu0 %4050
    %v4052 = vsel %vm354, %v4044, 0.0
    %4053 = vadd.xlane.f32.xlu0 %v4052
    %v4054 = vpop.xlane.xlu0 %4053
    %v4055 = vsel %vm354, %v4045, 0.0
    %4056 = vadd.xlane.f32.xlu0 %v4055
    %v4057 = vpop.xlane.xlu0 %4056
    %v4058 = vsel %vm354, %v4046, 0.0
    %4059 = vadd.xlane.f32.xlu0 %v4058
    %v4060 = vpop.xlane.xlu0 %4059
    %v4061 = vmul.f32 %v4051, %v1747
    %v4062 = vmul.f32 %v4054, %v1747
    %v4063 = vmul.f32 %v4057, %v1747
    %v4064 = vmul.f32 %v4060, %v1747
    %v4065 = vsub.f32 %v4043, %v4061
    %v4066 = vsub.f32 %v4044, %v4062
    %v4067 = vsub.f32 %v4045, %v4063
    %v4068 = vsub.f32 %v4046, %v4064
    %v4069 = vmul.f32 %v4065, %v4065
    %v4070 = vmul.f32 %v4066, %v4066
    %v4071 = vmul.f32 %v4067, %v4067
    %v4072 = vmul.f32 %v4068, %v4068
    %v4073 = vsel %vm354, %v4069, 0.0
    %4074 = vadd.xlane.f32.xlu0 %v4073
    %v4075 = vpop.xlane.xlu0 %4074
    %v4076 = vsel %vm354, %v4070, 0.0
    %4077 = vadd.xlane.f32.xlu0 %v4076
    %v4078 = vpop.xlane.xlu0 %4077
    %v4079 = vsel %vm354, %v4071, 0.0
    %4080 = vadd.xlane.f32.xlu0 %v4079
    %v4081 = vpop.xlane.xlu0 %4080
    %v4082 = vsel %vm354, %v4072, 0.0
    %4083 = vadd.xlane.f32.xlu0 %v4082
    %v4084 = vpop.xlane.xlu0 %4083
    %v4085 = vmul.f32 %v4075, %v1747
    %v4086 = vmul.f32 %v4078, %v1747
    %v4087 = vmul.f32 %v4081, %v1747
    %v4088 = vmul.f32 %v4084, %v1747
    %v4089 = vadd.f32 %v4085, 1e-05
    %v4090 = vadd.f32 %v4086, 1e-05
    %v4091 = vadd.f32 %v4087, 1e-05
    %v4092 = vadd.f32 %v4088, 1e-05
    %v4093 = vrsqrt.pop %v4089
    %v4094 = vrsqrt.pop %v4090
    %v4095 = vrsqrt.pop %v4091
    %v4096 = vrsqrt.pop %v4092
    %v4097 = vmul.f32 %v4065, %v4093
    %v4098 = vmul.f32 %v4066, %v4094
    %v4099 = vmul.f32 %v4067, %v4095
    %v4100 = vmul.f32 %v4068, %v4096
    %v4101 = vlaneseq
    %v4102 = vshrl.u32 %v4101, 7
    %v4103 = vsub.s32 0, %v4102
    %v4104 = vrot.slane %v4047, %v4103
    %v4105 = vmul.f32 %v4097, %v4104
    %v4106 = vmul.f32 %v4098, %v4104
    %v4107 = vmul.f32 %v4099, %v4104
    %v4108 = vmul.f32 %v4100, %v4104
    %v4109 = vlaneseq
    %v4110 = vshrl.u32 %v4109, 7
    %v4111 = vsub.s32 0, %v4110
    %v4112 = vrot.slane %v4048, %v4111
    %v4113 = vadd.f32 %v4105, %v4112
    %v4114 = vadd.f32 %v4106, %v4112
    %v4115 = vadd.f32 %v4107, %v4112
    %v4116 = vadd.f32 %v4108, %v4112
    %v4117 = vld [vmem:[#allocation2 + $0x200] sm:$0xff]
    %v4118 = vld [vmem:[#allocation2 + $0x208] sm:$0xff]
    %v4119 = vld [vmem:[#allocation2 + $0x210] sm:$0xff]
    %v4120 = vld [vmem:[#allocation2 + $0x218] sm:$0xff]
    %v4121 = vld [vmem:[#allocation2 + $0x220] sm:$0x1]
    %v4122 = vlaneseq
    %v4123 = vshrl.u32 %v4122, 7
    %v4124 = vsub.s32 0, %v4123
    %v4125 = vrot.slane %v4121, %v4124
    %v4127 = vsel %vm354, %v327, 0
    %v4130 = vsel %vm354, %v332, 0
    %v4133 = vsel %vm354, %v337, 0
    %v4136 = vsel %vm354, %v342, 0
    %4138 = vmatprep.subr.mxu0 0.0
    %4139 = vmatpush1.msra.mxu0 %v4117
    %4140 = vmatprep.subr.mxu0 0.0
    %4141 = vmatpush1.msra.mxu0 %v4118
    %4142 = vmatprep.subr.mxu0 0.0
    %4143 = vmatpush1.msra.mxu0 %v4119
    %4144 = vmatprep.subr.mxu0 0.0
    %4145 = vmatpush1.msra.mxu0 %v4120
    %4146 = vmatprep.subr.mxu0 0.0
    %4147 = vmatpush1.msra.mxu0 0.0
    %4148 = vmatprep.subr.mxu0 0.0
    %4149 = vmatpush1.msra.mxu0 0.0
    %4150 = vmatprep.subr.mxu0 0.0
    %4151 = vmatpush1.msra.mxu0 0.0
    %4152 = vmatprep.subr.mxu0 0.0
    %4153 = vmatpush1.msra.mxu0 0.0
    %4154 = vmatprep.subr.mxu0 0.0
    %4155 = vmatpush1.msra.mxu0 0.0
    %4156 = vmatprep.subr.mxu0 0.0
    %4157 = vmatpush1.msra.mxu0 0.0
    %4158 = vmatprep.subr.mxu0 0.0
    %4159 = vmatpush1.msra.mxu0 0.0
    %4160 = vmatprep.subr.mxu0 0.0
    %4161 = vmatpush1.msra.mxu0 0.0
    %4162 = vmatprep.subr.mxu0 0.0
    %4163 = vmatpush1.msra.mxu0 0.0
    %4164 = vmatprep.subr.mxu0 0.0
    %4165 = vmatpush1.msra.mxu0 0.0
    %4166 = vmatprep.subr.mxu0 0.0
    %4167 = vmatpush1.msra.mxu0 0.0
    %4168 = vmatprep.subr.mxu0 0.0
    %4169 = vmatpush1.msra.mxu0 0.0
    %4170 = vmatprep.subr.mxu0 0.0
    %4171 = vmatpush1.msra.mxu0 0.0
    %4172 = vmatprep.subr.mxu0 0.0
    %4173 = vmatpush1.msra.mxu0 0.0
    %4174 = vmatprep.subr.mxu0 0.0
    %4175 = vmatpush1.msra.mxu0 0.0
    %4176 = vmatprep.subr.mxu0 0.0
    %4177 = vmatpush1.msra.mxu0 0.0
    %4178 = vmatprep.subr.mxu0 0.0
    %4179 = vmatpush1.msra.mxu0 0.0
    %4180 = vmatprep.subr.mxu0 0.0
    %4181 = vmatpush1.msra.mxu0 0.0
    %4182 = vmatprep.subr.mxu0 0.0
    %4183 = vmatpush1.msra.mxu0 0.0
    %4184 = vmatprep.subr.mxu0 0.0
    %4185 = vmatpush1.msra.mxu0 0.0
    %4186 = vmatprep.subr.mxu0 0.0
    %4187 = vmatpush1.msra.mxu0 0.0
    %4188 = vmatprep.subr.mxu0 0.0
    %4189 = vmatpush1.msra.mxu0 0.0
    %4190 = vmatprep.subr.mxu0 0.0
    %4191 = vmatpush1.msra.mxu0 0.0
    %4192 = vmatprep.subr.mxu0 0.0
    %4193 = vmatpush1.msra.mxu0 0.0
    %4194 = vmatprep.subr.mxu0 0.0
    %4195 = vmatpush1.msra.mxu0 0.0
    %4196 = vmatprep.subr.mxu0 0.0
    %4197 = vmatpush1.msra.mxu0 0.0
    %4198 = vmatprep.subr.mxu0 0.0
    %4199 = vmatpush1.msra.mxu0 0.0
    %4200 = vmatprep.subr.mxu0 0.0
    %4201 = vmatpush1.msra.mxu0 0.0
    %4202 = vmatprep.mubr.f32.mxu0 0.0
    %4203 = vmatmul.mubr.f32.gmra.mrb[0].mxu0 %v4127
    %v4204 = vpop.f32.mrb[0].mxu0
    %v4205 = vadd.f32 %v4125, %v4204
    %v4206 = vpop.f32.mrb[0].mxu0
    %4207 = vmatprep.mubr.f32.mxu0 0.0
    %4208 = vmatmul.mubr.f32.gmra.mrb[0].mxu0 %v4130
    %v4209 = vpop.f32.mrb[0].mxu0
    %v4210 = vadd.f32 %v4125, %v4209
    %v4211 = vpop.f32.mrb[0].mxu0
    %4212 = vmatprep.mubr.f32.mxu0 0.0
    %4213 = vmatmul.mubr.f32.gmra.mrb[0].mxu0 %v4133
    %v4214 = vpop.f32.mrb[0].mxu0
    %v4215 = vadd.f32 %v4125, %v4214
    %v4216 = vpop.f32.mrb[0].mxu0
    %4217 = vmatprep.mubr.f32.mxu0 0.0
    %4218 = vmatmul.mubr.f32.gmra.mrb[0].mxu0 %v4136
    %v4219 = vpop.f32.mrb[0].mxu0
    %v4220 = vadd.f32 %v4125, %v4219
    %v4221 = vpop.f32.mrb[0].mxu0
    %4222 = vdwg.mxu0
    %v4223 = vld [vmem:[#allocation2 + $0x228] sm:$0xff]
    %v4224 = vld [vmem:[#allocation2 + $0x230] sm:$0xff]
    %v4225 = vld [vmem:[#allocation2 + $0x238] sm:$0xff]
    %v4226 = vld [vmem:[#allocation2 + $0x240] sm:$0xff]
    %v4227 = vld [vmem:[#allocation2 + $0x248] sm:$0x1]
    %4232 = vrot.lane.b32.xlu0 %v4205, 96
    %v4233 = vpop.permute.xlu0 %4232
    %4234 = vrot.lane.b32.xlu0 %v4210, 96
    %v4235 = vpop.permute.xlu0 %4234
    %4236 = vrot.lane.b32.xlu0 %v4215, 96
    %v4237 = vpop.permute.xlu0 %4236
    %4238 = vrot.lane.b32.xlu0 %v4220, 96
    %v4239 = vpop.permute.xlu0 %4238
    %v4240 = vsel %vm469, %v4205, 0
    %v4242 = vsel %vm469, %v4210, 0
    %v4244 = vsel %vm469, %v4215, 0
    %v4246 = vsel %vm469, %v4220, 0
    %v4248 = vsel %vm469, %v4233, 0
    %v4250 = vsel %vm469, %v4235, 0
    %v4252 = vsel %vm469, %v4237, 0
    %v4254 = vsel %vm469, %v4239, 0
    %4256 = vmatprep.subr.mxu0 0.0
    %4257 = vmatpush1.xpose.msra.mxu0 %v4248
    %4258 = vmatprep.subr.mxu0 0.0
    %4259 = vmatpush1.xpose.msra.mxu0 %v4250
    %4260 = vmatprep.subr.mxu0 0.0
    %4261 = vmatpush1.xpose.msra.mxu0 %v4252
    %4262 = vmatprep.subr.mxu0 0.0
    %4263 = vmatpush1.xpose.msra.mxu0 %v4254
    %4264 = vmatprep.subr.mxu0 0.0
    %4265 = vmatpush1.xpose.msra.mxu0 0.0
    %4266 = vmatprep.subr.mxu0 0.0
    %4267 = vmatpush1.xpose.msra.mxu0 0.0
    %4268 = vmatprep.subr.mxu0 0.0
    %4269 = vmatpush1.xpose.msra.mxu0 0.0
    %4270 = vmatprep.subr.mxu0 0.0
    %4271 = vmatpush1.xpose.msra.mxu0 0.0
    %4272 = vmatprep.subr.mxu0 0.0
    %4273 = vmatpush1.xpose.msra.mxu0 0.0
    %4274 = vmatprep.subr.mxu0 0.0
    %4275 = vmatpush1.xpose.msra.mxu0 0.0
    %4276 = vmatprep.subr.mxu0 0.0
    %4277 = vmatpush1.xpose.msra.mxu0 0.0
    %4278 = vmatprep.subr.mxu0 0.0
    %4279 = vmatpush1.xpose.msra.mxu0 0.0
    %4280 = vmatprep.subr.mxu0 0.0
    %4281 = vmatpush1.xpose.msra.mxu0 0.0
    %4282 = vmatprep.subr.mxu0 0.0
    %4283 = vmatpush1.xpose.msra.mxu0 0.0
    %4284 = vmatprep.subr.mxu0 0.0
    %4285 = vmatpush1.xpose.msra.mxu0 0.0
    %4286 = vmatprep.subr.mxu0 0.0
    %4287 = vmatpush1.xpose.msra.mxu0 0.0
    %4288 = vmatprep.subr.mxu0 0.0
    %4289 = vmatpush1.xpose.msra.mxu0 0.0
    %4290 = vmatprep.subr.mxu0 0.0
    %4291 = vmatpush1.xpose.msra.mxu0 0.0
    %4292 = vmatprep.subr.mxu0 0.0
    %4293 = vmatpush1.xpose.msra.mxu0 0.0
    %4294 = vmatprep.subr.mxu0 0.0
    %4295 = vmatpush1.xpose.msra.mxu0 0.0
    %4296 = vmatprep.subr.mxu0 0.0
    %4297 = vmatpush1.xpose.msra.mxu0 0.0
    %4298 = vmatprep.subr.mxu0 0.0
    %4299 = vmatpush1.xpose.msra.mxu0 0.0
    %4300 = vmatprep.subr.mxu0 0.0
    %4301 = vmatpush1.xpose.msra.mxu0 0.0
    %4302 = vmatprep.subr.mxu0 0.0
    %4303 = vmatpush1.xpose.msra.mxu0 0.0
    %4304 = vmatprep.subr.mxu0 0.0
    %4305 = vmatpush1.xpose.msra.mxu0 0.0
    %4306 = vmatprep.subr.mxu0 0.0
    %4307 = vmatpush1.xpose.msra.mxu0 0.0
    %4308 = vmatprep.subr.mxu0 0.0
    %4309 = vmatpush1.xpose.msra.mxu0 0.0
    %4310 = vmatprep.subr.mxu0 0.0
    %4311 = vmatpush1.xpose.msra.mxu0 0.0
    %4312 = vmatprep.subr.mxu0 0.0
    %4313 = vmatpush1.xpose.msra.mxu0 0.0
    %4314 = vmatprep.subr.mxu0 0.0
    %4315 = vmatpush1.xpose.msra.mxu0 0.0
    %4316 = vmatprep.subr.mxu0 0.0
    %4317 = vmatpush1.xpose.msra.mxu0 0.0
    %4318 = vmatprep.subr.mxu0 0.0
    %4319 = vmatpush1.xpose.msra.mxu0 0.0
    %4320 = vmatprep.mubr.f32.mxu0 0.0
    %4321 = vmatmul.mubr.f32.gmra.mrb[0].mxu0 %v4240
    %v4322 = vpop.f32.mrb[0].mxu0
    %v4323 = vadd.f32 0.0, %v4322
    %v4324 = vpop.f32.mrb[0].mxu0
    %4325 = vmatprep.mubr.f32.mxu0 0.0
    %4326 = vmatmul.mubr.f32.gmra.mrb[0].mxu0 %v4242
    %v4327 = vpop.f32.mrb[0].mxu0
    %v4328 = vadd.f32 0.0, %v4327
    %v4329 = vpop.f32.mrb[0].mxu0
    %4330 = vmatprep.mubr.f32.mxu0 0.0
    %4331 = vmatmul.mubr.f32.gmra.mrb[0].mxu0 %v4244
    %v4332 = vpop.f32.mrb[0].mxu0
    %v4333 = vadd.f32 0.0, %v4332
    %v4334 = vpop.f32.mrb[0].mxu0
    %4335 = vmatprep.mubr.f32.mxu0 0.0
    %4336 = vmatmul.mubr.f32.gmra.mrb[0].mxu0 %v4246
    %v4337 = vpop.f32.mrb[0].mxu0
    %v4338 = vadd.f32 0.0, %v4337
    %v4339 = vpop.f32.mrb[0].mxu0
    %4340 = vdwg.mxu0
    %v4341 = vmul.f32 %v4323, 0.35355338
    %v4342 = vmul.f32 %v4328, 0.35355338
    %v4343 = vmul.f32 %v4333, 0.35355338
    %v4344 = vmul.f32 %v4338, 0.35355338
    %v4345 = vadd.f32 %v4341, %v117
    %v4346 = vadd.f32 %v4342, %v118
    %v4347 = vadd.f32 %v4343, %v119
    %v4348 = vadd.f32 %v4344, %v120
    %v4349 = vsel %vm354, %v4345, -inf
    %4350 = vmax.xlane.f32.xlu0 %v4349
    %v4351 = vpop.xlane.xlu0 %4350
    %v4352 = vsel %vm354, %v4346, -inf
    %4353 = vmax.xlane.f32.xlu0 %v4352
    %v4354 = vpop.xlane.xlu0 %4353
    %v4355 = vsel %vm354, %v4347, -inf
    %4356 = vmax.xlane.f32.xlu0 %v4355
    %v4357 = vpop.xlane.xlu0 %4356
    %v4358 = vsel %vm354, %v4348, -inf
    %4359 = vmax.xlane.f32.xlu0 %v4358
    %v4360 = vpop.xlane.xlu0 %4359
    %v4361 = vsub.f32 %v4345, %v4351
    %v4362 = vsub.f32 %v4346, %v4354
    %v4363 = vsub.f32 %v4347, %v4357
    %v4364 = vsub.f32 %v4348, %v4360
    %v4365 = vmul.f32 %v4361, 1.442695
    %v4366 = vpow.pop %v4365
    %v4367 = vmul.f32 %v4362, 1.442695
    %v4368 = vpow.pop %v4367
    %v4369 = vmul.f32 %v4363, 1.442695
    %v4370 = vpow.pop %v4369
    %v4371 = vmul.f32 %v4364, 1.442695
    %v4372 = vpow.pop %v4371
    %v4373 = vsel %vm354, %v4366, 0.0
    %4374 = vadd.xlane.f32.xlu0 %v4373
    %v4375 = vpop.xlane.xlu0 %4374
    %v4376 = vsel %vm354, %v4368, 0.0
    %4377 = vadd.xlane.f32.xlu0 %v4376
    %v4378 = vpop.xlane.xlu0 %4377
    %v4379 = vsel %vm354, %v4370, 0.0
    %4380 = vadd.xlane.f32.xlu0 %v4379
    %v4381 = vpop.xlane.xlu0 %4380
    %v4382 = vsel %vm354, %v4372, 0.0
    %4383 = vadd.xlane.f32.xlu0 %v4382
    %v4384 = vpop.xlane.xlu0 %4383
    %v4385 = vrcp.pop %v4375
    %v4386 = vrcp.pop %v4378
    %v4387 = vrcp.pop %v4381
    %v4388 = vrcp.pop %v4384
    %v4389 = vmul.f32 %v4366, %v4385
    %v4390 = vmul.f32 %v4368, %v4386
    %v4391 = vmul.f32 %v4370, %v4387
    %v4392 = vmul.f32 %v4372, %v4388
    %4393 = vrot.lane.b32.xlu0 %v4205, 64
    %v4394 = vpop.permute.xlu0 %4393
    %4395 = vrot.lane.b32.xlu0 %v4210, 64
    %v4396 = vpop.permute.xlu0 %4395
    %4397 = vrot.lane.b32.xlu0 %v4215, 64
    %v4398 = vpop.permute.xlu0 %4397
    %4399 = vrot.lane.b32.xlu0 %v4220, 64
    %v4400 = vpop.permute.xlu0 %4399
    %v4406 = vsel %vm354, %v4389, 0
    %v4409 = vsel %vm354, %v4390, 0
    %v4412 = vsel %vm354, %v4391, 0
    %v4415 = vsel %vm354, %v4392, 0
    %4417 = vmatprep.subr.mxu0 0.0
    %4418 = vmatpush1.msra.mxu0 %v4394
    %4419 = vmatprep.subr.mxu0 0.0
    %4420 = vmatpush1.msra.mxu0 %v4396
    %4421 = vmatprep.subr.mxu0 0.0
    %4422 = vmatpush1.msra.mxu0 %v4398
    %4423 = vmatprep.subr.mxu0 0.0
    %4424 = vmatpush1.msra.mxu0 %v4400
    %4425 = vmatprep.subr.mxu0 0.0
    %4426 = vmatpush1.msra.mxu0 0.0
    %4427 = vmatprep.subr.mxu0 0.0
    %4428 = vmatpush1.msra.mxu0 0.0
    %4429 = vmatprep.subr.mxu0 0.0
    %4430 = vmatpush1.msra.mxu0 0.0
    %4431 = vmatprep.subr.mxu0 0.0
    %4432 = vmatpush1.msra.mxu0 0.0
    %4433 = vmatprep.subr.mxu0 0.0
    %4434 = vmatpush1.msra.mxu0 0.0
    %4435 = vmatprep.subr.mxu0 0.0
    %4436 = vmatpush1.msra.mxu0 0.0
    %4437 = vmatprep.subr.mxu0 0.0
    %4438 = vmatpush1.msra.mxu0 0.0
    %4439 = vmatprep.subr.mxu0 0.0
    %4440 = vmatpush1.msra.mxu0 0.0
    %4441 = vmatprep.subr.mxu0 0.0
    %4442 = vmatpush1.msra.mxu0 0.0
    %4443 = vmatprep.subr.mxu0 0.0
    %4444 = vmatpush1.msra.mxu0 0.0
    %4445 = vmatprep.subr.mxu0 0.0
    %4446 = vmatpush1.msra.mxu0 0.0
    %4447 = vmatprep.subr.mxu0 0.0
    %4448 = vmatpush1.msra.mxu0 0.0
    %4449 = vmatprep.subr.mxu0 0.0
    %4450 = vmatpush1.msra.mxu0 0.0
    %4451 = vmatprep.subr.mxu0 0.0
    %4452 = vmatpush1.msra.mxu0 0.0
    %4453 = vmatprep.subr.mxu0 0.0
    %4454 = vmatpush1.msra.mxu0 0.0
    %4455 = vmatprep.subr.mxu0 0.0
    %4456 = vmatpush1.msra.mxu0 0.0
    %4457 = vmatprep.subr.mxu0 0.0
    %4458 = vmatpush1.msra.mxu0 0.0
    %4459 = vmatprep.subr.mxu0 0.0
    %4460 = vmatpush1.msra.mxu0 0.0
    %4461 = vmatprep.subr.mxu0 0.0
    %4462 = vmatpush1.msra.mxu0 0.0
    %4463 = vmatprep.subr.mxu0 0.0
    %4464 = vmatpush1.msra.mxu0 0.0
    %4465 = vmatprep.subr.mxu0 0.0
    %4466 = vmatpush1.msra.mxu0 0.0
    %4467 = vmatprep.subr.mxu0 0.0
    %4468 = vmatpush1.msra.mxu0 0.0
    %4469 = vmatprep.subr.mxu0 0.0
    %4470 = vmatpush1.msra.mxu0 0.0
    %4471 = vmatprep.subr.mxu0 0.0
    %4472 = vmatpush1.msra.mxu0 0.0
    %4473 = vmatprep.subr.mxu0 0.0
    %4474 = vmatpush1.msra.mxu0 0.0
    %4475 = vmatprep.subr.mxu0 0.0
    %4476 = vmatpush1.msra.mxu0 0.0
    %4477 = vmatprep.subr.mxu0 0.0
    %4478 = vmatpush1.msra.mxu0 0.0
    %4479 = vmatprep.subr.mxu0 0.0
    %4480 = vmatpush1.msra.mxu0 0.0
    %4481 = vmatprep.mubr.f32.mxu0 0.0
    %4482 = vmatmul.mubr.f32.gmra.mrb[0].mxu0 %v4406
    %v4483 = vpop.f32.mrb[0].mxu0
    %v4484 = vadd.f32 0.0, %v4483
    %v4485 = vpop.f32.mrb[0].mxu0
    %4486 = vmatprep.mubr.f32.mxu0 0.0
    %4487 = vmatmul.mubr.f32.gmra.mrb[0].mxu0 %v4409
    %v4488 = vpop.f32.mrb[0].mxu0
    %v4489 = vadd.f32 0.0, %v4488
    %v4490 = vpop.f32.mrb[0].mxu0
    %4491 = vmatprep.mubr.f32.mxu0 0.0
    %4492 = vmatmul.mubr.f32.gmra.mrb[0].mxu0 %v4412
    %v4493 = vpop.f32.mrb[0].mxu0
    %v4494 = vadd.f32 0.0, %v4493
    %v4495 = vpop.f32.mrb[0].mxu0
    %4496 = vmatprep.mubr.f32.mxu0 0.0
    %4497 = vmatmul.mubr.f32.gmra.mrb[0].mxu0 %v4415
    %v4498 = vpop.f32.mrb[0].mxu0
    %v4499 = vadd.f32 0.0, %v4498
    %v4500 = vpop.f32.mrb[0].mxu0
    %4501 = vdwg.mxu0
    %4502 = vrot.lane.b32.xlu0 %v4205, 120
    %v4503 = vpop.permute.xlu0 %4502
    %4504 = vrot.lane.b32.xlu0 %v4210, 120
    %v4505 = vpop.permute.xlu0 %4504
    %4506 = vrot.lane.b32.xlu0 %v4215, 120
    %v4507 = vpop.permute.xlu0 %4506
    %4508 = vrot.lane.b32.xlu0 %v4220, 120
    %v4509 = vpop.permute.xlu0 %4508
    %4510 = vrot.lane.b32.xlu0 %v4205, 88
    %v4511 = vpop.permute.xlu0 %4510
    %4512 = vrot.lane.b32.xlu0 %v4210, 88
    %v4513 = vpop.permute.xlu0 %4512
    %4514 = vrot.lane.b32.xlu0 %v4215, 88
    %v4515 = vpop.permute.xlu0 %4514
    %4516 = vrot.lane.b32.xlu0 %v4220, 88
    %v4517 = vpop.permute.xlu0 %4516
    %v4518 = vsel %vm469, %v4503, 0
    %v4520 = vsel %vm469, %v4505, 0
    %v4522 = vsel %vm469, %v4507, 0
    %v4524 = vsel %vm469, %v4509, 0
    %v4526 = vsel %vm469, %v4511, 0
    %v4528 = vsel %vm469, %v4513, 0
    %v4530 = vsel %vm469, %v4515, 0
    %v4532 = vsel %vm469, %v4517, 0
    %4534 = vmatprep.subr.mxu0 0.0
    %4535 = vmatpush1.xpose.msra.mxu0 %v4526
    %4536 = vmatprep.subr.mxu0 0.0
    %4537 = vmatpush1.xpose.msra.mxu0 %v4528
    %4538 = vmatprep.subr.mxu0 0.0
    %4539 = vmatpush1.xpose.msra.mxu0 %v4530
    %4540 = vmatprep.subr.mxu0 0.0
    %4541 = vmatpush1.xpose.msra.mxu0 %v4532
    %4542 = vmatprep.subr.mxu0 0.0
    %4543 = vmatpush1.xpose.msra.mxu0 0.0
    %4544 = vmatprep.subr.mxu0 0.0
    %4545 = vmatpush1.xpose.msra.mxu0 0.0
    %4546 = vmatprep.subr.mxu0 0.0
    %4547 = vmatpush1.xpose.msra.mxu0 0.0
    %4548 = vmatprep.subr.mxu0 0.0
    %4549 = vmatpush1.xpose.msra.mxu0 0.0
    %4550 = vmatprep.subr.mxu0 0.0
    %4551 = vmatpush1.xpose.msra.mxu0 0.0
    %4552 = vmatprep.subr.mxu0 0.0
    %4553 = vmatpush1.xpose.msra.mxu0 0.0
    %4554 = vmatprep.subr.mxu0 0.0
    %4555 = vmatpush1.xpose.msra.mxu0 0.0
    %4556 = vmatprep.subr.mxu0 0.0
    %4557 = vmatpush1.xpose.msra.mxu0 0.0
    %4558 = vmatprep.subr.mxu0 0.0
    %4559 = vmatpush1.xpose.msra.mxu0 0.0
    %4560 = vmatprep.subr.mxu0 0.0
    %4561 = vmatpush1.xpose.msra.mxu0 0.0
    %4562 = vmatprep.subr.mxu0 0.0
    %4563 = vmatpush1.xpose.msra.mxu0 0.0
    %4564 = vmatprep.subr.mxu0 0.0
    %4565 = vmatpush1.xpose.msra.mxu0 0.0
    %4566 = vmatprep.subr.mxu0 0.0
    %4567 = vmatpush1.xpose.msra.mxu0 0.0
    %4568 = vmatprep.subr.mxu0 0.0
    %4569 = vmatpush1.xpose.msra.mxu0 0.0
    %4570 = vmatprep.subr.mxu0 0.0
    %4571 = vmatpush1.xpose.msra.mxu0 0.0
    %4572 = vmatprep.subr.mxu0 0.0
    %4573 = vmatpush1.xpose.msra.mxu0 0.0
    %4574 = vmatprep.subr.mxu0 0.0
    %4575 = vmatpush1.xpose.msra.mxu0 0.0
    %4576 = vmatprep.subr.mxu0 0.0
    %4577 = vmatpush1.xpose.msra.mxu0 0.0
    %4578 = vmatprep.subr.mxu0 0.0
    %4579 = vmatpush1.xpose.msra.mxu0 0.0
    %4580 = vmatprep.subr.mxu0 0.0
    %4581 = vmatpush1.xpose.msra.mxu0 0.0
    %4582 = vmatprep.subr.mxu0 0.0
    %4583 = vmatpush1.xpose.msra.mxu0 0.0
    %4584 = vmatprep.subr.mxu0 0.0
    %4585 = vmatpush1.xpose.msra.mxu0 0.0
    %4586 = vmatprep.subr.mxu0 0.0
    %4587 = vmatpush1.xpose.msra.mxu0 0.0
    %4588 = vmatprep.subr.mxu0 0.0
    %4589 = vmatpush1.xpose.msra.mxu0 0.0
    %4590 = vmatprep.subr.mxu0 0.0
    %4591 = vmatpush1.xpose.msra.mxu0 0.0
    %4592 = vmatprep.subr.mxu0 0.0
    %4593 = vmatpush1.xpose.msra.mxu0 0.0
    %4594 = vmatprep.subr.mxu0 0.0
    %4595 = vmatpush1.xpose.msra.mxu0 0.0
    %4596 = vmatprep.subr.mxu0 0.0
    %4597 = vmatpush1.xpose.msra.mxu0 0.0
    %4598 = vmatprep.mubr.f32.mxu0 0.0
    %4599 = vmatmul.mubr.f32.gmra.mrb[0].mxu0 %v4518
    %v4600 = vpop.f32.mrb[0].mxu0
    %v4601 = vadd.f32 0.0, %v4600
    %v4602 = vpop.f32.mrb[0].mxu0
    %4603 = vmatprep.mubr.f32.mxu0 0.0
    %4604 = vmatmul.mubr.f32.gmra.mrb[0].mxu0 %v4520
    %v4605 = vpop.f32.mrb[0].mxu0
    %v4606 = vadd.f32 0.0, %v4605
    %v4607 = vpop.f32.mrb[0].mxu0
    %4608 = vmatprep.mubr.f32.mxu0 0.0
    %4609 = vmatmul.mubr.f32.gmra.mrb[0].mxu0 %v4522
    %v4610 = vpop.f32.mrb[0].mxu0
    %v4611 = vadd.f32 0.0, %v4610
    %v4612 = vpop.f32.mrb[0].mxu0
    %4613 = vmatprep.mubr.f32.mxu0 0.0
    %4614 = vmatmul.mubr.f32.gmra.mrb[0].mxu0 %v4524
    %v4615 = vpop.f32.mrb[0].mxu0
    %v4616 = vadd.f32 0.0, %v4615
    %v4617 = vpop.f32.mrb[0].mxu0
    %4618 = vdwg.mxu0
    %v4619 = vmul.f32 %v4601, 0.35355338
    %v4620 = vmul.f32 %v4606, 0.35355338
    %v4621 = vmul.f32 %v4611, 0.35355338
    %v4622 = vmul.f32 %v4616, 0.35355338
    %v4623 = vadd.f32 %v4619, %v117
    %v4624 = vadd.f32 %v4620, %v118
    %v4625 = vadd.f32 %v4621, %v119
    %v4626 = vadd.f32 %v4622, %v120
    %v4627 = vsel %vm354, %v4623, -inf
    %4628 = vmax.xlane.f32.xlu0 %v4627
    %v4629 = vpop.xlane.xlu0 %4628
    %v4630 = vsel %vm354, %v4624, -inf
    %4631 = vmax.xlane.f32.xlu0 %v4630
    %v4632 = vpop.xlane.xlu0 %4631
    %v4633 = vsel %vm354, %v4625, -inf
    %4634 = vmax.xlane.f32.xlu0 %v4633
    %v4635 = vpop.xlane.xlu0 %4634
    %v4636 = vsel %vm354, %v4626, -inf
    %4637 = vmax.xlane.f32.xlu0 %v4636
    %v4638 = vpop.xlane.xlu0 %4637
    %v4639 = vsub.f32 %v4623, %v4629
    %v4640 = vsub.f32 %v4624, %v4632
    %v4641 = vsub.f32 %v4625, %v4635
    %v4642 = vsub.f32 %v4626, %v4638
    %v4643 = vmul.f32 %v4639, 1.442695
    %v4644 = vpow.pop %v4643
    %v4645 = vmul.f32 %v4640, 1.442695
    %v4646 = vpow.pop %v4645
    %v4647 = vmul.f32 %v4641, 1.442695
    %v4648 = vpow.pop %v4647
    %v4649 = vmul.f32 %v4642, 1.442695
    %v4650 = vpow.pop %v4649
    %v4651 = vsel %vm354, %v4644, 0.0
    %4652 = vadd.xlane.f32.xlu0 %v4651
    %v4653 = vpop.xlane.xlu0 %4652
    %v4654 = vsel %vm354, %v4646, 0.0
    %4655 = vadd.xlane.f32.xlu0 %v4654
    %v4656 = vpop.xlane.xlu0 %4655
    %v4657 = vsel %vm354, %v4648, 0.0
    %4658 = vadd.xlane.f32.xlu0 %v4657
    %v4659 = vpop.xlane.xlu0 %4658
    %v4660 = vsel %vm354, %v4650, 0.0
    %4661 = vadd.xlane.f32.xlu0 %v4660
    %v4662 = vpop.xlane.xlu0 %4661
    %v4663 = vrcp.pop %v4653
    %v4664 = vrcp.pop %v4656
    %v4665 = vrcp.pop %v4659
    %v4666 = vrcp.pop %v4662
    %v4667 = vmul.f32 %v4644, %v4663
    %v4668 = vmul.f32 %v4646, %v4664
    %v4669 = vmul.f32 %v4648, %v4665
    %v4670 = vmul.f32 %v4650, %v4666
    %4671 = vrot.lane.b32.xlu0 %v4205, 56
    %v4672 = vpop.permute.xlu0 %4671
    %4673 = vrot.lane.b32.xlu0 %v4210, 56
    %v4674 = vpop.permute.xlu0 %4673
    %4675 = vrot.lane.b32.xlu0 %v4215, 56
    %v4676 = vpop.permute.xlu0 %4675
    %4677 = vrot.lane.b32.xlu0 %v4220, 56
    %v4678 = vpop.permute.xlu0 %4677
    %v4684 = vsel %vm354, %v4667, 0
    %v4687 = vsel %vm354, %v4668, 0
    %v4690 = vsel %vm354, %v4669, 0
    %v4693 = vsel %vm354, %v4670, 0
    %4695 = vmatprep.subr.mxu0 0.0
    %4696 = vmatpush1.msra.mxu0 %v4672
    %4697 = vmatprep.subr.mxu0 0.0
    %4698 = vmatpush1.msra.mxu0 %v4674
    %4699 = vmatprep.subr.mxu0 0.0
    %4700 = vmatpush1.msra.mxu0 %v4676
    %4701 = vmatprep.subr.mxu0 0.0
    %4702 = vmatpush1.msra.mxu0 %v4678
    %4703 = vmatprep.subr.mxu0 0.0
    %4704 = vmatpush1.msra.mxu0 0.0
    %4705 = vmatprep.subr.mxu0 0.0
    %4706 = vmatpush1.msra.mxu0 0.0
    %4707 = vmatprep.subr.mxu0 0.0
    %4708 = vmatpush1.msra.mxu0 0.0
    %4709 = vmatprep.subr.mxu0 0.0
    %4710 = vmatpush1.msra.mxu0 0.0
    %4711 = vmatprep.subr.mxu0 0.0
    %4712 = vmatpush1.msra.mxu0 0.0
    %4713 = vmatprep.subr.mxu0 0.0
    %4714 = vmatpush1.msra.mxu0 0.0
    %4715 = vmatprep.subr.mxu0 0.0
    %4716 = vmatpush1.msra.mxu0 0.0
    %4717 = vmatprep.subr.mxu0 0.0
    %4718 = vmatpush1.msra.mxu0 0.0
    %4719 = vmatprep.subr.mxu0 0.0
    %4720 = vmatpush1.msra.mxu0 0.0
    %4721 = vmatprep.subr.mxu0 0.0
    %4722 = vmatpush1.msra.mxu0 0.0
    %4723 = vmatprep.subr.mxu0 0.0
    %4724 = vmatpush1.msra.mxu0 0.0
    %4725 = vmatprep.subr.mxu0 0.0
    %4726 = vmatpush1.msra.mxu0 0.0
    %4727 = vmatprep.subr.mxu0 0.0
    %4728 = vmatpush1.msra.mxu0 0.0
    %4729 = vmatprep.subr.mxu0 0.0
    %4730 = vmatpush1.msra.mxu0 0.0
    %4731 = vmatprep.subr.mxu0 0.0
    %4732 = vmatpush1.msra.mxu0 0.0
    %4733 = vmatprep.subr.mxu0 0.0
    %4734 = vmatpush1.msra.mxu0 0.0
    %4735 = vmatprep.subr.mxu0 0.0
    %4736 = vmatpush1.msra.mxu0 0.0
    %4737 = vmatprep.subr.mxu0 0.0
    %4738 = vmatpush1.msra.mxu0 0.0
    %4739 = vmatprep.subr.mxu0 0.0
    %4740 = vmatpush1.msra.mxu0 0.0
    %4741 = vmatprep.subr.mxu0 0.0
    %4742 = vmatpush1.msra.mxu0 0.0
    %4743 = vmatprep.subr.mxu0 0.0
    %4744 = vmatpush1.msra.mxu0 0.0
    %4745 = vmatprep.subr.mxu0 0.0
    %4746 = vmatpush1.msra.mxu0 0.0
    %4747 = vmatprep.subr.mxu0 0.0
    %4748 = vmatpush1.msra.mxu0 0.0
    %4749 = vmatprep.subr.mxu0 0.0
    %4750 = vmatpush1.msra.mxu0 0.0
    %4751 = vmatprep.subr.mxu0 0.0
    %4752 = vmatpush1.msra.mxu0 0.0
    %4753 = vmatprep.subr.mxu0 0.0
    %4754 = vmatpush1.msra.mxu0 0.0
    %4755 = vmatprep.subr.mxu0 0.0
    %4756 = vmatpush1.msra.mxu0 0.0
    %4757 = vmatprep.subr.mxu0 0.0
    %4758 = vmatpush1.msra.mxu0 0.0
    %4759 = vmatprep.mubr.f32.mxu0 0.0
    %4760 = vmatmul.mubr.f32.gmra.mrb[0].mxu0 %v4684
    %v4761 = vpop.f32.mrb[0].mxu0
    %v4762 = vadd.f32 0.0, %v4761
    %v4763 = vpop.f32.mrb[0].mxu0
    %4764 = vmatprep.mubr.f32.mxu0 0.0
    %4765 = vmatmul.mubr.f32.gmra.mrb[0].mxu0 %v4687
    %v4766 = vpop.f32.mrb[0].mxu0
    %v4767 = vadd.f32 0.0, %v4766
    %v4768 = vpop.f32.mrb[0].mxu0
    %4769 = vmatprep.mubr.f32.mxu0 0.0
    %4770 = vmatmul.mubr.f32.gmra.mrb[0].mxu0 %v4690
    %v4771 = vpop.f32.mrb[0].mxu0
    %v4772 = vadd.f32 0.0, %v4771
    %v4773 = vpop.f32.mrb[0].mxu0
    %4774 = vmatprep.mubr.f32.mxu0 0.0
    %4775 = vmatmul.mubr.f32.gmra.mrb[0].mxu0 %v4693
    %v4776 = vpop.f32.mrb[0].mxu0
    %v4777 = vadd.f32 0.0, %v4776
    %v4778 = vpop.f32.mrb[0].mxu0
    %4779 = vdwg.mxu0
    %4780 = vrot.lane.b32.xlu0 %v4205, 112
    %v4781 = vpop.permute.xlu0 %4780
    %4782 = vrot.lane.b32.xlu0 %v4210, 112
    %v4783 = vpop.permute.xlu0 %4782
    %4784 = vrot.lane.b32.xlu0 %v4215, 112
    %v4785 = vpop.permute.xlu0 %4784
    %4786 = vrot.lane.b32.xlu0 %v4220, 112
    %v4787 = vpop.permute.xlu0 %4786
    %4788 = vrot.lane.b32.xlu0 %v4205, 80
    %v4789 = vpop.permute.xlu0 %4788
    %4790 = vrot.lane.b32.xlu0 %v4210, 80
    %v4791 = vpop.permute.xlu0 %4790
    %4792 = vrot.lane.b32.xlu0 %v4215, 80
    %v4793 = vpop.permute.xlu0 %4792
    %4794 = vrot.lane.b32.xlu0 %v4220, 80
    %v4795 = vpop.permute.xlu0 %4794
    %v4796 = vsel %vm469, %v4781, 0
    %v4798 = vsel %vm469, %v4783, 0
    %v4800 = vsel %vm469, %v4785, 0
    %v4802 = vsel %vm469, %v4787, 0
    %v4804 = vsel %vm469, %v4789, 0
    %v4806 = vsel %vm469, %v4791, 0
    %v4808 = vsel %vm469, %v4793, 0
    %v4810 = vsel %vm469, %v4795, 0
    %4812 = vmatprep.subr.mxu0 0.0
    %4813 = vmatpush1.xpose.msra.mxu0 %v4804
    %4814 = vmatprep.subr.mxu0 0.0
    %4815 = vmatpush1.xpose.msra.mxu0 %v4806
    %4816 = vmatprep.subr.mxu0 0.0
    %4817 = vmatpush1.xpose.msra.mxu0 %v4808
    %4818 = vmatprep.subr.mxu0 0.0
    %4819 = vmatpush1.xpose.msra.mxu0 %v4810
    %4820 = vmatprep.subr.mxu0 0.0
    %4821 = vmatpush1.xpose.msra.mxu0 0.0
    %4822 = vmatprep.subr.mxu0 0.0
    %4823 = vmatpush1.xpose.msra.mxu0 0.0
    %4824 = vmatprep.subr.mxu0 0.0
    %4825 = vmatpush1.xpose.msra.mxu0 0.0
    %4826 = vmatprep.subr.mxu0 0.0
    %4827 = vmatpush1.xpose.msra.mxu0 0.0
    %4828 = vmatprep.subr.mxu0 0.0
    %4829 = vmatpush1.xpose.msra.mxu0 0.0
    %4830 = vmatprep.subr.mxu0 0.0
    %4831 = vmatpush1.xpose.msra.mxu0 0.0
    %4832 = vmatprep.subr.mxu0 0.0
    %4833 = vmatpush1.xpose.msra.mxu0 0.0
    %4834 = vmatprep.subr.mxu0 0.0
    %4835 = vmatpush1.xpose.msra.mxu0 0.0
    %4836 = vmatprep.subr.mxu0 0.0
    %4837 = vmatpush1.xpose.msra.mxu0 0.0
    %4838 = vmatprep.subr.mxu0 0.0
    %4839 = vmatpush1.xpose.msra.mxu0 0.0
    %4840 = vmatprep.subr.mxu0 0.0
    %4841 = vmatpush1.xpose.msra.mxu0 0.0
    %4842 = vmatprep.subr.mxu0 0.0
    %4843 = vmatpush1.xpose.msra.mxu0 0.0
    %4844 = vmatprep.subr.mxu0 0.0
    %4845 = vmatpush1.xpose.msra.mxu0 0.0
    %4846 = vmatprep.subr.mxu0 0.0
    %4847 = vmatpush1.xpose.msra.mxu0 0.0
    %4848 = vmatprep.subr.mxu0 0.0
    %4849 = vmatpush1.xpose.msra.mxu0 0.0
    %4850 = vmatprep.subr.mxu0 0.0
    %4851 = vmatpush1.xpose.msra.mxu0 0.0
    %4852 = vmatprep.subr.mxu0 0.0
    %4853 = vmatpush1.xpose.msra.mxu0 0.0
    %4854 = vmatprep.subr.mxu0 0.0
    %4855 = vmatpush1.xpose.msra.mxu0 0.0
    %4856 = vmatprep.subr.mxu0 0.0
    %4857 = vmatpush1.xpose.msra.mxu0 0.0
    %4858 = vmatprep.subr.mxu0 0.0
    %4859 = vmatpush1.xpose.msra.mxu0 0.0
    %4860 = vmatprep.subr.mxu0 0.0
    %4861 = vmatpush1.xpose.msra.mxu0 0.0
    %4862 = vmatprep.subr.mxu0 0.0
    %4863 = vmatpush1.xpose.msra.mxu0 0.0
    %4864 = vmatprep.subr.mxu0 0.0
    %4865 = vmatpush1.xpose.msra.mxu0 0.0
    %4866 = vmatprep.subr.mxu0 0.0
    %4867 = vmatpush1.xpose.msra.mxu0 0.0
    %4868 = vmatprep.subr.mxu0 0.0
    %4869 = vmatpush1.xpose.msra.mxu0 0.0
    %4870 = vmatprep.subr.mxu0 0.0
    %4871 = vmatpush1.xpose.msra.mxu0 0.0
    %4872 = vmatprep.subr.mxu0 0.0
    %4873 = vmatpush1.xpose.msra.mxu0 0.0
    %4874 = vmatprep.subr.mxu0 0.0
    %4875 = vmatpush1.xpose.msra.mxu0 0.0
    %4876 = vmatprep.mubr.f32.mxu0 0.0
    %4877 = vmatmul.mubr.f32.gmra.mrb[0].mxu0 %v4796
    %v4878 = vpop.f32.mrb[0].mxu0
    %v4879 = vadd.f32 0.0, %v4878
    %v4880 = vpop.f32.mrb[0].mxu0
    %4881 = vmatprep.mubr.f32.mxu0 0.0
    %4882 = vmatmul.mubr.f32.gmra.mrb[0].mxu0 %v4798
    %v4883 = vpop.f32.mrb[0].mxu0
    %v4884 = vadd.f32 0.0, %v4883
    %v4885 = vpop.f32.mrb[0].mxu0
    %4886 = vmatprep.mubr.f32.mxu0 0.0
    %4887 = vmatmul.mubr.f32.gmra.mrb[0].mxu0 %v4800
    %v4888 = vpop.f32.mrb[0].mxu0
    %v4889 = vadd.f32 0.0, %v4888
    %v4890 = vpop.f32.mrb[0].mxu0
    %4891 = vmatprep.mubr.f32.mxu0 0.0
    %4892 = vmatmul.mubr.f32.gmra.mrb[0].mxu0 %v4802
    %v4893 = vpop.f32.mrb[0].mxu0
    %v4894 = vadd.f32 0.0, %v4893
    %v4895 = vpop.f32.mrb[0].mxu0
    %4896 = vdwg.mxu0
    %v4897 = vmul.f32 %v4879, 0.35355338
    %v4898 = vmul.f32 %v4884, 0.35355338
    %v4899 = vmul.f32 %v4889, 0.35355338
    %v4900 = vmul.f32 %v4894, 0.35355338
    %v4901 = vadd.f32 %v4897, %v117
    %v4902 = vadd.f32 %v4898, %v118
    %v4903 = vadd.f32 %v4899, %v119
    %v4904 = vadd.f32 %v4900, %v120
    %v4905 = vsel %vm354, %v4901, -inf
    %4906 = vmax.xlane.f32.xlu0 %v4905
    %v4907 = vpop.xlane.xlu0 %4906
    %v4908 = vsel %vm354, %v4902, -inf
    %4909 = vmax.xlane.f32.xlu0 %v4908
    %v4910 = vpop.xlane.xlu0 %4909
    %v4911 = vsel %vm354, %v4903, -inf
    %4912 = vmax.xlane.f32.xlu0 %v4911
    %v4913 = vpop.xlane.xlu0 %4912
    %v4914 = vsel %vm354, %v4904, -inf
    %4915 = vmax.xlane.f32.xlu0 %v4914
    %v4916 = vpop.xlane.xlu0 %4915
    %v4917 = vsub.f32 %v4901, %v4907
    %v4918 = vsub.f32 %v4902, %v4910
    %v4919 = vsub.f32 %v4903, %v4913
    %v4920 = vsub.f32 %v4904, %v4916
    %v4921 = vmul.f32 %v4917, 1.442695
    %v4922 = vpow.pop %v4921
    %v4923 = vmul.f32 %v4918, 1.442695
    %v4924 = vpow.pop %v4923
    %v4925 = vmul.f32 %v4919, 1.442695
    %v4926 = vpow.pop %v4925
    %v4927 = vmul.f32 %v4920, 1.442695
    %v4928 = vpow.pop %v4927
    %v4929 = vsel %vm354, %v4922, 0.0
    %4930 = vadd.xlane.f32.xlu0 %v4929
    %v4931 = vpop.xlane.xlu0 %4930
    %v4932 = vsel %vm354, %v4924, 0.0
    %4933 = vadd.xlane.f32.xlu0 %v4932
    %v4934 = vpop.xlane.xlu0 %4933
    %v4935 = vsel %vm354, %v4926, 0.0
    %4936 = vadd.xlane.f32.xlu0 %v4935
    %v4937 = vpop.xlane.xlu0 %4936
    %v4938 = vsel %vm354, %v4928, 0.0
    %4939 = vadd.xlane.f32.xlu0 %v4938
    %v4940 = vpop.xlane.xlu0 %4939
    %v4941 = vrcp.pop %v4931
    %v4942 = vrcp.pop %v4934
    %v4943 = vrcp.pop %v4937
    %v4944 = vrcp.pop %v4940
    %v4945 = vmul.f32 %v4922, %v4941
    %v4946 = vmul.f32 %v4924, %v4942
    %v4947 = vmul.f32 %v4926, %v4943
    %v4948 = vmul.f32 %v4928, %v4944
    %4949 = vrot.lane.b32.xlu0 %v4205, 48
    %v4950 = vpop.permute.xlu0 %4949
    %4951 = vrot.lane.b32.xlu0 %v4210, 48
    %v4952 = vpop.permute.xlu0 %4951
    %4953 = vrot.lane.b32.xlu0 %v4215, 48
    %v4954 = vpop.permute.xlu0 %4953
    %4955 = vrot.lane.b32.xlu0 %v4220, 48
    %v4956 = vpop.permute.xlu0 %4955
    %v4962 = vsel %vm354, %v4945, 0
    %v4965 = vsel %vm354, %v4946, 0
    %v4968 = vsel %vm354, %v4947, 0
    %v4971 = vsel %vm354, %v4948, 0
    %4973 = vmatprep.subr.mxu0 0.0
    %4974 = vmatpush1.msra.mxu0 %v4950
    %4975 = vmatprep.subr.mxu0 0.0
    %4976 = vmatpush1.msra.mxu0 %v4952
    %4977 = vmatprep.subr.mxu0 0.0
    %4978 = vmatpush1.msra.mxu0 %v4954
    %4979 = vmatprep.subr.mxu0 0.0
    %4980 = vmatpush1.msra.mxu0 %v4956
    %4981 = vmatprep.subr.mxu0 0.0
    %4982 = vmatpush1.msra.mxu0 0.0
    %4983 = vmatprep.subr.mxu0 0.0
    %4984 = vmatpush1.msra.mxu0 0.0
    %4985 = vmatprep.subr.mxu0 0.0
    %4986 = vmatpush1.msra.mxu0 0.0
    %4987 = vmatprep.subr.mxu0 0.0
    %4988 = vmatpush1.msra.mxu0 0.0
    %4989 = vmatprep.subr.mxu0 0.0
    %4990 = vmatpush1.msra.mxu0 0.0
    %4991 = vmatprep.subr.mxu0 0.0
    %4992 = vmatpush1.msra.mxu0 0.0
    %4993 = vmatprep.subr.mxu0 0.0
    %4994 = vmatpush1.msra.mxu0 0.0
    %4995 = vmatprep.subr.mxu0 0.0
    %4996 = vmatpush1.msra.mxu0 0.0
    %4997 = vmatprep.subr.mxu0 0.0
    %4998 = vmatpush1.msra.mxu0 0.0
    %4999 = vmatprep.subr.mxu0 0.0
    %5000 = vmatpush1.msra.mxu0 0.0
    %5001 = vmatprep.subr.mxu0 0.0
    %5002 = vmatpush1.msra.mxu0 0.0
    %5003 = vmatprep.subr.mxu0 0.0
    %5004 = vmatpush1.msra.mxu0 0.0
    %5005 = vmatprep.subr.mxu0 0.0
    %5006 = vmatpush1.msra.mxu0 0.0
    %5007 = vmatprep.subr.mxu0 0.0
    %5008 = vmatpush1.msra.mxu0 0.0
    %5009 = vmatprep.subr.mxu0 0.0
    %5010 = vmatpush1.msra.mxu0 0.0
    %5011 = vmatprep.subr.mxu0 0.0
    %5012 = vmatpush1.msra.mxu0 0.0
    %5013 = vmatprep.subr.mxu0 0.0
    %5014 = vmatpush1.msra.mxu0 0.0
    %5015 = vmatprep.subr.mxu0 0.0
    %5016 = vmatpush1.msra.mxu0 0.0
    %5017 = vmatprep.subr.mxu0 0.0
    %5018 = vmatpush1.msra.mxu0 0.0
    %5019 = vmatprep.subr.mxu0 0.0
    %5020 = vmatpush1.msra.mxu0 0.0
    %5021 = vmatprep.subr.mxu0 0.0
    %5022 = vmatpush1.msra.mxu0 0.0
    %5023 = vmatprep.subr.mxu0 0.0
    %5024 = vmatpush1.msra.mxu0 0.0
    %5025 = vmatprep.subr.mxu0 0.0
    %5026 = vmatpush1.msra.mxu0 0.0
    %5027 = vmatprep.subr.mxu0 0.0
    %5028 = vmatpush1.msra.mxu0 0.0
    %5029 = vmatprep.subr.mxu0 0.0
    %5030 = vmatpush1.msra.mxu0 0.0
    %5031 = vmatprep.subr.mxu0 0.0
    %5032 = vmatpush1.msra.mxu0 0.0
    %5033 = vmatprep.subr.mxu0 0.0
    %5034 = vmatpush1.msra.mxu0 0.0
    %5035 = vmatprep.subr.mxu0 0.0
    %5036 = vmatpush1.msra.mxu0 0.0
    %5037 = vmatprep.mubr.f32.mxu0 0.0
    %5038 = vmatmul.mubr.f32.gmra.mrb[0].mxu0 %v4962
    %v5039 = vpop.f32.mrb[0].mxu0
    %v5040 = vadd.f32 0.0, %v5039
    %v5041 = vpop.f32.mrb[0].mxu0
    %5042 = vmatprep.mubr.f32.mxu0 0.0
    %5043 = vmatmul.mubr.f32.gmra.mrb[0].mxu0 %v4965
    %v5044 = vpop.f32.mrb[0].mxu0
    %v5045 = vadd.f32 0.0, %v5044
    %v5046 = vpop.f32.mrb[0].mxu0
    %5047 = vmatprep.mubr.f32.mxu0 0.0
    %5048 = vmatmul.mubr.f32.gmra.mrb[0].mxu0 %v4968
    %v5049 = vpop.f32.mrb[0].mxu0
    %v5050 = vadd.f32 0.0, %v5049
    %v5051 = vpop.f32.mrb[0].mxu0
    %5052 = vmatprep.mubr.f32.mxu0 0.0
    %5053 = vmatmul.mubr.f32.gmra.mrb[0].mxu0 %v4971
    %v5054 = vpop.f32.mrb[0].mxu0
    %v5055 = vadd.f32 0.0, %v5054
    %v5056 = vpop.f32.mrb[0].mxu0
    %5057 = vdwg.mxu0
    %5058 = vrot.lane.b32.xlu0 %v4205, 104
    %v5059 = vpop.permute.xlu0 %5058
    %5060 = vrot.lane.b32.xlu0 %v4210, 104
    %v5061 = vpop.permute.xlu0 %5060
    %5062 = vrot.lane.b32.xlu0 %v4215, 104
    %v5063 = vpop.permute.xlu0 %5062
    %5064 = vrot.lane.b32.xlu0 %v4220, 104
    %v5065 = vpop.permute.xlu0 %5064
    %5066 = vrot.lane.b32.xlu0 %v4205, 72
    %v5067 = vpop.permute.xlu0 %5066
    %5068 = vrot.lane.b32.xlu0 %v4210, 72
    %v5069 = vpop.permute.xlu0 %5068
    %5070 = vrot.lane.b32.xlu0 %v4215, 72
    %v5071 = vpop.permute.xlu0 %5070
    %5072 = vrot.lane.b32.xlu0 %v4220, 72
    %v5073 = vpop.permute.xlu0 %5072
    %v5074 = vsel %vm469, %v5059, 0
    %v5076 = vsel %vm469, %v5061, 0
    %v5078 = vsel %vm469, %v5063, 0
    %v5080 = vsel %vm469, %v5065, 0
    %v5082 = vsel %vm469, %v5067, 0
    %v5084 = vsel %vm469, %v5069, 0
    %v5086 = vsel %vm469, %v5071, 0
    %v5088 = vsel %vm469, %v5073, 0
    %5090 = vmatprep.subr.mxu0 0.0
    %5091 = vmatpush1.xpose.msra.mxu0 %v5082
    %5092 = vmatprep.subr.mxu0 0.0
    %5093 = vmatpush1.xpose.msra.mxu0 %v5084
    %5094 = vmatprep.subr.mxu0 0.0
    %5095 = vmatpush1.xpose.msra.mxu0 %v5086
    %5096 = vmatprep.subr.mxu0 0.0
    %5097 = vmatpush1.xpose.msra.mxu0 %v5088
    %5098 = vmatprep.subr.mxu0 0.0
    %5099 = vmatpush1.xpose.msra.mxu0 0.0
    %5100 = vmatprep.subr.mxu0 0.0
    %5101 = vmatpush1.xpose.msra.mxu0 0.0
    %5102 = vmatprep.subr.mxu0 0.0
    %5103 = vmatpush1.xpose.msra.mxu0 0.0
    %5104 = vmatprep.subr.mxu0 0.0
    %5105 = vmatpush1.xpose.msra.mxu0 0.0
    %5106 = vmatprep.subr.mxu0 0.0
    %5107 = vmatpush1.xpose.msra.mxu0 0.0
    %5108 = vmatprep.subr.mxu0 0.0
    %5109 = vmatpush1.xpose.msra.mxu0 0.0
    %5110 = vmatprep.subr.mxu0 0.0
    %5111 = vmatpush1.xpose.msra.mxu0 0.0
    %5112 = vmatprep.subr.mxu0 0.0
    %5113 = vmatpush1.xpose.msra.mxu0 0.0
    %5114 = vmatprep.subr.mxu0 0.0
    %5115 = vmatpush1.xpose.msra.mxu0 0.0
    %5116 = vmatprep.subr.mxu0 0.0
    %5117 = vmatpush1.xpose.msra.mxu0 0.0
    %5118 = vmatprep.subr.mxu0 0.0
    %5119 = vmatpush1.xpose.msra.mxu0 0.0
    %5120 = vmatprep.subr.mxu0 0.0
    %5121 = vmatpush1.xpose.msra.mxu0 0.0
    %5122 = vmatprep.subr.mxu0 0.0
    %5123 = vmatpush1.xpose.msra.mxu0 0.0
    %5124 = vmatprep.subr.mxu0 0.0
    %5125 = vmatpush1.xpose.msra.mxu0 0.0
    %5126 = vmatprep.subr.mxu0 0.0
    %5127 = vmatpush1.xpose.msra.mxu0 0.0
    %5128 = vmatprep.subr.mxu0 0.0
    %5129 = vmatpush1.xpose.msra.mxu0 0.0
    %5130 = vmatprep.subr.mxu0 0.0
    %5131 = vmatpush1.xpose.msra.mxu0 0.0
    %5132 = vmatprep.subr.mxu0 0.0
    %5133 = vmatpush1.xpose.msra.mxu0 0.0
    %5134 = vmatprep.subr.mxu0 0.0
    %5135 = vmatpush1.xpose.msra.mxu0 0.0
    %5136 = vmatprep.subr.mxu0 0.0
    %5137 = vmatpush1.xpose.msra.mxu0 0.0
    %5138 = vmatprep.subr.mxu0 0.0
    %5139 = vmatpush1.xpose.msra.mxu0 0.0
    %5140 = vmatprep.subr.mxu0 0.0
    %5141 = vmatpush1.xpose.msra.mxu0 0.0
    %5142 = vmatprep.subr.mxu0 0.0
    %5143 = vmatpush1.xpose.msra.mxu0 0.0
    %5144 = vmatprep.subr.mxu0 0.0
    %5145 = vmatpush1.xpose.msra.mxu0 0.0
    %5146 = vmatprep.subr.mxu0 0.0
    %5147 = vmatpush1.xpose.msra.mxu0 0.0
    %5148 = vmatprep.subr.mxu0 0.0
    %5149 = vmatpush1.xpose.msra.mxu0 0.0
    %5150 = vmatprep.subr.mxu0 0.0
    %5151 = vmatpush1.xpose.msra.mxu0 0.0
    %5152 = vmatprep.subr.mxu0 0.0
    %5153 = vmatpush1.xpose.msra.mxu0 0.0
    %5154 = vmatprep.mubr.f32.mxu0 0.0
    %5155 = vmatmul.mubr.f32.gmra.mrb[0].mxu0 %v5074
    %v5156 = vpop.f32.mrb[0].mxu0
    %v5157 = vadd.f32 0.0, %v5156
    %v5158 = vpop.f32.mrb[0].mxu0
    %5159 = vmatprep.mubr.f32.mxu0 0.0
    %5160 = vmatmul.mubr.f32.gmra.mrb[0].mxu0 %v5076
    %v5161 = vpop.f32.mrb[0].mxu0
    %v5162 = vadd.f32 0.0, %v5161
    %v5163 = vpop.f32.mrb[0].mxu0
    %5164 = vmatprep.mubr.f32.mxu0 0.0
    %5165 = vmatmul.mubr.f32.gmra.mrb[0].mxu0 %v5078
    %v5166 = vpop.f32.mrb[0].mxu0
    %v5167 = vadd.f32 0.0, %v5166
    %v5168 = vpop.f32.mrb[0].mxu0
    %5169 = vmatprep.mubr.f32.mxu0 0.0
    %5170 = vmatmul.mubr.f32.gmra.mrb[0].mxu0 %v5080
    %v5171 = vpop.f32.mrb[0].mxu0
    %v5172 = vadd.f32 0.0, %v5171
    %v5173 = vpop.f32.mrb[0].mxu0
    %5174 = vdwg.mxu0
    %v5175 = vmul.f32 %v5157, 0.35355338
    %v5176 = vmul.f32 %v5162, 0.35355338
    %v5177 = vmul.f32 %v5167, 0.35355338
    %v5178 = vmul.f32 %v5172, 0.35355338
    %v5179 = vadd.f32 %v5175, %v117
    %v5180 = vadd.f32 %v5176, %v118
    %v5181 = vadd.f32 %v5177, %v119
    %v5182 = vadd.f32 %v5178, %v120
    %v5183 = vsel %vm354, %v5179, -inf
    %5184 = vmax.xlane.f32.xlu0 %v5183
    %v5185 = vpop.xlane.xlu0 %5184
    %v5186 = vsel %vm354, %v5180, -inf
    %5187 = vmax.xlane.f32.xlu0 %v5186
    %v5188 = vpop.xlane.xlu0 %5187
    %v5189 = vsel %vm354, %v5181, -inf
    %5190 = vmax.xlane.f32.xlu0 %v5189
    %v5191 = vpop.xlane.xlu0 %5190
    %v5192 = vsel %vm354, %v5182, -inf
    %5193 = vmax.xlane.f32.xlu0 %v5192
    %v5194 = vpop.xlane.xlu0 %5193
    %v5195 = vsub.f32 %v5179, %v5185
    %v5196 = vsub.f32 %v5180, %v5188
    %v5197 = vsub.f32 %v5181, %v5191
    %v5198 = vsub.f32 %v5182, %v5194
    %v5199 = vmul.f32 %v5195, 1.442695
    %v5200 = vpow.pop %v5199
    %v5201 = vmul.f32 %v5196, 1.442695
    %v5202 = vpow.pop %v5201
    %v5203 = vmul.f32 %v5197, 1.442695
    %v5204 = vpow.pop %v5203
    %v5205 = vmul.f32 %v5198, 1.442695
    %v5206 = vpow.pop %v5205
    %v5207 = vsel %vm354, %v5200, 0.0
    %5208 = vadd.xlane.f32.xlu0 %v5207
    %v5209 = vpop.xlane.xlu0 %5208
    %v5210 = vsel %vm354, %v5202, 0.0
    %5211 = vadd.xlane.f32.xlu0 %v5210
    %v5212 = vpop.xlane.xlu0 %5211
    %v5213 = vsel %vm354, %v5204, 0.0
    %5214 = vadd.xlane.f32.xlu0 %v5213
    %v5215 = vpop.xlane.xlu0 %5214
    %v5216 = vsel %vm354, %v5206, 0.0
    %5217 = vadd.xlane.f32.xlu0 %v5216
    %v5218 = vpop.xlane.xlu0 %5217
    %v5219 = vrcp.pop %v5209
    %v5220 = vrcp.pop %v5212
    %v5221 = vrcp.pop %v5215
    %v5222 = vrcp.pop %v5218
    %v5223 = vmul.f32 %v5200, %v5219
    %v5224 = vmul.f32 %v5202, %v5220
    %v5225 = vmul.f32 %v5204, %v5221
    %v5226 = vmul.f32 %v5206, %v5222
    %5227 = vrot.lane.b32.xlu0 %v4205, 40
    %v5228 = vpop.permute.xlu0 %5227
    %5229 = vrot.lane.b32.xlu0 %v4210, 40
    %v5230 = vpop.permute.xlu0 %5229
    %5231 = vrot.lane.b32.xlu0 %v4215, 40
    %v5232 = vpop.permute.xlu0 %5231
    %5233 = vrot.lane.b32.xlu0 %v4220, 40
    %v5234 = vpop.permute.xlu0 %5233
    %v5240 = vsel %vm354, %v5223, 0
    %v5243 = vsel %vm354, %v5224, 0
    %v5246 = vsel %vm354, %v5225, 0
    %v5249 = vsel %vm354, %v5226, 0
    %5251 = vmatprep.subr.mxu0 0.0
    %5252 = vmatpush1.msra.mxu0 %v5228
    %5253 = vmatprep.subr.mxu0 0.0
    %5254 = vmatpush1.msra.mxu0 %v5230
    %5255 = vmatprep.subr.mxu0 0.0
    %5256 = vmatpush1.msra.mxu0 %v5232
    %5257 = vmatprep.subr.mxu0 0.0
    %5258 = vmatpush1.msra.mxu0 %v5234
    %5259 = vmatprep.subr.mxu0 0.0
    %5260 = vmatpush1.msra.mxu0 0.0
    %5261 = vmatprep.subr.mxu0 0.0
    %5262 = vmatpush1.msra.mxu0 0.0
    %5263 = vmatprep.subr.mxu0 0.0
    %5264 = vmatpush1.msra.mxu0 0.0
    %5265 = vmatprep.subr.mxu0 0.0
    %5266 = vmatpush1.msra.mxu0 0.0
    %5267 = vmatprep.subr.mxu0 0.0
    %5268 = vmatpush1.msra.mxu0 0.0
    %5269 = vmatprep.subr.mxu0 0.0
    %5270 = vmatpush1.msra.mxu0 0.0
    %5271 = vmatprep.subr.mxu0 0.0
    %5272 = vmatpush1.msra.mxu0 0.0
    %5273 = vmatprep.subr.mxu0 0.0
    %5274 = vmatpush1.msra.mxu0 0.0
    %5275 = vmatprep.subr.mxu0 0.0
    %5276 = vmatpush1.msra.mxu0 0.0
    %5277 = vmatprep.subr.mxu0 0.0
    %5278 = vmatpush1.msra.mxu0 0.0
    %5279 = vmatprep.subr.mxu0 0.0
    %5280 = vmatpush1.msra.mxu0 0.0
    %5281 = vmatprep.subr.mxu0 0.0
    %5282 = vmatpush1.msra.mxu0 0.0
    %5283 = vmatprep.subr.mxu0 0.0
    %5284 = vmatpush1.msra.mxu0 0.0
    %5285 = vmatprep.subr.mxu0 0.0
    %5286 = vmatpush1.msra.mxu0 0.0
    %5287 = vmatprep.subr.mxu0 0.0
    %5288 = vmatpush1.msra.mxu0 0.0
    %5289 = vmatprep.subr.mxu0 0.0
    %5290 = vmatpush1.msra.mxu0 0.0
    %5291 = vmatprep.subr.mxu0 0.0
    %5292 = vmatpush1.msra.mxu0 0.0
    %5293 = vmatprep.subr.mxu0 0.0
    %5294 = vmatpush1.msra.mxu0 0.0
    %5295 = vmatprep.subr.mxu0 0.0
    %5296 = vmatpush1.msra.mxu0 0.0
    %5297 = vmatprep.subr.mxu0 0.0
    %5298 = vmatpush1.msra.mxu0 0.0
    %5299 = vmatprep.subr.mxu0 0.0
    %5300 = vmatpush1.msra.mxu0 0.0
    %5301 = vmatprep.subr.mxu0 0.0
    %5302 = vmatpush1.msra.mxu0 0.0
    %5303 = vmatprep.subr.mxu0 0.0
    %5304 = vmatpush1.msra.mxu0 0.0
    %5305 = vmatprep.subr.mxu0 0.0
    %5306 = vmatpush1.msra.mxu0 0.0
    %5307 = vmatprep.subr.mxu0 0.0
    %5308 = vmatpush1.msra.mxu0 0.0
    %5309 = vmatprep.subr.mxu0 0.0
    %5310 = vmatpush1.msra.mxu0 0.0
    %5311 = vmatprep.subr.mxu0 0.0
    %5312 = vmatpush1.msra.mxu0 0.0
    %5313 = vmatprep.subr.mxu0 0.0
    %5314 = vmatpush1.msra.mxu0 0.0
    %5315 = vmatprep.mubr.f32.mxu0 0.0
    %5316 = vmatmul.mubr.f32.gmra.mrb[0].mxu0 %v5240
    %v5317 = vpop.f32.mrb[0].mxu0
    %v5318 = vadd.f32 0.0, %v5317
    %v5319 = vpop.f32.mrb[0].mxu0
    %5320 = vmatprep.mubr.f32.mxu0 0.0
    %5321 = vmatmul.mubr.f32.gmra.mrb[0].mxu0 %v5243
    %v5322 = vpop.f32.mrb[0].mxu0
    %v5323 = vadd.f32 0.0, %v5322
    %v5324 = vpop.f32.mrb[0].mxu0
    %5325 = vmatprep.mubr.f32.mxu0 0.0
    %5326 = vmatmul.mubr.f32.gmra.mrb[0].mxu0 %v5246
    %v5327 = vpop.f32.mrb[0].mxu0
    %v5328 = vadd.f32 0.0, %v5327
    %v5329 = vpop.f32.mrb[0].mxu0
    %5330 = vmatprep.mubr.f32.mxu0 0.0
    %5331 = vmatmul.mubr.f32.gmra.mrb[0].mxu0 %v5249
    %v5332 = vpop.f32.mrb[0].mxu0
    %v5333 = vadd.f32 0.0, %v5332
    %v5334 = vpop.f32.mrb[0].mxu0
    %5335 = vdwg.mxu0
    %5340 = vrot.lane.b32.xlu0 %v4762, 8
    %v5341 = vpop.permute.xlu0 %5340
    %5342 = vrot.lane.b32.xlu0 %v4767, 8
    %v5343 = vpop.permute.xlu0 %5342
    %5344 = vrot.lane.b32.xlu0 %v4772, 8
    %v5345 = vpop.permute.xlu0 %5344
    %5346 = vrot.lane.b32.xlu0 %v4777, 8
    %v5347 = vpop.permute.xlu0 %5346
    %5356 = vrot.lane.b32.xlu0 %v5040, 16
    %v5357 = vpop.permute.xlu0 %5356
    %5358 = vrot.lane.b32.xlu0 %v5045, 16
    %v5359 = vpop.permute.xlu0 %5358
    %5360 = vrot.lane.b32.xlu0 %v5050, 16
    %v5361 = vpop.permute.xlu0 %5360
    %5362 = vrot.lane.b32.xlu0 %v5055, 16
    %v5363 = vpop.permute.xlu0 %5362
    %5372 = vrot.lane.b32.xlu0 %v5318, 24
    %v5373 = vpop.permute.xlu0 %5372
    %5374 = vrot.lane.b32.xlu0 %v5323, 24
    %v5375 = vpop.permute.xlu0 %5374
    %5376 = vrot.lane.b32.xlu0 %v5328, 24
    %v5377 = vpop.permute.xlu0 %5376
    %5378 = vrot.lane.b32.xlu0 %v5333, 24
    %v5379 = vpop.permute.xlu0 %5378
    %v5384 = vsel %vm469, %v4484, %v5341
    %v5385 = vsel %vm469, %v4489, %v5343
    %v5386 = vsel %vm469, %v4494, %v5345
    %v5387 = vsel %vm469, %v4499, %v5347
    %v5388 = vsel %vm1618, %v5384, %v5357
    %v5389 = vsel %vm1618, %v5385, %v5359
    %v5390 = vsel %vm1618, %v5386, %v5361
    %v5391 = vsel %vm1618, %v5387, %v5363
    %v5392 = vsel %vm1623, %v5388, %v5373
    %v5393 = vsel %vm1623, %v5389, %v5375
    %v5394 = vsel %vm1623, %v5390, %v5377
    %v5395 = vsel %vm1623, %v5391, %v5379
    %v5396 = vlaneseq
    %v5397 = vshrl.u32 %v5396, 7
    %v5398 = vsub.s32 0, %v5397
    %v5399 = vrot.slane %v4227, %v5398
    %v5401 = vsel %vm354, %v5392, 0
    %v5404 = vsel %vm354, %v5393, 0
    %v5407 = vsel %vm354, %v5394, 0
    %v5410 = vsel %vm354, %v5395, 0
    %5412 = vmatprep.subr.mxu0 0.0
    %5413 = vmatpush1.msra.mxu0 %v4223
    %5414 = vmatprep.subr.mxu0 0.0
    %5415 = vmatpush1.msra.mxu0 %v4224
    %5416 = vmatprep.subr.mxu0 0.0
    %5417 = vmatpush1.msra.mxu0 %v4225
    %5418 = vmatprep.subr.mxu0 0.0
    %5419 = vmatpush1.msra.mxu0 %v4226
    %5420 = vmatprep.subr.mxu0 0.0
    %5421 = vmatpush1.msra.mxu0 0.0
    %5422 = vmatprep.subr.mxu0 0.0
    %5423 = vmatpush1.msra.mxu0 0.0
    %5424 = vmatprep.subr.mxu0 0.0
    %5425 = vmatpush1.msra.mxu0 0.0
    %5426 = vmatprep.subr.mxu0 0.0
    %5427 = vmatpush1.msra.mxu0 0.0
    %5428 = vmatprep.subr.mxu0 0.0
    %5429 = vmatpush1.msra.mxu0 0.0
    %5430 = vmatprep.subr.mxu0 0.0
    %5431 = vmatpush1.msra.mxu0 0.0
    %5432 = vmatprep.subr.mxu0 0.0
    %5433 = vmatpush1.msra.mxu0 0.0
    %5434 = vmatprep.subr.mxu0 0.0
    %5435 = vmatpush1.msra.mxu0 0.0
    %5436 = vmatprep.subr.mxu0 0.0
    %5437 = vmatpush1.msra.mxu0 0.0
    %5438 = vmatprep.subr.mxu0 0.0
    %5439 = vmatpush1.msra.mxu0 0.0
    %5440 = vmatprep.subr.mxu0 0.0
    %5441 = vmatpush1.msra.mxu0 0.0
    %5442 = vmatprep.subr.mxu0 0.0
    %5443 = vmatpush1.msra.mxu0 0.0
    %5444 = vmatprep.subr.mxu0 0.0
    %5445 = vmatpush1.msra.mxu0 0.0
    %5446 = vmatprep.subr.mxu0 0.0
    %5447 = vmatpush1.msra.mxu0 0.0
    %5448 = vmatprep.subr.mxu0 0.0
    %5449 = vmatpush1.msra.mxu0 0.0
    %5450 = vmatprep.subr.mxu0 0.0
    %5451 = vmatpush1.msra.mxu0 0.0
    %5452 = vmatprep.subr.mxu0 0.0
    %5453 = vmatpush1.msra.mxu0 0.0
    %5454 = vmatprep.subr.mxu0 0.0
    %5455 = vmatpush1.msra.mxu0 0.0
    %5456 = vmatprep.subr.mxu0 0.0
    %5457 = vmatpush1.msra.mxu0 0.0
    %5458 = vmatprep.subr.mxu0 0.0
    %5459 = vmatpush1.msra.mxu0 0.0
    %5460 = vmatprep.subr.mxu0 0.0
    %5461 = vmatpush1.msra.mxu0 0.0
    %5462 = vmatprep.subr.mxu0 0.0
    %5463 = vmatpush1.msra.mxu0 0.0
    %5464 = vmatprep.subr.mxu0 0.0
    %5465 = vmatpush1.msra.mxu0 0.0
    %5466 = vmatprep.subr.mxu0 0.0
    %5467 = vmatpush1.msra.mxu0 0.0
    %5468 = vmatprep.subr.mxu0 0.0
    %5469 = vmatpush1.msra.mxu0 0.0
    %5470 = vmatprep.subr.mxu0 0.0
    %5471 = vmatpush1.msra.mxu0 0.0
    %5472 = vmatprep.subr.mxu0 0.0
    %5473 = vmatpush1.msra.mxu0 0.0
    %5474 = vmatprep.subr.mxu0 0.0
    %5475 = vmatpush1.msra.mxu0 0.0
    %5476 = vmatprep.mubr.f32.mxu0 0.0
    %5477 = vmatmul.mubr.f32.gmra.mrb[0].mxu0 %v5401
    %v5478 = vpop.f32.mrb[0].mxu0
    %v5479 = vadd.f32 %v5399, %v5478
    %v5480 = vpop.f32.mrb[0].mxu0
    %5481 = vmatprep.mubr.f32.mxu0 0.0
    %5482 = vmatmul.mubr.f32.gmra.mrb[0].mxu0 %v5404
    %v5483 = vpop.f32.mrb[0].mxu0
    %v5484 = vadd.f32 %v5399, %v5483
    %v5485 = vpop.f32.mrb[0].mxu0
    %5486 = vmatprep.mubr.f32.mxu0 0.0
    %5487 = vmatmul.mubr.f32.gmra.mrb[0].mxu0 %v5407
    %v5488 = vpop.f32.mrb[0].mxu0
    %v5489 = vadd.f32 %v5399, %v5488
    %v5490 = vpop.f32.mrb[0].mxu0
    %5491 = vmatprep.mubr.f32.mxu0 0.0
    %5492 = vmatmul.mubr.f32.gmra.mrb[0].mxu0 %v5410
    %v5493 = vpop.f32.mrb[0].mxu0
    %v5494 = vadd.f32 %v5399, %v5493
    %v5495 = vpop.f32.mrb[0].mxu0
    %5496 = vdwg.mxu0
    %v5497 = vadd.f32 %v327, %v5479
    %v5498 = vadd.f32 %v332, %v5484
    %v5499 = vadd.f32 %v337, %v5489
    %v5500 = vadd.f32 %v342, %v5494
    %v5501 = vld [vmem:[#allocation2 + $0x338] sm:$0x1]
    %v5502 = vld [vmem:[#allocation2 + $0x340] sm:$0x1]
    %v5503 = vsel %vm354, %v5497, 0.0
    %5504 = vadd.xlane.f32.xlu0 %v5503
    %v5505 = vpop.xlane.xlu0 %5504
    %v5506 = vsel %vm354, %v5498, 0.0
    %5507 = vadd.xlane.f32.xlu0 %v5506
    %v5508 = vpop.xlane.xlu0 %5507
    %v5509 = vsel %vm354, %v5499, 0.0
    %5510 = vadd.xlane.f32.xlu0 %v5509
    %v5511 = vpop.xlane.xlu0 %5510
    %v5512 = vsel %vm354, %v5500, 0.0
    %5513 = vadd.xlane.f32.xlu0 %v5512
    %v5514 = vpop.xlane.xlu0 %5513
    %v5515 = vmul.f32 %v5505, %v1747
    %v5516 = vmul.f32 %v5508, %v1747
    %v5517 = vmul.f32 %v5511, %v1747
    %v5518 = vmul.f32 %v5514, %v1747
    %v5519 = vsub.f32 %v5497, %v5515
    %v5520 = vsub.f32 %v5498, %v5516
    %v5521 = vsub.f32 %v5499, %v5517
    %v5522 = vsub.f32 %v5500, %v5518
    %v5523 = vmul.f32 %v5519, %v5519
    %v5524 = vmul.f32 %v5520, %v5520
    %v5525 = vmul.f32 %v5521, %v5521
    %v5526 = vmul.f32 %v5522, %v5522
    %v5527 = vsel %vm354, %v5523, 0.0
    %5528 = vadd.xlane.f32.xlu0 %v5527
    %v5529 = vpop.xlane.xlu0 %5528
    %v5530 = vsel %vm354, %v5524, 0.0
    %5531 = vadd.xlane.f32.xlu0 %v5530
    %v5532 = vpop.xlane.xlu0 %5531
    %v5533 = vsel %vm354, %v5525, 0.0
    %5534 = vadd.xlane.f32.xlu0 %v5533
    %v5535 = vpop.xlane.xlu0 %5534
    %v5536 = vsel %vm354, %v5526, 0.0
    %5537 = vadd.xlane.f32.xlu0 %v5536
    %v5538 = vpop.xlane.xlu0 %5537
    %v5539 = vmul.f32 %v5529, %v1747
    %v5540 = vmul.f32 %v5532, %v1747
    %v5541 = vmul.f32 %v5535, %v1747
    %v5542 = vmul.f32 %v5538, %v1747
    %v5543 = vadd.f32 %v5539, 1e-05
    %v5544 = vadd.f32 %v5540, 1e-05
    %v5545 = vadd.f32 %v5541, 1e-05
    %v5546 = vadd.f32 %v5542, 1e-05
    %v5547 = vrsqrt.pop %v5543
    %v5548 = vrsqrt.pop %v5544
    %v5549 = vrsqrt.pop %v5545
    %v5550 = vrsqrt.pop %v5546
    %v5551 = vmul.f32 %v5519, %v5547
    %v5552 = vmul.f32 %v5520, %v5548
    %v5553 = vmul.f32 %v5521, %v5549
    %v5554 = vmul.f32 %v5522, %v5550
    %v5555 = vlaneseq
    %v5556 = vshrl.u32 %v5555, 7
    %v5557 = vsub.s32 0, %v5556
    %v5558 = vrot.slane %v5501, %v5557
    %v5559 = vmul.f32 %v5551, %v5558
    %v5560 = vmul.f32 %v5552, %v5558
    %v5561 = vmul.f32 %v5553, %v5558
    %v5562 = vmul.f32 %v5554, %v5558
    %v5563 = vlaneseq
    %v5564 = vshrl.u32 %v5563, 7
    %v5565 = vsub.s32 0, %v5564
    %v5566 = vrot.slane %v5502, %v5565
    %v5567 = vadd.f32 %v5559, %v5566
    %v5568 = vadd.f32 %v5560, %v5566
    %v5569 = vadd.f32 %v5561, %v5566
    %v5570 = vadd.f32 %v5562, %v5566
    %v5571 = vld [vmem:[#allocation2 + $0x250] sm:$0xff]
    %v5572 = vld [vmem:[#allocation2 + $0x258] sm:$0xff]
    %v5573 = vld [vmem:[#allocation2 + $0x260] sm:$0xff]
    %v5574 = vld [vmem:[#allocation2 + $0x268] sm:$0xff]
    %v5575 = vld [vmem:[#allocation2 + $0x270] sm:$0x1]
    %v5576 = vlaneseq
    %v5577 = vshrl.u32 %v5576, 7
    %v5578 = vsub.s32 0, %v5577
    %v5579 = vrot.slane %v5575, %v5578
    %v5581 = vsel %vm354, %v5567, 0
    %v5584 = vsel %vm354, %v5568, 0
    %v5587 = vsel %vm354, %v5569, 0
    %v5590 = vsel %vm354, %v5570, 0
    %5592 = vmatprep.subr.mxu0 0.0
    %5593 = vmatpush1.msra.mxu0 %v5571
    %5594 = vmatprep.subr.mxu0 0.0
    %5595 = vmatpush1.msra.mxu0 %v5572
    %5596 = vmatprep.subr.mxu0 0.0
    %5597 = vmatpush1.msra.mxu0 %v5573
    %5598 = vmatprep.subr.mxu0 0.0
    %5599 = vmatpush1.msra.mxu0 %v5574
    %5600 = vmatprep.subr.mxu0 0.0
    %5601 = vmatpush1.msra.mxu0 0.0
    %5602 = vmatprep.subr.mxu0 0.0
    %5603 = vmatpush1.msra.mxu0 0.0
    %5604 = vmatprep.subr.mxu0 0.0
    %5605 = vmatpush1.msra.mxu0 0.0
    %5606 = vmatprep.subr.mxu0 0.0
    %5607 = vmatpush1.msra.mxu0 0.0
    %5608 = vmatprep.subr.mxu0 0.0
    %5609 = vmatpush1.msra.mxu0 0.0
    %5610 = vmatprep.subr.mxu0 0.0
    %5611 = vmatpush1.msra.mxu0 0.0
    %5612 = vmatprep.subr.mxu0 0.0
    %5613 = vmatpush1.msra.mxu0 0.0
    %5614 = vmatprep.subr.mxu0 0.0
    %5615 = vmatpush1.msra.mxu0 0.0
    %5616 = vmatprep.subr.mxu0 0.0
    %5617 = vmatpush1.msra.mxu0 0.0
    %5618 = vmatprep.subr.mxu0 0.0
    %5619 = vmatpush1.msra.mxu0 0.0
    %5620 = vmatprep.subr.mxu0 0.0
    %5621 = vmatpush1.msra.mxu0 0.0
    %5622 = vmatprep.subr.mxu0 0.0
    %5623 = vmatpush1.msra.mxu0 0.0
    %5624 = vmatprep.subr.mxu0 0.0
    %5625 = vmatpush1.msra.mxu0 0.0
    %5626 = vmatprep.subr.mxu0 0.0
    %5627 = vmatpush1.msra.mxu0 0.0
    %5628 = vmatprep.subr.mxu0 0.0
    %5629 = vmatpush1.msra.mxu0 0.0
    %5630 = vmatprep.subr.mxu0 0.0
    %5631 = vmatpush1.msra.mxu0 0.0
    %5632 = vmatprep.subr.mxu0 0.0
    %5633 = vmatpush1.msra.mxu0 0.0
    %5634 = vmatprep.subr.mxu0 0.0
    %5635 = vmatpush1.msra.mxu0 0.0
    %5636 = vmatprep.subr.mxu0 0.0
    %5637 = vmatpush1.msra.mxu0 0.0
    %5638 = vmatprep.subr.mxu0 0.0
    %5639 = vmatpush1.msra.mxu0 0.0
    %5640 = vmatprep.subr.mxu0 0.0
    %5641 = vmatpush1.msra.mxu0 0.0
    %5642 = vmatprep.subr.mxu0 0.0
    %5643 = vmatpush1.msra.mxu0 0.0
    %5644 = vmatprep.subr.mxu0 0.0
    %5645 = vmatpush1.msra.mxu0 0.0
    %5646 = vmatprep.subr.mxu0 0.0
    %5647 = vmatpush1.msra.mxu0 0.0
    %5648 = vmatprep.subr.mxu0 0.0
    %5649 = vmatpush1.msra.mxu0 0.0
    %5650 = vmatprep.subr.mxu0 0.0
    %5651 = vmatpush1.msra.mxu0 0.0
    %5652 = vmatprep.subr.mxu0 0.0
    %5653 = vmatpush1.msra.mxu0 0.0
    %5654 = vmatprep.subr.mxu0 0.0
    %5655 = vmatpush1.msra.mxu0 0.0
    %5656 = vmatprep.mubr.f32.mxu0 0.0
    %5657 = vmatmul.mubr.f32.gmra.mrb[0].mxu0 %v5581
    %v5658 = vpop.f32.mrb[0].mxu0
    %v5659 = vadd.f32 %v5579, %v5658
    %v5660 = vpop.f32.mrb[0].mxu0
    %5661 = vmatprep.mubr.f32.mxu0 0.0
    %5662 = vmatmul.mubr.f32.gmra.mrb[0].mxu0 %v5584
    %v5663 = vpop.f32.mrb[0].mxu0
    %v5664 = vadd.f32 %v5579, %v5663
    %v5665 = vpop.f32.mrb[0].mxu0
    %5666 = vmatprep.mubr.f32.mxu0 0.0
    %5667 = vmatmul.mubr.f32.gmra.mrb[0].mxu0 %v5587
    %v5668 = vpop.f32.mrb[0].mxu0
    %v5669 = vadd.f32 %v5579, %v5668
    %v5670 = vpop.f32.mrb[0].mxu0
    %5671 = vmatprep.mubr.f32.mxu0 0.0
    %5672 = vmatmul.mubr.f32.gmra.mrb[0].mxu0 %v5590
    %v5673 = vpop.f32.mrb[0].mxu0
    %v5674 = vadd.f32 %v5579, %v5673
    %v5675 = vpop.f32.mrb[0].mxu0
    %5676 = vdwg.mxu0
    %v5677 = vld [vmem:[#allocation2 + $0x278] sm:$0xff]
    %v5678 = vld [vmem:[#allocation2 + $0x280] sm:$0xff]
    %v5679 = vld [vmem:[#allocation2 + $0x288] sm:$0xff]
    %v5680 = vld [vmem:[#allocation2 + $0x290] sm:$0xff]
    %v5681 = vld [vmem:[#allocation2 + $0x298] sm:$0x1]
    %v5682 = vlaneseq
    %v5683 = vshrl.u32 %v5682, 7
    %v5684 = vsub.s32 0, %v5683
    %v5685 = vrot.slane %v5681, %v5684
    %v5687 = vsel %vm354, %v4113, 0
    %v5690 = vsel %vm354, %v4114, 0
    %v5693 = vsel %vm354, %v4115, 0
    %v5696 = vsel %vm354, %v4116, 0
    %5698 = vmatprep.subr.mxu0 0.0
    %5699 = vmatpush1.msra.mxu0 %v5677
    %5700 = vmatprep.subr.mxu0 0.0
    %5701 = vmatpush1.msra.mxu0 %v5678
    %5702 = vmatprep.subr.mxu0 0.0
    %5703 = vmatpush1.msra.mxu0 %v5679
    %5704 = vmatprep.subr.mxu0 0.0
    %5705 = vmatpush1.msra.mxu0 %v5680
    %5706 = vmatprep.subr.mxu0 0.0
    %5707 = vmatpush1.msra.mxu0 0.0
    %5708 = vmatprep.subr.mxu0 0.0
    %5709 = vmatpush1.msra.mxu0 0.0
    %5710 = vmatprep.subr.mxu0 0.0
    %5711 = vmatpush1.msra.mxu0 0.0
    %5712 = vmatprep.subr.mxu0 0.0
    %5713 = vmatpush1.msra.mxu0 0.0
    %5714 = vmatprep.subr.mxu0 0.0
    %5715 = vmatpush1.msra.mxu0 0.0
    %5716 = vmatprep.subr.mxu0 0.0
    %5717 = vmatpush1.msra.mxu0 0.0
    %5718 = vmatprep.subr.mxu0 0.0
    %5719 = vmatpush1.msra.mxu0 0.0
    %5720 = vmatprep.subr.mxu0 0.0
    %5721 = vmatpush1.msra.mxu0 0.0
    %5722 = vmatprep.subr.mxu0 0.0
    %5723 = vmatpush1.msra.mxu0 0.0
    %5724 = vmatprep.subr.mxu0 0.0
    %5725 = vmatpush1.msra.mxu0 0.0
    %5726 = vmatprep.subr.mxu0 0.0
    %5727 = vmatpush1.msra.mxu0 0.0
    %5728 = vmatprep.subr.mxu0 0.0
    %5729 = vmatpush1.msra.mxu0 0.0
    %5730 = vmatprep.subr.mxu0 0.0
    %5731 = vmatpush1.msra.mxu0 0.0
    %5732 = vmatprep.subr.mxu0 0.0
    %5733 = vmatpush1.msra.mxu0 0.0
    %5734 = vmatprep.subr.mxu0 0.0
    %5735 = vmatpush1.msra.mxu0 0.0
    %5736 = vmatprep.subr.mxu0 0.0
    %5737 = vmatpush1.msra.mxu0 0.0
    %5738 = vmatprep.subr.mxu0 0.0
    %5739 = vmatpush1.msra.mxu0 0.0
    %5740 = vmatprep.subr.mxu0 0.0
    %5741 = vmatpush1.msra.mxu0 0.0
    %5742 = vmatprep.subr.mxu0 0.0
    %5743 = vmatpush1.msra.mxu0 0.0
    %5744 = vmatprep.subr.mxu0 0.0
    %5745 = vmatpush1.msra.mxu0 0.0
    %5746 = vmatprep.subr.mxu0 0.0
    %5747 = vmatpush1.msra.mxu0 0.0
    %5748 = vmatprep.subr.mxu0 0.0
    %5749 = vmatpush1.msra.mxu0 0.0
    %5750 = vmatprep.subr.mxu0 0.0
    %5751 = vmatpush1.msra.mxu0 0.0
    %5752 = vmatprep.subr.mxu0 0.0
    %5753 = vmatpush1.msra.mxu0 0.0
    %5754 = vmatprep.subr.mxu0 0.0
    %5755 = vmatpush1.msra.mxu0 0.0
    %5756 = vmatprep.subr.mxu0 0.0
    %5757 = vmatpush1.msra.mxu0 0.0
    %5758 = vmatprep.subr.mxu0 0.0
    %5759 = vmatpush1.msra.mxu0 0.0
    %5760 = vmatprep.subr.mxu0 0.0
    %5761 = vmatpush1.msra.mxu0 0.0
    %5762 = vmatprep.mubr.f32.mxu0 0.0
    %5763 = vmatmul.mubr.f32.gmra.mrb[0].mxu0 %v5687
    %v5764 = vpop.f32.mrb[0].mxu0
    %v5765 = vadd.f32 %v5685, %v5764
    %v5766 = vpop.f32.mrb[0].mxu0
    %5767 = vmatprep.mubr.f32.mxu0 0.0
    %5768 = vmatmul.mubr.f32.gmra.mrb[0].mxu0 %v5690
    %v5769 = vpop.f32.mrb[0].mxu0
    %v5770 = vadd.f32 %v5685, %v5769
    %v5771 = vpop.f32.mrb[0].mxu0
    %5772 = vmatprep.mubr.f32.mxu0 0.0
    %5773 = vmatmul.mubr.f32.gmra.mrb[0].mxu0 %v5693
    %v5774 = vpop.f32.mrb[0].mxu0
    %v5775 = vadd.f32 %v5685, %v5774
    %v5776 = vpop.f32.mrb[0].mxu0
    %5777 = vmatprep.mubr.f32.mxu0 0.0
    %5778 = vmatmul.mubr.f32.gmra.mrb[0].mxu0 %v5696
    %v5779 = vpop.f32.mrb[0].mxu0
    %v5780 = vadd.f32 %v5685, %v5779
    %v5781 = vpop.f32.mrb[0].mxu0
    %5782 = vdwg.mxu0
    %v5783 = vld [vmem:[#allocation2 + $0x2a0] sm:$0xff]
    %v5784 = vld [vmem:[#allocation2 + $0x2a8] sm:$0xff]
    %v5785 = vld [vmem:[#allocation2 + $0x2b0] sm:$0xff]
    %v5786 = vld [vmem:[#allocation2 + $0x2b8] sm:$0xff]
    %v5787 = vld [vmem:[#allocation2 + $0x2c0] sm:$0x1]
    %v5789 = vsel %vm469, %v5659, 0
    %v5792 = vsel %vm469, %v5664, 0
    %v5795 = vsel %vm469, %v5669, 0
    %v5798 = vsel %vm469, %v5674, 0
    %v5801 = vsel %vm469, %v5765, 0
    %v5804 = vsel %vm469, %v5770, 0
    %v5807 = vsel %vm469, %v5775, 0
    %v5810 = vsel %vm469, %v5780, 0
    %5812 = vmatprep.subr.mxu0 0.0
    %5813 = vmatpush1.xpose.msra.mxu0 %v5801
    %5814 = vmatprep.subr.mxu0 0.0
    %5815 = vmatpush1.xpose.msra.mxu0 %v5804
    %5816 = vmatprep.subr.mxu0 0.0
    %5817 = vmatpush1.xpose.msra.mxu0 %v5807
    %5818 = vmatprep.subr.mxu0 0.0
    %5819 = vmatpush1.xpose.msra.mxu0 %v5810
    %5820 = vmatprep.subr.mxu0 0.0
    %5821 = vmatpush1.xpose.msra.mxu0 0.0
    %5822 = vmatprep.subr.mxu0 0.0
    %5823 = vmatpush1.xpose.msra.mxu0 0.0
    %5824 = vmatprep.subr.mxu0 0.0
    %5825 = vmatpush1.xpose.msra.mxu0 0.0
    %5826 = vmatprep.subr.mxu0 0.0
    %5827 = vmatpush1.xpose.msra.mxu0 0.0
    %5828 = vmatprep.subr.mxu0 0.0
    %5829 = vmatpush1.xpose.msra.mxu0 0.0
    %5830 = vmatprep.subr.mxu0 0.0
    %5831 = vmatpush1.xpose.msra.mxu0 0.0
    %5832 = vmatprep.subr.mxu0 0.0
    %5833 = vmatpush1.xpose.msra.mxu0 0.0
    %5834 = vmatprep.subr.mxu0 0.0
    %5835 = vmatpush1.xpose.msra.mxu0 0.0
    %5836 = vmatprep.subr.mxu0 0.0
    %5837 = vmatpush1.xpose.msra.mxu0 0.0
    %5838 = vmatprep.subr.mxu0 0.0
    %5839 = vmatpush1.xpose.msra.mxu0 0.0
    %5840 = vmatprep.subr.mxu0 0.0
    %5841 = vmatpush1.xpose.msra.mxu0 0.0
    %5842 = vmatprep.subr.mxu0 0.0
    %5843 = vmatpush1.xpose.msra.mxu0 0.0
    %5844 = vmatprep.subr.mxu0 0.0
    %5845 = vmatpush1.xpose.msra.mxu0 0.0
    %5846 = vmatprep.subr.mxu0 0.0
    %5847 = vmatpush1.xpose.msra.mxu0 0.0
    %5848 = vmatprep.subr.mxu0 0.0
    %5849 = vmatpush1.xpose.msra.mxu0 0.0
    %5850 = vmatprep.subr.mxu0 0.0
    %5851 = vmatpush1.xpose.msra.mxu0 0.0
    %5852 = vmatprep.subr.mxu0 0.0
    %5853 = vmatpush1.xpose.msra.mxu0 0.0
    %5854 = vmatprep.subr.mxu0 0.0
    %5855 = vmatpush1.xpose.msra.mxu0 0.0
    %5856 = vmatprep.subr.mxu0 0.0
    %5857 = vmatpush1.xpose.msra.mxu0 0.0
    %5858 = vmatprep.subr.mxu0 0.0
    %5859 = vmatpush1.xpose.msra.mxu0 0.0
    %5860 = vmatprep.subr.mxu0 0.0
    %5861 = vmatpush1.xpose.msra.mxu0 0.0
    %5862 = vmatprep.subr.mxu0 0.0
    %5863 = vmatpush1.xpose.msra.mxu0 0.0
    %5864 = vmatprep.subr.mxu0 0.0
    %5865 = vmatpush1.xpose.msra.mxu0 0.0
    %5866 = vmatprep.subr.mxu0 0.0
    %5867 = vmatpush1.xpose.msra.mxu0 0.0
    %5868 = vmatprep.subr.mxu0 0.0
    %5869 = vmatpush1.xpose.msra.mxu0 0.0
    %5870 = vmatprep.subr.mxu0 0.0
    %5871 = vmatpush1.xpose.msra.mxu0 0.0
    %5872 = vmatprep.subr.mxu0 0.0
    %5873 = vmatpush1.xpose.msra.mxu0 0.0
    %5874 = vmatprep.subr.mxu0 0.0
    %5875 = vmatpush1.xpose.msra.mxu0 0.0
    %5876 = vmatprep.mubr.f32.mxu0 0.0
    %5877 = vmatmul.mubr.f32.gmra.mrb[0].mxu0 %v5789
    %v5878 = vpop.f32.mrb[0].mxu0
    %v5879 = vadd.f32 0.0, %v5878
    %v5880 = vpop.f32.mrb[0].mxu0
    %5881 = vmatprep.mubr.f32.mxu0 0.0
    %5882 = vmatmul.mubr.f32.gmra.mrb[0].mxu0 %v5792
    %v5883 = vpop.f32.mrb[0].mxu0
    %v5884 = vadd.f32 0.0, %v5883
    %v5885 = vpop.f32.mrb[0].mxu0
    %5886 = vmatprep.mubr.f32.mxu0 0.0
    %5887 = vmatmul.mubr.f32.gmra.mrb[0].mxu0 %v5795
    %v5888 = vpop.f32.mrb[0].mxu0
    %v5889 = vadd.f32 0.0, %v5888
    %v5890 = vpop.f32.mrb[0].mxu0
    %5891 = vmatprep.mubr.f32.mxu0 0.0
    %5892 = vmatmul.mubr.f32.gmra.mrb[0].mxu0 %v5798
    %v5893 = vpop.f32.mrb[0].mxu0
    %v5894 = vadd.f32 0.0, %v5893
    %v5895 = vpop.f32.mrb[0].mxu0
    %5896 = vdwg.mxu0
    %v5897 = vmul.f32 %v5879, 0.35355338
    %v5898 = vmul.f32 %v5884, 0.35355338
    %v5899 = vmul.f32 %v5889, 0.35355338
    %v5900 = vmul.f32 %v5894, 0.35355338
    %v5901 = vadd.f32 %v5897, %v89
    %v5902 = vadd.f32 %v5898, %v90
    %v5903 = vadd.f32 %v5899, %v91
    %v5904 = vadd.f32 %v5900, %v92
    %v5905 = vsel %vm354, %v5901, -inf
    %5906 = vmax.xlane.f32.xlu0 %v5905
    %v5907 = vpop.xlane.xlu0 %5906
    %v5908 = vsel %vm354, %v5902, -inf
    %5909 = vmax.xlane.f32.xlu0 %v5908
    %v5910 = vpop.xlane.xlu0 %5909
    %v5911 = vsel %vm354, %v5903, -inf
    %5912 = vmax.xlane.f32.xlu0 %v5911
    %v5913 = vpop.xlane.xlu0 %5912
    %v5914 = vsel %vm354, %v5904, -inf
    %5915 = vmax.xlane.f32.xlu0 %v5914
    %v5916 = vpop.xlane.xlu0 %5915
    %v5917 = vsub.f32 %v5901, %v5907
    %v5918 = vsub.f32 %v5902, %v5910
    %v5919 = vsub.f32 %v5903, %v5913
    %v5920 = vsub.f32 %v5904, %v5916
    %v5921 = vmul.f32 %v5917, 1.442695
    %v5922 = vpow.pop %v5921
    %v5923 = vmul.f32 %v5918, 1.442695
    %v5924 = vpow.pop %v5923
    %v5925 = vmul.f32 %v5919, 1.442695
    %v5926 = vpow.pop %v5925
    %v5927 = vmul.f32 %v5920, 1.442695
    %v5928 = vpow.pop %v5927
    %v5929 = vsel %vm354, %v5922, 0.0
    %5930 = vadd.xlane.f32.xlu0 %v5929
    %v5931 = vpop.xlane.xlu0 %5930
    %v5932 = vsel %vm354, %v5924, 0.0
    %5933 = vadd.xlane.f32.xlu0 %v5932
    %v5934 = vpop.xlane.xlu0 %5933
    %v5935 = vsel %vm354, %v5926, 0.0
    %5936 = vadd.xlane.f32.xlu0 %v5935
    %v5937 = vpop.xlane.xlu0 %5936
    %v5938 = vsel %vm354, %v5928, 0.0
    %5939 = vadd.xlane.f32.xlu0 %v5938
    %v5940 = vpop.xlane.xlu0 %5939
    %v5941 = vrcp.pop %v5931
    %v5942 = vrcp.pop %v5934
    %v5943 = vrcp.pop %v5937
    %v5944 = vrcp.pop %v5940
    %v5945 = vmul.f32 %v5922, %v5941
    %v5946 = vmul.f32 %v5924, %v5942
    %v5947 = vmul.f32 %v5926, %v5943
    %v5948 = vmul.f32 %v5928, %v5944
    %5949 = vrot.lane.b32.xlu0 %v5765, 96
    %v5950 = vpop.permute.xlu0 %5949
    %5951 = vrot.lane.b32.xlu0 %v5770, 96
    %v5952 = vpop.permute.xlu0 %5951
    %5953 = vrot.lane.b32.xlu0 %v5775, 96
    %v5954 = vpop.permute.xlu0 %5953
    %5955 = vrot.lane.b32.xlu0 %v5780, 96
    %v5956 = vpop.permute.xlu0 %5955
    %v5962 = vsel %vm354, %v5945, 0
    %v5965 = vsel %vm354, %v5946, 0
    %v5968 = vsel %vm354, %v5947, 0
    %v5971 = vsel %vm354, %v5948, 0
    %5973 = vmatprep.subr.mxu0 0.0
    %5974 = vmatpush1.msra.mxu0 %v5950
    %5975 = vmatprep.subr.mxu0 0.0
    %5976 = vmatpush1.msra.mxu0 %v5952
    %5977 = vmatprep.subr.mxu0 0.0
    %5978 = vmatpush1.msra.mxu0 %v5954
    %5979 = vmatprep.subr.mxu0 0.0
    %5980 = vmatpush1.msra.mxu0 %v5956
    %5981 = vmatprep.subr.mxu0 0.0
    %5982 = vmatpush1.msra.mxu0 0.0
    %5983 = vmatprep.subr.mxu0 0.0
    %5984 = vmatpush1.msra.mxu0 0.0
    %5985 = vmatprep.subr.mxu0 0.0
    %5986 = vmatpush1.msra.mxu0 0.0
    %5987 = vmatprep.subr.mxu0 0.0
    %5988 = vmatpush1.msra.mxu0 0.0
    %5989 = vmatprep.subr.mxu0 0.0
    %5990 = vmatpush1.msra.mxu0 0.0
    %5991 = vmatprep.subr.mxu0 0.0
    %5992 = vmatpush1.msra.mxu0 0.0
    %5993 = vmatprep.subr.mxu0 0.0
    %5994 = vmatpush1.msra.mxu0 0.0
    %5995 = vmatprep.subr.mxu0 0.0
    %5996 = vmatpush1.msra.mxu0 0.0
    %5997 = vmatprep.subr.mxu0 0.0
    %5998 = vmatpush1.msra.mxu0 0.0
    %5999 = vmatprep.subr.mxu0 0.0
    %6000 = vmatpush1.msra.mxu0 0.0
    %6001 = vmatprep.subr.mxu0 0.0
    %6002 = vmatpush1.msra.mxu0 0.0
    %6003 = vmatprep.subr.mxu0 0.0
    %6004 = vmatpush1.msra.mxu0 0.0
    %6005 = vmatprep.subr.mxu0 0.0
    %6006 = vmatpush1.msra.mxu0 0.0
    %6007 = vmatprep.subr.mxu0 0.0
    %6008 = vmatpush1.msra.mxu0 0.0
    %6009 = vmatprep.subr.mxu0 0.0
    %6010 = vmatpush1.msra.mxu0 0.0
    %6011 = vmatprep.subr.mxu0 0.0
    %6012 = vmatpush1.msra.mxu0 0.0
    %6013 = vmatprep.subr.mxu0 0.0
    %6014 = vmatpush1.msra.mxu0 0.0
    %6015 = vmatprep.subr.mxu0 0.0
    %6016 = vmatpush1.msra.mxu0 0.0
    %6017 = vmatprep.subr.mxu0 0.0
    %6018 = vmatpush1.msra.mxu0 0.0
    %6019 = vmatprep.subr.mxu0 0.0
    %6020 = vmatpush1.msra.mxu0 0.0
    %6021 = vmatprep.subr.mxu0 0.0
    %6022 = vmatpush1.msra.mxu0 0.0
    %6023 = vmatprep.subr.mxu0 0.0
    %6024 = vmatpush1.msra.mxu0 0.0
    %6025 = vmatprep.subr.mxu0 0.0
    %6026 = vmatpush1.msra.mxu0 0.0
    %6027 = vmatprep.subr.mxu0 0.0
    %6028 = vmatpush1.msra.mxu0 0.0
    %6029 = vmatprep.subr.mxu0 0.0
    %6030 = vmatpush1.msra.mxu0 0.0
    %6031 = vmatprep.subr.mxu0 0.0
    %6032 = vmatpush1.msra.mxu0 0.0
    %6033 = vmatprep.subr.mxu0 0.0
    %6034 = vmatpush1.msra.mxu0 0.0
    %6035 = vmatprep.subr.mxu0 0.0
    %6036 = vmatpush1.msra.mxu0 0.0
    %6037 = vmatprep.mubr.f32.mxu0 0.0
    %6038 = vmatmul.mubr.f32.gmra.mrb[0].mxu0 %v5962
    %v6039 = vpop.f32.mrb[0].mxu0
    %v6040 = vadd.f32 0.0, %v6039
    %v6041 = vpop.f32.mrb[0].mxu0
    %6042 = vmatprep.mubr.f32.mxu0 0.0
    %6043 = vmatmul.mubr.f32.gmra.mrb[0].mxu0 %v5965
    %v6044 = vpop.f32.mrb[0].mxu0
    %v6045 = vadd.f32 0.0, %v6044
    %v6046 = vpop.f32.mrb[0].mxu0
    %6047 = vmatprep.mubr.f32.mxu0 0.0
    %6048 = vmatmul.mubr.f32.gmra.mrb[0].mxu0 %v5968
    %v6049 = vpop.f32.mrb[0].mxu0
    %v6050 = vadd.f32 0.0, %v6049
    %v6051 = vpop.f32.mrb[0].mxu0
    %6052 = vmatprep.mubr.f32.mxu0 0.0
    %6053 = vmatmul.mubr.f32.gmra.mrb[0].mxu0 %v5971
    %v6054 = vpop.f32.mrb[0].mxu0
    %v6055 = vadd.f32 0.0, %v6054
    %v6056 = vpop.f32.mrb[0].mxu0
    %6057 = vdwg.mxu0
    %6058 = vrot.lane.b32.xlu0 %v5659, 120
    %v6059 = vpop.permute.xlu0 %6058
    %6060 = vrot.lane.b32.xlu0 %v5664, 120
    %v6061 = vpop.permute.xlu0 %6060
    %6062 = vrot.lane.b32.xlu0 %v5669, 120
    %v6063 = vpop.permute.xlu0 %6062
    %6064 = vrot.lane.b32.xlu0 %v5674, 120
    %v6065 = vpop.permute.xlu0 %6064
    %6066 = vrot.lane.b32.xlu0 %v5765, 120
    %v6067 = vpop.permute.xlu0 %6066
    %6068 = vrot.lane.b32.xlu0 %v5770, 120
    %v6069 = vpop.permute.xlu0 %6068
    %6070 = vrot.lane.b32.xlu0 %v5775, 120
    %v6071 = vpop.permute.xlu0 %6070
    %6072 = vrot.lane.b32.xlu0 %v5780, 120
    %v6073 = vpop.permute.xlu0 %6072
    %v6074 = vsel %vm469, %v6059, 0
    %v6076 = vsel %vm469, %v6061, 0
    %v6078 = vsel %vm469, %v6063, 0
    %v6080 = vsel %vm469, %v6065, 0
    %v6082 = vsel %vm469, %v6067, 0
    %v6084 = vsel %vm469, %v6069, 0
    %v6086 = vsel %vm469, %v6071, 0
    %v6088 = vsel %vm469, %v6073, 0
    %6090 = vmatprep.subr.mxu0 0.0
    %6091 = vmatpush1.xpose.msra.mxu0 %v6082
    %6092 = vmatprep.subr.mxu0 0.0
    %6093 = vmatpush1.xpose.msra.mxu0 %v6084
    %6094 = vmatprep.subr.mxu0 0.0
    %6095 = vmatpush1.xpose.msra.mxu0 %v6086
    %6096 = vmatprep.subr.mxu0 0.0
    %6097 = vmatpush1.xpose.msra.mxu0 %v6088
    %6098 = vmatprep.subr.mxu0 0.0
    %6099 = vmatpush1.xpose.msra.mxu0 0.0
    %6100 = vmatprep.subr.mxu0 0.0
    %6101 = vmatpush1.xpose.msra.mxu0 0.0
    %6102 = vmatprep.subr.mxu0 0.0
    %6103 = vmatpush1.xpose.msra.mxu0 0.0
    %6104 = vmatprep.subr.mxu0 0.0
    %6105 = vmatpush1.xpose.msra.mxu0 0.0
    %6106 = vmatprep.subr.mxu0 0.0
    %6107 = vmatpush1.xpose.msra.mxu0 0.0
    %6108 = vmatprep.subr.mxu0 0.0
    %6109 = vmatpush1.xpose.msra.mxu0 0.0
    %6110 = vmatprep.subr.mxu0 0.0
    %6111 = vmatpush1.xpose.msra.mxu0 0.0
    %6112 = vmatprep.subr.mxu0 0.0
    %6113 = vmatpush1.xpose.msra.mxu0 0.0
    %6114 = vmatprep.subr.mxu0 0.0
    %6115 = vmatpush1.xpose.msra.mxu0 0.0
    %6116 = vmatprep.subr.mxu0 0.0
    %6117 = vmatpush1.xpose.msra.mxu0 0.0
    %6118 = vmatprep.subr.mxu0 0.0
    %6119 = vmatpush1.xpose.msra.mxu0 0.0
    %6120 = vmatprep.subr.mxu0 0.0
    %6121 = vmatpush1.xpose.msra.mxu0 0.0
    %6122 = vmatprep.subr.mxu0 0.0
    %6123 = vmatpush1.xpose.msra.mxu0 0.0
    %6124 = vmatprep.subr.mxu0 0.0
    %6125 = vmatpush1.xpose.msra.mxu0 0.0
    %6126 = vmatprep.subr.mxu0 0.0
    %6127 = vmatpush1.xpose.msra.mxu0 0.0
    %6128 = vmatprep.subr.mxu0 0.0
    %6129 = vmatpush1.xpose.msra.mxu0 0.0
    %6130 = vmatprep.subr.mxu0 0.0
    %6131 = vmatpush1.xpose.msra.mxu0 0.0
    %6132 = vmatprep.subr.mxu0 0.0
    %6133 = vmatpush1.xpose.msra.mxu0 0.0
    %6134 = vmatprep.subr.mxu0 0.0
    %6135 = vmatpush1.xpose.msra.mxu0 0.0
    %6136 = vmatprep.subr.mxu0 0.0
    %6137 = vmatpush1.xpose.msra.mxu0 0.0
    %6138 = vmatprep.subr.mxu0 0.0
    %6139 = vmatpush1.xpose.msra.mxu0 0.0
    %6140 = vmatprep.subr.mxu0 0.0
    %6141 = vmatpush1.xpose.msra.mxu0 0.0
    %6142 = vmatprep.subr.mxu0 0.0
    %6143 = vmatpush1.xpose.msra.mxu0 0.0
    %6144 = vmatprep.subr.mxu0 0.0
    %6145 = vmatpush1.xpose.msra.mxu0 0.0
    %6146 = vmatprep.subr.mxu0 0.0
    %6147 = vmatpush1.xpose.msra.mxu0 0.0
    %6148 = vmatprep.subr.mxu0 0.0
    %6149 = vmatpush1.xpose.msra.mxu0 0.0
    %6150 = vmatprep.subr.mxu0 0.0
    %6151 = vmatpush1.xpose.msra.mxu0 0.0
    %6152 = vmatprep.subr.mxu0 0.0
    %6153 = vmatpush1.xpose.msra.mxu0 0.0
    %6154 = vmatprep.mubr.f32.mxu0 0.0
    %6155 = vmatmul.mubr.f32.gmra.mrb[0].mxu0 %v6074
    %v6156 = vpop.f32.mrb[0].mxu0
    %v6157 = vadd.f32 0.0, %v6156
    %v6158 = vpop.f32.mrb[0].mxu0
    %6159 = vmatprep.mubr.f32.mxu0 0.0
    %6160 = vmatmul.mubr.f32.gmra.mrb[0].mxu0 %v6076
    %v6161 = vpop.f32.mrb[0].mxu0
    %v6162 = vadd.f32 0.0, %v6161
    %v6163 = vpop.f32.mrb[0].mxu0
    %6164 = vmatprep.mubr.f32.mxu0 0.0
    %6165 = vmatmul.mubr.f32.gmra.mrb[0].mxu0 %v6078
    %v6166 = vpop.f32.mrb[0].mxu0
    %v6167 = vadd.f32 0.0, %v6166
    %v6168 = vpop.f32.mrb[0].mxu0
    %6169 = vmatprep.mubr.f32.mxu0 0.0
    %6170 = vmatmul.mubr.f32.gmra.mrb[0].mxu0 %v6080
    %v6171 = vpop.f32.mrb[0].mxu0
    %v6172 = vadd.f32 0.0, %v6171
    %v6173 = vpop.f32.mrb[0].mxu0
    %6174 = vdwg.mxu0
    %v6175 = vmul.f32 %v6157, 0.35355338
    %v6176 = vmul.f32 %v6162, 0.35355338
    %v6177 = vmul.f32 %v6167, 0.35355338
    %v6178 = vmul.f32 %v6172, 0.35355338
    %v6179 = vadd.f32 %v6175, %v89
    %v6180 = vadd.f32 %v6176, %v90
    %v6181 = vadd.f32 %v6177, %v91
    %v6182 = vadd.f32 %v6178, %v92
    %v6183 = vsel %vm354, %v6179, -inf
    %6184 = vmax.xlane.f32.xlu0 %v6183
    %v6185 = vpop.xlane.xlu0 %6184
    %v6186 = vsel %vm354, %v6180, -inf
    %6187 = vmax.xlane.f32.xlu0 %v6186
    %v6188 = vpop.xlane.xlu0 %6187
    %v6189 = vsel %vm354, %v6181, -inf
    %6190 = vmax.xlane.f32.xlu0 %v6189
    %v6191 = vpop.xlane.xlu0 %6190
    %v6192 = vsel %vm354, %v6182, -inf
    %6193 = vmax.xlane.f32.xlu0 %v6192
    %v6194 = vpop.xlane.xlu0 %6193
    %v6195 = vsub.f32 %v6179, %v6185
    %v6196 = vsub.f32 %v6180, %v6188
    %v6197 = vsub.f32 %v6181, %v6191
    %v6198 = vsub.f32 %v6182, %v6194
    %v6199 = vmul.f32 %v6195, 1.442695
    %v6200 = vpow.pop %v6199
    %v6201 = vmul.f32 %v6196, 1.442695
    %v6202 = vpow.pop %v6201
    %v6203 = vmul.f32 %v6197, 1.442695
    %v6204 = vpow.pop %v6203
    %v6205 = vmul.f32 %v6198, 1.442695
    %v6206 = vpow.pop %v6205
    %v6207 = vsel %vm354, %v6200, 0.0
    %6208 = vadd.xlane.f32.xlu0 %v6207
    %v6209 = vpop.xlane.xlu0 %6208
    %v6210 = vsel %vm354, %v6202, 0.0
    %6211 = vadd.xlane.f32.xlu0 %v6210
    %v6212 = vpop.xlane.xlu0 %6211
    %v6213 = vsel %vm354, %v6204, 0.0
    %6214 = vadd.xlane.f32.xlu0 %v6213
    %v6215 = vpop.xlane.xlu0 %6214
    %v6216 = vsel %vm354, %v6206, 0.0
    %6217 = vadd.xlane.f32.xlu0 %v6216
    %v6218 = vpop.xlane.xlu0 %6217
    %v6219 = vrcp.pop %v6209
    %v6220 = vrcp.pop %v6212
    %v6221 = vrcp.pop %v6215
    %v6222 = vrcp.pop %v6218
    %v6223 = vmul.f32 %v6200, %v6219
    %v6224 = vmul.f32 %v6202, %v6220
    %v6225 = vmul.f32 %v6204, %v6221
    %v6226 = vmul.f32 %v6206, %v6222
    %6227 = vrot.lane.b32.xlu0 %v5765, 88
    %v6228 = vpop.permute.xlu0 %6227
    %6229 = vrot.lane.b32.xlu0 %v5770, 88
    %v6230 = vpop.permute.xlu0 %6229
    %6231 = vrot.lane.b32.xlu0 %v5775, 88
    %v6232 = vpop.permute.xlu0 %6231
    %6233 = vrot.lane.b32.xlu0 %v5780, 88
    %v6234 = vpop.permute.xlu0 %6233
    %v6240 = vsel %vm354, %v6223, 0
    %v6243 = vsel %vm354, %v6224, 0
    %v6246 = vsel %vm354, %v6225, 0
    %v6249 = vsel %vm354, %v6226, 0
    %6251 = vmatprep.subr.mxu0 0.0
    %6252 = vmatpush1.msra.mxu0 %v6228
    %6253 = vmatprep.subr.mxu0 0.0
    %6254 = vmatpush1.msra.mxu0 %v6230
    %6255 = vmatprep.subr.mxu0 0.0
    %6256 = vmatpush1.msra.mxu0 %v6232
    %6257 = vmatprep.subr.mxu0 0.0
    %6258 = vmatpush1.msra.mxu0 %v6234
    %6259 = vmatprep.subr.mxu0 0.0
    %6260 = vmatpush1.msra.mxu0 0.0
    %6261 = vmatprep.subr.mxu0 0.0
    %6262 = vmatpush1.msra.mxu0 0.0
    %6263 = vmatprep.subr.mxu0 0.0
    %6264 = vmatpush1.msra.mxu0 0.0
    %6265 = vmatprep.subr.mxu0 0.0
    %6266 = vmatpush1.msra.mxu0 0.0
    %6267 = vmatprep.subr.mxu0 0.0
    %6268 = vmatpush1.msra.mxu0 0.0
    %6269 = vmatprep.subr.mxu0 0.0
    %6270 = vmatpush1.msra.mxu0 0.0
    %6271 = vmatprep.subr.mxu0 0.0
    %6272 = vmatpush1.msra.mxu0 0.0
    %6273 = vmatprep.subr.mxu0 0.0
    %6274 = vmatpush1.msra.mxu0 0.0
    %6275 = vmatprep.subr.mxu0 0.0
    %6276 = vmatpush1.msra.mxu0 0.0
    %6277 = vmatprep.subr.mxu0 0.0
    %6278 = vmatpush1.msra.mxu0 0.0
    %6279 = vmatprep.subr.mxu0 0.0
    %6280 = vmatpush1.msra.mxu0 0.0
    %6281 = vmatprep.subr.mxu0 0.0
    %6282 = vmatpush1.msra.mxu0 0.0
    %6283 = vmatprep.subr.mxu0 0.0
    %6284 = vmatpush1.msra.mxu0 0.0
    %6285 = vmatprep.subr.mxu0 0.0
    %6286 = vmatpush1.msra.mxu0 0.0
    %6287 = vmatprep.subr.mxu0 0.0
    %6288 = vmatpush1.msra.mxu0 0.0
    %6289 = vmatprep.subr.mxu0 0.0
    %6290 = vmatpush1.msra.mxu0 0.0
    %6291 = vmatprep.subr.mxu0 0.0
    %6292 = vmatpush1.msra.mxu0 0.0
    %6293 = vmatprep.subr.mxu0 0.0
    %6294 = vmatpush1.msra.mxu0 0.0
    %6295 = vmatprep.subr.mxu0 0.0
    %6296 = vmatpush1.msra.mxu0 0.0
    %6297 = vmatprep.subr.mxu0 0.0
    %6298 = vmatpush1.msra.mxu0 0.0
    %6299 = vmatprep.subr.mxu0 0.0
    %6300 = vmatpush1.msra.mxu0 0.0
    %6301 = vmatprep.subr.mxu0 0.0
    %6302 = vmatpush1.msra.mxu0 0.0
    %6303 = vmatprep.subr.mxu0 0.0
    %6304 = vmatpush1.msra.mxu0 0.0
    %6305 = vmatprep.subr.mxu0 0.0
    %6306 = vmatpush1.msra.mxu0 0.0
    %6307 = vmatprep.subr.mxu0 0.0
    %6308 = vmatpush1.msra.mxu0 0.0
    %6309 = vmatprep.subr.mxu0 0.0
    %6310 = vmatpush1.msra.mxu0 0.0
    %6311 = vmatprep.subr.mxu0 0.0
    %6312 = vmatpush1.msra.mxu0 0.0
    %6313 = vmatprep.subr.mxu0 0.0
    %6314 = vmatpush1.msra.mxu0 0.0
    %6315 = vmatprep.mubr.f32.mxu0 0.0
    %6316 = vmatmul.mubr.f32.gmra.mrb[0].mxu0 %v6240
    %v6317 = vpop.f32.mrb[0].mxu0
    %v6318 = vadd.f32 0.0, %v6317
    %v6319 = vpop.f32.mrb[0].mxu0
    %6320 = vmatprep.mubr.f32.mxu0 0.0
    %6321 = vmatmul.mubr.f32.gmra.mrb[0].mxu0 %v6243
    %v6322 = vpop.f32.mrb[0].mxu0
    %v6323 = vadd.f32 0.0, %v6322
    %v6324 = vpop.f32.mrb[0].mxu0
    %6325 = vmatprep.mubr.f32.mxu0 0.0
    %6326 = vmatmul.mubr.f32.gmra.mrb[0].mxu0 %v6246
    %v6327 = vpop.f32.mrb[0].mxu0
    %v6328 = vadd.f32 0.0, %v6327
    %v6329 = vpop.f32.mrb[0].mxu0
    %6330 = vmatprep.mubr.f32.mxu0 0.0
    %6331 = vmatmul.mubr.f32.gmra.mrb[0].mxu0 %v6249
    %v6332 = vpop.f32.mrb[0].mxu0
    %v6333 = vadd.f32 0.0, %v6332
    %v6334 = vpop.f32.mrb[0].mxu0
    %6335 = vdwg.mxu0
    %6336 = vrot.lane.b32.xlu0 %v5659, 112
    %v6337 = vpop.permute.xlu0 %6336
    %6338 = vrot.lane.b32.xlu0 %v5664, 112
    %v6339 = vpop.permute.xlu0 %6338
    %6340 = vrot.lane.b32.xlu0 %v5669, 112
    %v6341 = vpop.permute.xlu0 %6340
    %6342 = vrot.lane.b32.xlu0 %v5674, 112
    %v6343 = vpop.permute.xlu0 %6342
    %6344 = vrot.lane.b32.xlu0 %v5765, 112
    %v6345 = vpop.permute.xlu0 %6344
    %6346 = vrot.lane.b32.xlu0 %v5770, 112
    %v6347 = vpop.permute.xlu0 %6346
    %6348 = vrot.lane.b32.xlu0 %v5775, 112
    %v6349 = vpop.permute.xlu0 %6348
    %6350 = vrot.lane.b32.xlu0 %v5780, 112
    %v6351 = vpop.permute.xlu0 %6350
    %v6352 = vsel %vm469, %v6337, 0
    %v6354 = vsel %vm469, %v6339, 0
    %v6356 = vsel %vm469, %v6341, 0
    %v6358 = vsel %vm469, %v6343, 0
    %v6360 = vsel %vm469, %v6345, 0
    %v6362 = vsel %vm469, %v6347, 0
    %v6364 = vsel %vm469, %v6349, 0
    %v6366 = vsel %vm469, %v6351, 0
    %6368 = vmatprep.subr.mxu0 0.0
    %6369 = vmatpush1.xpose.msra.mxu0 %v6360
    %6370 = vmatprep.subr.mxu0 0.0
    %6371 = vmatpush1.xpose.msra.mxu0 %v6362
    %6372 = vmatprep.subr.mxu0 0.0
    %6373 = vmatpush1.xpose.msra.mxu0 %v6364
    %6374 = vmatprep.subr.mxu0 0.0
    %6375 = vmatpush1.xpose.msra.mxu0 %v6366
    %6376 = vmatprep.subr.mxu0 0.0
    %6377 = vmatpush1.xpose.msra.mxu0 0.0
    %6378 = vmatprep.subr.mxu0 0.0
    %6379 = vmatpush1.xpose.msra.mxu0 0.0
    %6380 = vmatprep.subr.mxu0 0.0
    %6381 = vmatpush1.xpose.msra.mxu0 0.0
    %6382 = vmatprep.subr.mxu0 0.0
    %6383 = vmatpush1.xpose.msra.mxu0 0.0
    %6384 = vmatprep.subr.mxu0 0.0
    %6385 = vmatpush1.xpose.msra.mxu0 0.0
    %6386 = vmatprep.subr.mxu0 0.0
    %6387 = vmatpush1.xpose.msra.mxu0 0.0
    %6388 = vmatprep.subr.mxu0 0.0
    %6389 = vmatpush1.xpose.msra.mxu0 0.0
    %6390 = vmatprep.subr.mxu0 0.0
    %6391 = vmatpush1.xpose.msra.mxu0 0.0
    %6392 = vmatprep.subr.mxu0 0.0
    %6393 = vmatpush1.xpose.msra.mxu0 0.0
    %6394 = vmatprep.subr.mxu0 0.0
    %6395 = vmatpush1.xpose.msra.mxu0 0.0
    %6396 = vmatprep.subr.mxu0 0.0
    %6397 = vmatpush1.xpose.msra.mxu0 0.0
    %6398 = vmatprep.subr.mxu0 0.0
    %6399 = vmatpush1.xpose.msra.mxu0 0.0
    %6400 = vmatprep.subr.mxu0 0.0
    %6401 = vmatpush1.xpose.msra.mxu0 0.0
    %6402 = vmatprep.subr.mxu0 0.0
    %6403 = vmatpush1.xpose.msra.mxu0 0.0
    %6404 = vmatprep.subr.mxu0 0.0
    %6405 = vmatpush1.xpose.msra.mxu0 0.0
    %6406 = vmatprep.subr.mxu0 0.0
    %6407 = vmatpush1.xpose.msra.mxu0 0.0
    %6408 = vmatprep.subr.mxu0 0.0
    %6409 = vmatpush1.xpose.msra.mxu0 0.0
    %6410 = vmatprep.subr.mxu0 0.0
    %6411 = vmatpush1.xpose.msra.mxu0 0.0
    %6412 = vmatprep.subr.mxu0 0.0
    %6413 = vmatpush1.xpose.msra.mxu0 0.0
    %6414 = vmatprep.subr.mxu0 0.0
    %6415 = vmatpush1.xpose.msra.mxu0 0.0
    %6416 = vmatprep.subr.mxu0 0.0
    %6417 = vmatpush1.xpose.msra.mxu0 0.0
    %6418 = vmatprep.subr.mxu0 0.0
    %6419 = vmatpush1.xpose.msra.mxu0 0.0
    %6420 = vmatprep.subr.mxu0 0.0
    %6421 = vmatpush1.xpose.msra.mxu0 0.0
    %6422 = vmatprep.subr.mxu0 0.0
    %6423 = vmatpush1.xpose.msra.mxu0 0.0
    %6424 = vmatprep.subr.mxu0 0.0
    %6425 = vmatpush1.xpose.msra.mxu0 0.0
    %6426 = vmatprep.subr.mxu0 0.0
    %6427 = vmatpush1.xpose.msra.mxu0 0.0
    %6428 = vmatprep.subr.mxu0 0.0
    %6429 = vmatpush1.xpose.msra.mxu0 0.0
    %6430 = vmatprep.subr.mxu0 0.0
    %6431 = vmatpush1.xpose.msra.mxu0 0.0
    %6432 = vmatprep.mubr.f32.mxu0 0.0
    %6433 = vmatmul.mubr.f32.gmra.mrb[0].mxu0 %v6352
    %v6434 = vpop.f32.mrb[0].mxu0
    %v6435 = vadd.f32 0.0, %v6434
    %v6436 = vpop.f32.mrb[0].mxu0
    %6437 = vmatprep.mubr.f32.mxu0 0.0
    %6438 = vmatmul.mubr.f32.gmra.mrb[0].mxu0 %v6354
    %v6439 = vpop.f32.mrb[0].mxu0
    %v6440 = vadd.f32 0.0, %v6439
    %v6441 = vpop.f32.mrb[0].mxu0
    %6442 = vmatprep.mubr.f32.mxu0 0.0
    %6443 = vmatmul.mubr.f32.gmra.mrb[0].mxu0 %v6356
    %v6444 = vpop.f32.mrb[0].mxu0
    %v6445 = vadd.f32 0.0, %v6444
    %v6446 = vpop.f32.mrb[0].mxu0
    %6447 = vmatprep.mubr.f32.mxu0 0.0
    %6448 = vmatmul.mubr.f32.gmra.mrb[0].mxu0 %v6358
    %v6449 = vpop.f32.mrb[0].mxu0
    %v6450 = vadd.f32 0.0, %v6449
    %v6451 = vpop.f32.mrb[0].mxu0
    %6452 = vdwg.mxu0
    %v6453 = vmul.f32 %v6435, 0.35355338
    %v6454 = vmul.f32 %v6440, 0.35355338
    %v6455 = vmul.f32 %v6445, 0.35355338
    %v6456 = vmul.f32 %v6450, 0.35355338
    %v6457 = vadd.f32 %v6453, %v89
    %v6458 = vadd.f32 %v6454, %v90
    %v6459 = vadd.f32 %v6455, %v91
    %v6460 = vadd.f32 %v6456, %v92
    %v6461 = vsel %vm354, %v6457, -inf
    %6462 = vmax.xlane.f32.xlu0 %v6461
    %v6463 = vpop.xlane.xlu0 %6462
    %v6464 = vsel %vm354, %v6458, -inf
    %6465 = vmax.xlane.f32.xlu0 %v6464
    %v6466 = vpop.xlane.xlu0 %6465
    %v6467 = vsel %vm354, %v6459, -inf
    %6468 = vmax.xlane.f32.xlu0 %v6467
    %v6469 = vpop.xlane.xlu0 %6468
    %v6470 = vsel %vm354, %v6460, -inf
    %6471 = vmax.xlane.f32.xlu0 %v6470
    %v6472 = vpop.xlane.xlu0 %6471
    %v6473 = vsub.f32 %v6457, %v6463
    %v6474 = vsub.f32 %v6458, %v6466
    %v6475 = vsub.f32 %v6459, %v6469
    %v6476 = vsub.f32 %v6460, %v6472
    %v6477 = vmul.f32 %v6473, 1.442695
    %v6478 = vpow.pop %v6477
    %v6479 = vmul.f32 %v6474, 1.442695
    %v6480 = vpow.pop %v6479
    %v6481 = vmul.f32 %v6475, 1.442695
    %v6482 = vpow.pop %v6481
    %v6483 = vmul.f32 %v6476, 1.442695
    %v6484 = vpow.pop %v6483
    %v6485 = vsel %vm354, %v6478, 0.0
    %6486 = vadd.xlane.f32.xlu0 %v6485
    %v6487 = vpop.xlane.xlu0 %6486
    %v6488 = vsel %vm354, %v6480, 0.0
    %6489 = vadd.xlane.f32.xlu0 %v6488
    %v6490 = vpop.xlane.xlu0 %6489
    %v6491 = vsel %vm354, %v6482, 0.0
    %6492 = vadd.xlane.f32.xlu0 %v6491
    %v6493 = vpop.xlane.xlu0 %6492
    %v6494 = vsel %vm354, %v6484, 0.0
    %6495 = vadd.xlane.f32.xlu0 %v6494
    %v6496 = vpop.xlane.xlu0 %6495
    %v6497 = vrcp.pop %v6487
    %v6498 = vrcp.pop %v6490
    %v6499 = vrcp.pop %v6493
    %v6500 = vrcp.pop %v6496
    %v6501 = vmul.f32 %v6478, %v6497
    %v6502 = vmul.f32 %v6480, %v6498
    %v6503 = vmul.f32 %v6482, %v6499
    %v6504 = vmul.f32 %v6484, %v6500
    %6505 = vrot.lane.b32.xlu0 %v5765, 80
    %v6506 = vpop.permute.xlu0 %6505
    %6507 = vrot.lane.b32.xlu0 %v5770, 80
    %v6508 = vpop.permute.xlu0 %6507
    %6509 = vrot.lane.b32.xlu0 %v5775, 80
    %v6510 = vpop.permute.xlu0 %6509
    %6511 = vrot.lane.b32.xlu0 %v5780, 80
    %v6512 = vpop.permute.xlu0 %6511
    %v6518 = vsel %vm354, %v6501, 0
    %v6521 = vsel %vm354, %v6502, 0
    %v6524 = vsel %vm354, %v6503, 0
    %v6527 = vsel %vm354, %v6504, 0
    %6529 = vmatprep.subr.mxu0 0.0
    %6530 = vmatpush1.msra.mxu0 %v6506
    %6531 = vmatprep.subr.mxu0 0.0
    %6532 = vmatpush1.msra.mxu0 %v6508
    %6533 = vmatprep.subr.mxu0 0.0
    %6534 = vmatpush1.msra.mxu0 %v6510
    %6535 = vmatprep.subr.mxu0 0.0
    %6536 = vmatpush1.msra.mxu0 %v6512
    %6537 = vmatprep.subr.mxu0 0.0
    %6538 = vmatpush1.msra.mxu0 0.0
    %6539 = vmatprep.subr.mxu0 0.0
    %6540 = vmatpush1.msra.mxu0 0.0
    %6541 = vmatprep.subr.mxu0 0.0
    %6542 = vmatpush1.msra.mxu0 0.0
    %6543 = vmatprep.subr.mxu0 0.0
    %6544 = vmatpush1.msra.mxu0 0.0
    %6545 = vmatprep.subr.mxu0 0.0
    %6546 = vmatpush1.msra.mxu0 0.0
    %6547 = vmatprep.subr.mxu0 0.0
    %6548 = vmatpush1.msra.mxu0 0.0
    %6549 = vmatprep.subr.mxu0 0.0
    %6550 = vmatpush1.msra.mxu0 0.0
    %6551 = vmatprep.subr.mxu0 0.0
    %6552 = vmatpush1.msra.mxu0 0.0
    %6553 = vmatprep.subr.mxu0 0.0
    %6554 = vmatpush1.msra.mxu0 0.0
    %6555 = vmatprep.subr.mxu0 0.0
    %6556 = vmatpush1.msra.mxu0 0.0
    %6557 = vmatprep.subr.mxu0 0.0
    %6558 = vmatpush1.msra.mxu0 0.0
    %6559 = vmatprep.subr.mxu0 0.0
    %6560 = vmatpush1.msra.mxu0 0.0
    %6561 = vmatprep.subr.mxu0 0.0
    %6562 = vmatpush1.msra.mxu0 0.0
    %6563 = vmatprep.subr.mxu0 0.0
    %6564 = vmatpush1.msra.mxu0 0.0
    %6565 = vmatprep.subr.mxu0 0.0
    %6566 = vmatpush1.msra.mxu0 0.0
    %6567 = vmatprep.subr.mxu0 0.0
    %6568 = vmatpush1.msra.mxu0 0.0
    %6569 = vmatprep.subr.mxu0 0.0
    %6570 = vmatpush1.msra.mxu0 0.0
    %6571 = vmatprep.subr.mxu0 0.0
    %6572 = vmatpush1.msra.mxu0 0.0
    %6573 = vmatprep.subr.mxu0 0.0
    %6574 = vmatpush1.msra.mxu0 0.0
    %6575 = vmatprep.subr.mxu0 0.0
    %6576 = vmatpush1.msra.mxu0 0.0
    %6577 = vmatprep.subr.mxu0 0.0
    %6578 = vmatpush1.msra.mxu0 0.0
    %6579 = vmatprep.subr.mxu0 0.0
    %6580 = vmatpush1.msra.mxu0 0.0
    %6581 = vmatprep.subr.mxu0 0.0
    %6582 = vmatpush1.msra.mxu0 0.0
    %6583 = vmatprep.subr.mxu0 0.0
    %6584 = vmatpush1.msra.mxu0 0.0
    %6585 = vmatprep.subr.mxu0 0.0
    %6586 = vmatpush1.msra.mxu0 0.0
    %6587 = vmatprep.subr.mxu0 0.0
    %6588 = vmatpush1.msra.mxu0 0.0
    %6589 = vmatprep.subr.mxu0 0.0
    %6590 = vmatpush1.msra.mxu0 0.0
    %6591 = vmatprep.subr.mxu0 0.0
    %6592 = vmatpush1.msra.mxu0 0.0
    %6593 = vmatprep.mubr.f32.mxu0 0.0
    %6594 = vmatmul.mubr.f32.gmra.mrb[0].mxu0 %v6518
    %v6595 = vpop.f32.mrb[0].mxu0
    %v6596 = vadd.f32 0.0, %v6595
    %v6597 = vpop.f32.mrb[0].mxu0
    %6598 = vmatprep.mubr.f32.mxu0 0.0
    %6599 = vmatmul.mubr.f32.gmra.mrb[0].mxu0 %v6521
    %v6600 = vpop.f32.mrb[0].mxu0
    %v6601 = vadd.f32 0.0, %v6600
    %v6602 = vpop.f32.mrb[0].mxu0
    %6603 = vmatprep.mubr.f32.mxu0 0.0
    %6604 = vmatmul.mubr.f32.gmra.mrb[0].mxu0 %v6524
    %v6605 = vpop.f32.mrb[0].mxu0
    %v6606 = vadd.f32 0.0, %v6605
    %v6607 = vpop.f32.mrb[0].mxu0
    %6608 = vmatprep.mubr.f32.mxu0 0.0
    %6609 = vmatmul.mubr.f32.gmra.mrb[0].mxu0 %v6527
    %v6610 = vpop.f32.mrb[0].mxu0
    %v6611 = vadd.f32 0.0, %v6610
    %v6612 = vpop.f32.mrb[0].mxu0
    %6613 = vdwg.mxu0
    %6614 = vrot.lane.b32.xlu0 %v5659, 104
    %v6615 = vpop.permute.xlu0 %6614
    %6616 = vrot.lane.b32.xlu0 %v5664, 104
    %v6617 = vpop.permute.xlu0 %6616
    %6618 = vrot.lane.b32.xlu0 %v5669, 104
    %v6619 = vpop.permute.xlu0 %6618
    %6620 = vrot.lane.b32.xlu0 %v5674, 104
    %v6621 = vpop.permute.xlu0 %6620
    %6622 = vrot.lane.b32.xlu0 %v5765, 104
    %v6623 = vpop.permute.xlu0 %6622
    %6624 = vrot.lane.b32.xlu0 %v5770, 104
    %v6625 = vpop.permute.xlu0 %6624
    %6626 = vrot.lane.b32.xlu0 %v5775, 104
    %v6627 = vpop.permute.xlu0 %6626
    %6628 = vrot.lane.b32.xlu0 %v5780, 104
    %v6629 = vpop.permute.xlu0 %6628
    %v6630 = vsel %vm469, %v6615, 0
    %v6632 = vsel %vm469, %v6617, 0
    %v6634 = vsel %vm469, %v6619, 0
    %v6636 = vsel %vm469, %v6621, 0
    %v6638 = vsel %vm469, %v6623, 0
    %v6640 = vsel %vm469, %v6625, 0
    %v6642 = vsel %vm469, %v6627, 0
    %v6644 = vsel %vm469, %v6629, 0
    %6646 = vmatprep.subr.mxu0 0.0
    %6647 = vmatpush1.xpose.msra.mxu0 %v6638
    %6648 = vmatprep.subr.mxu0 0.0
    %6649 = vmatpush1.xpose.msra.mxu0 %v6640
    %6650 = vmatprep.subr.mxu0 0.0
    %6651 = vmatpush1.xpose.msra.mxu0 %v6642
    %6652 = vmatprep.subr.mxu0 0.0
    %6653 = vmatpush1.xpose.msra.mxu0 %v6644
    %6654 = vmatprep.subr.mxu0 0.0
    %6655 = vmatpush1.xpose.msra.mxu0 0.0
    %6656 = vmatprep.subr.mxu0 0.0
    %6657 = vmatpush1.xpose.msra.mxu0 0.0
    %6658 = vmatprep.subr.mxu0 0.0
    %6659 = vmatpush1.xpose.msra.mxu0 0.0
    %6660 = vmatprep.subr.mxu0 0.0
    %6661 = vmatpush1.xpose.msra.mxu0 0.0
    %6662 = vmatprep.subr.mxu0 0.0
    %6663 = vmatpush1.xpose.msra.mxu0 0.0
    %6664 = vmatprep.subr.mxu0 0.0
    %6665 = vmatpush1.xpose.msra.mxu0 0.0
    %6666 = vmatprep.subr.mxu0 0.0
    %6667 = vmatpush1.xpose.msra.mxu0 0.0
    %6668 = vmatprep.subr.mxu0 0.0
    %6669 = vmatpush1.xpose.msra.mxu0 0.0
    %6670 = vmatprep.subr.mxu0 0.0
    %6671 = vmatpush1.xpose.msra.mxu0 0.0
    %6672 = vmatprep.subr.mxu0 0.0
    %6673 = vmatpush1.xpose.msra.mxu0 0.0
    %6674 = vmatprep.subr.mxu0 0.0
    %6675 = vmatpush1.xpose.msra.mxu0 0.0
    %6676 = vmatprep.subr.mxu0 0.0
    %6677 = vmatpush1.xpose.msra.mxu0 0.0
    %6678 = vmatprep.subr.mxu0 0.0
    %6679 = vmatpush1.xpose.msra.mxu0 0.0
    %6680 = vmatprep.subr.mxu0 0.0
    %6681 = vmatpush1.xpose.msra.mxu0 0.0
    %6682 = vmatprep.subr.mxu0 0.0
    %6683 = vmatpush1.xpose.msra.mxu0 0.0
    %6684 = vmatprep.subr.mxu0 0.0
    %6685 = vmatpush1.xpose.msra.mxu0 0.0
    %6686 = vmatprep.subr.mxu0 0.0
    %6687 = vmatpush1.xpose.msra.mxu0 0.0
    %6688 = vmatprep.subr.mxu0 0.0
    %6689 = vmatpush1.xpose.msra.mxu0 0.0
    %6690 = vmatprep.subr.mxu0 0.0
    %6691 = vmatpush1.xpose.msra.mxu0 0.0
    %6692 = vmatprep.subr.mxu0 0.0
    %6693 = vmatpush1.xpose.msra.mxu0 0.0
    %6694 = vmatprep.subr.mxu0 0.0
    %6695 = vmatpush1.xpose.msra.mxu0 0.0
    %6696 = vmatprep.subr.mxu0 0.0
    %6697 = vmatpush1.xpose.msra.mxu0 0.0
    %6698 = vmatprep.subr.mxu0 0.0
    %6699 = vmatpush1.xpose.msra.mxu0 0.0
    %6700 = vmatprep.subr.mxu0 0.0
    %6701 = vmatpush1.xpose.msra.mxu0 0.0
    %6702 = vmatprep.subr.mxu0 0.0
    %6703 = vmatpush1.xpose.msra.mxu0 0.0
    %6704 = vmatprep.subr.mxu0 0.0
    %6705 = vmatpush1.xpose.msra.mxu0 0.0
    %6706 = vmatprep.subr.mxu0 0.0
    %6707 = vmatpush1.xpose.msra.mxu0 0.0
    %6708 = vmatprep.subr.mxu0 0.0
    %6709 = vmatpush1.xpose.msra.mxu0 0.0
    %6710 = vmatprep.mubr.f32.mxu0 0.0
    %6711 = vmatmul.mubr.f32.gmra.mrb[0].mxu0 %v6630
    %v6712 = vpop.f32.mrb[0].mxu0
    %v6713 = vadd.f32 0.0, %v6712
    %v6714 = vpop.f32.mrb[0].mxu0
    %6715 = vmatprep.mubr.f32.mxu0 0.0
    %6716 = vmatmul.mubr.f32.gmra.mrb[0].mxu0 %v6632
    %v6717 = vpop.f32.mrb[0].mxu0
    %v6718 = vadd.f32 0.0, %v6717
    %v6719 = vpop.f32.mrb[0].mxu0
    %6720 = vmatprep.mubr.f32.mxu0 0.0
    %6721 = vmatmul.mubr.f32.gmra.mrb[0].mxu0 %v6634
    %v6722 = vpop.f32.mrb[0].mxu0
    %v6723 = vadd.f32 0.0, %v6722
    %v6724 = vpop.f32.mrb[0].mxu0
    %6725 = vmatprep.mubr.f32.mxu0 0.0
    %6726 = vmatmul.mubr.f32.gmra.mrb[0].mxu0 %v6636
    %v6727 = vpop.f32.mrb[0].mxu0
    %v6728 = vadd.f32 0.0, %v6727
    %v6729 = vpop.f32.mrb[0].mxu0
    %6730 = vdwg.mxu0
    %v6731 = vmul.f32 %v6713, 0.35355338
    %v6732 = vmul.f32 %v6718, 0.35355338
    %v6733 = vmul.f32 %v6723, 0.35355338
    %v6734 = vmul.f32 %v6728, 0.35355338
    %v6735 = vadd.f32 %v6731, %v89
    %v6736 = vadd.f32 %v6732, %v90
    %v6737 = vadd.f32 %v6733, %v91
    %v6738 = vadd.f32 %v6734, %v92
    %v6739 = vsel %vm354, %v6735, -inf
    %6740 = vmax.xlane.f32.xlu0 %v6739
    %v6741 = vpop.xlane.xlu0 %6740
    %v6742 = vsel %vm354, %v6736, -inf
    %6743 = vmax.xlane.f32.xlu0 %v6742
    %v6744 = vpop.xlane.xlu0 %6743
    %v6745 = vsel %vm354, %v6737, -inf
    %6746 = vmax.xlane.f32.xlu0 %v6745
    %v6747 = vpop.xlane.xlu0 %6746
    %v6748 = vsel %vm354, %v6738, -inf
    %6749 = vmax.xlane.f32.xlu0 %v6748
    %v6750 = vpop.xlane.xlu0 %6749
    %v6751 = vsub.f32 %v6735, %v6741
    %v6752 = vsub.f32 %v6736, %v6744
    %v6753 = vsub.f32 %v6737, %v6747
    %v6754 = vsub.f32 %v6738, %v6750
    %v6755 = vmul.f32 %v6751, 1.442695
    %v6756 = vpow.pop %v6755
    %v6757 = vmul.f32 %v6752, 1.442695
    %v6758 = vpow.pop %v6757
    %v6759 = vmul.f32 %v6753, 1.442695
    %v6760 = vpow.pop %v6759
    %v6761 = vmul.f32 %v6754, 1.442695
    %v6762 = vpow.pop %v6761
    %v6763 = vsel %vm354, %v6756, 0.0
    %6764 = vadd.xlane.f32.xlu0 %v6763
    %v6765 = vpop.xlane.xlu0 %6764
    %v6766 = vsel %vm354, %v6758, 0.0
    %6767 = vadd.xlane.f32.xlu0 %v6766
    %v6768 = vpop.xlane.xlu0 %6767
    %v6769 = vsel %vm354, %v6760, 0.0
    %6770 = vadd.xlane.f32.xlu0 %v6769
    %v6771 = vpop.xlane.xlu0 %6770
    %v6772 = vsel %vm354, %v6762, 0.0
    %6773 = vadd.xlane.f32.xlu0 %v6772
    %v6774 = vpop.xlane.xlu0 %6773
    %v6775 = vrcp.pop %v6765
    %v6776 = vrcp.pop %v6768
    %v6777 = vrcp.pop %v6771
    %v6778 = vrcp.pop %v6774
    %v6779 = vmul.f32 %v6756, %v6775
    %v6780 = vmul.f32 %v6758, %v6776
    %v6781 = vmul.f32 %v6760, %v6777
    %v6782 = vmul.f32 %v6762, %v6778
    %6783 = vrot.lane.b32.xlu0 %v5765, 72
    %v6784 = vpop.permute.xlu0 %6783
    %6785 = vrot.lane.b32.xlu0 %v5770, 72
    %v6786 = vpop.permute.xlu0 %6785
    %6787 = vrot.lane.b32.xlu0 %v5775, 72
    %v6788 = vpop.permute.xlu0 %6787
    %6789 = vrot.lane.b32.xlu0 %v5780, 72
    %v6790 = vpop.permute.xlu0 %6789
    %v6796 = vsel %vm354, %v6779, 0
    %v6799 = vsel %vm354, %v6780, 0
    %v6802 = vsel %vm354, %v6781, 0
    %v6805 = vsel %vm354, %v6782, 0
    %6807 = vmatprep.subr.mxu0 0.0
    %6808 = vmatpush1.msra.mxu0 %v6784
    %6809 = vmatprep.subr.mxu0 0.0
    %6810 = vmatpush1.msra.mxu0 %v6786
    %6811 = vmatprep.subr.mxu0 0.0
    %6812 = vmatpush1.msra.mxu0 %v6788
    %6813 = vmatprep.subr.mxu0 0.0
    %6814 = vmatpush1.msra.mxu0 %v6790
    %6815 = vmatprep.subr.mxu0 0.0
    %6816 = vmatpush1.msra.mxu0 0.0
    %6817 = vmatprep.subr.mxu0 0.0
    %6818 = vmatpush1.msra.mxu0 0.0
    %6819 = vmatprep.subr.mxu0 0.0
    %6820 = vmatpush1.msra.mxu0 0.0
    %6821 = vmatprep.subr.mxu0 0.0
    %6822 = vmatpush1.msra.mxu0 0.0
    %6823 = vmatprep.subr.mxu0 0.0
    %6824 = vmatpush1.msra.mxu0 0.0
    %6825 = vmatprep.subr.mxu0 0.0
    %6826 = vmatpush1.msra.mxu0 0.0
    %6827 = vmatprep.subr.mxu0 0.0
    %6828 = vmatpush1.msra.mxu0 0.0
    %6829 = vmatprep.subr.mxu0 0.0
    %6830 = vmatpush1.msra.mxu0 0.0
    %6831 = vmatprep.subr.mxu0 0.0
    %6832 = vmatpush1.msra.mxu0 0.0
    %6833 = vmatprep.subr.mxu0 0.0
    %6834 = vmatpush1.msra.mxu0 0.0
    %6835 = vmatprep.subr.mxu0 0.0
    %6836 = vmatpush1.msra.mxu0 0.0
    %6837 = vmatprep.subr.mxu0 0.0
    %6838 = vmatpush1.msra.mxu0 0.0
    %6839 = vmatprep.subr.mxu0 0.0
    %6840 = vmatpush1.msra.mxu0 0.0
    %6841 = vmatprep.subr.mxu0 0.0
    %6842 = vmatpush1.msra.mxu0 0.0
    %6843 = vmatprep.subr.mxu0 0.0
    %6844 = vmatpush1.msra.mxu0 0.0
    %6845 = vmatprep.subr.mxu0 0.0
    %6846 = vmatpush1.msra.mxu0 0.0
    %6847 = vmatprep.subr.mxu0 0.0
    %6848 = vmatpush1.msra.mxu0 0.0
    %6849 = vmatprep.subr.mxu0 0.0
    %6850 = vmatpush1.msra.mxu0 0.0
    %6851 = vmatprep.subr.mxu0 0.0
    %6852 = vmatpush1.msra.mxu0 0.0
    %6853 = vmatprep.subr.mxu0 0.0
    %6854 = vmatpush1.msra.mxu0 0.0
    %6855 = vmatprep.subr.mxu0 0.0
    %6856 = vmatpush1.msra.mxu0 0.0
    %6857 = vmatprep.subr.mxu0 0.0
    %6858 = vmatpush1.msra.mxu0 0.0
    %6859 = vmatprep.subr.mxu0 0.0
    %6860 = vmatpush1.msra.mxu0 0.0
    %6861 = vmatprep.subr.mxu0 0.0
    %6862 = vmatpush1.msra.mxu0 0.0
    %6863 = vmatprep.subr.mxu0 0.0
    %6864 = vmatpush1.msra.mxu0 0.0
    %6865 = vmatprep.subr.mxu0 0.0
    %6866 = vmatpush1.msra.mxu0 0.0
    %6867 = vmatprep.subr.mxu0 0.0
    %6868 = vmatpush1.msra.mxu0 0.0
    %6869 = vmatprep.subr.mxu0 0.0
    %6870 = vmatpush1.msra.mxu0 0.0
    %6871 = vmatprep.mubr.f32.mxu0 0.0
    %6872 = vmatmul.mubr.f32.gmra.mrb[0].mxu0 %v6796
    %v6873 = vpop.f32.mrb[0].mxu0
    %v6874 = vadd.f32 0.0, %v6873
    %v6875 = vpop.f32.mrb[0].mxu0
    %6876 = vmatprep.mubr.f32.mxu0 0.0
    %6877 = vmatmul.mubr.f32.gmra.mrb[0].mxu0 %v6799
    %v6878 = vpop.f32.mrb[0].mxu0
    %v6879 = vadd.f32 0.0, %v6878
    %v6880 = vpop.f32.mrb[0].mxu0
    %6881 = vmatprep.mubr.f32.mxu0 0.0
    %6882 = vmatmul.mubr.f32.gmra.mrb[0].mxu0 %v6802
    %v6883 = vpop.f32.mrb[0].mxu0
    %v6884 = vadd.f32 0.0, %v6883
    %v6885 = vpop.f32.mrb[0].mxu0
    %6886 = vmatprep.mubr.f32.mxu0 0.0
    %6887 = vmatmul.mubr.f32.gmra.mrb[0].mxu0 %v6805
    %v6888 = vpop.f32.mrb[0].mxu0
    %v6889 = vadd.f32 0.0, %v6888
    %v6890 = vpop.f32.mrb[0].mxu0
    %6891 = vdwg.mxu0
    %6896 = vrot.lane.b32.xlu0 %v6318, 8
    %v6897 = vpop.permute.xlu0 %6896
    %6898 = vrot.lane.b32.xlu0 %v6323, 8
    %v6899 = vpop.permute.xlu0 %6898
    %6900 = vrot.lane.b32.xlu0 %v6328, 8
    %v6901 = vpop.permute.xlu0 %6900
    %6902 = vrot.lane.b32.xlu0 %v6333, 8
    %v6903 = vpop.permute.xlu0 %6902
    %6912 = vrot.lane.b32.xlu0 %v6596, 16
    %v6913 = vpop.permute.xlu0 %6912
    %6914 = vrot.lane.b32.xlu0 %v6601, 16
    %v6915 = vpop.permute.xlu0 %6914
    %6916 = vrot.lane.b32.xlu0 %v6606, 16
    %v6917 = vpop.permute.xlu0 %6916
    %6918 = vrot.lane.b32.xlu0 %v6611, 16
    %v6919 = vpop.permute.xlu0 %6918
    %6928 = vrot.lane.b32.xlu0 %v6874, 24
    %v6929 = vpop.permute.xlu0 %6928
    %6930 = vrot.lane.b32.xlu0 %v6879, 24
    %v6931 = vpop.permute.xlu0 %6930
    %6932 = vrot.lane.b32.xlu0 %v6884, 24
    %v6933 = vpop.permute.xlu0 %6932
    %6934 = vrot.lane.b32.xlu0 %v6889, 24
    %v6935 = vpop.permute.xlu0 %6934
    %v6940 = vsel %vm469, %v6040, %v6897
    %v6941 = vsel %vm469, %v6045, %v6899
    %v6942 = vsel %vm469, %v6050, %v6901
    %v6943 = vsel %vm469, %v6055, %v6903
    %v6944 = vsel %vm1618, %v6940, %v6913
    %v6945 = vsel %vm1618, %v6941, %v6915
    %v6946 = vsel %vm1618, %v6942, %v6917
    %v6947 = vsel %vm1618, %v6943, %v6919
    %v6948 = vsel %vm1623, %v6944, %v6929
    %v6949 = vsel %vm1623, %v6945, %v6931
    %v6950 = vsel %vm1623, %v6946, %v6933
    %v6951 = vsel %vm1623, %v6947, %v6935
    %v6952 = vlaneseq
    %v6953 = vshrl.u32 %v6952, 7
    %v6954 = vsub.s32 0, %v6953
    %v6955 = vrot.slane %v5787, %v6954
    %v6957 = vsel %vm354, %v6948, 0
    %v6960 = vsel %vm354, %v6949, 0
    %v6963 = vsel %vm354, %v6950, 0
    %v6966 = vsel %vm354, %v6951, 0
    %6968 = vmatprep.subr.mxu0 0.0
    %6969 = vmatpush1.msra.mxu0 %v5783
    %6970 = vmatprep.subr.mxu0 0.0
    %6971 = vmatpush1.msra.mxu0 %v5784
    %6972 = vmatprep.subr.mxu0 0.0
    %6973 = vmatpush1.msra.mxu0 %v5785
    %6974 = vmatprep.subr.mxu0 0.0
    %6975 = vmatpush1.msra.mxu0 %v5786
    %6976 = vmatprep.subr.mxu0 0.0
    %6977 = vmatpush1.msra.mxu0 0.0
    %6978 = vmatprep.subr.mxu0 0.0
    %6979 = vmatpush1.msra.mxu0 0.0
    %6980 = vmatprep.subr.mxu0 0.0
    %6981 = vmatpush1.msra.mxu0 0.0
    %6982 = vmatprep.subr.mxu0 0.0
    %6983 = vmatpush1.msra.mxu0 0.0
    %6984 = vmatprep.subr.mxu0 0.0
    %6985 = vmatpush1.msra.mxu0 0.0
    %6986 = vmatprep.subr.mxu0 0.0
    %6987 = vmatpush1.msra.mxu0 0.0
    %6988 = vmatprep.subr.mxu0 0.0
    %6989 = vmatpush1.msra.mxu0 0.0
    %6990 = vmatprep.subr.mxu0 0.0
    %6991 = vmatpush1.msra.mxu0 0.0
    %6992 = vmatprep.subr.mxu0 0.0
    %6993 = vmatpush1.msra.mxu0 0.0
    %6994 = vmatprep.subr.mxu0 0.0
    %6995 = vmatpush1.msra.mxu0 0.0
    %6996 = vmatprep.subr.mxu0 0.0
    %6997 = vmatpush1.msra.mxu0 0.0
    %6998 = vmatprep.subr.mxu0 0.0
    %6999 = vmatpush1.msra.mxu0 0.0
    %7000 = vmatprep.subr.mxu0 0.0
    %7001 = vmatpush1.msra.mxu0 0.0
    %7002 = vmatprep.subr.mxu0 0.0
    %7003 = vmatpush1.msra.mxu0 0.0
    %7004 = vmatprep.subr.mxu0 0.0
    %7005 = vmatpush1.msra.mxu0 0.0
    %7006 = vmatprep.subr.mxu0 0.0
    %7007 = vmatpush1.msra.mxu0 0.0
    %7008 = vmatprep.subr.mxu0 0.0
    %7009 = vmatpush1.msra.mxu0 0.0
    %7010 = vmatprep.subr.mxu0 0.0
    %7011 = vmatpush1.msra.mxu0 0.0
    %7012 = vmatprep.subr.mxu0 0.0
    %7013 = vmatpush1.msra.mxu0 0.0
    %7014 = vmatprep.subr.mxu0 0.0
    %7015 = vmatpush1.msra.mxu0 0.0
    %7016 = vmatprep.subr.mxu0 0.0
    %7017 = vmatpush1.msra.mxu0 0.0
    %7018 = vmatprep.subr.mxu0 0.0
    %7019 = vmatpush1.msra.mxu0 0.0
    %7020 = vmatprep.subr.mxu0 0.0
    %7021 = vmatpush1.msra.mxu0 0.0
    %7022 = vmatprep.subr.mxu0 0.0
    %7023 = vmatpush1.msra.mxu0 0.0
    %7024 = vmatprep.subr.mxu0 0.0
    %7025 = vmatpush1.msra.mxu0 0.0
    %7026 = vmatprep.subr.mxu0 0.0
    %7027 = vmatpush1.msra.mxu0 0.0
    %7028 = vmatprep.subr.mxu0 0.0
    %7029 = vmatpush1.msra.mxu0 0.0
    %7030 = vmatprep.subr.mxu0 0.0
    %7031 = vmatpush1.msra.mxu0 0.0
    %7032 = vmatprep.mubr.f32.mxu0 0.0
    %7033 = vmatmul.mubr.f32.gmra.mrb[0].mxu0 %v6957
    %v7034 = vpop.f32.mrb[0].mxu0
    %v7035 = vadd.f32 %v6955, %v7034
    %v7036 = vpop.f32.mrb[0].mxu0
    %7037 = vmatprep.mubr.f32.mxu0 0.0
    %7038 = vmatmul.mubr.f32.gmra.mrb[0].mxu0 %v6960
    %v7039 = vpop.f32.mrb[0].mxu0
    %v7040 = vadd.f32 %v6955, %v7039
    %v7041 = vpop.f32.mrb[0].mxu0
    %7042 = vmatprep.mubr.f32.mxu0 0.0
    %7043 = vmatmul.mubr.f32.gmra.mrb[0].mxu0 %v6963
    %v7044 = vpop.f32.mrb[0].mxu0
    %v7045 = vadd.f32 %v6955, %v7044
    %v7046 = vpop.f32.mrb[0].mxu0
    %7047 = vmatprep.mubr.f32.mxu0 0.0
    %7048 = vmatmul.mubr.f32.gmra.mrb[0].mxu0 %v6966
    %v7049 = vpop.f32.mrb[0].mxu0
    %v7050 = vadd.f32 %v6955, %v7049
    %v7051 = vpop.f32.mrb[0].mxu0
    %7052 = vdwg.mxu0
    %v7053 = vadd.f32 %v5567, %v7035
    %v7054 = vadd.f32 %v5568, %v7040
    %v7055 = vadd.f32 %v5569, %v7045
    %v7056 = vadd.f32 %v5570, %v7050
    %v7057 = vld [vmem:[#allocation2 + $0x348] sm:$0x1]
    %v7058 = vld [vmem:[#allocation2 + $0x350] sm:$0x1]
    %v7059 = vsel %vm354, %v7053, 0.0
    %7060 = vadd.xlane.f32.xlu0 %v7059
    %v7061 = vpop.xlane.xlu0 %7060
    %v7062 = vsel %vm354, %v7054, 0.0
    %7063 = vadd.xlane.f32.xlu0 %v7062
    %v7064 = vpop.xlane.xlu0 %7063
    %v7065 = vsel %vm354, %v7055, 0.0
    %7066 = vadd.xlane.f32.xlu0 %v7065
    %v7067 = vpop.xlane.xlu0 %7066
    %v7068 = vsel %vm354, %v7056, 0.0
    %7069 = vadd.xlane.f32.xlu0 %v7068
    %v7070 = vpop.xlane.xlu0 %7069
    %v7071 = vmul.f32 %v7061, %v1747
    %v7072 = vmul.f32 %v7064, %v1747
    %v7073 = vmul.f32 %v7067, %v1747
    %v7074 = vmul.f32 %v7070, %v1747
    %v7075 = vsub.f32 %v7053, %v7071
    %v7076 = vsub.f32 %v7054, %v7072
    %v7077 = vsub.f32 %v7055, %v7073
    %v7078 = vsub.f32 %v7056, %v7074
    %v7079 = vmul.f32 %v7075, %v7075
    %v7080 = vmul.f32 %v7076, %v7076
    %v7081 = vmul.f32 %v7077, %v7077
    %v7082 = vmul.f32 %v7078, %v7078
    %v7083 = vsel %vm354, %v7079, 0.0
    %7084 = vadd.xlane.f32.xlu0 %v7083
    %v7085 = vpop.xlane.xlu0 %7084
    %v7086 = vsel %vm354, %v7080, 0.0
    %7087 = vadd.xlane.f32.xlu0 %v7086
    %v7088 = vpop.xlane.xlu0 %7087
    %v7089 = vsel %vm354, %v7081, 0.0
    %7090 = vadd.xlane.f32.xlu0 %v7089
    %v7091 = vpop.xlane.xlu0 %7090
    %v7092 = vsel %vm354, %v7082, 0.0
    %7093 = vadd.xlane.f32.xlu0 %v7092
    %v7094 = vpop.xlane.xlu0 %7093
    %v7095 = vmul.f32 %v7085, %v1747
    %v7096 = vmul.f32 %v7088, %v1747
    %v7097 = vmul.f32 %v7091, %v1747
    %v7098 = vmul.f32 %v7094, %v1747
    %v7099 = vadd.f32 %v7095, 1e-05
    %v7100 = vadd.f32 %v7096, 1e-05
    %v7101 = vadd.f32 %v7097, 1e-05
    %v7102 = vadd.f32 %v7098, 1e-05
    %v7103 = vrsqrt.pop %v7099
    %v7104 = vrsqrt.pop %v7100
    %v7105 = vrsqrt.pop %v7101
    %v7106 = vrsqrt.pop %v7102
    %v7107 = vmul.f32 %v7075, %v7103
    %v7108 = vmul.f32 %v7076, %v7104
    %v7109 = vmul.f32 %v7077, %v7105
    %v7110 = vmul.f32 %v7078, %v7106
    %v7111 = vlaneseq
    %v7112 = vshrl.u32 %v7111, 7
    %v7113 = vsub.s32 0, %v7112
    %v7114 = vrot.slane %v7057, %v7113
    %v7115 = vmul.f32 %v7107, %v7114
    %v7116 = vmul.f32 %v7108, %v7114
    %v7117 = vmul.f32 %v7109, %v7114
    %v7118 = vmul.f32 %v7110, %v7114
    %v7119 = vlaneseq
    %v7120 = vshrl.u32 %v7119, 7
    %v7121 = vsub.s32 0, %v7120
    %v7122 = vrot.slane %v7058, %v7121
    %v7123 = vadd.f32 %v7115, %v7122
    %v7124 = vadd.f32 %v7116, %v7122
    %v7125 = vadd.f32 %v7117, %v7122
    %v7126 = vadd.f32 %v7118, %v7122
    %v7127 = vld [vmem:[#allocation2 + $0x2c8] sm:$0xff]
    %v7128 = vld [vmem:[#allocation2 + $0x2d0] sm:$0xff]
    %v7129 = vld [vmem:[#allocation2 + $0x2d8] sm:$0xff]
    %v7130 = vld [vmem:[#allocation2 + $0x2e0] sm:$0xff]
    %v7131 = vld [vmem:[#allocation2 + $0x2e8] sm:$0x1]
    %v7132 = vlaneseq
    %v7133 = vshrl.u32 %v7132, 7
    %v7134 = vsub.s32 0, %v7133
    %v7135 = vrot.slane %v7131, %v7134
    %v7137 = vsel %vm354, %v7123, 0
    %v7140 = vsel %vm354, %v7124, 0
    %v7143 = vsel %vm354, %v7125, 0
    %v7146 = vsel %vm354, %v7126, 0
    %7148 = vmatprep.subr.mxu0 0.0
    %7149 = vmatpush1.msra.mxu0 %v7127
    %7150 = vmatprep.subr.mxu0 0.0
    %7151 = vmatpush1.msra.mxu0 %v7128
    %7152 = vmatprep.subr.mxu0 0.0
    %7153 = vmatpush1.msra.mxu0 %v7129
    %7154 = vmatprep.subr.mxu0 0.0
    %7155 = vmatpush1.msra.mxu0 %v7130
    %7156 = vmatprep.subr.mxu0 0.0
    %7157 = vmatpush1.msra.mxu0 0.0
    %7158 = vmatprep.subr.mxu0 0.0
    %7159 = vmatpush1.msra.mxu0 0.0
    %7160 = vmatprep.subr.mxu0 0.0
    %7161 = vmatpush1.msra.mxu0 0.0
    %7162 = vmatprep.subr.mxu0 0.0
    %7163 = vmatpush1.msra.mxu0 0.0
    %7164 = vmatprep.subr.mxu0 0.0
    %7165 = vmatpush1.msra.mxu0 0.0
    %7166 = vmatprep.subr.mxu0 0.0
    %7167 = vmatpush1.msra.mxu0 0.0
    %7168 = vmatprep.subr.mxu0 0.0
    %7169 = vmatpush1.msra.mxu0 0.0
    %7170 = vmatprep.subr.mxu0 0.0
    %7171 = vmatpush1.msra.mxu0 0.0
    %7172 = vmatprep.subr.mxu0 0.0
    %7173 = vmatpush1.msra.mxu0 0.0
    %7174 = vmatprep.subr.mxu0 0.0
    %7175 = vmatpush1.msra.mxu0 0.0
    %7176 = vmatprep.subr.mxu0 0.0
    %7177 = vmatpush1.msra.mxu0 0.0
    %7178 = vmatprep.subr.mxu0 0.0
    %7179 = vmatpush1.msra.mxu0 0.0
    %7180 = vmatprep.subr.mxu0 0.0
    %7181 = vmatpush1.msra.mxu0 0.0
    %7182 = vmatprep.subr.mxu0 0.0
    %7183 = vmatpush1.msra.mxu0 0.0
    %7184 = vmatprep.subr.mxu0 0.0
    %7185 = vmatpush1.msra.mxu0 0.0
    %7186 = vmatprep.subr.mxu0 0.0
    %7187 = vmatpush1.msra.mxu0 0.0
    %7188 = vmatprep.subr.mxu0 0.0
    %7189 = vmatpush1.msra.mxu0 0.0
    %7190 = vmatprep.subr.mxu0 0.0
    %7191 = vmatpush1.msra.mxu0 0.0
    %7192 = vmatprep.subr.mxu0 0.0
    %7193 = vmatpush1.msra.mxu0 0.0
    %7194 = vmatprep.subr.mxu0 0.0
    %7195 = vmatpush1.msra.mxu0 0.0
    %7196 = vmatprep.subr.mxu0 0.0
    %7197 = vmatpush1.msra.mxu0 0.0
    %7198 = vmatprep.subr.mxu0 0.0
    %7199 = vmatpush1.msra.mxu0 0.0
    %7200 = vmatprep.subr.mxu0 0.0
    %7201 = vmatpush1.msra.mxu0 0.0
    %7202 = vmatprep.subr.mxu0 0.0
    %7203 = vmatpush1.msra.mxu0 0.0
    %7204 = vmatprep.subr.mxu0 0.0
    %7205 = vmatpush1.msra.mxu0 0.0
    %7206 = vmatprep.subr.mxu0 0.0
    %7207 = vmatpush1.msra.mxu0 0.0
    %7208 = vmatprep.subr.mxu0 0.0
    %7209 = vmatpush1.msra.mxu0 0.0
    %7210 = vmatprep.subr.mxu0 0.0
    %7211 = vmatpush1.msra.mxu0 0.0
    %7212 = vmatprep.mubr.f32.mxu0 0.0
    %7213 = vmatmul.mubr.f32.gmra.mrb[0].mxu0 %v7137
    %v7214 = vpop.f32.mrb[0].mxu0
    %v7215 = vadd.f32 %v7135, %v7214
    %v7216 = vpop.f32.mrb[0].mxu0
    %7217 = vmatprep.mubr.f32.mxu0 0.0
    %7218 = vmatmul.mubr.f32.gmra.mrb[0].mxu0 %v7140
    %v7219 = vpop.f32.mrb[0].mxu0
    %v7220 = vadd.f32 %v7135, %v7219
    %v7221 = vpop.f32.mrb[0].mxu0
    %7222 = vmatprep.mubr.f32.mxu0 0.0
    %7223 = vmatmul.mubr.f32.gmra.mrb[0].mxu0 %v7143
    %v7224 = vpop.f32.mrb[0].mxu0
    %v7225 = vadd.f32 %v7135, %v7224
    %v7226 = vpop.f32.mrb[0].mxu0
    %7227 = vmatprep.mubr.f32.mxu0 0.0
    %7228 = vmatmul.mubr.f32.gmra.mrb[0].mxu0 %v7146
    %v7229 = vpop.f32.mrb[0].mxu0
    %v7230 = vadd.f32 %v7135, %v7229
    %v7231 = vpop.f32.mrb[0].mxu0
    %7232 = vdwg.mxu0
    %v7233 = vmul.f32 %v7215, 0.5
    %v7234 = vmul.f32 %v7220, 0.5
    %v7235 = vmul.f32 %v7225, 0.5
    %v7236 = vmul.f32 %v7230, 0.5
    %v7237 = vmul.f32 %v7215, 0.70710677
    %v7238 = vmul.f32 %v7220, 0.70710677
    %v7239 = vmul.f32 %v7225, 0.70710677
    %v7240 = vmul.f32 %v7230, 0.70710677
    %v7241 = vand.u32 2147483647, %v7237
    %v7242 = vand.u32 2147483647, %v7238
    %v7243 = vand.u32 2147483647, %v7239
    %v7244 = vand.u32 2147483647, %v7240
    %v7245 = vmul.f32 %v7241, 0.3275911
    %v7246 = vmul.f32 %v7242, 0.3275911
    %v7247 = vmul.f32 %v7243, 0.3275911
    %v7248 = vmul.f32 %v7244, 0.3275911
    %v7249 = vadd.f32 %v7245, 1.0
    %v7250 = vadd.f32 %v7246, 1.0
    %v7251 = vadd.f32 %v7247, 1.0
    %v7252 = vadd.f32 %v7248, 1.0
    %v7253 = vrcp.pop %v7249
    %v7254 = vrcp.pop %v7250
    %v7255 = vrcp.pop %v7251
    %v7256 = vrcp.pop %v7252
    %v7257 = vmul.f32 %v7253, 1.0614054
    %v7258 = vmul.f32 %v7254, 1.0614054
    %v7259 = vmul.f32 %v7255, 1.0614054
    %v7260 = vmul.f32 %v7256, 1.0614054
    %v7261 = vadd.f32 %v7257, -1.4531521
    %v7262 = vadd.f32 %v7258, -1.4531521
    %v7263 = vadd.f32 %v7259, -1.4531521
    %v7264 = vadd.f32 %v7260, -1.4531521
    %v7265 = vmul.f32 %v7261, %v7253
    %v7266 = vmul.f32 %v7262, %v7254
    %v7267 = vmul.f32 %v7263, %v7255
    %v7268 = vmul.f32 %v7264, %v7256
    %v7269 = vadd.f32 %v7265, 1.4214138
    %v7270 = vadd.f32 %v7266, 1.4214138
    %v7271 = vadd.f32 %v7267, 1.4214138
    %v7272 = vadd.f32 %v7268, 1.4214138
    %v7273 = vmul.f32 %v7269, %v7253
    %v7274 = vmul.f32 %v7270, %v7254
    %v7275 = vmul.f32 %v7271, %v7255
    %v7276 = vmul.f32 %v7272, %v7256
    %v7277 = vadd.f32 %v7273, -0.28449672
    %v7278 = vadd.f32 %v7274, -0.28449672
    %v7279 = vadd.f32 %v7275, -0.28449672
    %v7280 = vadd.f32 %v7276, -0.28449672
    %v7281 = vmul.f32 %v7277, %v7253
    %v7282 = vmul.f32 %v7278, %v7254
    %v7283 = vmul.f32 %v7279, %v7255
    %v7284 = vmul.f32 %v7280, %v7256
    %v7285 = vadd.f32 %v7281, 0.2548296
    %v7286 = vadd.f32 %v7282, 0.2548296
    %v7287 = vadd.f32 %v7283, 0.2548296
    %v7288 = vadd.f32 %v7284, 0.2548296
    %v7289 = vmul.f32 %v7285, %v7253
    %v7290 = vmul.f32 %v7286, %v7254
    %v7291 = vmul.f32 %v7287, %v7255
    %v7292 = vmul.f32 %v7288, %v7256
    %v7293 = vmul.f32 %v7241, %v7241
    %v7294 = vmul.f32 %v7242, %v7242
    %v7295 = vmul.f32 %v7243, %v7243
    %v7296 = vmul.f32 %v7244, %v7244
    %v7297 = vsub.f32 0.0, %v7293
    %v7298 = vsub.f32 0.0, %v7294
    %v7299 = vsub.f32 0.0, %v7295
    %v7300 = vsub.f32 0.0, %v7296
    %v7301 = vmul.f32 %v7297, 1.442695
    %v7302 = vpow.pop %v7301
    %v7303 = vmul.f32 %v7298, 1.442695
    %v7304 = vpow.pop %v7303
    %v7305 = vmul.f32 %v7299, 1.442695
    %v7306 = vpow.pop %v7305
    %v7307 = vmul.f32 %v7300, 1.442695
    %v7308 = vpow.pop %v7307
    %v7309 = vmul.f32 %v7289, %v7302
    %v7310 = vmul.f32 %v7290, %v7304
    %v7311 = vmul.f32 %v7291, %v7306
    %v7312 = vmul.f32 %v7292, %v7308
    %v7313 = vsub.f32 1.0, %v7309
    %v7314 = vsub.f32 1.0, %v7310
    %v7315 = vsub.f32 1.0, %v7311
    %v7316 = vsub.f32 1.0, %v7312
    %vm7317 = vcmp.ge.f32.partialorder %v7237, 0.0
    %vm7318 = vcmp.ge.f32.partialorder %v7238, 0.0
    %vm7319 = vcmp.ge.f32.partialorder %v7239, 0.0
    %vm7320 = vcmp.ge.f32.partialorder %v7240, 0.0
    %v7321 = vsub.f32 0.0, %v7313
    %v7322 = vsub.f32 0.0, %v7314
    %v7323 = vsub.f32 0.0, %v7315
    %v7324 = vsub.f32 0.0, %v7316
    %v7325 = vsel %vm7317, %v7313, %v7321
    %v7326 = vsel %vm7318, %v7314, %v7322
    %v7327 = vsel %vm7319, %v7315, %v7323
    %v7328 = vsel %vm7320, %v7316, %v7324
    %v7329 = vadd.f32 %v7325, 1.0
    %v7330 = vadd.f32 %v7326, 1.0
    %v7331 = vadd.f32 %v7327, 1.0
    %v7332 = vadd.f32 %v7328, 1.0
    %v7333 = vmul.f32 %v7233, %v7329
    %v7334 = vmul.f32 %v7234, %v7330
    %v7335 = vmul.f32 %v7235, %v7331
    %v7336 = vmul.f32 %v7236, %v7332
    %v7337 = vld [vmem:[#allocation2 + $0x2f0] sm:$0xff]
    %v7338 = vld [vmem:[#allocation2 + $0x2f8] sm:$0xff]
    %v7339 = vld [vmem:[#allocation2 + $0x300] sm:$0xff]
    %v7340 = vld [vmem:[#allocation2 + $0x308] sm:$0xff]
    %v7341 = vld [vmem:[#allocation2 + $0x310] sm:$0xff]
    %v7342 = vld [vmem:[#allocation2 + $0x318] sm:$0xff]
    %v7343 = vld [vmem:[#allocation2 + $0x320] sm:$0xff]
    %v7344 = vld [vmem:[#allocation2 + $0x328] sm:$0xff]
    %v7345 = vld [vmem:[#allocation2 + $0x330] sm:$0x1]
    %v7346 = vlaneseq
    %v7347 = vshrl.u32 %v7346, 7
    %v7348 = vsub.s32 0, %v7347
    %v7349 = vrot.slane %v7345, %v7348
    %v7351 = vsel %vm2027, %v7333, 0
    %v7354 = vsel %vm2027, %v7334, 0
    %v7357 = vsel %vm2027, %v7335, 0
    %v7360 = vsel %vm2027, %v7336, 0
    %7362 = vmatprep.subr.mxu0 0.0
    %7363 = vmatpush1.msra.mxu0 %v7337
    %7364 = vmatprep.subr.mxu0 0.0
    %7365 = vmatpush1.msra.mxu0 %v7338
    %7366 = vmatprep.subr.mxu0 0.0
    %7367 = vmatpush1.msra.mxu0 %v7339
    %7368 = vmatprep.subr.mxu0 0.0
    %7369 = vmatpush1.msra.mxu0 %v7340
    %7370 = vmatprep.subr.mxu0 0.0
    %7371 = vmatpush1.msra.mxu0 %v7341
    %7372 = vmatprep.subr.mxu0 0.0
    %7373 = vmatpush1.msra.mxu0 %v7342
    %7374 = vmatprep.subr.mxu0 0.0
    %7375 = vmatpush1.msra.mxu0 %v7343
    %7376 = vmatprep.subr.mxu0 0.0
    %7377 = vmatpush1.msra.mxu0 %v7344
    %7378 = vmatprep.subr.mxu0 0.0
    %7379 = vmatpush1.msra.mxu0 0.0
    %7380 = vmatprep.subr.mxu0 0.0
    %7381 = vmatpush1.msra.mxu0 0.0
    %7382 = vmatprep.subr.mxu0 0.0
    %7383 = vmatpush1.msra.mxu0 0.0
    %7384 = vmatprep.subr.mxu0 0.0
    %7385 = vmatpush1.msra.mxu0 0.0
    %7386 = vmatprep.subr.mxu0 0.0
    %7387 = vmatpush1.msra.mxu0 0.0
    %7388 = vmatprep.subr.mxu0 0.0
    %7389 = vmatpush1.msra.mxu0 0.0
    %7390 = vmatprep.subr.mxu0 0.0
    %7391 = vmatpush1.msra.mxu0 0.0
    %7392 = vmatprep.subr.mxu0 0.0
    %7393 = vmatpush1.msra.mxu0 0.0
    %7394 = vmatprep.subr.mxu0 0.0
    %7395 = vmatpush1.msra.mxu0 0.0
    %7396 = vmatprep.subr.mxu0 0.0
    %7397 = vmatpush1.msra.mxu0 0.0
    %7398 = vmatprep.subr.mxu0 0.0
    %7399 = vmatpush1.msra.mxu0 0.0
    %7400 = vmatprep.subr.mxu0 0.0
    %7401 = vmatpush1.msra.mxu0 0.0
    %7402 = vmatprep.subr.mxu0 0.0
    %7403 = vmatpush1.msra.mxu0 0.0
    %7404 = vmatprep.subr.mxu0 0.0
    %7405 = vmatpush1.msra.mxu0 0.0
    %7406 = vmatprep.subr.mxu0 0.0
    %7407 = vmatpush1.msra.mxu0 0.0
    %7408 = vmatprep.subr.mxu0 0.0
    %7409 = vmatpush1.msra.mxu0 0.0
    %7410 = vmatprep.subr.mxu0 0.0
    %7411 = vmatpush1.msra.mxu0 0.0
    %7412 = vmatprep.subr.mxu0 0.0
    %7413 = vmatpush1.msra.mxu0 0.0
    %7414 = vmatprep.subr.mxu0 0.0
    %7415 = vmatpush1.msra.mxu0 0.0
    %7416 = vmatprep.subr.mxu0 0.0
    %7417 = vmatpush1.msra.mxu0 0.0
    %7418 = vmatprep.subr.mxu0 0.0
    %7419 = vmatpush1.msra.mxu0 0.0
    %7420 = vmatprep.subr.mxu0 0.0
    %7421 = vmatpush1.msra.mxu0 0.0
    %7422 = vmatprep.subr.mxu0 0.0
    %7423 = vmatpush1.msra.mxu0 0.0
    %7424 = vmatprep.subr.mxu0 0.0
    %7425 = vmatpush1.msra.mxu0 0.0
    %7426 = vmatprep.mubr.f32.mxu0 0.0
    %7427 = vmatmul.mubr.f32.gmra.mrb[0].mxu0 %v7351
    %v7428 = vpop.f32.mrb[0].mxu0
    %v7429 = vadd.f32 %v7349, %v7428
    %v7430 = vpop.f32.mrb[0].mxu0
    %7431 = vmatprep.mubr.f32.mxu0 0.0
    %7432 = vmatmul.mubr.f32.gmra.mrb[0].mxu0 %v7354
    %v7433 = vpop.f32.mrb[0].mxu0
    %v7434 = vadd.f32 %v7349, %v7433
    %v7435 = vpop.f32.mrb[0].mxu0
    %7436 = vmatprep.mubr.f32.mxu0 0.0
    %7437 = vmatmul.mubr.f32.gmra.mrb[0].mxu0 %v7357
    %v7438 = vpop.f32.mrb[0].mxu0
    %v7439 = vadd.f32 %v7349, %v7438
    %v7440 = vpop.f32.mrb[0].mxu0
    %7441 = vmatprep.mubr.f32.mxu0 0.0
    %7442 = vmatmul.mubr.f32.gmra.mrb[0].mxu0 %v7360
    %v7443 = vpop.f32.mrb[0].mxu0
    %v7444 = vadd.f32 %v7349, %v7443
    %v7445 = vpop.f32.mrb[0].mxu0
    %7446 = vdwg.mxu0
    %v7447 = vadd.f32 %v7123, %v7429
    %v7448 = vadd.f32 %v7124, %v7434
    %v7449 = vadd.f32 %v7125, %v7439
    %v7450 = vadd.f32 %v7126, %v7444
    %v7451 = vld [vmem:[#allocation2 + $0x358] sm:$0x1]
    %v7452 = vld [vmem:[#allocation2 + $0x360] sm:$0x1]
    %v7453 = vsel %vm354, %v7447, 0.0
    %7454 = vadd.xlane.f32.xlu0 %v7453
    %v7455 = vpop.xlane.xlu0 %7454
    %v7456 = vsel %vm354, %v7448, 0.0
    %7457 = vadd.xlane.f32.xlu0 %v7456
    %v7458 = vpop.xlane.xlu0 %7457
    %v7459 = vsel %vm354, %v7449, 0.0
    %7460 = vadd.xlane.f32.xlu0 %v7459
    %v7461 = vpop.xlane.xlu0 %7460
    %v7462 = vsel %vm354, %v7450, 0.0
    %7463 = vadd.xlane.f32.xlu0 %v7462
    %v7464 = vpop.xlane.xlu0 %7463
    %v7465 = vmul.f32 %v7455, %v1747
    %v7466 = vmul.f32 %v7458, %v1747
    %v7467 = vmul.f32 %v7461, %v1747
    %v7468 = vmul.f32 %v7464, %v1747
    %v7469 = vsub.f32 %v7447, %v7465
    %v7470 = vsub.f32 %v7448, %v7466
    %v7471 = vsub.f32 %v7449, %v7467
    %v7472 = vsub.f32 %v7450, %v7468
    %v7473 = vmul.f32 %v7469, %v7469
    %v7474 = vmul.f32 %v7470, %v7470
    %v7475 = vmul.f32 %v7471, %v7471
    %v7476 = vmul.f32 %v7472, %v7472
    %v7477 = vsel %vm354, %v7473, 0.0
    %7478 = vadd.xlane.f32.xlu0 %v7477
    %v7479 = vpop.xlane.xlu0 %7478
    %v7480 = vsel %vm354, %v7474, 0.0
    %7481 = vadd.xlane.f32.xlu0 %v7480
    %v7482 = vpop.xlane.xlu0 %7481
    %v7483 = vsel %vm354, %v7475, 0.0
    %7484 = vadd.xlane.f32.xlu0 %v7483
    %v7485 = vpop.xlane.xlu0 %7484
    %v7486 = vsel %vm354, %v7476, 0.0
    %7487 = vadd.xlane.f32.xlu0 %v7486
    %v7488 = vpop.xlane.xlu0 %7487
    %v7489 = vmul.f32 %v7479, %v1747
    %v7490 = vmul.f32 %v7482, %v1747
    %v7491 = vmul.f32 %v7485, %v1747
    %v7492 = vmul.f32 %v7488, %v1747
    %v7493 = vadd.f32 %v7489, 1e-05
    %v7494 = vadd.f32 %v7490, 1e-05
    %v7495 = vadd.f32 %v7491, 1e-05
    %v7496 = vadd.f32 %v7492, 1e-05
    %v7497 = vrsqrt.pop %v7493
    %v7498 = vrsqrt.pop %v7494
    %v7499 = vrsqrt.pop %v7495
    %v7500 = vrsqrt.pop %v7496
    %v7501 = vmul.f32 %v7469, %v7497
    %v7502 = vmul.f32 %v7470, %v7498
    %v7503 = vmul.f32 %v7471, %v7499
    %v7504 = vmul.f32 %v7472, %v7500
    %v7505 = vlaneseq
    %v7506 = vshrl.u32 %v7505, 7
    %v7507 = vsub.s32 0, %v7506
    %v7508 = vrot.slane %v7451, %v7507
    %v7509 = vmul.f32 %v7501, %v7508
    %v7510 = vmul.f32 %v7502, %v7508
    %v7511 = vmul.f32 %v7503, %v7508
    %v7512 = vmul.f32 %v7504, %v7508
    %v7513 = vlaneseq
    %v7514 = vshrl.u32 %v7513, 7
    %v7515 = vsub.s32 0, %v7514
    %v7516 = vrot.slane %v7452, %v7515
    %v7517 = vadd.f32 %v7509, %v7516
    %v7518 = vadd.f32 %v7510, %v7516
    %v7519 = vadd.f32 %v7511, %v7516
    %v7520 = vadd.f32 %v7512, %v7516
    %v7521 = vld [vmem:[#allocation2 + $0x368] sm:$0x1]
    %v7522 = vld [vmem:[#allocation2 + $0x370] sm:$0x1]
    %v7523 = vsel %vm354, %v7517, 0.0
    %7524 = vadd.xlane.f32.xlu0 %v7523
    %v7525 = vpop.xlane.xlu0 %7524
    %v7526 = vsel %vm354, %v7518, 0.0
    %7527 = vadd.xlane.f32.xlu0 %v7526
    %v7528 = vpop.xlane.xlu0 %7527
    %v7529 = vsel %vm354, %v7519, 0.0
    %7530 = vadd.xlane.f32.xlu0 %v7529
    %v7531 = vpop.xlane.xlu0 %7530
    %v7532 = vsel %vm354, %v7520, 0.0
    %7533 = vadd.xlane.f32.xlu0 %v7532
    %v7534 = vpop.xlane.xlu0 %7533
    %v7535 = vmul.f32 %v7525, %v1747
    %v7536 = vmul.f32 %v7528, %v1747
    %v7537 = vmul.f32 %v7531, %v1747
    %v7538 = vmul.f32 %v7534, %v1747
    %v7539 = vsub.f32 %v7517, %v7535
    %v7540 = vsub.f32 %v7518, %v7536
    %v7541 = vsub.f32 %v7519, %v7537
    %v7542 = vsub.f32 %v7520, %v7538
    %v7543 = vmul.f32 %v7539, %v7539
    %v7544 = vmul.f32 %v7540, %v7540
    %v7545 = vmul.f32 %v7541, %v7541
    %v7546 = vmul.f32 %v7542, %v7542
    %v7547 = vsel %vm354, %v7543, 0.0
    %7548 = vadd.xlane.f32.xlu0 %v7547
    %v7549 = vpop.xlane.xlu0 %7548
    %v7550 = vsel %vm354, %v7544, 0.0
    %7551 = vadd.xlane.f32.xlu0 %v7550
    %v7552 = vpop.xlane.xlu0 %7551
    %v7553 = vsel %vm354, %v7545, 0.0
    %7554 = vadd.xlane.f32.xlu0 %v7553
    %v7555 = vpop.xlane.xlu0 %7554
    %v7556 = vsel %vm354, %v7546, 0.0
    %7557 = vadd.xlane.f32.xlu0 %v7556
    %v7558 = vpop.xlane.xlu0 %7557
    %v7559 = vmul.f32 %v7549, %v1747
    %v7560 = vmul.f32 %v7552, %v1747
    %v7561 = vmul.f32 %v7555, %v1747
    %v7562 = vmul.f32 %v7558, %v1747
    %v7563 = vadd.f32 %v7559, 1e-05
    %v7564 = vadd.f32 %v7560, 1e-05
    %v7565 = vadd.f32 %v7561, 1e-05
    %v7566 = vadd.f32 %v7562, 1e-05
    %v7567 = vrsqrt.pop %v7563
    %v7568 = vrsqrt.pop %v7564
    %v7569 = vrsqrt.pop %v7565
    %v7570 = vrsqrt.pop %v7566
    %v7571 = vmul.f32 %v7539, %v7567
    %v7572 = vmul.f32 %v7540, %v7568
    %v7573 = vmul.f32 %v7541, %v7569
    %v7574 = vmul.f32 %v7542, %v7570
    %v7575 = vlaneseq
    %v7576 = vshrl.u32 %v7575, 7
    %v7577 = vsub.s32 0, %v7576
    %v7578 = vrot.slane %v7521, %v7577
    %v7579 = vmul.f32 %v7571, %v7578
    %v7580 = vmul.f32 %v7572, %v7578
    %v7581 = vmul.f32 %v7573, %v7578
    %v7582 = vmul.f32 %v7574, %v7578
    %v7583 = vlaneseq
    %v7584 = vshrl.u32 %v7583, 7
    %v7585 = vsub.s32 0, %v7584
    %v7586 = vrot.slane %v7522, %v7585
    %v7587 = vadd.f32 %v7579, %v7586
    %v7588 = vadd.f32 %v7580, %v7586
    %v7589 = vadd.f32 %v7581, %v7586
    %v7590 = vadd.f32 %v7582, %v7586
    %v7591 = vld [vmem:[#allocation2 + $0x378] sm:$0xff]
    %v7592 = vld [vmem:[#allocation2 + $0x380] sm:$0xff]
    %v7593 = vld [vmem:[#allocation2 + $0x388] sm:$0xff]
    %v7594 = vld [vmem:[#allocation2 + $0x390] sm:$0xff]
    %v7595 = vld [vmem:[#allocation2 + $0x398] sm:$0x1]
    %v7596 = vlaneseq
    %v7597 = vshrl.u32 %v7596, 7
    %v7598 = vsub.s32 0, %v7597
    %v7599 = vrot.slane %v7595, %v7598
    %v7601 = vsel %vm354, %v7587, 0
    %v7604 = vsel %vm354, %v7588, 0
    %v7607 = vsel %vm354, %v7589, 0
    %v7610 = vsel %vm354, %v7590, 0
    %7612 = vmatprep.subr.mxu0 0.0
    %7613 = vmatpush1.msra.mxu0 %v7591
    %7614 = vmatprep.subr.mxu0 0.0
    %7615 = vmatpush1.msra.mxu0 %v7592
    %7616 = vmatprep.subr.mxu0 0.0
    %7617 = vmatpush1.msra.mxu0 %v7593
    %7618 = vmatprep.subr.mxu0 0.0
    %7619 = vmatpush1.msra.mxu0 %v7594
    %7620 = vmatprep.subr.mxu0 0.0
    %7621 = vmatpush1.msra.mxu0 0.0
    %7622 = vmatprep.subr.mxu0 0.0
    %7623 = vmatpush1.msra.mxu0 0.0
    %7624 = vmatprep.subr.mxu0 0.0
    %7625 = vmatpush1.msra.mxu0 0.0
    %7626 = vmatprep.subr.mxu0 0.0
    %7627 = vmatpush1.msra.mxu0 0.0
    %7628 = vmatprep.subr.mxu0 0.0
    %7629 = vmatpush1.msra.mxu0 0.0
    %7630 = vmatprep.subr.mxu0 0.0
    %7631 = vmatpush1.msra.mxu0 0.0
    %7632 = vmatprep.subr.mxu0 0.0
    %7633 = vmatpush1.msra.mxu0 0.0
    %7634 = vmatprep.subr.mxu0 0.0
    %7635 = vmatpush1.msra.mxu0 0.0
    %7636 = vmatprep.subr.mxu0 0.0
    %7637 = vmatpush1.msra.mxu0 0.0
    %7638 = vmatprep.subr.mxu0 0.0
    %7639 = vmatpush1.msra.mxu0 0.0
    %7640 = vmatprep.subr.mxu0 0.0
    %7641 = vmatpush1.msra.mxu0 0.0
    %7642 = vmatprep.subr.mxu0 0.0
    %7643 = vmatpush1.msra.mxu0 0.0
    %7644 = vmatprep.subr.mxu0 0.0
    %7645 = vmatpush1.msra.mxu0 0.0
    %7646 = vmatprep.subr.mxu0 0.0
    %7647 = vmatpush1.msra.mxu0 0.0
    %7648 = vmatprep.subr.mxu0 0.0
    %7649 = vmatpush1.msra.mxu0 0.0
    %7650 = vmatprep.subr.mxu0 0.0
    %7651 = vmatpush1.msra.mxu0 0.0
    %7652 = vmatprep.subr.mxu0 0.0
    %7653 = vmatpush1.msra.mxu0 0.0
    %7654 = vmatprep.subr.mxu0 0.0
    %7655 = vmatpush1.msra.mxu0 0.0
    %7656 = vmatprep.subr.mxu0 0.0
    %7657 = vmatpush1.msra.mxu0 0.0
    %7658 = vmatprep.subr.mxu0 0.0
    %7659 = vmatpush1.msra.mxu0 0.0
    %7660 = vmatprep.subr.mxu0 0.0
    %7661 = vmatpush1.msra.mxu0 0.0
    %7662 = vmatprep.subr.mxu0 0.0
    %7663 = vmatpush1.msra.mxu0 0.0
    %7664 = vmatprep.subr.mxu0 0.0
    %7665 = vmatpush1.msra.mxu0 0.0
    %7666 = vmatprep.subr.mxu0 0.0
    %7667 = vmatpush1.msra.mxu0 0.0
    %7668 = vmatprep.subr.mxu0 0.0
    %7669 = vmatpush1.msra.mxu0 0.0
    %7670 = vmatprep.subr.mxu0 0.0
    %7671 = vmatpush1.msra.mxu0 0.0
    %7672 = vmatprep.subr.mxu0 0.0
    %7673 = vmatpush1.msra.mxu0 0.0
    %7674 = vmatprep.subr.mxu0 0.0
    %7675 = vmatpush1.msra.mxu0 0.0
    %7676 = vmatprep.mubr.f32.mxu0 0.0
    %7677 = vmatmul.mubr.f32.gmra.mrb[0].mxu0 %v7601
    %v7678 = vpop.f32.mrb[0].mxu0
    %v7679 = vadd.f32 %v7599, %v7678
    %v7680 = vpop.f32.mrb[0].mxu0
    %7681 = vmatprep.mubr.f32.mxu0 0.0
    %7682 = vmatmul.mubr.f32.gmra.mrb[0].mxu0 %v7604
    %v7683 = vpop.f32.mrb[0].mxu0
    %v7684 = vadd.f32 %v7599, %v7683
    %v7685 = vpop.f32.mrb[0].mxu0
    %7686 = vmatprep.mubr.f32.mxu0 0.0
    %7687 = vmatmul.mubr.f32.gmra.mrb[0].mxu0 %v7607
    %v7688 = vpop.f32.mrb[0].mxu0
    %v7689 = vadd.f32 %v7599, %v7688
    %v7690 = vpop.f32.mrb[0].mxu0
    %7691 = vmatprep.mubr.f32.mxu0 0.0
    %7692 = vmatmul.mubr.f32.gmra.mrb[0].mxu0 %v7610
    %v7693 = vpop.f32.mrb[0].mxu0
    %v7694 = vadd.f32 %v7599, %v7693
    %v7695 = vpop.f32.mrb[0].mxu0
    %7696 = vdwg.mxu0
    %7697 = vst [vmem:[%s5] sm:$0xff] %v7679
    %7698 = vst [vmem:[%s5 + $0x8] sm:$0xff] %v7684
    %7699 = vst [vmem:[%s5 + $0x10] sm:$0xff] %v7689
    %7700 = vst [vmem:[%s5 + $0x18] sm:$0xff] %v7694
    // Predicated region
    $region26: #{forward.1} parent=1 // pred_check
      _
    $region27: #{forward.1} parent=1 // pred_check_branch
      %7702 = sbr.rel (0) target = $region29
    $region28: #{forward.1} parent=1 // pred_region
      _
    $region29: #{forward.1} parent=1 // pred_fallthru
      _
    // Predicated region
    $region30: #{forward.1} parent=1 // pred_check
      _
    $region31: #{forward.1} parent=1 // pred_check_branch
      %7704 = sbr.rel (0) target = $region33
    $region32: #{forward.1} parent=1 // pred_region
      _
    $region33: #{forward.1} parent=1 // pred_fallthru
      _
    %7705 = vsyncpa [#allocation3], 1

</llo_original>
